<compile_context>
chip_gen: v6e
topology: v6e:2x2x1
jax: 0.10.0
libtpu: 0.0.40
codegen_flags: <defaults>
</compile_context>

<pallas_src>
import functools

import numpy as np

import jax
import jax.numpy as jnp
from jax import lax
from jax.experimental import pallas as pl
from jax.experimental.pallas import tpu as pltpu

BN_EPS = 1e-5
BT = 8          # images per grid step (multiple of 8 keeps every row slice
                # inside the kernel sublane-aligned)


# ----------------------------------------------------------------------------
# Fused Pallas kernel: conv1+bn+relu+pool -> conv2+bn+relu+pool -> FC head
# ----------------------------------------------------------------------------
def _mnist_fused_kernel(x_ref, m1_ref, s1_ref, t1_ref, m2_ref, s2_ref, t2_ref,
                        wb1_ref, s3_ref, t3_ref, w2_ref, s4_ref, t4_ref,
                        w3_ref, b5_ref, o_ref, *, bt):
    f32 = jnp.float32
    bf16 = jnp.bfloat16

    # ---- Stage 1: conv1 (banded matmuls) + BN + ReLU + 2x2 maxpool ---------
    # x_ref[s]         : (6*bt, 28)  rows = (r2, b), = input row 4*r2 + s
    # m1_ref[di]       : (28, 768)   cols = (pj, c, co), band implements the
    #                                 W-direction of the 5x5 conv + W-parity
    # acc class m1c = conv1-output-row mod 4; pooling = max over parities.
    s1 = s1_ref[...]
    t1 = t1_ref[...]
    p1 = []                                           # per pooled-row parity
    for qh in range(2):
        aff = []
        for pi in range(2):
            m1c = 2 * qh + pi
            acc = jnp.dot(x_ref[m1c], m1_ref[0], preferred_element_type=f32)
            for di in range(1, 5):
                acc = acc + jnp.dot(x_ref[m1c + di], m1_ref[di],
                                    preferred_element_type=f32)
            aff.append(acc * s1 + t1)                 # folded conv-bias + BN
        m = jnp.maximum(aff[0], aff[1])               # pool over row parity
        m = jnp.maximum(m[:, :384], m[:, 384:])       # pool over col parity
        p1.append(jnp.maximum(m, 0.0))                # ReLU; (6*bt, 384) f32

    # ---- Stage 2: conv2 (banded matmuls) + BN + Dropout2d(eval) + ReLU + pool
    # p1[qh] rows = (r2, b); lhs slices are sublane-aligned (offsets k*bt).
    s2 = s2_ref[...]
    t2 = t2_ref[...]
    aff2 = []
    for pio in range(2):                              # conv2 output-row parity
        acc = None
        for di in range(5):
            qh = (pio + di) % 2
            oh = (pio + di) // 2
            lhs = p1[qh][oh * bt:(oh + 4) * bt, :].astype(bf16)   # (4*bt, 384)
            d = jnp.dot(lhs, m2_ref[di], preferred_element_type=f32)
            acc = d if acc is None else acc + d
        aff2.append(acc * s2 + t2)
    m = jnp.maximum(aff2[0], aff2[1])                 # pool over row parity
    m = jnp.maximum(m[:, :256], m[:, 256:])           # pool over col parity
    p2 = jnp.maximum(m, 0.0)                          # (4*bt, 256) f32

    # ---- Classifier: (Linear+BN+ReLU) x2 + Linear, all resident in VMEM ----
    # FC1 contracts the pooled (h, w, c) features as 4 accumulated matmuls
    # (one per spatial row), so no transpose/relayout is needed.
    h = None
    for r3 in range(4):
        lhs = p2[r3 * bt:(r3 + 1) * bt, :].astype(bf16)           # (bt, 256)
        d = jnp.dot(lhs, wb1_ref[r3], preferred_element_type=f32)
        h = d if h is None else h + d
    h = jnp.maximum(h * s3_ref[...] + t3_ref[...], 0.0).astype(bf16)
    h = jnp.dot(h, w2_ref[...], preferred_element_type=f32)
    h = jnp.maximum(h * s4_ref[...] + t4_ref[...], 0.0).astype(bf16)
    h = jnp.dot(h, w3_ref[...], preferred_element_type=f32)
    o_ref[...] = h + b5_ref[...]                      # (bt, 128) f32 logits


# ----------------------------------------------------------------------------
# One-time parameter packing (hoisted out of the jitted forward)
# ----------------------------------------------------------------------------
def _fold_bn(bias, g, b, m, v):
    scale = g / np.sqrt(v + BN_EPS)
    shift = b + (bias - m) * scale
    return scale, shift


def prepare_params(params, wdtype=jnp.bfloat16):
    """Fold BN, build banded conv matrices / blocked FC weights, pad to lanes."""
    p = {k: np.asarray(v, np.float32) for k, v in params.items()}

    # conv1: M1[di] (28, 768); columns = pj*384 + c*32 + co, j = 2c+pj
    w1 = p["c1_w"]                                        # (32, 1, 5, 5)
    M1 = np.zeros((5, 28, 2, 12, 32), np.float32)
    for di in range(5):
        for pj in range(2):
            for c in range(12):
                j = 2 * c + pj
                for dj in range(5):
                    M1[di, j + dj, pj, c, :] = w1[:, 0, di, dj]
    M1 = M1.reshape(5, 28, 768)
    sc1, sh1 = _fold_bn(p["c1_b"], p["bn1_g"], p["bn1_b"], p["bn1_m"], p["bn1_v"])
    s1 = np.tile(sc1, 24).reshape(1, 768)
    t1 = np.tile(sh1, 24).reshape(1, 768)

    # conv2: M2[di] (384, 512); rows = c*32+ci, cols = pjo*256 + c4*64 + co(<48)
    w2 = p["c2_w"]                                        # (48, 32, 5, 5)
    M2 = np.zeros((5, 12, 32, 2, 4, 64), np.float32)
    for di in range(5):
        for pjo in range(2):
            for c4 in range(4):
                jo = 2 * c4 + pjo
                for dj in range(5):
                    M2[di, jo + dj, :, pjo, c4, :48] = w2[:, :, di, dj].T
    M2 = M2.reshape(5, 384, 512)
    sc2, sh2 = _fold_bn(p["c2_b"], p["bn2_g"], p["bn2_b"], p["bn2_m"], p["bn2_v"])
    s2 = np.zeros((1, 2, 4, 64), np.float32)
    t2 = np.zeros((1, 2, 4, 64), np.float32)
    s2[0, :, :, :48] = sc2
    t2[0, :, :, :48] = sh2
    s2 = s2.reshape(1, 512)
    t2 = t2.reshape(1, 512)

    # FC1 as 4 per-spatial-row blocks, matching torch's (c,h,w) flatten order.
    f1 = p["f1_w"]                                        # (768, 100)
    Wb1 = np.zeros((4, 4, 64, 128), np.float32)           # [h, w, c_pad, unit]
    for r3 in range(4):
        for c4 in range(4):
            for co in range(48):
                Wb1[r3, c4, co, :100] = f1[co * 16 + r3 * 4 + c4, :]
    Wb1 = Wb1.reshape(4, 256, 128)
    sc3, sh3 = _fold_bn(p["f1_b"], p["bn3_g"], p["bn3_b"], p["bn3_m"], p["bn3_v"])
    s3 = np.zeros((1, 128), np.float32); s3[0, :100] = sc3
    t3 = np.zeros((1, 128), np.float32); t3[0, :100] = sh3

    W2 = np.zeros((128, 128), np.float32); W2[:100, :100] = p["f2_w"]
    sc4, sh4 = _fold_bn(p["f2_b"], p["bn4_g"], p["bn4_b"], p["bn4_m"], p["bn4_v"])
    s4 = np.zeros((1, 128), np.float32); s4[0, :100] = sc4
    t4 = np.zeros((1, 128), np.float32); t4[0, :100] = sh4

    W3 = np.zeros((128, 128), np.float32); W3[:100, :10] = p["f3_w"]
    b5 = np.zeros((1, 128), np.float32); b5[0, :10] = p["f3_b"]

    return {
        "M1": jnp.asarray(M1, wdtype), "s1": jnp.asarray(s1), "t1": jnp.asarray(t1),
        "M2": jnp.asarray(M2, wdtype), "s2": jnp.asarray(s2), "t2": jnp.asarray(t2),
        "Wb1": jnp.asarray(Wb1, wdtype), "s3": jnp.asarray(s3), "t3": jnp.asarray(t3),
        "W2": jnp.asarray(W2, wdtype), "s4": jnp.asarray(s4), "t4": jnp.asarray(t4),
        "W3": jnp.asarray(W3, wdtype), "b5": jnp.asarray(b5),
    }


# ----------------------------------------------------------------------------
# Forward pass
# ----------------------------------------------------------------------------
def _const(shape):
    return pl.BlockSpec(shape, lambda i: (0,) * len(shape))


def mnist_forward(prepped, x):
    """x: (B, 1, 28, 28) f32 NCHW -> logits (B, 10) f32 (eval-mode forward)."""
    assert x.shape[1:] == (1, 28, 28)
    B = x.shape[0]
    bt = BT
    b_pad = ((B + bt - 1) // bt) * bt
    nb = b_pad // bt

    # Tiny XLA-side input prep: pad batch, split rows by (row mod 4) phase so
    # every conv1 matmul operand is a direct leading-dim index inside the kernel.
    x2 = x.reshape(B, 28, 28)
    if b_pad != B:
        x2 = jnp.pad(x2, ((0, b_pad - B), (0, 0), (0, 0)))
    x2 = x2.reshape(nb, bt, 28, 28)
    slabs = []
    for s in range(8):      # xprep[ib, s, r2*bt + b, :] = x[ib*bt + b, 4*r2 + s, :]
        sl = x2[:, :, s::4, :][:, :, :6, :]                         # (nb, bt, 6, 28)
        slabs.append(jnp.transpose(sl, (0, 2, 1, 3)).reshape(nb, 6 * bt, 28))
    xprep = jnp.stack(slabs, axis=1).astype(jnp.bfloat16)           # (nb, 8, 6bt, 28)

    kernel = functools.partial(_mnist_fused_kernel, bt=bt)
    out = pl.pallas_call(
        kernel,
        out_shape=jax.ShapeDtypeStruct((b_pad, 128), jnp.float32),
        grid=(nb,),
        in_specs=[
            pl.BlockSpec((None, 8, 6 * bt, 28), lambda i: (i, 0, 0, 0)),
            _const((5, 28, 768)), _const((1, 768)), _const((1, 768)),
            _const((5, 384, 512)), _const((1, 512)), _const((1, 512)),
            _const((4, 256, 128)), _const((1, 128)), _const((1, 128)),
            _const((128, 128)), _const((1, 128)), _const((1, 128)),
            _const((128, 128)), _const((1, 128)),
        ],
        out_specs=pl.BlockSpec((bt, 128), lambda i: (i, 0)),
        compiler_params=pltpu.CompilerParams(
            dimension_semantics=("parallel",),
            vmem_limit_bytes=32 * 1024 * 1024),
    )(xprep,
      prepped["M1"], prepped["s1"], prepped["t1"],
      prepped["M2"], prepped["s2"], prepped["t2"],
      prepped["Wb1"], prepped["s3"], prepped["t3"],
      prepped["W2"], prepped["s4"], prepped["t4"],
      prepped["W3"], prepped["b5"])
    return out[:B, :10]


# ----------------------------------------------------------------------------
# Pure-JAX reference (eval mode) and parameter init
# ----------------------------------------------------------------------------
def reference_forward(params, x):
    p = params

    def bn2d(z, g, b, m, v):
        s = g / jnp.sqrt(v + BN_EPS)
        return z * s[None, :, None, None] + (b - m * s)[None, :, None, None]

    def bn1d(z, g, b, m, v):
        s = g / jnp.sqrt(v + BN_EPS)
        return z * s + (b - m * s)

    dn = ('NCHW', 'OIHW', 'NCHW')
    y = lax.conv_general_dilated(x, p["c1_w"], (1, 1), 'VALID', dimension_numbers=dn)
    y = y + p["c1_b"][None, :, None, None]
    y = jax.nn.relu(bn2d(y, p["bn1_g"], p["bn1_b"], p["bn1_m"], p["bn1_v"]))
    y = lax.reduce_window(y, -jnp.inf, lax.max, (1, 1, 2, 2), (1, 1, 2, 2), 'VALID')
    y = lax.conv_general_dilated(y, p["c2_w"], (1, 1), 'VALID', dimension_numbers=dn)
    y = y + p["c2_b"][None, :, None, None]
    # Dropout2d: identity in eval mode.
    y = jax.nn.relu(bn2d(y, p["bn2_g"], p["bn2_b"], p["bn2_m"], p["bn2_v"]))
    y = lax.reduce_window(y, -jnp.inf, lax.max, (1, 1, 2, 2), (1, 1, 2, 2), 'VALID')
    f = y.reshape(y.shape[0], -1)
    h = jax.nn.relu(bn1d(f @ p["f1_w"] + p["f1_b"],
                         p["bn3_g"], p["bn3_b"], p["bn3_m"], p["bn3_v"]))
    h = jax.nn.relu(bn1d(h @ p["f2_w"] + p["f2_b"],
                         p["bn4_g"], p["bn4_b"], p["bn4_m"], p["bn4_v"]))
    return h @ p["f3_w"] + p["f3_b"]


def init_params(key):
    def nrm(k, shape, s=0.05):
        return s * jax.random.normal(k, shape, dtype=jnp.float32)

    ks = jax.random.split(key, 26)
    p = {}
    p["c1_w"] = nrm(ks[0], (32, 1, 5, 5));  p["c1_b"] = nrm(ks[1], (32,))
    p["bn1_g"] = 1.0 + nrm(ks[2], (32,));   p["bn1_b"] = nrm(ks[3], (32,))
    p["bn1_m"] = nrm(ks[4], (32,));         p["bn1_v"] = jnp.abs(nrm(ks[5], (32,))) + 1.0
    p["c2_w"] = nrm(ks[6], (48, 32, 5, 5)); p["c2_b"] = nrm(ks[7], (48,))
    p["bn2_g"] = 1.0 + nrm(ks[8], (48,));   p["bn2_b"] = nrm(ks[9], (48,))
    p["bn2_m"] = nrm(ks[10], (48,));        p["bn2_v"] = jnp.abs(nrm(ks[11], (48,))) + 1.0
    p["f1_w"] = nrm(ks[12], (768, 100));    p["f1_b"] = nrm(ks[13], (100,))
    p["bn3_g"] = 1.0 + nrm(ks[14], (100,)); p["bn3_b"] = nrm(ks[15], (100,))
    p["bn3_m"] = nrm(ks[16], (100,));       p["bn3_v"] = jnp.abs(nrm(ks[17], (100,))) + 1.0
    p["f2_w"] = nrm(ks[18], (100, 100));    p["f2_b"] = nrm(ks[19], (100,))
    p["bn4_g"] = 1.0 + nrm(ks[20], (100,)); p["bn4_b"] = nrm(ks[21], (100,))
    p["bn4_m"] = nrm(ks[22], (100,));       p["bn4_v"] = jnp.abs(nrm(ks[23], (100,))) + 1.0
    p["f3_w"] = nrm(ks[24], (100, 10));     p["f3_b"] = nrm(ks[25], (10,))
    return p


if __name__ == "__main__":
    key = jax.random.PRNGKey(0)
    pkey, xkey = jax.random.split(key)
    params = init_params(pkey)
    prepped = prepare_params(params)      # one-time packing, outside the jit
    # MNIST-shaped input (28x28 required so the flatten is exactly 48*4*4).
    x = jax.random.normal(xkey, (2, 1, 28, 28), dtype=jnp.float32)

    out = jax.jit(mnist_forward)(prepped, x)
    jax.block_until_ready(out)
    assert out.shape == (2, 10) and out.dtype == jnp.float32

    # Verify against the pure-JAX f32 reference (bf16 matmul operands => small drift).
    ref = jax.jit(reference_forward)(params, x)
    err = float(jnp.max(jnp.abs(out - ref)))
    assert err < 3e-2, f"mismatch vs reference: max abs err = {err}"
    print("KERNEL_OK")
</pallas_src>

<mosaic_0001>
module attributes {stable_mosaic.version = 11 : i64} {
  func.func @_mnist_fused_kernel(%arg0: i32, %arg1: memref<1x8x48x28xbf16, #tpu.memory_space<vmem>>, %arg2: memref<5x28x768xbf16, #tpu.memory_space<vmem>>, %arg3: memref<1x768xf32, #tpu.memory_space<vmem>>, %arg4: memref<1x768xf32, #tpu.memory_space<vmem>>, %arg5: memref<5x384x512xbf16, #tpu.memory_space<vmem>>, %arg6: memref<1x512xf32, #tpu.memory_space<vmem>>, %arg7: memref<1x512xf32, #tpu.memory_space<vmem>>, %arg8: memref<4x256x128xbf16, #tpu.memory_space<vmem>>, %arg9: memref<1x128xf32, #tpu.memory_space<vmem>>, %arg10: memref<1x128xf32, #tpu.memory_space<vmem>>, %arg11: memref<128x128xbf16, #tpu.memory_space<vmem>>, %arg12: memref<1x128xf32, #tpu.memory_space<vmem>>, %arg13: memref<1x128xf32, #tpu.memory_space<vmem>>, %arg14: memref<128x128xbf16, #tpu.memory_space<vmem>>, %arg15: memref<1x128xf32, #tpu.memory_space<vmem>>, %arg16: memref<8x128xf32, #tpu.memory_space<vmem>>) attributes {dimension_semantics = [#tpu.dimension_semantics<parallel>], iteration_bounds = array<i64: 1>, scalar_prefetch = 0 : i64, scratch_operands = 0 : i64, tpu.core_type = #tpu.core_type<tc>, window_params = [{transform_indices = @transform_0, window_bounds = array<i64: 1, 8, 48, 28>}, {pipeline_mode = #tpu.pipeline_mode<synchronous>, transform_indices = @transform_1, window_bounds = array<i64: 5, 28, 768>}, {pipeline_mode = #tpu.pipeline_mode<synchronous>, transform_indices = @transform_2, window_bounds = array<i64: 1, 768>}, {pipeline_mode = #tpu.pipeline_mode<synchronous>, transform_indices = @transform_3, window_bounds = array<i64: 1, 768>}, {pipeline_mode = #tpu.pipeline_mode<synchronous>, transform_indices = @transform_4, window_bounds = array<i64: 5, 384, 512>}, {pipeline_mode = #tpu.pipeline_mode<synchronous>, transform_indices = @transform_5, window_bounds = array<i64: 1, 512>}, {pipeline_mode = #tpu.pipeline_mode<synchronous>, transform_indices = @transform_6, window_bounds = array<i64: 1, 512>}, {pipeline_mode = #tpu.pipeline_mode<synchronous>, transform_indices = @transform_7, window_bounds = array<i64: 4, 256, 128>}, {pipeline_mode = #tpu.pipeline_mode<synchronous>, transform_indices = @transform_8, window_bounds = array<i64: 1, 128>}, {pipeline_mode = #tpu.pipeline_mode<synchronous>, transform_indices = @transform_9, window_bounds = array<i64: 1, 128>}, {pipeline_mode = #tpu.pipeline_mode<synchronous>, transform_indices = @transform_10, window_bounds = array<i64: 128, 128>}, {pipeline_mode = #tpu.pipeline_mode<synchronous>, transform_indices = @transform_11, window_bounds = array<i64: 1, 128>}, {pipeline_mode = #tpu.pipeline_mode<synchronous>, transform_indices = @transform_12, window_bounds = array<i64: 1, 128>}, {pipeline_mode = #tpu.pipeline_mode<synchronous>, transform_indices = @transform_13, window_bounds = array<i64: 128, 128>}, {pipeline_mode = #tpu.pipeline_mode<synchronous>, transform_indices = @transform_14, window_bounds = array<i64: 1, 128>}, {transform_indices = @transform_15, window_bounds = array<i64: 8, 128>}]} {
    %c0 = arith.constant 0 : index
    %c0_0 = arith.constant 0 : index
    %0 = vector.load %arg3[%c0, %c0_0] : memref<1x768xf32, #tpu.memory_space<vmem>>, vector<1x768xf32>
    %c0_1 = arith.constant 0 : index
    %c0_2 = arith.constant 0 : index
    %1 = vector.load %arg4[%c0_1, %c0_2] : memref<1x768xf32, #tpu.memory_space<vmem>>, vector<1x768xf32>
    %c0_3 = arith.constant 0 : index
    %c0_4 = arith.constant 0 : index
    %c0_5 = arith.constant 0 : index
    %c0_6 = arith.constant 0 : index
    %2 = vector.load %arg1[%c0_3, %c0_4, %c0_5, %c0_6] : memref<1x8x48x28xbf16, #tpu.memory_space<vmem>>, vector<1x1x48x28xbf16>
    %3 = vector.shape_cast %2 : vector<1x1x48x28xbf16> to vector<48x28xbf16>
    %c0_7 = arith.constant 0 : index
    %c0_8 = arith.constant 0 : index
    %c0_9 = arith.constant 0 : index
    %4 = vector.load %arg2[%c0_7, %c0_8, %c0_9] : memref<5x28x768xbf16, #tpu.memory_space<vmem>>, vector<1x28x768xbf16>
    %5 = vector.shape_cast %4 : vector<1x28x768xbf16> to vector<28x768xbf16>
    %cst = arith.constant dense<0.000000e+00> : vector<48x768xf32>
    %6 = tpu.matmul %3, %5, %cst {dimension_numbers = #tpu.dot_dimension_numbers<[1], [0], [0], [1], [0, 0, 1, 1], [], []>} : vector<48x28xbf16>, vector<28x768xbf16>, vector<48x768xf32> -> vector<48x768xf32>
    %c0_10 = arith.constant 0 : index
    %c1 = arith.constant 1 : index
    %c0_11 = arith.constant 0 : index
    %c0_12 = arith.constant 0 : index
    %7 = vector.load %arg1[%c0_10, %c1, %c0_11, %c0_12] : memref<1x8x48x28xbf16, #tpu.memory_space<vmem>>, vector<1x1x48x28xbf16>
    %8 = vector.shape_cast %7 : vector<1x1x48x28xbf16> to vector<48x28xbf16>
    %c1_13 = arith.constant 1 : index
    %c0_14 = arith.constant 0 : index
    %c0_15 = arith.constant 0 : index
    %9 = vector.load %arg2[%c1_13, %c0_14, %c0_15] : memref<5x28x768xbf16, #tpu.memory_space<vmem>>, vector<1x28x768xbf16>
    %10 = vector.shape_cast %9 : vector<1x28x768xbf16> to vector<28x768xbf16>
    %cst_16 = arith.constant dense<0.000000e+00> : vector<48x768xf32>
    %11 = tpu.matmul %8, %10, %cst_16 {dimension_numbers = #tpu.dot_dimension_numbers<[1], [0], [0], [1], [0, 0, 1, 1], [], []>} : vector<48x28xbf16>, vector<28x768xbf16>, vector<48x768xf32> -> vector<48x768xf32>
    %12 = arith.addf %6, %11 : vector<48x768xf32>
    %c0_17 = arith.constant 0 : index
    %c2 = arith.constant 2 : index
    %c0_18 = arith.constant 0 : index
    %c0_19 = arith.constant 0 : index
    %13 = vector.load %arg1[%c0_17, %c2, %c0_18, %c0_19] : memref<1x8x48x28xbf16, #tpu.memory_space<vmem>>, vector<1x1x48x28xbf16>
    %14 = vector.shape_cast %13 : vector<1x1x48x28xbf16> to vector<48x28xbf16>
    %c2_20 = arith.constant 2 : index
    %c0_21 = arith.constant 0 : index
    %c0_22 = arith.constant 0 : index
    %15 = vector.load %arg2[%c2_20, %c0_21, %c0_22] : memref<5x28x768xbf16, #tpu.memory_space<vmem>>, vector<1x28x768xbf16>
    %16 = vector.shape_cast %15 : vector<1x28x768xbf16> to vector<28x768xbf16>
    %cst_23 = arith.constant dense<0.000000e+00> : vector<48x768xf32>
    %17 = tpu.matmul %14, %16, %cst_23 {dimension_numbers = #tpu.dot_dimension_numbers<[1], [0], [0], [1], [0, 0, 1, 1], [], []>} : vector<48x28xbf16>, vector<28x768xbf16>, vector<48x768xf32> -> vector<48x768xf32>
    %18 = arith.addf %12, %17 : vector<48x768xf32>
    %c0_24 = arith.constant 0 : index
    %c3 = arith.constant 3 : index
    %c0_25 = arith.constant 0 : index
    %c0_26 = arith.constant 0 : index
    %19 = vector.load %arg1[%c0_24, %c3, %c0_25, %c0_26] : memref<1x8x48x28xbf16, #tpu.memory_space<vmem>>, vector<1x1x48x28xbf16>
    %20 = vector.shape_cast %19 : vector<1x1x48x28xbf16> to vector<48x28xbf16>
    %c3_27 = arith.constant 3 : index
    %c0_28 = arith.constant 0 : index
    %c0_29 = arith.constant 0 : index
    %21 = vector.load %arg2[%c3_27, %c0_28, %c0_29] : memref<5x28x768xbf16, #tpu.memory_space<vmem>>, vector<1x28x768xbf16>
    %22 = vector.shape_cast %21 : vector<1x28x768xbf16> to vector<28x768xbf16>
    %cst_30 = arith.constant dense<0.000000e+00> : vector<48x768xf32>
    %23 = tpu.matmul %20, %22, %cst_30 {dimension_numbers = #tpu.dot_dimension_numbers<[1], [0], [0], [1], [0, 0, 1, 1], [], []>} : vector<48x28xbf16>, vector<28x768xbf16>, vector<48x768xf32> -> vector<48x768xf32>
    %24 = arith.addf %18, %23 : vector<48x768xf32>
    %c0_31 = arith.constant 0 : index
    %c4 = arith.constant 4 : index
    %c0_32 = arith.constant 0 : index
    %c0_33 = arith.constant 0 : index
    %25 = vector.load %arg1[%c0_31, %c4, %c0_32, %c0_33] : memref<1x8x48x28xbf16, #tpu.memory_space<vmem>>, vector<1x1x48x28xbf16>
    %26 = vector.shape_cast %25 : vector<1x1x48x28xbf16> to vector<48x28xbf16>
    %c4_34 = arith.constant 4 : index
    %c0_35 = arith.constant 0 : index
    %c0_36 = arith.constant 0 : index
    %27 = vector.load %arg2[%c4_34, %c0_35, %c0_36] : memref<5x28x768xbf16, #tpu.memory_space<vmem>>, vector<1x28x768xbf16>
    %28 = vector.shape_cast %27 : vector<1x28x768xbf16> to vector<28x768xbf16>
    %cst_37 = arith.constant dense<0.000000e+00> : vector<48x768xf32>
    %29 = tpu.matmul %26, %28, %cst_37 {dimension_numbers = #tpu.dot_dimension_numbers<[1], [0], [0], [1], [0, 0, 1, 1], [], []>} : vector<48x28xbf16>, vector<28x768xbf16>, vector<48x768xf32> -> vector<48x768xf32>
    %30 = arith.addf %24, %29 : vector<48x768xf32>
    %31 = vector.broadcast %0 : vector<1x768xf32> to vector<48x768xf32>
    %32 = arith.mulf %30, %31 : vector<48x768xf32>
    %33 = vector.broadcast %1 : vector<1x768xf32> to vector<48x768xf32>
    %34 = arith.addf %32, %33 : vector<48x768xf32>
    %c0_38 = arith.constant 0 : index
    %c1_39 = arith.constant 1 : index
    %c0_40 = arith.constant 0 : index
    %c0_41 = arith.constant 0 : index
    %35 = vector.load %arg1[%c0_38, %c1_39, %c0_40, %c0_41] : memref<1x8x48x28xbf16, #tpu.memory_space<vmem>>, vector<1x1x48x28xbf16>
    %36 = vector.shape_cast %35 : vector<1x1x48x28xbf16> to vector<48x28xbf16>
    %c0_42 = arith.constant 0 : index
    %c0_43 = arith.constant 0 : index
    %c0_44 = arith.constant 0 : index
    %37 = vector.load %arg2[%c0_42, %c0_43, %c0_44] : memref<5x28x768xbf16, #tpu.memory_space<vmem>>, vector<1x28x768xbf16>
    %38 = vector.shape_cast %37 : vector<1x28x768xbf16> to vector<28x768xbf16>
    %cst_45 = arith.constant dense<0.000000e+00> : vector<48x768xf32>
    %39 = tpu.matmul %36, %38, %cst_45 {dimension_numbers = #tpu.dot_dimension_numbers<[1], [0], [0], [1], [0, 0, 1, 1], [], []>} : vector<48x28xbf16>, vector<28x768xbf16>, vector<48x768xf32> -> vector<48x768xf32>
    %c0_46 = arith.constant 0 : index
    %c2_47 = arith.constant 2 : index
    %c0_48 = arith.constant 0 : index
    %c0_49 = arith.constant 0 : index
    %40 = vector.load %arg1[%c0_46, %c2_47, %c0_48, %c0_49] : memref<1x8x48x28xbf16, #tpu.memory_space<vmem>>, vector<1x1x48x28xbf16>
    %41 = vector.shape_cast %40 : vector<1x1x48x28xbf16> to vector<48x28xbf16>
    %c1_50 = arith.constant 1 : index
    %c0_51 = arith.constant 0 : index
    %c0_52 = arith.constant 0 : index
    %42 = vector.load %arg2[%c1_50, %c0_51, %c0_52] : memref<5x28x768xbf16, #tpu.memory_space<vmem>>, vector<1x28x768xbf16>
    %43 = vector.shape_cast %42 : vector<1x28x768xbf16> to vector<28x768xbf16>
    %cst_53 = arith.constant dense<0.000000e+00> : vector<48x768xf32>
    %44 = tpu.matmul %41, %43, %cst_53 {dimension_numbers = #tpu.dot_dimension_numbers<[1], [0], [0], [1], [0, 0, 1, 1], [], []>} : vector<48x28xbf16>, vector<28x768xbf16>, vector<48x768xf32> -> vector<48x768xf32>
    %45 = arith.addf %39, %44 : vector<48x768xf32>
    %c0_54 = arith.constant 0 : index
    %c3_55 = arith.constant 3 : index
    %c0_56 = arith.constant 0 : index
    %c0_57 = arith.constant 0 : index
    %46 = vector.load %arg1[%c0_54, %c3_55, %c0_56, %c0_57] : memref<1x8x48x28xbf16, #tpu.memory_space<vmem>>, vector<1x1x48x28xbf16>
    %47 = vector.shape_cast %46 : vector<1x1x48x28xbf16> to vector<48x28xbf16>
    %c2_58 = arith.constant 2 : index
    %c0_59 = arith.constant 0 : index
    %c0_60 = arith.constant 0 : index
    %48 = vector.load %arg2[%c2_58, %c0_59, %c0_60] : memref<5x28x768xbf16, #tpu.memory_space<vmem>>, vector<1x28x768xbf16>
    %49 = vector.shape_cast %48 : vector<1x28x768xbf16> to vector<28x768xbf16>
    %cst_61 = arith.constant dense<0.000000e+00> : vector<48x768xf32>
    %50 = tpu.matmul %47, %49, %cst_61 {dimension_numbers = #tpu.dot_dimension_numbers<[1], [0], [0], [1], [0, 0, 1, 1], [], []>} : vector<48x28xbf16>, vector<28x768xbf16>, vector<48x768xf32> -> vector<48x768xf32>
    %51 = arith.addf %45, %50 : vector<48x768xf32>
    %c0_62 = arith.constant 0 : index
    %c4_63 = arith.constant 4 : index
    %c0_64 = arith.constant 0 : index
    %c0_65 = arith.constant 0 : index
    %52 = vector.load %arg1[%c0_62, %c4_63, %c0_64, %c0_65] : memref<1x8x48x28xbf16, #tpu.memory_space<vmem>>, vector<1x1x48x28xbf16>
    %53 = vector.shape_cast %52 : vector<1x1x48x28xbf16> to vector<48x28xbf16>
    %c3_66 = arith.constant 3 : index
    %c0_67 = arith.constant 0 : index
    %c0_68 = arith.constant 0 : index
    %54 = vector.load %arg2[%c3_66, %c0_67, %c0_68] : memref<5x28x768xbf16, #tpu.memory_space<vmem>>, vector<1x28x768xbf16>
    %55 = vector.shape_cast %54 : vector<1x28x768xbf16> to vector<28x768xbf16>
    %cst_69 = arith.constant dense<0.000000e+00> : vector<48x768xf32>
    %56 = tpu.matmul %53, %55, %cst_69 {dimension_numbers = #tpu.dot_dimension_numbers<[1], [0], [0], [1], [0, 0, 1, 1], [], []>} : vector<48x28xbf16>, vector<28x768xbf16>, vector<48x768xf32> -> vector<48x768xf32>
    %57 = arith.addf %51, %56 : vector<48x768xf32>
    %c0_70 = arith.constant 0 : index
    %c5 = arith.constant 5 : index
    %c0_71 = arith.constant 0 : index
    %c0_72 = arith.constant 0 : index
    %58 = vector.load %arg1[%c0_70, %c5, %c0_71, %c0_72] : memref<1x8x48x28xbf16, #tpu.memory_space<vmem>>, vector<1x1x48x28xbf16>
    %59 = vector.shape_cast %58 : vector<1x1x48x28xbf16> to vector<48x28xbf16>
    %c4_73 = arith.constant 4 : index
    %c0_74 = arith.constant 0 : index
    %c0_75 = arith.constant 0 : index
    %60 = vector.load %arg2[%c4_73, %c0_74, %c0_75] : memref<5x28x768xbf16, #tpu.memory_space<vmem>>, vector<1x28x768xbf16>
    %61 = vector.shape_cast %60 : vector<1x28x768xbf16> to vector<28x768xbf16>
    %cst_76 = arith.constant dense<0.000000e+00> : vector<48x768xf32>
    %62 = tpu.matmul %59, %61, %cst_76 {dimension_numbers = #tpu.dot_dimension_numbers<[1], [0], [0], [1], [0, 0, 1, 1], [], []>} : vector<48x28xbf16>, vector<28x768xbf16>, vector<48x768xf32> -> vector<48x768xf32>
    %63 = arith.addf %57, %62 : vector<48x768xf32>
    %64 = vector.broadcast %0 : vector<1x768xf32> to vector<48x768xf32>
    %65 = arith.mulf %63, %64 : vector<48x768xf32>
    %66 = vector.broadcast %1 : vector<1x768xf32> to vector<48x768xf32>
    %67 = arith.addf %65, %66 : vector<48x768xf32>
    %68 = arith.maximumf %34, %67 : vector<48x768xf32>
    %69 = vector.extract_strided_slice %68 {offsets = [0, 0], sizes = [48, 384], strides = [1, 1]} : vector<48x768xf32> to vector<48x384xf32>
    %70 = vector.extract_strided_slice %68 {offsets = [0, 384], sizes = [48, 384], strides = [1, 1]} : vector<48x768xf32> to vector<48x384xf32>
    %71 = arith.maximumf %69, %70 : vector<48x384xf32>
    %cst_77 = arith.constant 0.000000e+00 : f32
    %72 = vector.broadcast %cst_77 : f32 to vector<48x384xf32>
    %73 = arith.maximumf %71, %72 : vector<48x384xf32>
    %c0_78 = arith.constant 0 : index
    %c2_79 = arith.constant 2 : index
    %c0_80 = arith.constant 0 : index
    %c0_81 = arith.constant 0 : index
    %74 = vector.load %arg1[%c0_78, %c2_79, %c0_80, %c0_81] : memref<1x8x48x28xbf16, #tpu.memory_space<vmem>>, vector<1x1x48x28xbf16>
    %75 = vector.shape_cast %74 : vector<1x1x48x28xbf16> to vector<48x28xbf16>
    %c0_82 = arith.constant 0 : index
    %c0_83 = arith.constant 0 : index
    %c0_84 = arith.constant 0 : index
    %76 = vector.load %arg2[%c0_82, %c0_83, %c0_84] : memref<5x28x768xbf16, #tpu.memory_space<vmem>>, vector<1x28x768xbf16>
    %77 = vector.shape_cast %76 : vector<1x28x768xbf16> to vector<28x768xbf16>
    %cst_85 = arith.constant dense<0.000000e+00> : vector<48x768xf32>
    %78 = tpu.matmul %75, %77, %cst_85 {dimension_numbers = #tpu.dot_dimension_numbers<[1], [0], [0], [1], [0, 0, 1, 1], [], []>} : vector<48x28xbf16>, vector<28x768xbf16>, vector<48x768xf32> -> vector<48x768xf32>
    %c0_86 = arith.constant 0 : index
    %c3_87 = arith.constant 3 : index
    %c0_88 = arith.constant 0 : index
    %c0_89 = arith.constant 0 : index
    %79 = vector.load %arg1[%c0_86, %c3_87, %c0_88, %c0_89] : memref<1x8x48x28xbf16, #tpu.memory_space<vmem>>, vector<1x1x48x28xbf16>
    %80 = vector.shape_cast %79 : vector<1x1x48x28xbf16> to vector<48x28xbf16>
    %c1_90 = arith.constant 1 : index
    %c0_91 = arith.constant 0 : index
    %c0_92 = arith.constant 0 : index
    %81 = vector.load %arg2[%c1_90, %c0_91, %c0_92] : memref<5x28x768xbf16, #tpu.memory_space<vmem>>, vector<1x28x768xbf16>
    %82 = vector.shape_cast %81 : vector<1x28x768xbf16> to vector<28x768xbf16>
    %cst_93 = arith.constant dense<0.000000e+00> : vector<48x768xf32>
    %83 = tpu.matmul %80, %82, %cst_93 {dimension_numbers = #tpu.dot_dimension_numbers<[1], [0], [0], [1], [0, 0, 1, 1], [], []>} : vector<48x28xbf16>, vector<28x768xbf16>, vector<48x768xf32> -> vector<48x768xf32>
    %84 = arith.addf %78, %83 : vector<48x768xf32>
    %c0_94 = arith.constant 0 : index
    %c4_95 = arith.constant 4 : index
    %c0_96 = arith.constant 0 : index
    %c0_97 = arith.constant 0 : index
    %85 = vector.load %arg1[%c0_94, %c4_95, %c0_96, %c0_97] : memref<1x8x48x28xbf16, #tpu.memory_space<vmem>>, vector<1x1x48x28xbf16>
    %86 = vector.shape_cast %85 : vector<1x1x48x28xbf16> to vector<48x28xbf16>
    %c2_98 = arith.constant 2 : index
    %c0_99 = arith.constant 0 : index
    %c0_100 = arith.constant 0 : index
    %87 = vector.load %arg2[%c2_98, %c0_99, %c0_100] : memref<5x28x768xbf16, #tpu.memory_space<vmem>>, vector<1x28x768xbf16>
    %88 = vector.shape_cast %87 : vector<1x28x768xbf16> to vector<28x768xbf16>
    %cst_101 = arith.constant dense<0.000000e+00> : vector<48x768xf32>
    %89 = tpu.matmul %86, %88, %cst_101 {dimension_numbers = #tpu.dot_dimension_numbers<[1], [0], [0], [1], [0, 0, 1, 1], [], []>} : vector<48x28xbf16>, vector<28x768xbf16>, vector<48x768xf32> -> vector<48x768xf32>
    %90 = arith.addf %84, %89 : vector<48x768xf32>
    %c0_102 = arith.constant 0 : index
    %c5_103 = arith.constant 5 : index
    %c0_104 = arith.constant 0 : index
    %c0_105 = arith.constant 0 : index
    %91 = vector.load %arg1[%c0_102, %c5_103, %c0_104, %c0_105] : memref<1x8x48x28xbf16, #tpu.memory_space<vmem>>, vector<1x1x48x28xbf16>
    %92 = vector.shape_cast %91 : vector<1x1x48x28xbf16> to vector<48x28xbf16>
    %c3_106 = arith.constant 3 : index
    %c0_107 = arith.constant 0 : index
    %c0_108 = arith.constant 0 : index
    %93 = vector.load %arg2[%c3_106, %c0_107, %c0_108] : memref<5x28x768xbf16, #tpu.memory_space<vmem>>, vector<1x28x768xbf16>
    %94 = vector.shape_cast %93 : vector<1x28x768xbf16> to vector<28x768xbf16>
    %cst_109 = arith.constant dense<0.000000e+00> : vector<48x768xf32>
    %95 = tpu.matmul %92, %94, %cst_109 {dimension_numbers = #tpu.dot_dimension_numbers<[1], [0], [0], [1], [0, 0, 1, 1], [], []>} : vector<48x28xbf16>, vector<28x768xbf16>, vector<48x768xf32> -> vector<48x768xf32>
    %96 = arith.addf %90, %95 : vector<48x768xf32>
    %c0_110 = arith.constant 0 : index
    %c6 = arith.constant 6 : index
    %c0_111 = arith.constant 0 : index
    %c0_112 = arith.constant 0 : index
    %97 = vector.load %arg1[%c0_110, %c6, %c0_111, %c0_112] : memref<1x8x48x28xbf16, #tpu.memory_space<vmem>>, vector<1x1x48x28xbf16>
    %98 = vector.shape_cast %97 : vector<1x1x48x28xbf16> to vector<48x28xbf16>
    %c4_113 = arith.constant 4 : index
    %c0_114 = arith.constant 0 : index
    %c0_115 = arith.constant 0 : index
    %99 = vector.load %arg2[%c4_113, %c0_114, %c0_115] : memref<5x28x768xbf16, #tpu.memory_space<vmem>>, vector<1x28x768xbf16>
    %100 = vector.shape_cast %99 : vector<1x28x768xbf16> to vector<28x768xbf16>
    %cst_116 = arith.constant dense<0.000000e+00> : vector<48x768xf32>
    %101 = tpu.matmul %98, %100, %cst_116 {dimension_numbers = #tpu.dot_dimension_numbers<[1], [0], [0], [1], [0, 0, 1, 1], [], []>} : vector<48x28xbf16>, vector<28x768xbf16>, vector<48x768xf32> -> vector<48x768xf32>
    %102 = arith.addf %96, %101 : vector<48x768xf32>
    %103 = vector.broadcast %0 : vector<1x768xf32> to vector<48x768xf32>
    %104 = arith.mulf %102, %103 : vector<48x768xf32>
    %105 = vector.broadcast %1 : vector<1x768xf32> to vector<48x768xf32>
    %106 = arith.addf %104, %105 : vector<48x768xf32>
    %c0_117 = arith.constant 0 : index
    %c3_118 = arith.constant 3 : index
    %c0_119 = arith.constant 0 : index
    %c0_120 = arith.constant 0 : index
    %107 = vector.load %arg1[%c0_117, %c3_118, %c0_119, %c0_120] : memref<1x8x48x28xbf16, #tpu.memory_space<vmem>>, vector<1x1x48x28xbf16>
    %108 = vector.shape_cast %107 : vector<1x1x48x28xbf16> to vector<48x28xbf16>
    %c0_121 = arith.constant 0 : index
    %c0_122 = arith.constant 0 : index
    %c0_123 = arith.constant 0 : index
    %109 = vector.load %arg2[%c0_121, %c0_122, %c0_123] : memref<5x28x768xbf16, #tpu.memory_space<vmem>>, vector<1x28x768xbf16>
    %110 = vector.shape_cast %109 : vector<1x28x768xbf16> to vector<28x768xbf16>
    %cst_124 = arith.constant dense<0.000000e+00> : vector<48x768xf32>
    %111 = tpu.matmul %108, %110, %cst_124 {dimension_numbers = #tpu.dot_dimension_numbers<[1], [0], [0], [1], [0, 0, 1, 1], [], []>} : vector<48x28xbf16>, vector<28x768xbf16>, vector<48x768xf32> -> vector<48x768xf32>
    %c0_125 = arith.constant 0 : index
    %c4_126 = arith.constant 4 : index
    %c0_127 = arith.constant 0 : index
    %c0_128 = arith.constant 0 : index
    %112 = vector.load %arg1[%c0_125, %c4_126, %c0_127, %c0_128] : memref<1x8x48x28xbf16, #tpu.memory_space<vmem>>, vector<1x1x48x28xbf16>
    %113 = vector.shape_cast %112 : vector<1x1x48x28xbf16> to vector<48x28xbf16>
    %c1_129 = arith.constant 1 : index
    %c0_130 = arith.constant 0 : index
    %c0_131 = arith.constant 0 : index
    %114 = vector.load %arg2[%c1_129, %c0_130, %c0_131] : memref<5x28x768xbf16, #tpu.memory_space<vmem>>, vector<1x28x768xbf16>
    %115 = vector.shape_cast %114 : vector<1x28x768xbf16> to vector<28x768xbf16>
    %cst_132 = arith.constant dense<0.000000e+00> : vector<48x768xf32>
    %116 = tpu.matmul %113, %115, %cst_132 {dimension_numbers = #tpu.dot_dimension_numbers<[1], [0], [0], [1], [0, 0, 1, 1], [], []>} : vector<48x28xbf16>, vector<28x768xbf16>, vector<48x768xf32> -> vector<48x768xf32>
    %117 = arith.addf %111, %116 : vector<48x768xf32>
    %c0_133 = arith.constant 0 : index
    %c5_134 = arith.constant 5 : index
    %c0_135 = arith.constant 0 : index
    %c0_136 = arith.constant 0 : index
    %118 = vector.load %arg1[%c0_133, %c5_134, %c0_135, %c0_136] : memref<1x8x48x28xbf16, #tpu.memory_space<vmem>>, vector<1x1x48x28xbf16>
    %119 = vector.shape_cast %118 : vector<1x1x48x28xbf16> to vector<48x28xbf16>
    %c2_137 = arith.constant 2 : index
    %c0_138 = arith.constant 0 : index
    %c0_139 = arith.constant 0 : index
    %120 = vector.load %arg2[%c2_137, %c0_138, %c0_139] : memref<5x28x768xbf16, #tpu.memory_space<vmem>>, vector<1x28x768xbf16>
    %121 = vector.shape_cast %120 : vector<1x28x768xbf16> to vector<28x768xbf16>
    %cst_140 = arith.constant dense<0.000000e+00> : vector<48x768xf32>
    %122 = tpu.matmul %119, %121, %cst_140 {dimension_numbers = #tpu.dot_dimension_numbers<[1], [0], [0], [1], [0, 0, 1, 1], [], []>} : vector<48x28xbf16>, vector<28x768xbf16>, vector<48x768xf32> -> vector<48x768xf32>
    %123 = arith.addf %117, %122 : vector<48x768xf32>
    %c0_141 = arith.constant 0 : index
    %c6_142 = arith.constant 6 : index
    %c0_143 = arith.constant 0 : index
    %c0_144 = arith.constant 0 : index
    %124 = vector.load %arg1[%c0_141, %c6_142, %c0_143, %c0_144] : memref<1x8x48x28xbf16, #tpu.memory_space<vmem>>, vector<1x1x48x28xbf16>
    %125 = vector.shape_cast %124 : vector<1x1x48x28xbf16> to vector<48x28xbf16>
    %c3_145 = arith.constant 3 : index
    %c0_146 = arith.constant 0 : index
    %c0_147 = arith.constant 0 : index
    %126 = vector.load %arg2[%c3_145, %c0_146, %c0_147] : memref<5x28x768xbf16, #tpu.memory_space<vmem>>, vector<1x28x768xbf16>
    %127 = vector.shape_cast %126 : vector<1x28x768xbf16> to vector<28x768xbf16>
    %cst_148 = arith.constant dense<0.000000e+00> : vector<48x768xf32>
    %128 = tpu.matmul %125, %127, %cst_148 {dimension_numbers = #tpu.dot_dimension_numbers<[1], [0], [0], [1], [0, 0, 1, 1], [], []>} : vector<48x28xbf16>, vector<28x768xbf16>, vector<48x768xf32> -> vector<48x768xf32>
    %129 = arith.addf %123, %128 : vector<48x768xf32>
    %c0_149 = arith.constant 0 : index
    %c7 = arith.constant 7 : index
    %c0_150 = arith.constant 0 : index
    %c0_151 = arith.constant 0 : index
    %130 = vector.load %arg1[%c0_149, %c7, %c0_150, %c0_151] : memref<1x8x48x28xbf16, #tpu.memory_space<vmem>>, vector<1x1x48x28xbf16>
    %131 = vector.shape_cast %130 : vector<1x1x48x28xbf16> to vector<48x28xbf16>
    %c4_152 = arith.constant 4 : index
    %c0_153 = arith.constant 0 : index
    %c0_154 = arith.constant 0 : index
    %132 = vector.load %arg2[%c4_152, %c0_153, %c0_154] : memref<5x28x768xbf16, #tpu.memory_space<vmem>>, vector<1x28x768xbf16>
    %133 = vector.shape_cast %132 : vector<1x28x768xbf16> to vector<28x768xbf16>
    %cst_155 = arith.constant dense<0.000000e+00> : vector<48x768xf32>
    %134 = tpu.matmul %131, %133, %cst_155 {dimension_numbers = #tpu.dot_dimension_numbers<[1], [0], [0], [1], [0, 0, 1, 1], [], []>} : vector<48x28xbf16>, vector<28x768xbf16>, vector<48x768xf32> -> vector<48x768xf32>
    %135 = arith.addf %129, %134 : vector<48x768xf32>
    %136 = vector.broadcast %0 : vector<1x768xf32> to vector<48x768xf32>
    %137 = arith.mulf %135, %136 : vector<48x768xf32>
    %138 = vector.broadcast %1 : vector<1x768xf32> to vector<48x768xf32>
    %139 = arith.addf %137, %138 : vector<48x768xf32>
    %140 = arith.maximumf %106, %139 : vector<48x768xf32>
    %141 = vector.extract_strided_slice %140 {offsets = [0, 0], sizes = [48, 384], strides = [1, 1]} : vector<48x768xf32> to vector<48x384xf32>
    %142 = vector.extract_strided_slice %140 {offsets = [0, 384], sizes = [48, 384], strides = [1, 1]} : vector<48x768xf32> to vector<48x384xf32>
    %143 = arith.maximumf %141, %142 : vector<48x384xf32>
    %cst_156 = arith.constant 0.000000e+00 : f32
    %144 = vector.broadcast %cst_156 : f32 to vector<48x384xf32>
    %145 = arith.maximumf %143, %144 : vector<48x384xf32>
    %c0_157 = arith.constant 0 : index
    %c0_158 = arith.constant 0 : index
    %146 = vector.load %arg6[%c0_157, %c0_158] : memref<1x512xf32, #tpu.memory_space<vmem>>, vector<1x512xf32>
    %c0_159 = arith.constant 0 : index
    %c0_160 = arith.constant 0 : index
    %147 = vector.load %arg7[%c0_159, %c0_160] : memref<1x512xf32, #tpu.memory_space<vmem>>, vector<1x512xf32>
    %148 = vector.extract_strided_slice %73 {offsets = [0, 0], sizes = [32, 384], strides = [1, 1]} : vector<48x384xf32> to vector<32x384xf32>
    %149 = arith.truncf %148 : vector<32x384xf32> to vector<32x384xbf16>
    %c0_161 = arith.constant 0 : index
    %c0_162 = arith.constant 0 : index
    %c0_163 = arith.constant 0 : index
    %150 = vector.load %arg5[%c0_161, %c0_162, %c0_163] : memref<5x384x512xbf16, #tpu.memory_space<vmem>>, vector<1x384x512xbf16>
    %151 = vector.shape_cast %150 : vector<1x384x512xbf16> to vector<384x512xbf16>
    %cst_164 = arith.constant dense<0.000000e+00> : vector<32x512xf32>
    %152 = tpu.matmul %149, %151, %cst_164 {dimension_numbers = #tpu.dot_dimension_numbers<[1], [0], [0], [1], [0, 0, 1, 1], [], []>} : vector<32x384xbf16>, vector<384x512xbf16>, vector<32x512xf32> -> vector<32x512xf32>
    %153 = vector.extract_strided_slice %145 {offsets = [0, 0], sizes = [32, 384], strides = [1, 1]} : vector<48x384xf32> to vector<32x384xf32>
    %154 = arith.truncf %153 : vector<32x384xf32> to vector<32x384xbf16>
    %c1_165 = arith.constant 1 : index
    %c0_166 = arith.constant 0 : index
    %c0_167 = arith.constant 0 : index
    %155 = vector.load %arg5[%c1_165, %c0_166, %c0_167] : memref<5x384x512xbf16, #tpu.memory_space<vmem>>, vector<1x384x512xbf16>
    %156 = vector.shape_cast %155 : vector<1x384x512xbf16> to vector<384x512xbf16>
    %cst_168 = arith.constant dense<0.000000e+00> : vector<32x512xf32>
    %157 = tpu.matmul %154, %156, %cst_168 {dimension_numbers = #tpu.dot_dimension_numbers<[1], [0], [0], [1], [0, 0, 1, 1], [], []>} : vector<32x384xbf16>, vector<384x512xbf16>, vector<32x512xf32> -> vector<32x512xf32>
    %158 = arith.addf %152, %157 : vector<32x512xf32>
    %159 = vector.extract_strided_slice %73 {offsets = [8, 0], sizes = [32, 384], strides = [1, 1]} : vector<48x384xf32> to vector<32x384xf32>
    %160 = arith.truncf %159 : vector<32x384xf32> to vector<32x384xbf16>
    %c2_169 = arith.constant 2 : index
    %c0_170 = arith.constant 0 : index
    %c0_171 = arith.constant 0 : index
    %161 = vector.load %arg5[%c2_169, %c0_170, %c0_171] : memref<5x384x512xbf16, #tpu.memory_space<vmem>>, vector<1x384x512xbf16>
    %162 = vector.shape_cast %161 : vector<1x384x512xbf16> to vector<384x512xbf16>
    %cst_172 = arith.constant dense<0.000000e+00> : vector<32x512xf32>
    %163 = tpu.matmul %160, %162, %cst_172 {dimension_numbers = #tpu.dot_dimension_numbers<[1], [0], [0], [1], [0, 0, 1, 1], [], []>} : vector<32x384xbf16>, vector<384x512xbf16>, vector<32x512xf32> -> vector<32x512xf32>
    %164 = arith.addf %158, %163 : vector<32x512xf32>
    %165 = vector.extract_strided_slice %145 {offsets = [8, 0], sizes = [32, 384], strides = [1, 1]} : vector<48x384xf32> to vector<32x384xf32>
    %166 = arith.truncf %165 : vector<32x384xf32> to vector<32x384xbf16>
    %c3_173 = arith.constant 3 : index
    %c0_174 = arith.constant 0 : index
    %c0_175 = arith.constant 0 : index
    %167 = vector.load %arg5[%c3_173, %c0_174, %c0_175] : memref<5x384x512xbf16, #tpu.memory_space<vmem>>, vector<1x384x512xbf16>
    %168 = vector.shape_cast %167 : vector<1x384x512xbf16> to vector<384x512xbf16>
    %cst_176 = arith.constant dense<0.000000e+00> : vector<32x512xf32>
    %169 = tpu.matmul %166, %168, %cst_176 {dimension_numbers = #tpu.dot_dimension_numbers<[1], [0], [0], [1], [0, 0, 1, 1], [], []>} : vector<32x384xbf16>, vector<384x512xbf16>, vector<32x512xf32> -> vector<32x512xf32>
    %170 = arith.addf %164, %169 : vector<32x512xf32>
    %171 = vector.extract_strided_slice %73 {offsets = [16, 0], sizes = [32, 384], strides = [1, 1]} : vector<48x384xf32> to vector<32x384xf32>
    %172 = arith.truncf %171 : vector<32x384xf32> to vector<32x384xbf16>
    %c4_177 = arith.constant 4 : index
    %c0_178 = arith.constant 0 : index
    %c0_179 = arith.constant 0 : index
    %173 = vector.load %arg5[%c4_177, %c0_178, %c0_179] : memref<5x384x512xbf16, #tpu.memory_space<vmem>>, vector<1x384x512xbf16>
    %174 = vector.shape_cast %173 : vector<1x384x512xbf16> to vector<384x512xbf16>
    %cst_180 = arith.constant dense<0.000000e+00> : vector<32x512xf32>
    %175 = tpu.matmul %172, %174, %cst_180 {dimension_numbers = #tpu.dot_dimension_numbers<[1], [0], [0], [1], [0, 0, 1, 1], [], []>} : vector<32x384xbf16>, vector<384x512xbf16>, vector<32x512xf32> -> vector<32x512xf32>
    %176 = arith.addf %170, %175 : vector<32x512xf32>
    %177 = vector.broadcast %146 : vector<1x512xf32> to vector<32x512xf32>
    %178 = arith.mulf %176, %177 : vector<32x512xf32>
    %179 = vector.broadcast %147 : vector<1x512xf32> to vector<32x512xf32>
    %180 = arith.addf %178, %179 : vector<32x512xf32>
    %181 = vector.extract_strided_slice %145 {offsets = [0, 0], sizes = [32, 384], strides = [1, 1]} : vector<48x384xf32> to vector<32x384xf32>
    %182 = arith.truncf %181 : vector<32x384xf32> to vector<32x384xbf16>
    %c0_181 = arith.constant 0 : index
    %c0_182 = arith.constant 0 : index
    %c0_183 = arith.constant 0 : index
    %183 = vector.load %arg5[%c0_181, %c0_182, %c0_183] : memref<5x384x512xbf16, #tpu.memory_space<vmem>>, vector<1x384x512xbf16>
    %184 = vector.shape_cast %183 : vector<1x384x512xbf16> to vector<384x512xbf16>
    %cst_184 = arith.constant dense<0.000000e+00> : vector<32x512xf32>
    %185 = tpu.matmul %182, %184, %cst_184 {dimension_numbers = #tpu.dot_dimension_numbers<[1], [0], [0], [1], [0, 0, 1, 1], [], []>} : vector<32x384xbf16>, vector<384x512xbf16>, vector<32x512xf32> -> vector<32x512xf32>
    %186 = vector.extract_strided_slice %73 {offsets = [8, 0], sizes = [32, 384], strides = [1, 1]} : vector<48x384xf32> to vector<32x384xf32>
    %187 = arith.truncf %186 : vector<32x384xf32> to vector<32x384xbf16>
    %c1_185 = arith.constant 1 : index
    %c0_186 = arith.constant 0 : index
    %c0_187 = arith.constant 0 : index
    %188 = vector.load %arg5[%c1_185, %c0_186, %c0_187] : memref<5x384x512xbf16, #tpu.memory_space<vmem>>, vector<1x384x512xbf16>
    %189 = vector.shape_cast %188 : vector<1x384x512xbf16> to vector<384x512xbf16>
    %cst_188 = arith.constant dense<0.000000e+00> : vector<32x512xf32>
    %190 = tpu.matmul %187, %189, %cst_188 {dimension_numbers = #tpu.dot_dimension_numbers<[1], [0], [0], [1], [0, 0, 1, 1], [], []>} : vector<32x384xbf16>, vector<384x512xbf16>, vector<32x512xf32> -> vector<32x512xf32>
    %191 = arith.addf %185, %190 : vector<32x512xf32>
    %192 = vector.extract_strided_slice %145 {offsets = [8, 0], sizes = [32, 384], strides = [1, 1]} : vector<48x384xf32> to vector<32x384xf32>
    %193 = arith.truncf %192 : vector<32x384xf32> to vector<32x384xbf16>
    %c2_189 = arith.constant 2 : index
    %c0_190 = arith.constant 0 : index
    %c0_191 = arith.constant 0 : index
    %194 = vector.load %arg5[%c2_189, %c0_190, %c0_191] : memref<5x384x512xbf16, #tpu.memory_space<vmem>>, vector<1x384x512xbf16>
    %195 = vector.shape_cast %194 : vector<1x384x512xbf16> to vector<384x512xbf16>
    %cst_192 = arith.constant dense<0.000000e+00> : vector<32x512xf32>
    %196 = tpu.matmul %193, %195, %cst_192 {dimension_numbers = #tpu.dot_dimension_numbers<[1], [0], [0], [1], [0, 0, 1, 1], [], []>} : vector<32x384xbf16>, vector<384x512xbf16>, vector<32x512xf32> -> vector<32x512xf32>
    %197 = arith.addf %191, %196 : vector<32x512xf32>
    %198 = vector.extract_strided_slice %73 {offsets = [16, 0], sizes = [32, 384], strides = [1, 1]} : vector<48x384xf32> to vector<32x384xf32>
    %199 = arith.truncf %198 : vector<32x384xf32> to vector<32x384xbf16>
    %c3_193 = arith.constant 3 : index
    %c0_194 = arith.constant 0 : index
    %c0_195 = arith.constant 0 : index
    %200 = vector.load %arg5[%c3_193, %c0_194, %c0_195] : memref<5x384x512xbf16, #tpu.memory_space<vmem>>, vector<1x384x512xbf16>
    %201 = vector.shape_cast %200 : vector<1x384x512xbf16> to vector<384x512xbf16>
    %cst_196 = arith.constant dense<0.000000e+00> : vector<32x512xf32>
    %202 = tpu.matmul %199, %201, %cst_196 {dimension_numbers = #tpu.dot_dimension_numbers<[1], [0], [0], [1], [0, 0, 1, 1], [], []>} : vector<32x384xbf16>, vector<384x512xbf16>, vector<32x512xf32> -> vector<32x512xf32>
    %203 = arith.addf %197, %202 : vector<32x512xf32>
    %204 = vector.extract_strided_slice %145 {offsets = [16, 0], sizes = [32, 384], strides = [1, 1]} : vector<48x384xf32> to vector<32x384xf32>
    %205 = arith.truncf %204 : vector<32x384xf32> to vector<32x384xbf16>
    %c4_197 = arith.constant 4 : index
    %c0_198 = arith.constant 0 : index
    %c0_199 = arith.constant 0 : index
    %206 = vector.load %arg5[%c4_197, %c0_198, %c0_199] : memref<5x384x512xbf16, #tpu.memory_space<vmem>>, vector<1x384x512xbf16>
    %207 = vector.shape_cast %206 : vector<1x384x512xbf16> to vector<384x512xbf16>
    %cst_200 = arith.constant dense<0.000000e+00> : vector<32x512xf32>
    %208 = tpu.matmul %205, %207, %cst_200 {dimension_numbers = #tpu.dot_dimension_numbers<[1], [0], [0], [1], [0, 0, 1, 1], [], []>} : vector<32x384xbf16>, vector<384x512xbf16>, vector<32x512xf32> -> vector<32x512xf32>
    %209 = arith.addf %203, %208 : vector<32x512xf32>
    %210 = vector.broadcast %146 : vector<1x512xf32> to vector<32x512xf32>
    %211 = arith.mulf %209, %210 : vector<32x512xf32>
    %212 = vector.broadcast %147 : vector<1x512xf32> to vector<32x512xf32>
    %213 = arith.addf %211, %212 : vector<32x512xf32>
    %214 = arith.maximumf %180, %213 : vector<32x512xf32>
    %215 = vector.extract_strided_slice %214 {offsets = [0, 0], sizes = [32, 256], strides = [1, 1]} : vector<32x512xf32> to vector<32x256xf32>
    %216 = vector.extract_strided_slice %214 {offsets = [0, 256], sizes = [32, 256], strides = [1, 1]} : vector<32x512xf32> to vector<32x256xf32>
    %217 = arith.maximumf %215, %216 : vector<32x256xf32>
    %cst_201 = arith.constant 0.000000e+00 : f32
    %218 = vector.broadcast %cst_201 : f32 to vector<32x256xf32>
    %219 = arith.maximumf %217, %218 : vector<32x256xf32>
    %220 = vector.extract_strided_slice %219 {offsets = [0, 0], sizes = [8, 256], strides = [1, 1]} : vector<32x256xf32> to vector<8x256xf32>
    %221 = arith.truncf %220 : vector<8x256xf32> to vector<8x256xbf16>
    %c0_202 = arith.constant 0 : index
    %c0_203 = arith.constant 0 : index
    %c0_204 = arith.constant 0 : index
    %222 = vector.load %arg8[%c0_202, %c0_203, %c0_204] : memref<4x256x128xbf16, #tpu.memory_space<vmem>>, vector<1x256x128xbf16>
    %223 = vector.shape_cast %222 : vector<1x256x128xbf16> to vector<256x128xbf16>
    %cst_205 = arith.constant dense<0.000000e+00> : vector<8x128xf32>
    %224 = tpu.matmul %221, %223, %cst_205 {dimension_numbers = #tpu.dot_dimension_numbers<[1], [0], [0], [1], [0, 0, 1, 1], [], []>} : vector<8x256xbf16>, vector<256x128xbf16>, vector<8x128xf32> -> vector<8x128xf32>
    %225 = vector.extract_strided_slice %219 {offsets = [8, 0], sizes = [8, 256], strides = [1, 1]} : vector<32x256xf32> to vector<8x256xf32>
    %226 = arith.truncf %225 : vector<8x256xf32> to vector<8x256xbf16>
    %c1_206 = arith.constant 1 : index
    %c0_207 = arith.constant 0 : index
    %c0_208 = arith.constant 0 : index
    %227 = vector.load %arg8[%c1_206, %c0_207, %c0_208] : memref<4x256x128xbf16, #tpu.memory_space<vmem>>, vector<1x256x128xbf16>
    %228 = vector.shape_cast %227 : vector<1x256x128xbf16> to vector<256x128xbf16>
    %cst_209 = arith.constant dense<0.000000e+00> : vector<8x128xf32>
    %229 = tpu.matmul %226, %228, %cst_209 {dimension_numbers = #tpu.dot_dimension_numbers<[1], [0], [0], [1], [0, 0, 1, 1], [], []>} : vector<8x256xbf16>, vector<256x128xbf16>, vector<8x128xf32> -> vector<8x128xf32>
    %230 = arith.addf %224, %229 : vector<8x128xf32>
    %231 = vector.extract_strided_slice %219 {offsets = [16, 0], sizes = [8, 256], strides = [1, 1]} : vector<32x256xf32> to vector<8x256xf32>
    %232 = arith.truncf %231 : vector<8x256xf32> to vector<8x256xbf16>
    %c2_210 = arith.constant 2 : index
    %c0_211 = arith.constant 0 : index
    %c0_212 = arith.constant 0 : index
    %233 = vector.load %arg8[%c2_210, %c0_211, %c0_212] : memref<4x256x128xbf16, #tpu.memory_space<vmem>>, vector<1x256x128xbf16>
    %234 = vector.shape_cast %233 : vector<1x256x128xbf16> to vector<256x128xbf16>
    %cst_213 = arith.constant dense<0.000000e+00> : vector<8x128xf32>
    %235 = tpu.matmul %232, %234, %cst_213 {dimension_numbers = #tpu.dot_dimension_numbers<[1], [0], [0], [1], [0, 0, 1, 1], [], []>} : vector<8x256xbf16>, vector<256x128xbf16>, vector<8x128xf32> -> vector<8x128xf32>
    %236 = arith.addf %230, %235 : vector<8x128xf32>
    %237 = vector.extract_strided_slice %219 {offsets = [24, 0], sizes = [8, 256], strides = [1, 1]} : vector<32x256xf32> to vector<8x256xf32>
    %238 = arith.truncf %237 : vector<8x256xf32> to vector<8x256xbf16>
    %c3_214 = arith.constant 3 : index
    %c0_215 = arith.constant 0 : index
    %c0_216 = arith.constant 0 : index
    %239 = vector.load %arg8[%c3_214, %c0_215, %c0_216] : memref<4x256x128xbf16, #tpu.memory_space<vmem>>, vector<1x256x128xbf16>
    %240 = vector.shape_cast %239 : vector<1x256x128xbf16> to vector<256x128xbf16>
    %cst_217 = arith.constant dense<0.000000e+00> : vector<8x128xf32>
    %241 = tpu.matmul %238, %240, %cst_217 {dimension_numbers = #tpu.dot_dimension_numbers<[1], [0], [0], [1], [0, 0, 1, 1], [], []>} : vector<8x256xbf16>, vector<256x128xbf16>, vector<8x128xf32> -> vector<8x128xf32>
    %242 = arith.addf %236, %241 : vector<8x128xf32>
    %c0_218 = arith.constant 0 : index
    %c0_219 = arith.constant 0 : index
    %243 = vector.load %arg9[%c0_218, %c0_219] : memref<1x128xf32, #tpu.memory_space<vmem>>, vector<1x128xf32>
    %244 = vector.broadcast %243 : vector<1x128xf32> to vector<8x128xf32>
    %245 = arith.mulf %242, %244 : vector<8x128xf32>
    %c0_220 = arith.constant 0 : index
    %c0_221 = arith.constant 0 : index
    %246 = vector.load %arg10[%c0_220, %c0_221] : memref<1x128xf32, #tpu.memory_space<vmem>>, vector<1x128xf32>
    %247 = vector.broadcast %246 : vector<1x128xf32> to vector<8x128xf32>
    %248 = arith.addf %245, %247 : vector<8x128xf32>
    %cst_222 = arith.constant 0.000000e+00 : f32
    %249 = vector.broadcast %cst_222 : f32 to vector<8x128xf32>
    %250 = arith.maximumf %248, %249 : vector<8x128xf32>
    %251 = arith.truncf %250 : vector<8x128xf32> to vector<8x128xbf16>
    %c0_223 = arith.constant 0 : index
    %c0_224 = arith.constant 0 : index
    %252 = vector.load %arg11[%c0_223, %c0_224] : memref<128x128xbf16, #tpu.memory_space<vmem>>, vector<128x128xbf16>
    %cst_225 = arith.constant dense<0.000000e+00> : vector<8x128xf32>
    %253 = tpu.matmul %251, %252, %cst_225 {dimension_numbers = #tpu.dot_dimension_numbers<[1], [0], [0], [1], [0, 0, 1, 1], [], []>} : vector<8x128xbf16>, vector<128x128xbf16>, vector<8x128xf32> -> vector<8x128xf32>
    %c0_226 = arith.constant 0 : index
    %c0_227 = arith.constant 0 : index
    %254 = vector.load %arg12[%c0_226, %c0_227] : memref<1x128xf32, #tpu.memory_space<vmem>>, vector<1x128xf32>
    %255 = vector.broadcast %254 : vector<1x128xf32> to vector<8x128xf32>
    %256 = arith.mulf %253, %255 : vector<8x128xf32>
    %c0_228 = arith.constant 0 : index
    %c0_229 = arith.constant 0 : index
    %257 = vector.load %arg13[%c0_228, %c0_229] : memref<1x128xf32, #tpu.memory_space<vmem>>, vector<1x128xf32>
    %258 = vector.broadcast %257 : vector<1x128xf32> to vector<8x128xf32>
    %259 = arith.addf %256, %258 : vector<8x128xf32>
    %cst_230 = arith.constant 0.000000e+00 : f32
    %260 = vector.broadcast %cst_230 : f32 to vector<8x128xf32>
    %261 = arith.maximumf %259, %260 : vector<8x128xf32>
    %262 = arith.truncf %261 : vector<8x128xf32> to vector<8x128xbf16>
    %c0_231 = arith.constant 0 : index
    %c0_232 = arith.constant 0 : index
    %263 = vector.load %arg14[%c0_231, %c0_232] : memref<128x128xbf16, #tpu.memory_space<vmem>>, vector<128x128xbf16>
    %cst_233 = arith.constant dense<0.000000e+00> : vector<8x128xf32>
    %264 = tpu.matmul %262, %263, %cst_233 {dimension_numbers = #tpu.dot_dimension_numbers<[1], [0], [0], [1], [0, 0, 1, 1], [], []>} : vector<8x128xbf16>, vector<128x128xbf16>, vector<8x128xf32> -> vector<8x128xf32>
    %c0_234 = arith.constant 0 : index
    %c0_235 = arith.constant 0 : index
    %265 = vector.load %arg15[%c0_234, %c0_235] : memref<1x128xf32, #tpu.memory_space<vmem>>, vector<1x128xf32>
    %266 = vector.broadcast %265 : vector<1x128xf32> to vector<8x128xf32>
    %267 = arith.addf %264, %266 : vector<8x128xf32>
    %c0_236 = arith.constant 0 : index
    %c0_237 = arith.constant 0 : index
    %268 = vector.load %arg16[%c0_236, %c0_237] : memref<8x128xf32, #tpu.memory_space<vmem>>, vector<8x128xf32>
    tpu.vector_store %arg16[%c0_236, %c0_237], %267 {strides = array<i32>} : memref<8x128xf32, #tpu.memory_space<vmem>>, vector<8x128xf32>,
    return
  }
  func.func @transform_0(%arg0: i32) -> (i32, i32, i32, i32) {
    %c0_i32 = arith.constant 0 : i32
    %c0_i32_0 = arith.constant 0 : i32
    %c0_i32_1 = arith.constant 0 : i32
    %c0_i32_2 = arith.constant 0 : i32
    return %arg0, %c0_i32, %c0_i32_0, %c0_i32_1 : i32, i32, i32, i32
  }
  func.func @transform_1(%arg0: i32) -> (i32, i32, i32) {
    %c0_i32 = arith.constant 0 : i32
    %c0_i32_0 = arith.constant 0 : i32
    %c0_i32_1 = arith.constant 0 : i32
    %c0_i32_2 = arith.constant 0 : i32
    return %c0_i32, %c0_i32_0, %c0_i32_1 : i32, i32, i32
  }
  func.func @transform_2(%arg0: i32) -> (i32, i32) {
    %c0_i32 = arith.constant 0 : i32
    %c0_i32_0 = arith.constant 0 : i32
    %c0_i32_1 = arith.constant 0 : i32
    return %c0_i32, %c0_i32_0 : i32, i32
  }
  func.func @transform_3(%arg0: i32) -> (i32, i32) {
    %c0_i32 = arith.constant 0 : i32
    %c0_i32_0 = arith.constant 0 : i32
    %c0_i32_1 = arith.constant 0 : i32
    return %c0_i32, %c0_i32_0 : i32, i32
  }
  func.func @transform_4(%arg0: i32) -> (i32, i32, i32) {
    %c0_i32 = arith.constant 0 : i32
    %c0_i32_0 = arith.constant 0 : i32
    %c0_i32_1 = arith.constant 0 : i32
    %c0_i32_2 = arith.constant 0 : i32
    return %c0_i32, %c0_i32_0, %c0_i32_1 : i32, i32, i32
  }
  func.func @transform_5(%arg0: i32) -> (i32, i32) {
    %c0_i32 = arith.constant 0 : i32
    %c0_i32_0 = arith.constant 0 : i32
    %c0_i32_1 = arith.constant 0 : i32
    return %c0_i32, %c0_i32_0 : i32, i32
  }
  func.func @transform_6(%arg0: i32) -> (i32, i32) {
    %c0_i32 = arith.constant 0 : i32
    %c0_i32_0 = arith.constant 0 : i32
    %c0_i32_1 = arith.constant 0 : i32
    return %c0_i32, %c0_i32_0 : i32, i32
  }
  func.func @transform_7(%arg0: i32) -> (i32, i32, i32) {
    %c0_i32 = arith.constant 0 : i32
    %c0_i32_0 = arith.constant 0 : i32
    %c0_i32_1 = arith.constant 0 : i32
    %c0_i32_2 = arith.constant 0 : i32
    return %c0_i32, %c0_i32_0, %c0_i32_1 : i32, i32, i32
  }
  func.func @transform_8(%arg0: i32) -> (i32, i32) {
    %c0_i32 = arith.constant 0 : i32
    %c0_i32_0 = arith.constant 0 : i32
    %c0_i32_1 = arith.constant 0 : i32
    return %c0_i32, %c0_i32_0 : i32, i32
  }
  func.func @transform_9(%arg0: i32) -> (i32, i32) {
    %c0_i32 = arith.constant 0 : i32
    %c0_i32_0 = arith.constant 0 : i32
    %c0_i32_1 = arith.constant 0 : i32
    return %c0_i32, %c0_i32_0 : i32, i32
  }
  func.func @transform_10(%arg0: i32) -> (i32, i32) {
    %c0_i32 = arith.constant 0 : i32
    %c0_i32_0 = arith.constant 0 : i32
    %c0_i32_1 = arith.constant 0 : i32
    return %c0_i32, %c0_i32_0 : i32, i32
  }
  func.func @transform_11(%arg0: i32) -> (i32, i32) {
    %c0_i32 = arith.constant 0 : i32
    %c0_i32_0 = arith.constant 0 : i32
    %c0_i32_1 = arith.constant 0 : i32
    return %c0_i32, %c0_i32_0 : i32, i32
  }
  func.func @transform_12(%arg0: i32) -> (i32, i32) {
    %c0_i32 = arith.constant 0 : i32
    %c0_i32_0 = arith.constant 0 : i32
    %c0_i32_1 = arith.constant 0 : i32
    return %c0_i32, %c0_i32_0 : i32, i32
  }
  func.func @transform_13(%arg0: i32) -> (i32, i32) {
    %c0_i32 = arith.constant 0 : i32
    %c0_i32_0 = arith.constant 0 : i32
    %c0_i32_1 = arith.constant 0 : i32
    return %c0_i32, %c0_i32_0 : i32, i32
  }
  func.func @transform_14(%arg0: i32) -> (i32, i32) {
    %c0_i32 = arith.constant 0 : i32
    %c0_i32_0 = arith.constant 0 : i32
    %c0_i32_1 = arith.constant 0 : i32
    return %c0_i32, %c0_i32_0 : i32, i32
  }
  func.func @transform_15(%arg0: i32) -> (i32, i32) {
    %c0_i32 = arith.constant 0 : i32
    %c0_i32_0 = arith.constant 0 : i32
    return %arg0, %c0_i32 : i32, i32
  }
}

</mosaic_0001>

<llo_original>
// kernel: mnist_forward.1
$region0: #{mnist_forward.1}
  #allocation0 [shape = 'u32[]', space=smem, size = 0x4, offset = 0x4, fixed_abs, tag = 'smem constant byte address 0x4 - core index']
  #allocation1 [shape = 'u32[144,128]{1,0:T(1,128)}', space=vmem, size = 0x12000, scoped, tag = 'internal scratch']
  %s0 = inlined_call_operand.vmem [shape: bf16[1,8,48,28], index: 0, kind: input, shape index: {}]
  %s1 = inlined_call_operand.hbm [shape: bf16[5,28,768], index: 1, kind: input, shape index: {}]
  %s2 = inlined_call_operand.hbm [shape: f32[1,768], index: 2, kind: input, shape index: {}]
  %s3 = inlined_call_operand.hbm [shape: f32[1,768], index: 3, kind: input, shape index: {}]
  %s4 = inlined_call_operand.hbm [shape: bf16[5,384,512], index: 4, kind: input, shape index: {}]
  %s5 = inlined_call_operand.hbm [shape: f32[1,512], index: 5, kind: input, shape index: {}]
  %s6 = inlined_call_operand.hbm [shape: f32[1,512], index: 6, kind: input, shape index: {}]
  %s7 = inlined_call_operand.hbm [shape: bf16[4,256,128], index: 7, kind: input, shape index: {}]
  %s8 = inlined_call_operand.hbm [shape: f32[1,128], index: 8, kind: input, shape index: {}]
  %s9 = inlined_call_operand.hbm [shape: f32[1,128], index: 9, kind: input, shape index: {}]
  %s10 = inlined_call_operand.hbm [shape: bf16[128,128], index: 10, kind: input, shape index: {}]
  %s11 = inlined_call_operand.hbm [shape: f32[1,128], index: 11, kind: input, shape index: {}]
  %s12 = inlined_call_operand.hbm [shape: f32[1,128], index: 12, kind: input, shape index: {}]
  %s13 = inlined_call_operand.hbm [shape: bf16[128,128], index: 13, kind: input, shape index: {}]
  %s14 = inlined_call_operand.hbm [shape: f32[1,128], index: 14, kind: input, shape index: {}]
  %s15 = inlined_call_operand.vmem [shape: f32[8,128], index: 15, kind: output, shape index: {}]
  %s16 = sld [smem:[#allocation0]]
  $region126: #{mnist_forward.1} parent=0
    _
  %s18 = ssub.s32 1, %s16
  %s19 = scalar_select 0, %s18, %s16
  $region1: #{mnist_forward.1} parent=0
    #allocation2 [shape = 'u8[245760]{0}', space=vmem, size = 0x3c000, scoped, tag = 'input window, operand 1, single buffered']
    #allocation3 [shape = 's32[1]{0}', space=sflag, size = 0x4, scoped, tag = 'scoped memory for mnist_forward.1']
    #allocation4 [shape = 'u8[3072]{0}', space=vmem, size = 0xc00, scoped, tag = 'input window, operand 2, single buffered']
    #allocation5 [shape = 's32[1]{0}', space=sflag, size = 0x4, scoped, tag = 'scoped memory for mnist_forward.1']
    #allocation6 [shape = 'u8[3072]{0}', space=vmem, size = 0xc00, scoped, tag = 'input window, operand 3, single buffered']
    #allocation7 [shape = 'u8[1966080]{0}', space=vmem, size = 0x1e0000, scoped, tag = 'input window, operand 4, single buffered']
    #allocation8 [shape = 's32[1]{0}', space=sflag, size = 0x4, scoped, tag = 'scoped memory for mnist_forward.1']
    #allocation9 [shape = 'u8[2048]{0}', space=vmem, size = 0x800, scoped, tag = 'input window, operand 5, single buffered']
    #allocation10 [shape = 'u8[2048]{0}', space=vmem, size = 0x800, scoped, tag = 'input window, operand 6, single buffered']
    #allocation11 [shape = 's32[1]{0}', space=sflag, size = 0x4, scoped, tag = 'scoped memory for mnist_forward.1']
    #allocation12 [shape = 'u8[262144]{0}', space=vmem, size = 0x40000, scoped, tag = 'input window, operand 7, single buffered']
    #allocation13 [shape = 'u8[512]{0}', space=vmem, size = 0x400, scoped, tag = 'input window, operand 8, single buffered']
    #allocation14 [shape = 's32[1]{0}', space=sflag, size = 0x4, scoped, tag = 'scoped memory for mnist_forward.1']
    #allocation15 [shape = 'u8[512]{0}', space=vmem, size = 0x400, scoped, tag = 'input window, operand 9, single buffered']
    #allocation16 [shape = 'u8[32768]{0}', space=vmem, size = 0x8000, scoped, tag = 'input window, operand 10, single buffered']
    #allocation17 [shape = 's32[1]{0}', space=sflag, size = 0x4, scoped, tag = 'scoped memory for mnist_forward.1']
    #allocation18 [shape = 'u8[512]{0}', space=vmem, size = 0x400, scoped, tag = 'input window, operand 11, single buffered']
    #allocation19 [shape = 'u8[512]{0}', space=vmem, size = 0x400, scoped, tag = 'input window, operand 12, single buffered']
    #allocation20 [shape = 's32[1]{0}', space=sflag, size = 0x4, scoped, tag = 'scoped memory for mnist_forward.1']
    #allocation21 [shape = 'u8[32768]{0}', space=vmem, size = 0x8000, scoped, tag = 'input window, operand 13, single buffered']
    #allocation22 [shape = 'u8[512]{0}', space=vmem, size = 0x400, scoped, tag = 'input window, operand 14, single buffered']
    #allocation23 [shape = 's32[1]{0}', space=sflag, size = 0x4, scoped, tag = 'scoped memory for mnist_forward.1']
    %20 = vsyncpa [#allocation3], 0
    %21 = vsyncpa [#allocation5], 0
    %22 = vsyncpa [#allocation8], 0
    %23 = vsyncpa [#allocation11], 0
    %24 = vsyncpa [#allocation14], 0
    %25 = vsyncpa [#allocation17], 0
    %26 = vsyncpa [#allocation20], 0
    %27 = vsyncpa [#allocation23], 0
    // Predicated region
    $region2: #{mnist_forward.1} parent=1 // pred_check
      _
    $region3: #{mnist_forward.1} parent=1 // pred_check_branch
      %29 = sbr.rel (0) target = $region5
    $region4: #{mnist_forward.1} parent=1 // pred_region
      _
    $region5: #{mnist_forward.1} parent=1 // pred_fallthru
      _
    // Predicated region
    $region6: #{mnist_forward.1} parent=1 // pred_check
      _
    $region7: #{mnist_forward.1} parent=1 // pred_check_branch
      %31 = sbr.rel (0) target = $region9
    $region8: #{mnist_forward.1} parent=1 // pred_region
      %s33 = ssub.s32 7680, 7680
      %34 = vsyncadd [#allocation3], %s33
      %s35 = sshll.u32 [#allocation2], 4
      %s36 = int_to_ptr.vmem [resolvable:$true] %s35
      %41 = dma.hbm_to_vmem [thread:$0]  %s1, 7680, %s36, [#allocation3], 384, 384, 24
    $region9: #{mnist_forward.1} parent=1 // pred_fallthru
      _
    // Predicated region
    $region10: #{mnist_forward.1} parent=1 // pred_check
      _
    $region11: #{mnist_forward.1} parent=1 // pred_check_branch
      %43 = sbr.rel (0) target = $region13
    $region12: #{mnist_forward.1} parent=1 // pred_region
      %s45 = ssub.s32 96, 96
      %46 = vsyncadd [#allocation5], %s45
      %s48 = sshll.u32 [#allocation4], 4
      %s49 = int_to_ptr.vmem [resolvable:$true] %s48
      %51 = dma.hbm_to_vmem [thread:$0]  %s2, 96, %s49, [#allocation5]
    $region13: #{mnist_forward.1} parent=1 // pred_fallthru
      _
    // Predicated region
    $region14: #{mnist_forward.1} parent=1 // pred_check
      _
    $region15: #{mnist_forward.1} parent=1 // pred_check_branch
      %53 = sbr.rel (0) target = $region17
    $region16: #{mnist_forward.1} parent=1 // pred_region
      %s55 = ssub.s32 96, 96
      %56 = vsyncadd [#allocation5], %s55
      %s58 = sshll.u32 [#allocation6], 4
      %s59 = int_to_ptr.vmem [resolvable:$true] %s58
      %61 = dma.hbm_to_vmem [thread:$0]  %s3, 96, %s59, [#allocation5]
    $region17: #{mnist_forward.1} parent=1 // pred_fallthru
      _
    // Predicated region
    $region18: #{mnist_forward.1} parent=1 // pred_check
      _
    $region19: #{mnist_forward.1} parent=1 // pred_check_branch
      %63 = sbr.rel (0) target = $region21
    $region20: #{mnist_forward.1} parent=1 // pred_region
      %s65 = ssub.s32 61440, 61440
      %66 = vsyncadd [#allocation8], %s65
      %s67 = sshll.u32 [#allocation7], 4
      %s68 = int_to_ptr.vmem [resolvable:$true] %s67
      %73 = dma.hbm_to_vmem [thread:$0]  %s4, 61440, %s68, [#allocation8], 256, 256, 16
    $region21: #{mnist_forward.1} parent=1 // pred_fallthru
      _
    // Predicated region
    $region22: #{mnist_forward.1} parent=1 // pred_check
      _
    $region23: #{mnist_forward.1} parent=1 // pred_check_branch
      %75 = sbr.rel (0) target = $region25
    $region24: #{mnist_forward.1} parent=1 // pred_region
      %s77 = ssub.s32 64, 64
      %78 = vsyncadd [#allocation8], %s77
      %s80 = sshll.u32 [#allocation9], 4
      %s81 = int_to_ptr.vmem [resolvable:$true] %s80
      %83 = dma.hbm_to_vmem [thread:$0]  %s5, 64, %s81, [#allocation8]
    $region25: #{mnist_forward.1} parent=1 // pred_fallthru
      _
    // Predicated region
    $region26: #{mnist_forward.1} parent=1 // pred_check
      _
    $region27: #{mnist_forward.1} parent=1 // pred_check_branch
      %85 = sbr.rel (0) target = $region29
    $region28: #{mnist_forward.1} parent=1 // pred_region
      %s87 = ssub.s32 64, 64
      %88 = vsyncadd [#allocation11], %s87
      %s90 = sshll.u32 [#allocation10], 4
      %s91 = int_to_ptr.vmem [resolvable:$true] %s90
      %93 = dma.hbm_to_vmem [thread:$0]  %s6, 64, %s91, [#allocation11]
    $region29: #{mnist_forward.1} parent=1 // pred_fallthru
      _
    // Predicated region
    $region30: #{mnist_forward.1} parent=1 // pred_check
      _
    $region31: #{mnist_forward.1} parent=1 // pred_check_branch
      %95 = sbr.rel (0) target = $region33
    $region32: #{mnist_forward.1} parent=1 // pred_region
      %s97 = ssub.s32 8192, 8192
      %98 = vsyncadd [#allocation11], %s97
      %s99 = sshll.u32 [#allocation12], 4
      %s100 = int_to_ptr.vmem [resolvable:$true] %s99
      %105 = dma.hbm_to_vmem [thread:$0]  %s7, 8192, %s100, [#allocation11], 64, 64, 4
    $region33: #{mnist_forward.1} parent=1 // pred_fallthru
      _
    // Predicated region
    $region34: #{mnist_forward.1} parent=1 // pred_check
      _
    $region35: #{mnist_forward.1} parent=1 // pred_check_branch
      %107 = sbr.rel (0) target = $region37
    $region36: #{mnist_forward.1} parent=1 // pred_region
      %s109 = ssub.s32 16, 16
      %110 = vsyncadd [#allocation14], %s109
      %s112 = sshll.u32 [#allocation13], 4
      %s113 = int_to_ptr.vmem [resolvable:$true] %s112
      %115 = dma.hbm_to_vmem [thread:$0]  %s8, 16, %s113, [#allocation14]
    $region37: #{mnist_forward.1} parent=1 // pred_fallthru
      _
    // Predicated region
    $region38: #{mnist_forward.1} parent=1 // pred_check
      _
    $region39: #{mnist_forward.1} parent=1 // pred_check_branch
      %117 = sbr.rel (0) target = $region41
    $region40: #{mnist_forward.1} parent=1 // pred_region
      %s119 = ssub.s32 16, 16
      %120 = vsyncadd [#allocation14], %s119
      %s122 = sshll.u32 [#allocation15], 4
      %s123 = int_to_ptr.vmem [resolvable:$true] %s122
      %125 = dma.hbm_to_vmem [thread:$0]  %s9, 16, %s123, [#allocation14]
    $region41: #{mnist_forward.1} parent=1 // pred_fallthru
      _
    // Predicated region
    $region42: #{mnist_forward.1} parent=1 // pred_check
      _
    $region43: #{mnist_forward.1} parent=1 // pred_check_branch
      %127 = sbr.rel (0) target = $region45
    $region44: #{mnist_forward.1} parent=1 // pred_region
      %s129 = ssub.s32 1024, 1024
      %130 = vsyncadd [#allocation17], %s129
      %s131 = sshll.u32 [#allocation16], 4
      %s132 = int_to_ptr.vmem [resolvable:$true] %s131
      %137 = dma.hbm_to_vmem [thread:$0]  %s10, 1024, %s132, [#allocation17], 64, 64, 4
    $region45: #{mnist_forward.1} parent=1 // pred_fallthru
      _
    // Predicated region
    $region46: #{mnist_forward.1} parent=1 // pred_check
      _
    $region47: #{mnist_forward.1} parent=1 // pred_check_branch
      %139 = sbr.rel (0) target = $region49
    $region48: #{mnist_forward.1} parent=1 // pred_region
      %s141 = ssub.s32 16, 16
      %142 = vsyncadd [#allocation17], %s141
      %s144 = sshll.u32 [#allocation18], 4
      %s145 = int_to_ptr.vmem [resolvable:$true] %s144
      %147 = dma.hbm_to_vmem [thread:$0]  %s11, 16, %s145, [#allocation17]
    $region49: #{mnist_forward.1} parent=1 // pred_fallthru
      _
    // Predicated region
    $region50: #{mnist_forward.1} parent=1 // pred_check
      _
    $region51: #{mnist_forward.1} parent=1 // pred_check_branch
      %149 = sbr.rel (0) target = $region53
    $region52: #{mnist_forward.1} parent=1 // pred_region
      %s151 = ssub.s32 16, 16
      %152 = vsyncadd [#allocation20], %s151
      %s154 = sshll.u32 [#allocation19], 4
      %s155 = int_to_ptr.vmem [resolvable:$true] %s154
      %157 = dma.hbm_to_vmem [thread:$0]  %s12, 16, %s155, [#allocation20]
    $region53: #{mnist_forward.1} parent=1 // pred_fallthru
      _
    // Predicated region
    $region54: #{mnist_forward.1} parent=1 // pred_check
      _
    $region55: #{mnist_forward.1} parent=1 // pred_check_branch
      %159 = sbr.rel (0) target = $region57
    $region56: #{mnist_forward.1} parent=1 // pred_region
      %s161 = ssub.s32 1024, 1024
      %162 = vsyncadd [#allocation20], %s161
      %s163 = sshll.u32 [#allocation21], 4
      %s164 = int_to_ptr.vmem [resolvable:$true] %s163
      %169 = dma.hbm_to_vmem [thread:$0]  %s13, 1024, %s164, [#allocation20], 64, 64, 4
    $region57: #{mnist_forward.1} parent=1 // pred_fallthru
      _
    // Predicated region
    $region58: #{mnist_forward.1} parent=1 // pred_check
      _
    $region59: #{mnist_forward.1} parent=1 // pred_check_branch
      %171 = sbr.rel (0) target = $region61
    $region60: #{mnist_forward.1} parent=1 // pred_region
      %s173 = ssub.s32 16, 16
      %174 = vsyncadd [#allocation23], %s173
      %s176 = sshll.u32 [#allocation22], 4
      %s177 = int_to_ptr.vmem [resolvable:$true] %s176
      %179 = dma.hbm_to_vmem [thread:$0]  %s14, 16, %s177, [#allocation23]
    $region61: #{mnist_forward.1} parent=1 // pred_fallthru
      _
    // Predicated region
    $region62: #{mnist_forward.1} parent=1 // pred_check
      _
    $region63: #{mnist_forward.1} parent=1 // pred_check_branch
      %181 = sbr.rel (0) target = $region65
    $region64: #{mnist_forward.1} parent=1 // pred_region
      %182 = dma.done [#allocation3], 7680
    $region65: #{mnist_forward.1} parent=1 // pred_fallthru
      _
    // Predicated region
    $region66: #{mnist_forward.1} parent=1 // pred_check
      _
    $region67: #{mnist_forward.1} parent=1 // pred_check_branch
      %184 = sbr.rel (0) target = $region69
    $region68: #{mnist_forward.1} parent=1 // pred_region
      %185 = dma.done [#allocation5], 96
    $region69: #{mnist_forward.1} parent=1 // pred_fallthru
      _
    // Predicated region
    $region70: #{mnist_forward.1} parent=1 // pred_check
      _
    $region71: #{mnist_forward.1} parent=1 // pred_check_branch
      %187 = sbr.rel (0) target = $region73
    $region72: #{mnist_forward.1} parent=1 // pred_region
      %188 = dma.done [#allocation5], 96
    $region73: #{mnist_forward.1} parent=1 // pred_fallthru
      _
    // Predicated region
    $region74: #{mnist_forward.1} parent=1 // pred_check
      _
    $region75: #{mnist_forward.1} parent=1 // pred_check_branch
      %190 = sbr.rel (0) target = $region77
    $region76: #{mnist_forward.1} parent=1 // pred_region
      %191 = dma.done [#allocation8], 61440
    $region77: #{mnist_forward.1} parent=1 // pred_fallthru
      _
    // Predicated region
    $region78: #{mnist_forward.1} parent=1 // pred_check
      _
    $region79: #{mnist_forward.1} parent=1 // pred_check_branch
      %193 = sbr.rel (0) target = $region81
    $region80: #{mnist_forward.1} parent=1 // pred_region
      %194 = dma.done [#allocation8], 64
    $region81: #{mnist_forward.1} parent=1 // pred_fallthru
      _
    // Predicated region
    $region82: #{mnist_forward.1} parent=1 // pred_check
      _
    $region83: #{mnist_forward.1} parent=1 // pred_check_branch
      %196 = sbr.rel (0) target = $region85
    $region84: #{mnist_forward.1} parent=1 // pred_region
      %197 = dma.done [#allocation11], 64
    $region85: #{mnist_forward.1} parent=1 // pred_fallthru
      _
    // Predicated region
    $region86: #{mnist_forward.1} parent=1 // pred_check
      _
    $region87: #{mnist_forward.1} parent=1 // pred_check_branch
      %199 = sbr.rel (0) target = $region89
    $region88: #{mnist_forward.1} parent=1 // pred_region
      %200 = dma.done [#allocation11], 8192
    $region89: #{mnist_forward.1} parent=1 // pred_fallthru
      _
    // Predicated region
    $region90: #{mnist_forward.1} parent=1 // pred_check
      _
    $region91: #{mnist_forward.1} parent=1 // pred_check_branch
      %202 = sbr.rel (0) target = $region93
    $region92: #{mnist_forward.1} parent=1 // pred_region
      %203 = dma.done [#allocation14], 16
    $region93: #{mnist_forward.1} parent=1 // pred_fallthru
      _
    // Predicated region
    $region94: #{mnist_forward.1} parent=1 // pred_check
      _
    $region95: #{mnist_forward.1} parent=1 // pred_check_branch
      %205 = sbr.rel (0) target = $region97
    $region96: #{mnist_forward.1} parent=1 // pred_region
      %206 = dma.done [#allocation14], 16
    $region97: #{mnist_forward.1} parent=1 // pred_fallthru
      _
    // Predicated region
    $region98: #{mnist_forward.1} parent=1 // pred_check
      _
    $region99: #{mnist_forward.1} parent=1 // pred_check_branch
      %208 = sbr.rel (0) target = $region101
    $region100: #{mnist_forward.1} parent=1 // pred_region
      %209 = dma.done [#allocation17], 1024
    $region101: #{mnist_forward.1} parent=1 // pred_fallthru
      _
    // Predicated region
    $region102: #{mnist_forward.1} parent=1 // pred_check
      _
    $region103: #{mnist_forward.1} parent=1 // pred_check_branch
      %211 = sbr.rel (0) target = $region105
    $region104: #{mnist_forward.1} parent=1 // pred_region
      %212 = dma.done [#allocation17], 16
    $region105: #{mnist_forward.1} parent=1 // pred_fallthru
      _
    // Predicated region
    $region106: #{mnist_forward.1} parent=1 // pred_check
      _
    $region107: #{mnist_forward.1} parent=1 // pred_check_branch
      %214 = sbr.rel (0) target = $region109
    $region108: #{mnist_forward.1} parent=1 // pred_region
      %215 = dma.done [#allocation20], 16
    $region109: #{mnist_forward.1} parent=1 // pred_fallthru
      _
    // Predicated region
    $region110: #{mnist_forward.1} parent=1 // pred_check
      _
    $region111: #{mnist_forward.1} parent=1 // pred_check_branch
      %217 = sbr.rel (0) target = $region113
    $region112: #{mnist_forward.1} parent=1 // pred_region
      %218 = dma.done [#allocation20], 1024
    $region113: #{mnist_forward.1} parent=1 // pred_fallthru
      _
    // Predicated region
    $region114: #{mnist_forward.1} parent=1 // pred_check
      _
    $region115: #{mnist_forward.1} parent=1 // pred_check_branch
      %220 = sbr.rel (0) target = $region117
    $region116: #{mnist_forward.1} parent=1 // pred_region
      %221 = dma.done [#allocation23], 16
    $region117: #{mnist_forward.1} parent=1 // pred_fallthru
      _
    %v223 = vld [vmem:[#allocation4] sm:$0x3f]
    %v224 = vld [vmem:[#allocation6] sm:$0x3f]
    %v225 = vld [vmem:[%s0] sm:$0xf]
    %v226 = vld [vmem:[%s0 + $0x4] sm:$0xf]
    %v227 = vld [vmem:[%s0 + $0x8] sm:$0xf]
    %v228 = vld [vmem:[%s0 + $0xc] sm:$0xf]
    %v229 = vld [vmem:[%s0 + $0x10] sm:$0xf]
    %v230 = vld [vmem:[%s0 + $0x14] sm:$0xf]
    %v231 = vld [vmem:[#allocation2] sm:$0xff]
    %v232 = vld [vmem:[#allocation2 + $0x8] sm:$0xff]
    %v233 = vld [vmem:[#allocation2 + $0x10] sm:$0xff]
    %v234 = vld [vmem:[#allocation2 + $0x18] sm:$0xff]
    %v235 = vld [vmem:[#allocation2 + $0x20] sm:$0xff]
    %v236 = vld [vmem:[#allocation2 + $0x28] sm:$0xff]
    %v237 = vld [vmem:[#allocation2 + $0x30] sm:$0xff]
    %v238 = vld [vmem:[#allocation2 + $0x38] sm:$0xff]
    %v239 = vld [vmem:[#allocation2 + $0x40] sm:$0xff]
    %v240 = vld [vmem:[#allocation2 + $0x48] sm:$0x33]
    %v241 = vld [vmem:[#allocation2 + $0x50] sm:$0x33]
    %v242 = vld [vmem:[#allocation2 + $0x58] sm:$0x33]
    %s243 = scalar_lea.vmem %s0, 24
    %v244 = vld [vmem:[%s243] sm:$0xf]
    %v245 = vld [vmem:[%s243 + $0x4] sm:$0xf]
    %v246 = vld [vmem:[%s243 + $0x8] sm:$0xf]
    %v247 = vld [vmem:[%s243 + $0xc] sm:$0xf]
    %v248 = vld [vmem:[%s243 + $0x10] sm:$0xf]
    %v249 = vld [vmem:[%s243 + $0x14] sm:$0xf]
    %s250 = scalar_lea.vmem [#allocation2], 96
    %v251 = vld [vmem:[%s250] sm:$0xff]
    %v252 = vld [vmem:[%s250 + $0x8] sm:$0xff]
    %v253 = vld [vmem:[%s250 + $0x10] sm:$0xff]
    %v254 = vld [vmem:[%s250 + $0x18] sm:$0xff]
    %v255 = vld [vmem:[%s250 + $0x20] sm:$0xff]
    %v256 = vld [vmem:[%s250 + $0x28] sm:$0xff]
    %v257 = vld [vmem:[%s250 + $0x30] sm:$0xff]
    %v258 = vld [vmem:[%s250 + $0x38] sm:$0xff]
    %v259 = vld [vmem:[%s250 + $0x40] sm:$0xff]
    %v260 = vld [vmem:[%s250 + $0x48] sm:$0x33]
    %v261 = vld [vmem:[%s250 + $0x50] sm:$0x33]
    %v262 = vld [vmem:[%s250 + $0x58] sm:$0x33]
    %v269 = vunpack.c.l.b16 %v244
    %v270 = vunpack.c.l.b16 %v245
    %v271 = vunpack.c.l.b16 %v246
    %v272 = vunpack.c.l.b16 %v247
    %v273 = vunpack.c.l.b16 %v248
    %v274 = vunpack.c.l.b16 %v249
    %v275 = vpack.c.b16 %v270, %v269
    %v276 = vpack.c.b16 %v272, %v271
    %v277 = vpack.c.b16 %v274, %v273
    %v290 = vunpack.c.l.b16 %v251
    %v291 = vunpack.c.h.b16 %v251
    %v292 = vunpack.c.l.b16 %v252
    %v293 = vunpack.c.h.b16 %v252
    %v294 = vunpack.c.l.b16 %v253
    %v295 = vunpack.c.h.b16 %v253
    %v296 = vunpack.c.l.b16 %v254
    %v297 = vunpack.c.h.b16 %v254
    %v298 = vunpack.c.l.b16 %v255
    %v299 = vunpack.c.h.b16 %v255
    %v300 = vunpack.c.l.b16 %v256
    %v301 = vunpack.c.h.b16 %v256
    %v302 = vunpack.c.l.b16 %v257
    %v303 = vunpack.c.h.b16 %v257
    %v304 = vunpack.c.l.b16 %v258
    %v305 = vunpack.c.h.b16 %v258
    %v306 = vunpack.c.l.b16 %v259
    %v307 = vunpack.c.h.b16 %v259
    %v308 = vunpack.c.l.b16 %v260
    %v309 = vunpack.c.h.b16 %v260
    %v310 = vunpack.c.l.b16 %v261
    %v311 = vunpack.c.h.b16 %v261
    %v312 = vunpack.c.l.b16 %v262
    %v313 = vunpack.c.h.b16 %v262
    %v314 = vpack.c.b16 %v296, %v290
    %v315 = vpack.c.b16 %v297, %v291
    %v316 = vpack.c.b16 %v298, %v292
    %v317 = vpack.c.b16 %v299, %v293
    %v318 = vpack.c.b16 %v300, %v294
    %v319 = vpack.c.b16 %v301, %v295
    %v320 = vpack.c.b16 %v308, %v302
    %v321 = vpack.c.b16 %v309, %v303
    %v322 = vpack.c.b16 %v310, %v304
    %v323 = vpack.c.b16 %v311, %v305
    %v324 = vpack.c.b16 %v312, %v306
    %v325 = vpack.c.b16 %v313, %v307
    %vm332 = vcmask 228352
    %v334 = vsel %vm332, %v275, 0
    %v337 = vsel %vm332, %v276, 0
    %v340 = vsel %vm332, %v277, 0
    %vm342 = vcmask 1045504
    %v344 = vsel %vm342, %v320, 0
    %v347 = vsel %vm342, %v321, 0
    %v350 = vsel %vm342, %v322, 0
    %v353 = vsel %vm342, %v323, 0
    %v356 = vsel %vm342, %v324, 0
    %v359 = vsel %vm342, %v325, 0
    %361 = vmatprep.subr.bf16.mxu0 0
    %362 = vmatpush1.bf16.msra.mxu0 0
    %363 = vmatprep.subr.bf16.mxu0 0
    %364 = vmatpush1.bf16.msra.mxu0 0
    %365 = vmatprep.subr.bf16.mxu0 0
    %366 = vmatpush1.bf16.msra.mxu0 0
    %367 = vmatprep.subr.bf16.mxu0 0
    %368 = vmatpush1.bf16.msra.mxu0 0
    %369 = vmatprep.subr.bf16.mxu0 0
    %370 = vmatpush1.bf16.msra.mxu0 0
    %371 = vmatprep.subr.bf16.mxu0 0
    %372 = vmatpush1.bf16.msra.mxu0 0
    %373 = vmatprep.subr.bf16.mxu0 %v347
    %374 = vmatpush1.bf16.msra.mxu0 %v344
    %375 = vmatprep.subr.bf16.mxu0 %v315
    %376 = vmatpush1.bf16.msra.mxu0 %v314
    %377 = vmatprep.subr.bf16.mxu0 0
    %378 = vmatpush2.bf16.msra.mxu0 0
    %379 = vmatprep.subr.bf16.mxu0 0
    %380 = vmatpush2.bf16.msra.mxu0 0
    %381 = vmatprep.subr.bf16.mxu0 0
    %382 = vmatpush2.bf16.msra.mxu0 0
    %383 = vmatprep.subr.bf16.mxu0 0
    %384 = vmatpush2.bf16.msra.mxu0 0
    %385 = vmatprep.subr.bf16.mxu0 0
    %386 = vmatpush2.bf16.msra.mxu0 0
    %387 = vmatprep.subr.bf16.mxu0 0
    %388 = vmatpush2.bf16.msra.mxu0 0
    %389 = vmatprep.subr.bf16.mxu0 0
    %390 = vmatpush2.bf16.msra.mxu0 0
    %391 = vmatprep.subr.bf16.mxu0 0
    %392 = vmatpush2.bf16.msra.mxu0 0
    %393 = vmatprep.mubr.bf16.mxu0 0
    %394 = vmatmul.mubr.bf16.gmra.mxu0 %v334
    %v395 = vpop.f32.mrf.mxu0
    %v396 = vadd.f32 0.0, %v395
    %v397 = vpop.f32.mrf.mxu0
    %v398 = vadd.f32 0.0, %v397
    %v399 = vpop.f32.mrf.mxu0
    %v400 = vadd.f32 0.0, %v399
    %v401 = vpop.f32.mrf.mxu0
    %v402 = vadd.f32 0.0, %v401
    %403 = vmatprep.mubr.bf16.mxu0 0
    %404 = vmatmul.mubr.bf16.gmra.mxu0 %v337
    %v405 = vpop.f32.mrf.mxu0
    %v406 = vadd.f32 0.0, %v405
    %v407 = vpop.f32.mrf.mxu0
    %v408 = vadd.f32 0.0, %v407
    %v409 = vpop.f32.mrf.mxu0
    %v410 = vadd.f32 0.0, %v409
    %v411 = vpop.f32.mrf.mxu0
    %v412 = vadd.f32 0.0, %v411
    %413 = vmatprep.mubr.bf16.mxu0 0
    %414 = vmatmul.mubr.bf16.gmra.mxu0 %v340
    %v415 = vpop.f32.mrf.mxu0
    %v416 = vadd.f32 0.0, %v415
    %v417 = vpop.f32.mrf.mxu0
    %v418 = vadd.f32 0.0, %v417
    %v419 = vpop.f32.mrf.mxu0
    %v420 = vadd.f32 0.0, %v419
    %v421 = vpop.f32.mrf.mxu0
    %v422 = vadd.f32 0.0, %v421
    %423 = vdwg.mxu0
    %424 = vmatprep.subr.bf16.mxu0 0
    %425 = vmatpush1.bf16.msra.mxu0 0
    %426 = vmatprep.subr.bf16.mxu0 0
    %427 = vmatpush1.bf16.msra.mxu0 0
    %428 = vmatprep.subr.bf16.mxu0 0
    %429 = vmatpush1.bf16.msra.mxu0 0
    %430 = vmatprep.subr.bf16.mxu0 0
    %431 = vmatpush1.bf16.msra.mxu0 0
    %432 = vmatprep.subr.bf16.mxu0 0
    %433 = vmatpush1.bf16.msra.mxu0 0
    %434 = vmatprep.subr.bf16.mxu0 0
    %435 = vmatpush1.bf16.msra.mxu0 0
    %436 = vmatprep.subr.bf16.mxu0 %v353
    %437 = vmatpush1.bf16.msra.mxu0 %v350
    %438 = vmatprep.subr.bf16.mxu0 %v317
    %439 = vmatpush1.bf16.msra.mxu0 %v316
    %440 = vmatprep.subr.bf16.mxu0 0
    %441 = vmatpush2.bf16.msra.mxu0 0
    %442 = vmatprep.subr.bf16.mxu0 0
    %443 = vmatpush2.bf16.msra.mxu0 0
    %444 = vmatprep.subr.bf16.mxu0 0
    %445 = vmatpush2.bf16.msra.mxu0 0
    %446 = vmatprep.subr.bf16.mxu0 0
    %447 = vmatpush2.bf16.msra.mxu0 0
    %448 = vmatprep.subr.bf16.mxu0 0
    %449 = vmatpush2.bf16.msra.mxu0 0
    %450 = vmatprep.subr.bf16.mxu0 0
    %451 = vmatpush2.bf16.msra.mxu0 0
    %452 = vmatprep.subr.bf16.mxu0 0
    %453 = vmatpush2.bf16.msra.mxu0 0
    %454 = vmatprep.subr.bf16.mxu0 0
    %455 = vmatpush2.bf16.msra.mxu0 0
    %456 = vmatprep.mubr.bf16.mxu0 0
    %457 = vmatmul.mubr.bf16.gmra.mxu0 %v334
    %v458 = vpop.f32.mrf.mxu0
    %v459 = vadd.f32 0.0, %v458
    %v460 = vpop.f32.mrf.mxu0
    %v461 = vadd.f32 0.0, %v460
    %v462 = vpop.f32.mrf.mxu0
    %v463 = vadd.f32 0.0, %v462
    %v464 = vpop.f32.mrf.mxu0
    %v465 = vadd.f32 0.0, %v464
    %466 = vmatprep.mubr.bf16.mxu0 0
    %467 = vmatmul.mubr.bf16.gmra.mxu0 %v337
    %v468 = vpop.f32.mrf.mxu0
    %v469 = vadd.f32 0.0, %v468
    %v470 = vpop.f32.mrf.mxu0
    %v471 = vadd.f32 0.0, %v470
    %v472 = vpop.f32.mrf.mxu0
    %v473 = vadd.f32 0.0, %v472
    %v474 = vpop.f32.mrf.mxu0
    %v475 = vadd.f32 0.0, %v474
    %476 = vmatprep.mubr.bf16.mxu0 0
    %477 = vmatmul.mubr.bf16.gmra.mxu0 %v340
    %v478 = vpop.f32.mrf.mxu0
    %v479 = vadd.f32 0.0, %v478
    %v480 = vpop.f32.mrf.mxu0
    %v481 = vadd.f32 0.0, %v480
    %v482 = vpop.f32.mrf.mxu0
    %v483 = vadd.f32 0.0, %v482
    %v484 = vpop.f32.mrf.mxu0
    %v485 = vadd.f32 0.0, %v484
    %486 = vdwg.mxu0
    %487 = vmatprep.subr.bf16.mxu0 0
    %488 = vmatpush1.bf16.msra.mxu0 0
    %489 = vmatprep.subr.bf16.mxu0 0
    %490 = vmatpush1.bf16.msra.mxu0 0
    %491 = vmatprep.subr.bf16.mxu0 0
    %492 = vmatpush1.bf16.msra.mxu0 0
    %493 = vmatprep.subr.bf16.mxu0 0
    %494 = vmatpush1.bf16.msra.mxu0 0
    %495 = vmatprep.subr.bf16.mxu0 0
    %496 = vmatpush1.bf16.msra.mxu0 0
    %497 = vmatprep.subr.bf16.mxu0 0
    %498 = vmatpush1.bf16.msra.mxu0 0
    %499 = vmatprep.subr.bf16.mxu0 %v359
    %500 = vmatpush1.bf16.msra.mxu0 %v356
    %501 = vmatprep.subr.bf16.mxu0 %v319
    %502 = vmatpush1.bf16.msra.mxu0 %v318
    %503 = vmatprep.subr.bf16.mxu0 0
    %504 = vmatpush2.bf16.msra.mxu0 0
    %505 = vmatprep.subr.bf16.mxu0 0
    %506 = vmatpush2.bf16.msra.mxu0 0
    %507 = vmatprep.subr.bf16.mxu0 0
    %508 = vmatpush2.bf16.msra.mxu0 0
    %509 = vmatprep.subr.bf16.mxu0 0
    %510 = vmatpush2.bf16.msra.mxu0 0
    %511 = vmatprep.subr.bf16.mxu0 0
    %512 = vmatpush2.bf16.msra.mxu0 0
    %513 = vmatprep.subr.bf16.mxu0 0
    %514 = vmatpush2.bf16.msra.mxu0 0
    %515 = vmatprep.subr.bf16.mxu0 0
    %516 = vmatpush2.bf16.msra.mxu0 0
    %517 = vmatprep.subr.bf16.mxu0 0
    %518 = vmatpush2.bf16.msra.mxu0 0
    %519 = vmatprep.mubr.bf16.mxu0 0
    %520 = vmatmul.mubr.bf16.gmra.mxu0 %v334
    %v521 = vpop.f32.mrf.mxu0
    %v522 = vadd.f32 0.0, %v521
    %v523 = vpop.f32.mrf.mxu0
    %v524 = vadd.f32 0.0, %v523
    %v525 = vpop.f32.mrf.mxu0
    %v526 = vadd.f32 0.0, %v525
    %v527 = vpop.f32.mrf.mxu0
    %v528 = vadd.f32 0.0, %v527
    %529 = vmatprep.mubr.bf16.mxu0 0
    %530 = vmatmul.mubr.bf16.gmra.mxu0 %v337
    %v531 = vpop.f32.mrf.mxu0
    %v532 = vadd.f32 0.0, %v531
    %v533 = vpop.f32.mrf.mxu0
    %v534 = vadd.f32 0.0, %v533
    %v535 = vpop.f32.mrf.mxu0
    %v536 = vadd.f32 0.0, %v535
    %v537 = vpop.f32.mrf.mxu0
    %v538 = vadd.f32 0.0, %v537
    %539 = vmatprep.mubr.bf16.mxu0 0
    %540 = vmatmul.mubr.bf16.gmra.mxu0 %v340
    %v541 = vpop.f32.mrf.mxu0
    %v542 = vadd.f32 0.0, %v541
    %v543 = vpop.f32.mrf.mxu0
    %v544 = vadd.f32 0.0, %v543
    %v545 = vpop.f32.mrf.mxu0
    %v546 = vadd.f32 0.0, %v545
    %v547 = vpop.f32.mrf.mxu0
    %v548 = vadd.f32 0.0, %v547
    %549 = vdwg.mxu0
    %v556 = vunpack.c.l.b16 %v225
    %v557 = vunpack.c.l.b16 %v226
    %v558 = vunpack.c.l.b16 %v227
    %v559 = vunpack.c.l.b16 %v228
    %v560 = vunpack.c.l.b16 %v229
    %v561 = vunpack.c.l.b16 %v230
    %v562 = vpack.c.b16 %v557, %v556
    %v563 = vpack.c.b16 %v559, %v558
    %v564 = vpack.c.b16 %v561, %v560
    %v577 = vunpack.c.l.b16 %v231
    %v578 = vunpack.c.h.b16 %v231
    %v579 = vunpack.c.l.b16 %v232
    %v580 = vunpack.c.h.b16 %v232
    %v581 = vunpack.c.l.b16 %v233
    %v582 = vunpack.c.h.b16 %v233
    %v583 = vunpack.c.l.b16 %v234
    %v584 = vunpack.c.h.b16 %v234
    %v585 = vunpack.c.l.b16 %v235
    %v586 = vunpack.c.h.b16 %v235
    %v587 = vunpack.c.l.b16 %v236
    %v588 = vunpack.c.h.b16 %v236
    %v589 = vunpack.c.l.b16 %v237
    %v590 = vunpack.c.h.b16 %v237
    %v591 = vunpack.c.l.b16 %v238
    %v592 = vunpack.c.h.b16 %v238
    %v593 = vunpack.c.l.b16 %v239
    %v594 = vunpack.c.h.b16 %v239
    %v595 = vunpack.c.l.b16 %v240
    %v596 = vunpack.c.h.b16 %v240
    %v597 = vunpack.c.l.b16 %v241
    %v598 = vunpack.c.h.b16 %v241
    %v599 = vunpack.c.l.b16 %v242
    %v600 = vunpack.c.h.b16 %v242
    %v601 = vpack.c.b16 %v583, %v577
    %v602 = vpack.c.b16 %v584, %v578
    %v603 = vpack.c.b16 %v585, %v579
    %v604 = vpack.c.b16 %v586, %v580
    %v605 = vpack.c.b16 %v587, %v581
    %v606 = vpack.c.b16 %v588, %v582
    %v607 = vpack.c.b16 %v595, %v589
    %v608 = vpack.c.b16 %v596, %v590
    %v609 = vpack.c.b16 %v597, %v591
    %v610 = vpack.c.b16 %v598, %v592
    %v611 = vpack.c.b16 %v599, %v593
    %v612 = vpack.c.b16 %v600, %v594
    %v620 = vsel %vm332, %v562, 0
    %v623 = vsel %vm332, %v563, 0
    %v626 = vsel %vm332, %v564, 0
    %v629 = vsel %vm342, %v607, 0
    %v632 = vsel %vm342, %v608, 0
    %v635 = vsel %vm342, %v609, 0
    %v638 = vsel %vm342, %v610, 0
    %v641 = vsel %vm342, %v611, 0
    %v644 = vsel %vm342, %v612, 0
    %646 = vmatprep.subr.bf16.mxu0 0
    %647 = vmatpush1.bf16.msra.mxu0 0
    %648 = vmatprep.subr.bf16.mxu0 0
    %649 = vmatpush1.bf16.msra.mxu0 0
    %650 = vmatprep.subr.bf16.mxu0 0
    %651 = vmatpush1.bf16.msra.mxu0 0
    %652 = vmatprep.subr.bf16.mxu0 0
    %653 = vmatpush1.bf16.msra.mxu0 0
    %654 = vmatprep.subr.bf16.mxu0 0
    %655 = vmatpush1.bf16.msra.mxu0 0
    %656 = vmatprep.subr.bf16.mxu0 0
    %657 = vmatpush1.bf16.msra.mxu0 0
    %658 = vmatprep.subr.bf16.mxu0 %v632
    %659 = vmatpush1.bf16.msra.mxu0 %v629
    %660 = vmatprep.subr.bf16.mxu0 %v602
    %661 = vmatpush1.bf16.msra.mxu0 %v601
    %662 = vmatprep.subr.bf16.mxu0 0
    %663 = vmatpush2.bf16.msra.mxu0 0
    %664 = vmatprep.subr.bf16.mxu0 0
    %665 = vmatpush2.bf16.msra.mxu0 0
    %666 = vmatprep.subr.bf16.mxu0 0
    %667 = vmatpush2.bf16.msra.mxu0 0
    %668 = vmatprep.subr.bf16.mxu0 0
    %669 = vmatpush2.bf16.msra.mxu0 0
    %670 = vmatprep.subr.bf16.mxu0 0
    %671 = vmatpush2.bf16.msra.mxu0 0
    %672 = vmatprep.subr.bf16.mxu0 0
    %673 = vmatpush2.bf16.msra.mxu0 0
    %674 = vmatprep.subr.bf16.mxu0 0
    %675 = vmatpush2.bf16.msra.mxu0 0
    %676 = vmatprep.subr.bf16.mxu0 0
    %677 = vmatpush2.bf16.msra.mxu0 0
    %678 = vmatprep.mubr.bf16.mxu0 0
    %679 = vmatmul.mubr.bf16.gmra.mxu0 %v620
    %v680 = vpop.f32.mrf.mxu0
    %v681 = vadd.f32 %v396, %v680
    %v682 = vpop.f32.mrf.mxu0
    %v683 = vadd.f32 %v398, %v682
    %v684 = vpop.f32.mrf.mxu0
    %v685 = vadd.f32 %v400, %v684
    %v686 = vpop.f32.mrf.mxu0
    %v687 = vadd.f32 %v402, %v686
    %688 = vmatprep.mubr.bf16.mxu0 0
    %689 = vmatmul.mubr.bf16.gmra.mxu0 %v623
    %v690 = vpop.f32.mrf.mxu0
    %v691 = vadd.f32 %v406, %v690
    %v692 = vpop.f32.mrf.mxu0
    %v693 = vadd.f32 %v408, %v692
    %v694 = vpop.f32.mrf.mxu0
    %v695 = vadd.f32 %v410, %v694
    %v696 = vpop.f32.mrf.mxu0
    %v697 = vadd.f32 %v412, %v696
    %698 = vmatprep.mubr.bf16.mxu0 0
    %699 = vmatmul.mubr.bf16.gmra.mxu0 %v626
    %v700 = vpop.f32.mrf.mxu0
    %v701 = vadd.f32 %v416, %v700
    %v702 = vpop.f32.mrf.mxu0
    %v703 = vadd.f32 %v418, %v702
    %v704 = vpop.f32.mrf.mxu0
    %v705 = vadd.f32 %v420, %v704
    %v706 = vpop.f32.mrf.mxu0
    %v707 = vadd.f32 %v422, %v706
    %708 = vdwg.mxu0
    %709 = vmatprep.subr.bf16.mxu0 0
    %710 = vmatpush1.bf16.msra.mxu0 0
    %711 = vmatprep.subr.bf16.mxu0 0
    %712 = vmatpush1.bf16.msra.mxu0 0
    %713 = vmatprep.subr.bf16.mxu0 0
    %714 = vmatpush1.bf16.msra.mxu0 0
    %715 = vmatprep.subr.bf16.mxu0 0
    %716 = vmatpush1.bf16.msra.mxu0 0
    %717 = vmatprep.subr.bf16.mxu0 0
    %718 = vmatpush1.bf16.msra.mxu0 0
    %719 = vmatprep.subr.bf16.mxu0 0
    %720 = vmatpush1.bf16.msra.mxu0 0
    %721 = vmatprep.subr.bf16.mxu0 %v638
    %722 = vmatpush1.bf16.msra.mxu0 %v635
    %723 = vmatprep.subr.bf16.mxu0 %v604
    %724 = vmatpush1.bf16.msra.mxu0 %v603
    %725 = vmatprep.subr.bf16.mxu0 0
    %726 = vmatpush2.bf16.msra.mxu0 0
    %727 = vmatprep.subr.bf16.mxu0 0
    %728 = vmatpush2.bf16.msra.mxu0 0
    %729 = vmatprep.subr.bf16.mxu0 0
    %730 = vmatpush2.bf16.msra.mxu0 0
    %731 = vmatprep.subr.bf16.mxu0 0
    %732 = vmatpush2.bf16.msra.mxu0 0
    %733 = vmatprep.subr.bf16.mxu0 0
    %734 = vmatpush2.bf16.msra.mxu0 0
    %735 = vmatprep.subr.bf16.mxu0 0
    %736 = vmatpush2.bf16.msra.mxu0 0
    %737 = vmatprep.subr.bf16.mxu0 0
    %738 = vmatpush2.bf16.msra.mxu0 0
    %739 = vmatprep.subr.bf16.mxu0 0
    %740 = vmatpush2.bf16.msra.mxu0 0
    %741 = vmatprep.mubr.bf16.mxu0 0
    %742 = vmatmul.mubr.bf16.gmra.mxu0 %v620
    %v743 = vpop.f32.mrf.mxu0
    %v744 = vadd.f32 %v459, %v743
    %v745 = vpop.f32.mrf.mxu0
    %v746 = vadd.f32 %v461, %v745
    %v747 = vpop.f32.mrf.mxu0
    %v748 = vadd.f32 %v463, %v747
    %v749 = vpop.f32.mrf.mxu0
    %v750 = vadd.f32 %v465, %v749
    %751 = vmatprep.mubr.bf16.mxu0 0
    %752 = vmatmul.mubr.bf16.gmra.mxu0 %v623
    %v753 = vpop.f32.mrf.mxu0
    %v754 = vadd.f32 %v469, %v753
    %v755 = vpop.f32.mrf.mxu0
    %v756 = vadd.f32 %v471, %v755
    %v757 = vpop.f32.mrf.mxu0
    %v758 = vadd.f32 %v473, %v757
    %v759 = vpop.f32.mrf.mxu0
    %v760 = vadd.f32 %v475, %v759
    %761 = vmatprep.mubr.bf16.mxu0 0
    %762 = vmatmul.mubr.bf16.gmra.mxu0 %v626
    %v763 = vpop.f32.mrf.mxu0
    %v764 = vadd.f32 %v479, %v763
    %v765 = vpop.f32.mrf.mxu0
    %v766 = vadd.f32 %v481, %v765
    %v767 = vpop.f32.mrf.mxu0
    %v768 = vadd.f32 %v483, %v767
    %v769 = vpop.f32.mrf.mxu0
    %v770 = vadd.f32 %v485, %v769
    %771 = vdwg.mxu0
    %772 = vmatprep.subr.bf16.mxu0 0
    %773 = vmatpush1.bf16.msra.mxu0 0
    %774 = vmatprep.subr.bf16.mxu0 0
    %775 = vmatpush1.bf16.msra.mxu0 0
    %776 = vmatprep.subr.bf16.mxu0 0
    %777 = vmatpush1.bf16.msra.mxu0 0
    %778 = vmatprep.subr.bf16.mxu0 0
    %779 = vmatpush1.bf16.msra.mxu0 0
    %780 = vmatprep.subr.bf16.mxu0 0
    %781 = vmatpush1.bf16.msra.mxu0 0
    %782 = vmatprep.subr.bf16.mxu0 0
    %783 = vmatpush1.bf16.msra.mxu0 0
    %784 = vmatprep.subr.bf16.mxu0 %v644
    %785 = vmatpush1.bf16.msra.mxu0 %v641
    %786 = vmatprep.subr.bf16.mxu0 %v606
    %787 = vmatpush1.bf16.msra.mxu0 %v605
    %788 = vmatprep.subr.bf16.mxu0 0
    %789 = vmatpush2.bf16.msra.mxu0 0
    %790 = vmatprep.subr.bf16.mxu0 0
    %791 = vmatpush2.bf16.msra.mxu0 0
    %792 = vmatprep.subr.bf16.mxu0 0
    %793 = vmatpush2.bf16.msra.mxu0 0
    %794 = vmatprep.subr.bf16.mxu0 0
    %795 = vmatpush2.bf16.msra.mxu0 0
    %796 = vmatprep.subr.bf16.mxu0 0
    %797 = vmatpush2.bf16.msra.mxu0 0
    %798 = vmatprep.subr.bf16.mxu0 0
    %799 = vmatpush2.bf16.msra.mxu0 0
    %800 = vmatprep.subr.bf16.mxu0 0
    %801 = vmatpush2.bf16.msra.mxu0 0
    %802 = vmatprep.subr.bf16.mxu0 0
    %803 = vmatpush2.bf16.msra.mxu0 0
    %804 = vmatprep.mubr.bf16.mxu0 0
    %805 = vmatmul.mubr.bf16.gmra.mxu0 %v620
    %v806 = vpop.f32.mrf.mxu0
    %v807 = vadd.f32 %v522, %v806
    %v808 = vpop.f32.mrf.mxu0
    %v809 = vadd.f32 %v524, %v808
    %v810 = vpop.f32.mrf.mxu0
    %v811 = vadd.f32 %v526, %v810
    %v812 = vpop.f32.mrf.mxu0
    %v813 = vadd.f32 %v528, %v812
    %814 = vmatprep.mubr.bf16.mxu0 0
    %815 = vmatmul.mubr.bf16.gmra.mxu0 %v623
    %v816 = vpop.f32.mrf.mxu0
    %v817 = vadd.f32 %v532, %v816
    %v818 = vpop.f32.mrf.mxu0
    %v819 = vadd.f32 %v534, %v818
    %v820 = vpop.f32.mrf.mxu0
    %v821 = vadd.f32 %v536, %v820
    %v822 = vpop.f32.mrf.mxu0
    %v823 = vadd.f32 %v538, %v822
    %824 = vmatprep.mubr.bf16.mxu0 0
    %825 = vmatmul.mubr.bf16.gmra.mxu0 %v626
    %v826 = vpop.f32.mrf.mxu0
    %v827 = vadd.f32 %v542, %v826
    %v828 = vpop.f32.mrf.mxu0
    %v829 = vadd.f32 %v544, %v828
    %v830 = vpop.f32.mrf.mxu0
    %v831 = vadd.f32 %v546, %v830
    %v832 = vpop.f32.mrf.mxu0
    %v833 = vadd.f32 %v548, %v832
    %834 = vdwg.mxu0
    %s835 = scalar_lea.vmem %s0, 48
    %v836 = vld [vmem:[%s835] sm:$0xf]
    %v837 = vld [vmem:[%s835 + $0x4] sm:$0xf]
    %v838 = vld [vmem:[%s835 + $0x8] sm:$0xf]
    %v839 = vld [vmem:[%s835 + $0xc] sm:$0xf]
    %v840 = vld [vmem:[%s835 + $0x10] sm:$0xf]
    %v841 = vld [vmem:[%s835 + $0x14] sm:$0xf]
    %s842 = scalar_lea.vmem [#allocation2], 192
    %v843 = vld [vmem:[%s842] sm:$0xff]
    %v844 = vld [vmem:[%s842 + $0x8] sm:$0xff]
    %v845 = vld [vmem:[%s842 + $0x10] sm:$0xff]
    %v846 = vld [vmem:[%s842 + $0x18] sm:$0xff]
    %v847 = vld [vmem:[%s842 + $0x20] sm:$0xff]
    %v848 = vld [vmem:[%s842 + $0x28] sm:$0xff]
    %v849 = vld [vmem:[%s842 + $0x30] sm:$0xff]
    %v850 = vld [vmem:[%s842 + $0x38] sm:$0xff]
    %v851 = vld [vmem:[%s842 + $0x40] sm:$0xff]
    %v852 = vld [vmem:[%s842 + $0x48] sm:$0x33]
    %v853 = vld [vmem:[%s842 + $0x50] sm:$0x33]
    %v854 = vld [vmem:[%s842 + $0x58] sm:$0x33]
    %v861 = vunpack.c.l.b16 %v836
    %v862 = vunpack.c.l.b16 %v837
    %v863 = vunpack.c.l.b16 %v838
    %v864 = vunpack.c.l.b16 %v839
    %v865 = vunpack.c.l.b16 %v840
    %v866 = vunpack.c.l.b16 %v841
    %v867 = vpack.c.b16 %v862, %v861
    %v868 = vpack.c.b16 %v864, %v863
    %v869 = vpack.c.b16 %v866, %v865
    %v882 = vunpack.c.l.b16 %v843
    %v883 = vunpack.c.h.b16 %v843
    %v884 = vunpack.c.l.b16 %v844
    %v885 = vunpack.c.h.b16 %v844
    %v886 = vunpack.c.l.b16 %v845
    %v887 = vunpack.c.h.b16 %v845
    %v888 = vunpack.c.l.b16 %v846
    %v889 = vunpack.c.h.b16 %v846
    %v890 = vunpack.c.l.b16 %v847
    %v891 = vunpack.c.h.b16 %v847
    %v892 = vunpack.c.l.b16 %v848
    %v893 = vunpack.c.h.b16 %v848
    %v894 = vunpack.c.l.b16 %v849
    %v895 = vunpack.c.h.b16 %v849
    %v896 = vunpack.c.l.b16 %v850
    %v897 = vunpack.c.h.b16 %v850
    %v898 = vunpack.c.l.b16 %v851
    %v899 = vunpack.c.h.b16 %v851
    %v900 = vunpack.c.l.b16 %v852
    %v901 = vunpack.c.h.b16 %v852
    %v902 = vunpack.c.l.b16 %v853
    %v903 = vunpack.c.h.b16 %v853
    %v904 = vunpack.c.l.b16 %v854
    %v905 = vunpack.c.h.b16 %v854
    %v906 = vpack.c.b16 %v888, %v882
    %v907 = vpack.c.b16 %v889, %v883
    %v908 = vpack.c.b16 %v890, %v884
    %v909 = vpack.c.b16 %v891, %v885
    %v910 = vpack.c.b16 %v892, %v886
    %v911 = vpack.c.b16 %v893, %v887
    %v912 = vpack.c.b16 %v900, %v894
    %v913 = vpack.c.b16 %v901, %v895
    %v914 = vpack.c.b16 %v902, %v896
    %v915 = vpack.c.b16 %v903, %v897
    %v916 = vpack.c.b16 %v904, %v898
    %v917 = vpack.c.b16 %v905, %v899
    %v925 = vsel %vm332, %v867, 0
    %v928 = vsel %vm332, %v868, 0
    %v931 = vsel %vm332, %v869, 0
    %v934 = vsel %vm342, %v912, 0
    %v937 = vsel %vm342, %v913, 0
    %v940 = vsel %vm342, %v914, 0
    %v943 = vsel %vm342, %v915, 0
    %v946 = vsel %vm342, %v916, 0
    %v949 = vsel %vm342, %v917, 0
    %951 = vmatprep.subr.bf16.mxu0 0
    %952 = vmatpush1.bf16.msra.mxu0 0
    %953 = vmatprep.subr.bf16.mxu0 0
    %954 = vmatpush1.bf16.msra.mxu0 0
    %955 = vmatprep.subr.bf16.mxu0 0
    %956 = vmatpush1.bf16.msra.mxu0 0
    %957 = vmatprep.subr.bf16.mxu0 0
    %958 = vmatpush1.bf16.msra.mxu0 0
    %959 = vmatprep.subr.bf16.mxu0 0
    %960 = vmatpush1.bf16.msra.mxu0 0
    %961 = vmatprep.subr.bf16.mxu0 0
    %962 = vmatpush1.bf16.msra.mxu0 0
    %963 = vmatprep.subr.bf16.mxu0 %v937
    %964 = vmatpush1.bf16.msra.mxu0 %v934
    %965 = vmatprep.subr.bf16.mxu0 %v907
    %966 = vmatpush1.bf16.msra.mxu0 %v906
    %967 = vmatprep.subr.bf16.mxu0 0
    %968 = vmatpush2.bf16.msra.mxu0 0
    %969 = vmatprep.subr.bf16.mxu0 0
    %970 = vmatpush2.bf16.msra.mxu0 0
    %971 = vmatprep.subr.bf16.mxu0 0
    %972 = vmatpush2.bf16.msra.mxu0 0
    %973 = vmatprep.subr.bf16.mxu0 0
    %974 = vmatpush2.bf16.msra.mxu0 0
    %975 = vmatprep.subr.bf16.mxu0 0
    %976 = vmatpush2.bf16.msra.mxu0 0
    %977 = vmatprep.subr.bf16.mxu0 0
    %978 = vmatpush2.bf16.msra.mxu0 0
    %979 = vmatprep.subr.bf16.mxu0 0
    %980 = vmatpush2.bf16.msra.mxu0 0
    %981 = vmatprep.subr.bf16.mxu0 0
    %982 = vmatpush2.bf16.msra.mxu0 0
    %983 = vmatprep.mubr.bf16.mxu0 0
    %984 = vmatmul.mubr.bf16.gmra.mxu0 %v925
    %v985 = vpop.f32.mrf.mxu0
    %v986 = vadd.f32 0.0, %v985
    %v987 = vpop.f32.mrf.mxu0
    %v988 = vadd.f32 0.0, %v987
    %v989 = vpop.f32.mrf.mxu0
    %v990 = vadd.f32 0.0, %v989
    %v991 = vpop.f32.mrf.mxu0
    %v992 = vadd.f32 0.0, %v991
    %993 = vmatprep.mubr.bf16.mxu0 0
    %994 = vmatmul.mubr.bf16.gmra.mxu0 %v928
    %v995 = vpop.f32.mrf.mxu0
    %v996 = vadd.f32 0.0, %v995
    %v997 = vpop.f32.mrf.mxu0
    %v998 = vadd.f32 0.0, %v997
    %v999 = vpop.f32.mrf.mxu0
    %v1000 = vadd.f32 0.0, %v999
    %v1001 = vpop.f32.mrf.mxu0
    %v1002 = vadd.f32 0.0, %v1001
    %1003 = vmatprep.mubr.bf16.mxu0 0
    %1004 = vmatmul.mubr.bf16.gmra.mxu0 %v931
    %v1005 = vpop.f32.mrf.mxu0
    %v1006 = vadd.f32 0.0, %v1005
    %v1007 = vpop.f32.mrf.mxu0
    %v1008 = vadd.f32 0.0, %v1007
    %v1009 = vpop.f32.mrf.mxu0
    %v1010 = vadd.f32 0.0, %v1009
    %v1011 = vpop.f32.mrf.mxu0
    %v1012 = vadd.f32 0.0, %v1011
    %1013 = vdwg.mxu0
    %1014 = vmatprep.subr.bf16.mxu0 0
    %1015 = vmatpush1.bf16.msra.mxu0 0
    %1016 = vmatprep.subr.bf16.mxu0 0
    %1017 = vmatpush1.bf16.msra.mxu0 0
    %1018 = vmatprep.subr.bf16.mxu0 0
    %1019 = vmatpush1.bf16.msra.mxu0 0
    %1020 = vmatprep.subr.bf16.mxu0 0
    %1021 = vmatpush1.bf16.msra.mxu0 0
    %1022 = vmatprep.subr.bf16.mxu0 0
    %1023 = vmatpush1.bf16.msra.mxu0 0
    %1024 = vmatprep.subr.bf16.mxu0 0
    %1025 = vmatpush1.bf16.msra.mxu0 0
    %1026 = vmatprep.subr.bf16.mxu0 %v943
    %1027 = vmatpush1.bf16.msra.mxu0 %v940
    %1028 = vmatprep.subr.bf16.mxu0 %v909
    %1029 = vmatpush1.bf16.msra.mxu0 %v908
    %1030 = vmatprep.subr.bf16.mxu0 0
    %1031 = vmatpush2.bf16.msra.mxu0 0
    %1032 = vmatprep.subr.bf16.mxu0 0
    %1033 = vmatpush2.bf16.msra.mxu0 0
    %1034 = vmatprep.subr.bf16.mxu0 0
    %1035 = vmatpush2.bf16.msra.mxu0 0
    %1036 = vmatprep.subr.bf16.mxu0 0
    %1037 = vmatpush2.bf16.msra.mxu0 0
    %1038 = vmatprep.subr.bf16.mxu0 0
    %1039 = vmatpush2.bf16.msra.mxu0 0
    %1040 = vmatprep.subr.bf16.mxu0 0
    %1041 = vmatpush2.bf16.msra.mxu0 0
    %1042 = vmatprep.subr.bf16.mxu0 0
    %1043 = vmatpush2.bf16.msra.mxu0 0
    %1044 = vmatprep.subr.bf16.mxu0 0
    %1045 = vmatpush2.bf16.msra.mxu0 0
    %1046 = vmatprep.mubr.bf16.mxu0 0
    %1047 = vmatmul.mubr.bf16.gmra.mxu0 %v925
    %v1048 = vpop.f32.mrf.mxu0
    %v1049 = vadd.f32 0.0, %v1048
    %v1050 = vpop.f32.mrf.mxu0
    %v1051 = vadd.f32 0.0, %v1050
    %v1052 = vpop.f32.mrf.mxu0
    %v1053 = vadd.f32 0.0, %v1052
    %v1054 = vpop.f32.mrf.mxu0
    %v1055 = vadd.f32 0.0, %v1054
    %1056 = vmatprep.mubr.bf16.mxu0 0
    %1057 = vmatmul.mubr.bf16.gmra.mxu0 %v928
    %v1058 = vpop.f32.mrf.mxu0
    %v1059 = vadd.f32 0.0, %v1058
    %v1060 = vpop.f32.mrf.mxu0
    %v1061 = vadd.f32 0.0, %v1060
    %v1062 = vpop.f32.mrf.mxu0
    %v1063 = vadd.f32 0.0, %v1062
    %v1064 = vpop.f32.mrf.mxu0
    %v1065 = vadd.f32 0.0, %v1064
    %1066 = vmatprep.mubr.bf16.mxu0 0
    %1067 = vmatmul.mubr.bf16.gmra.mxu0 %v931
    %v1068 = vpop.f32.mrf.mxu0
    %v1069 = vadd.f32 0.0, %v1068
    %v1070 = vpop.f32.mrf.mxu0
    %v1071 = vadd.f32 0.0, %v1070
    %v1072 = vpop.f32.mrf.mxu0
    %v1073 = vadd.f32 0.0, %v1072
    %v1074 = vpop.f32.mrf.mxu0
    %v1075 = vadd.f32 0.0, %v1074
    %1076 = vdwg.mxu0
    %1077 = vmatprep.subr.bf16.mxu0 0
    %1078 = vmatpush1.bf16.msra.mxu0 0
    %1079 = vmatprep.subr.bf16.mxu0 0
    %1080 = vmatpush1.bf16.msra.mxu0 0
    %1081 = vmatprep.subr.bf16.mxu0 0
    %1082 = vmatpush1.bf16.msra.mxu0 0
    %1083 = vmatprep.subr.bf16.mxu0 0
    %1084 = vmatpush1.bf16.msra.mxu0 0
    %1085 = vmatprep.subr.bf16.mxu0 0
    %1086 = vmatpush1.bf16.msra.mxu0 0
    %1087 = vmatprep.subr.bf16.mxu0 0
    %1088 = vmatpush1.bf16.msra.mxu0 0
    %1089 = vmatprep.subr.bf16.mxu0 %v949
    %1090 = vmatpush1.bf16.msra.mxu0 %v946
    %1091 = vmatprep.subr.bf16.mxu0 %v911
    %1092 = vmatpush1.bf16.msra.mxu0 %v910
    %1093 = vmatprep.subr.bf16.mxu0 0
    %1094 = vmatpush2.bf16.msra.mxu0 0
    %1095 = vmatprep.subr.bf16.mxu0 0
    %1096 = vmatpush2.bf16.msra.mxu0 0
    %1097 = vmatprep.subr.bf16.mxu0 0
    %1098 = vmatpush2.bf16.msra.mxu0 0
    %1099 = vmatprep.subr.bf16.mxu0 0
    %1100 = vmatpush2.bf16.msra.mxu0 0
    %1101 = vmatprep.subr.bf16.mxu0 0
    %1102 = vmatpush2.bf16.msra.mxu0 0
    %1103 = vmatprep.subr.bf16.mxu0 0
    %1104 = vmatpush2.bf16.msra.mxu0 0
    %1105 = vmatprep.subr.bf16.mxu0 0
    %1106 = vmatpush2.bf16.msra.mxu0 0
    %1107 = vmatprep.subr.bf16.mxu0 0
    %1108 = vmatpush2.bf16.msra.mxu0 0
    %1109 = vmatprep.mubr.bf16.mxu0 0
    %1110 = vmatmul.mubr.bf16.gmra.mxu0 %v925
    %v1111 = vpop.f32.mrf.mxu0
    %v1112 = vadd.f32 0.0, %v1111
    %v1113 = vpop.f32.mrf.mxu0
    %v1114 = vadd.f32 0.0, %v1113
    %v1115 = vpop.f32.mrf.mxu0
    %v1116 = vadd.f32 0.0, %v1115
    %v1117 = vpop.f32.mrf.mxu0
    %v1118 = vadd.f32 0.0, %v1117
    %1119 = vmatprep.mubr.bf16.mxu0 0
    %1120 = vmatmul.mubr.bf16.gmra.mxu0 %v928
    %v1121 = vpop.f32.mrf.mxu0
    %v1122 = vadd.f32 0.0, %v1121
    %v1123 = vpop.f32.mrf.mxu0
    %v1124 = vadd.f32 0.0, %v1123
    %v1125 = vpop.f32.mrf.mxu0
    %v1126 = vadd.f32 0.0, %v1125
    %v1127 = vpop.f32.mrf.mxu0
    %v1128 = vadd.f32 0.0, %v1127
    %1129 = vmatprep.mubr.bf16.mxu0 0
    %1130 = vmatmul.mubr.bf16.gmra.mxu0 %v931
    %v1131 = vpop.f32.mrf.mxu0
    %v1132 = vadd.f32 0.0, %v1131
    %v1133 = vpop.f32.mrf.mxu0
    %v1134 = vadd.f32 0.0, %v1133
    %v1135 = vpop.f32.mrf.mxu0
    %v1136 = vadd.f32 0.0, %v1135
    %v1137 = vpop.f32.mrf.mxu0
    %v1138 = vadd.f32 0.0, %v1137
    %1139 = vdwg.mxu0
    %v1140 = vadd.f32 %v681, %v986
    %v1141 = vadd.f32 %v683, %v988
    %v1142 = vadd.f32 %v744, %v1049
    %v1143 = vadd.f32 %v746, %v1051
    %v1144 = vadd.f32 %v807, %v1112
    %v1145 = vadd.f32 %v809, %v1114
    %v1146 = vadd.f32 %v685, %v990
    %v1147 = vadd.f32 %v687, %v992
    %v1148 = vadd.f32 %v748, %v1053
    %v1149 = vadd.f32 %v750, %v1055
    %v1150 = vadd.f32 %v811, %v1116
    %v1151 = vadd.f32 %v813, %v1118
    %v1152 = vadd.f32 %v691, %v996
    %v1153 = vadd.f32 %v693, %v998
    %v1154 = vadd.f32 %v754, %v1059
    %v1155 = vadd.f32 %v756, %v1061
    %v1156 = vadd.f32 %v817, %v1122
    %v1157 = vadd.f32 %v819, %v1124
    %v1158 = vadd.f32 %v695, %v1000
    %v1159 = vadd.f32 %v697, %v1002
    %v1160 = vadd.f32 %v758, %v1063
    %v1161 = vadd.f32 %v760, %v1065
    %v1162 = vadd.f32 %v821, %v1126
    %v1163 = vadd.f32 %v823, %v1128
    %v1164 = vadd.f32 %v701, %v1006
    %v1165 = vadd.f32 %v703, %v1008
    %v1166 = vadd.f32 %v764, %v1069
    %v1167 = vadd.f32 %v766, %v1071
    %v1168 = vadd.f32 %v827, %v1132
    %v1169 = vadd.f32 %v829, %v1134
    %v1170 = vadd.f32 %v705, %v1010
    %v1171 = vadd.f32 %v707, %v1012
    %v1172 = vadd.f32 %v768, %v1073
    %v1173 = vadd.f32 %v770, %v1075
    %v1174 = vadd.f32 %v831, %v1136
    %v1175 = vadd.f32 %v833, %v1138
    %s1176 = scalar_lea.vmem %s0, 72
    %v1177 = vld [vmem:[%s1176] sm:$0xf]
    %v1178 = vld [vmem:[%s1176 + $0x4] sm:$0xf]
    %v1179 = vld [vmem:[%s1176 + $0x8] sm:$0xf]
    %v1180 = vld [vmem:[%s1176 + $0xc] sm:$0xf]
    %v1181 = vld [vmem:[%s1176 + $0x10] sm:$0xf]
    %v1182 = vld [vmem:[%s1176 + $0x14] sm:$0xf]
    %s1183 = scalar_lea.vmem [#allocation2], 288
    %v1184 = vld [vmem:[%s1183] sm:$0xff]
    %v1185 = vld [vmem:[%s1183 + $0x8] sm:$0xff]
    %v1186 = vld [vmem:[%s1183 + $0x10] sm:$0xff]
    %v1187 = vld [vmem:[%s1183 + $0x18] sm:$0xff]
    %v1188 = vld [vmem:[%s1183 + $0x20] sm:$0xff]
    %v1189 = vld [vmem:[%s1183 + $0x28] sm:$0xff]
    %v1190 = vld [vmem:[%s1183 + $0x30] sm:$0xff]
    %v1191 = vld [vmem:[%s1183 + $0x38] sm:$0xff]
    %v1192 = vld [vmem:[%s1183 + $0x40] sm:$0xff]
    %v1193 = vld [vmem:[%s1183 + $0x48] sm:$0x33]
    %v1194 = vld [vmem:[%s1183 + $0x50] sm:$0x33]
    %v1195 = vld [vmem:[%s1183 + $0x58] sm:$0x33]
    %v1202 = vunpack.c.l.b16 %v1177
    %v1203 = vunpack.c.l.b16 %v1178
    %v1204 = vunpack.c.l.b16 %v1179
    %v1205 = vunpack.c.l.b16 %v1180
    %v1206 = vunpack.c.l.b16 %v1181
    %v1207 = vunpack.c.l.b16 %v1182
    %v1208 = vpack.c.b16 %v1203, %v1202
    %v1209 = vpack.c.b16 %v1205, %v1204
    %v1210 = vpack.c.b16 %v1207, %v1206
    %v1223 = vunpack.c.l.b16 %v1184
    %v1224 = vunpack.c.h.b16 %v1184
    %v1225 = vunpack.c.l.b16 %v1185
    %v1226 = vunpack.c.h.b16 %v1185
    %v1227 = vunpack.c.l.b16 %v1186
    %v1228 = vunpack.c.h.b16 %v1186
    %v1229 = vunpack.c.l.b16 %v1187
    %v1230 = vunpack.c.h.b16 %v1187
    %v1231 = vunpack.c.l.b16 %v1188
    %v1232 = vunpack.c.h.b16 %v1188
    %v1233 = vunpack.c.l.b16 %v1189
    %v1234 = vunpack.c.h.b16 %v1189
    %v1235 = vunpack.c.l.b16 %v1190
    %v1236 = vunpack.c.h.b16 %v1190
    %v1237 = vunpack.c.l.b16 %v1191
    %v1238 = vunpack.c.h.b16 %v1191
    %v1239 = vunpack.c.l.b16 %v1192
    %v1240 = vunpack.c.h.b16 %v1192
    %v1241 = vunpack.c.l.b16 %v1193
    %v1242 = vunpack.c.h.b16 %v1193
    %v1243 = vunpack.c.l.b16 %v1194
    %v1244 = vunpack.c.h.b16 %v1194
    %v1245 = vunpack.c.l.b16 %v1195
    %v1246 = vunpack.c.h.b16 %v1195
    %v1247 = vpack.c.b16 %v1229, %v1223
    %v1248 = vpack.c.b16 %v1230, %v1224
    %v1249 = vpack.c.b16 %v1231, %v1225
    %v1250 = vpack.c.b16 %v1232, %v1226
    %v1251 = vpack.c.b16 %v1233, %v1227
    %v1252 = vpack.c.b16 %v1234, %v1228
    %v1253 = vpack.c.b16 %v1241, %v1235
    %v1254 = vpack.c.b16 %v1242, %v1236
    %v1255 = vpack.c.b16 %v1243, %v1237
    %v1256 = vpack.c.b16 %v1244, %v1238
    %v1257 = vpack.c.b16 %v1245, %v1239
    %v1258 = vpack.c.b16 %v1246, %v1240
    %v1266 = vsel %vm332, %v1208, 0
    %v1269 = vsel %vm332, %v1209, 0
    %v1272 = vsel %vm332, %v1210, 0
    %v1275 = vsel %vm342, %v1253, 0
    %v1278 = vsel %vm342, %v1254, 0
    %v1281 = vsel %vm342, %v1255, 0
    %v1284 = vsel %vm342, %v1256, 0
    %v1287 = vsel %vm342, %v1257, 0
    %v1290 = vsel %vm342, %v1258, 0
    %1292 = vmatprep.subr.bf16.mxu0 0
    %1293 = vmatpush1.bf16.msra.mxu0 0
    %1294 = vmatprep.subr.bf16.mxu0 0
    %1295 = vmatpush1.bf16.msra.mxu0 0
    %1296 = vmatprep.subr.bf16.mxu0 0
    %1297 = vmatpush1.bf16.msra.mxu0 0
    %1298 = vmatprep.subr.bf16.mxu0 0
    %1299 = vmatpush1.bf16.msra.mxu0 0
    %1300 = vmatprep.subr.bf16.mxu0 0
    %1301 = vmatpush1.bf16.msra.mxu0 0
    %1302 = vmatprep.subr.bf16.mxu0 0
    %1303 = vmatpush1.bf16.msra.mxu0 0
    %1304 = vmatprep.subr.bf16.mxu0 %v1278
    %1305 = vmatpush1.bf16.msra.mxu0 %v1275
    %1306 = vmatprep.subr.bf16.mxu0 %v1248
    %1307 = vmatpush1.bf16.msra.mxu0 %v1247
    %1308 = vmatprep.subr.bf16.mxu0 0
    %1309 = vmatpush2.bf16.msra.mxu0 0
    %1310 = vmatprep.subr.bf16.mxu0 0
    %1311 = vmatpush2.bf16.msra.mxu0 0
    %1312 = vmatprep.subr.bf16.mxu0 0
    %1313 = vmatpush2.bf16.msra.mxu0 0
    %1314 = vmatprep.subr.bf16.mxu0 0
    %1315 = vmatpush2.bf16.msra.mxu0 0
    %1316 = vmatprep.subr.bf16.mxu0 0
    %1317 = vmatpush2.bf16.msra.mxu0 0
    %1318 = vmatprep.subr.bf16.mxu0 0
    %1319 = vmatpush2.bf16.msra.mxu0 0
    %1320 = vmatprep.subr.bf16.mxu0 0
    %1321 = vmatpush2.bf16.msra.mxu0 0
    %1322 = vmatprep.subr.bf16.mxu0 0
    %1323 = vmatpush2.bf16.msra.mxu0 0
    %1324 = vmatprep.mubr.bf16.mxu0 0
    %1325 = vmatmul.mubr.bf16.gmra.mxu0 %v1266
    %v1326 = vpop.f32.mrf.mxu0
    %v1327 = vadd.f32 0.0, %v1326
    %v1328 = vpop.f32.mrf.mxu0
    %v1329 = vadd.f32 0.0, %v1328
    %v1330 = vpop.f32.mrf.mxu0
    %v1331 = vadd.f32 0.0, %v1330
    %v1332 = vpop.f32.mrf.mxu0
    %v1333 = vadd.f32 0.0, %v1332
    %1334 = vmatprep.mubr.bf16.mxu0 0
    %1335 = vmatmul.mubr.bf16.gmra.mxu0 %v1269
    %v1336 = vpop.f32.mrf.mxu0
    %v1337 = vadd.f32 0.0, %v1336
    %v1338 = vpop.f32.mrf.mxu0
    %v1339 = vadd.f32 0.0, %v1338
    %v1340 = vpop.f32.mrf.mxu0
    %v1341 = vadd.f32 0.0, %v1340
    %v1342 = vpop.f32.mrf.mxu0
    %v1343 = vadd.f32 0.0, %v1342
    %1344 = vmatprep.mubr.bf16.mxu0 0
    %1345 = vmatmul.mubr.bf16.gmra.mxu0 %v1272
    %v1346 = vpop.f32.mrf.mxu0
    %v1347 = vadd.f32 0.0, %v1346
    %v1348 = vpop.f32.mrf.mxu0
    %v1349 = vadd.f32 0.0, %v1348
    %v1350 = vpop.f32.mrf.mxu0
    %v1351 = vadd.f32 0.0, %v1350
    %v1352 = vpop.f32.mrf.mxu0
    %v1353 = vadd.f32 0.0, %v1352
    %1354 = vdwg.mxu0
    %1355 = vmatprep.subr.bf16.mxu0 0
    %1356 = vmatpush1.bf16.msra.mxu0 0
    %1357 = vmatprep.subr.bf16.mxu0 0
    %1358 = vmatpush1.bf16.msra.mxu0 0
    %1359 = vmatprep.subr.bf16.mxu0 0
    %1360 = vmatpush1.bf16.msra.mxu0 0
    %1361 = vmatprep.subr.bf16.mxu0 0
    %1362 = vmatpush1.bf16.msra.mxu0 0
    %1363 = vmatprep.subr.bf16.mxu0 0
    %1364 = vmatpush1.bf16.msra.mxu0 0
    %1365 = vmatprep.subr.bf16.mxu0 0
    %1366 = vmatpush1.bf16.msra.mxu0 0
    %1367 = vmatprep.subr.bf16.mxu0 %v1284
    %1368 = vmatpush1.bf16.msra.mxu0 %v1281
    %1369 = vmatprep.subr.bf16.mxu0 %v1250
    %1370 = vmatpush1.bf16.msra.mxu0 %v1249
    %1371 = vmatprep.subr.bf16.mxu0 0
    %1372 = vmatpush2.bf16.msra.mxu0 0
    %1373 = vmatprep.subr.bf16.mxu0 0
    %1374 = vmatpush2.bf16.msra.mxu0 0
    %1375 = vmatprep.subr.bf16.mxu0 0
    %1376 = vmatpush2.bf16.msra.mxu0 0
    %1377 = vmatprep.subr.bf16.mxu0 0
    %1378 = vmatpush2.bf16.msra.mxu0 0
    %1379 = vmatprep.subr.bf16.mxu0 0
    %1380 = vmatpush2.bf16.msra.mxu0 0
    %1381 = vmatprep.subr.bf16.mxu0 0
    %1382 = vmatpush2.bf16.msra.mxu0 0
    %1383 = vmatprep.subr.bf16.mxu0 0
    %1384 = vmatpush2.bf16.msra.mxu0 0
    %1385 = vmatprep.subr.bf16.mxu0 0
    %1386 = vmatpush2.bf16.msra.mxu0 0
    %1387 = vmatprep.mubr.bf16.mxu0 0
    %1388 = vmatmul.mubr.bf16.gmra.mxu0 %v1266
    %v1389 = vpop.f32.mrf.mxu0
    %v1390 = vadd.f32 0.0, %v1389
    %v1391 = vpop.f32.mrf.mxu0
    %v1392 = vadd.f32 0.0, %v1391
    %v1393 = vpop.f32.mrf.mxu0
    %v1394 = vadd.f32 0.0, %v1393
    %v1395 = vpop.f32.mrf.mxu0
    %v1396 = vadd.f32 0.0, %v1395
    %1397 = vmatprep.mubr.bf16.mxu0 0
    %1398 = vmatmul.mubr.bf16.gmra.mxu0 %v1269
    %v1399 = vpop.f32.mrf.mxu0
    %v1400 = vadd.f32 0.0, %v1399
    %v1401 = vpop.f32.mrf.mxu0
    %v1402 = vadd.f32 0.0, %v1401
    %v1403 = vpop.f32.mrf.mxu0
    %v1404 = vadd.f32 0.0, %v1403
    %v1405 = vpop.f32.mrf.mxu0
    %v1406 = vadd.f32 0.0, %v1405
    %1407 = vmatprep.mubr.bf16.mxu0 0
    %1408 = vmatmul.mubr.bf16.gmra.mxu0 %v1272
    %v1409 = vpop.f32.mrf.mxu0
    %v1410 = vadd.f32 0.0, %v1409
    %v1411 = vpop.f32.mrf.mxu0
    %v1412 = vadd.f32 0.0, %v1411
    %v1413 = vpop.f32.mrf.mxu0
    %v1414 = vadd.f32 0.0, %v1413
    %v1415 = vpop.f32.mrf.mxu0
    %v1416 = vadd.f32 0.0, %v1415
    %1417 = vdwg.mxu0
    %1418 = vmatprep.subr.bf16.mxu0 0
    %1419 = vmatpush1.bf16.msra.mxu0 0
    %1420 = vmatprep.subr.bf16.mxu0 0
    %1421 = vmatpush1.bf16.msra.mxu0 0
    %1422 = vmatprep.subr.bf16.mxu0 0
    %1423 = vmatpush1.bf16.msra.mxu0 0
    %1424 = vmatprep.subr.bf16.mxu0 0
    %1425 = vmatpush1.bf16.msra.mxu0 0
    %1426 = vmatprep.subr.bf16.mxu0 0
    %1427 = vmatpush1.bf16.msra.mxu0 0
    %1428 = vmatprep.subr.bf16.mxu0 0
    %1429 = vmatpush1.bf16.msra.mxu0 0
    %1430 = vmatprep.subr.bf16.mxu0 %v1290
    %1431 = vmatpush1.bf16.msra.mxu0 %v1287
    %1432 = vmatprep.subr.bf16.mxu0 %v1252
    %1433 = vmatpush1.bf16.msra.mxu0 %v1251
    %1434 = vmatprep.subr.bf16.mxu0 0
    %1435 = vmatpush2.bf16.msra.mxu0 0
    %1436 = vmatprep.subr.bf16.mxu0 0
    %1437 = vmatpush2.bf16.msra.mxu0 0
    %1438 = vmatprep.subr.bf16.mxu0 0
    %1439 = vmatpush2.bf16.msra.mxu0 0
    %1440 = vmatprep.subr.bf16.mxu0 0
    %1441 = vmatpush2.bf16.msra.mxu0 0
    %1442 = vmatprep.subr.bf16.mxu0 0
    %1443 = vmatpush2.bf16.msra.mxu0 0
    %1444 = vmatprep.subr.bf16.mxu0 0
    %1445 = vmatpush2.bf16.msra.mxu0 0
    %1446 = vmatprep.subr.bf16.mxu0 0
    %1447 = vmatpush2.bf16.msra.mxu0 0
    %1448 = vmatprep.subr.bf16.mxu0 0
    %1449 = vmatpush2.bf16.msra.mxu0 0
    %1450 = vmatprep.mubr.bf16.mxu0 0
    %1451 = vmatmul.mubr.bf16.gmra.mxu0 %v1266
    %v1452 = vpop.f32.mrf.mxu0
    %v1453 = vadd.f32 0.0, %v1452
    %v1454 = vpop.f32.mrf.mxu0
    %v1455 = vadd.f32 0.0, %v1454
    %v1456 = vpop.f32.mrf.mxu0
    %v1457 = vadd.f32 0.0, %v1456
    %v1458 = vpop.f32.mrf.mxu0
    %v1459 = vadd.f32 0.0, %v1458
    %1460 = vmatprep.mubr.bf16.mxu0 0
    %1461 = vmatmul.mubr.bf16.gmra.mxu0 %v1269
    %v1462 = vpop.f32.mrf.mxu0
    %v1463 = vadd.f32 0.0, %v1462
    %v1464 = vpop.f32.mrf.mxu0
    %v1465 = vadd.f32 0.0, %v1464
    %v1466 = vpop.f32.mrf.mxu0
    %v1467 = vadd.f32 0.0, %v1466
    %v1468 = vpop.f32.mrf.mxu0
    %v1469 = vadd.f32 0.0, %v1468
    %1470 = vmatprep.mubr.bf16.mxu0 0
    %1471 = vmatmul.mubr.bf16.gmra.mxu0 %v1272
    %v1472 = vpop.f32.mrf.mxu0
    %v1473 = vadd.f32 0.0, %v1472
    %v1474 = vpop.f32.mrf.mxu0
    %v1475 = vadd.f32 0.0, %v1474
    %v1476 = vpop.f32.mrf.mxu0
    %v1477 = vadd.f32 0.0, %v1476
    %v1478 = vpop.f32.mrf.mxu0
    %v1479 = vadd.f32 0.0, %v1478
    %1480 = vdwg.mxu0
    %v1481 = vadd.f32 %v1140, %v1327
    %v1482 = vadd.f32 %v1141, %v1329
    %v1483 = vadd.f32 %v1142, %v1390
    %v1484 = vadd.f32 %v1143, %v1392
    %v1485 = vadd.f32 %v1144, %v1453
    %v1486 = vadd.f32 %v1145, %v1455
    %v1487 = vadd.f32 %v1146, %v1331
    %v1488 = vadd.f32 %v1147, %v1333
    %v1489 = vadd.f32 %v1148, %v1394
    %v1490 = vadd.f32 %v1149, %v1396
    %v1491 = vadd.f32 %v1150, %v1457
    %v1492 = vadd.f32 %v1151, %v1459
    %v1493 = vadd.f32 %v1152, %v1337
    %v1494 = vadd.f32 %v1153, %v1339
    %v1495 = vadd.f32 %v1154, %v1400
    %v1496 = vadd.f32 %v1155, %v1402
    %v1497 = vadd.f32 %v1156, %v1463
    %v1498 = vadd.f32 %v1157, %v1465
    %v1499 = vadd.f32 %v1158, %v1341
    %v1500 = vadd.f32 %v1159, %v1343
    %v1501 = vadd.f32 %v1160, %v1404
    %v1502 = vadd.f32 %v1161, %v1406
    %v1503 = vadd.f32 %v1162, %v1467
    %v1504 = vadd.f32 %v1163, %v1469
    %v1505 = vadd.f32 %v1164, %v1347
    %v1506 = vadd.f32 %v1165, %v1349
    %v1507 = vadd.f32 %v1166, %v1410
    %v1508 = vadd.f32 %v1167, %v1412
    %v1509 = vadd.f32 %v1168, %v1473
    %v1510 = vadd.f32 %v1169, %v1475
    %v1511 = vadd.f32 %v1170, %v1351
    %v1512 = vadd.f32 %v1171, %v1353
    %v1513 = vadd.f32 %v1172, %v1414
    %v1514 = vadd.f32 %v1173, %v1416
    %v1515 = vadd.f32 %v1174, %v1477
    %v1516 = vadd.f32 %v1175, %v1479
    %s1517 = scalar_lea.vmem %s0, 96
    %v1518 = vld [vmem:[%s1517] sm:$0xf]
    %v1519 = vld [vmem:[%s1517 + $0x4] sm:$0xf]
    %v1520 = vld [vmem:[%s1517 + $0x8] sm:$0xf]
    %v1521 = vld [vmem:[%s1517 + $0xc] sm:$0xf]
    %v1522 = vld [vmem:[%s1517 + $0x10] sm:$0xf]
    %v1523 = vld [vmem:[%s1517 + $0x14] sm:$0xf]
    %s1524 = scalar_lea.vmem [#allocation2], 384
    %v1525 = vld [vmem:[%s1524] sm:$0xff]
    %v1526 = vld [vmem:[%s1524 + $0x8] sm:$0xff]
    %v1527 = vld [vmem:[%s1524 + $0x10] sm:$0xff]
    %v1528 = vld [vmem:[%s1524 + $0x18] sm:$0xff]
    %v1529 = vld [vmem:[%s1524 + $0x20] sm:$0xff]
    %v1530 = vld [vmem:[%s1524 + $0x28] sm:$0xff]
    %v1531 = vld [vmem:[%s1524 + $0x30] sm:$0xff]
    %v1532 = vld [vmem:[%s1524 + $0x38] sm:$0xff]
    %v1533 = vld [vmem:[%s1524 + $0x40] sm:$0xff]
    %v1534 = vld [vmem:[%s1524 + $0x48] sm:$0x33]
    %v1535 = vld [vmem:[%s1524 + $0x50] sm:$0x33]
    %v1536 = vld [vmem:[%s1524 + $0x58] sm:$0x33]
    %v1543 = vunpack.c.l.b16 %v1518
    %v1544 = vunpack.c.l.b16 %v1519
    %v1545 = vunpack.c.l.b16 %v1520
    %v1546 = vunpack.c.l.b16 %v1521
    %v1547 = vunpack.c.l.b16 %v1522
    %v1548 = vunpack.c.l.b16 %v1523
    %v1549 = vpack.c.b16 %v1544, %v1543
    %v1550 = vpack.c.b16 %v1546, %v1545
    %v1551 = vpack.c.b16 %v1548, %v1547
    %v1564 = vunpack.c.l.b16 %v1525
    %v1565 = vunpack.c.h.b16 %v1525
    %v1566 = vunpack.c.l.b16 %v1526
    %v1567 = vunpack.c.h.b16 %v1526
    %v1568 = vunpack.c.l.b16 %v1527
    %v1569 = vunpack.c.h.b16 %v1527
    %v1570 = vunpack.c.l.b16 %v1528
    %v1571 = vunpack.c.h.b16 %v1528
    %v1572 = vunpack.c.l.b16 %v1529
    %v1573 = vunpack.c.h.b16 %v1529
    %v1574 = vunpack.c.l.b16 %v1530
    %v1575 = vunpack.c.h.b16 %v1530
    %v1576 = vunpack.c.l.b16 %v1531
    %v1577 = vunpack.c.h.b16 %v1531
    %v1578 = vunpack.c.l.b16 %v1532
    %v1579 = vunpack.c.h.b16 %v1532
    %v1580 = vunpack.c.l.b16 %v1533
    %v1581 = vunpack.c.h.b16 %v1533
    %v1582 = vunpack.c.l.b16 %v1534
    %v1583 = vunpack.c.h.b16 %v1534
    %v1584 = vunpack.c.l.b16 %v1535
    %v1585 = vunpack.c.h.b16 %v1535
    %v1586 = vunpack.c.l.b16 %v1536
    %v1587 = vunpack.c.h.b16 %v1536
    %v1588 = vpack.c.b16 %v1570, %v1564
    %v1589 = vpack.c.b16 %v1571, %v1565
    %v1590 = vpack.c.b16 %v1572, %v1566
    %v1591 = vpack.c.b16 %v1573, %v1567
    %v1592 = vpack.c.b16 %v1574, %v1568
    %v1593 = vpack.c.b16 %v1575, %v1569
    %v1594 = vpack.c.b16 %v1582, %v1576
    %v1595 = vpack.c.b16 %v1583, %v1577
    %v1596 = vpack.c.b16 %v1584, %v1578
    %v1597 = vpack.c.b16 %v1585, %v1579
    %v1598 = vpack.c.b16 %v1586, %v1580
    %v1599 = vpack.c.b16 %v1587, %v1581
    %v1607 = vsel %vm332, %v1549, 0
    %v1610 = vsel %vm332, %v1550, 0
    %v1613 = vsel %vm332, %v1551, 0
    %v1616 = vsel %vm342, %v1594, 0
    %v1619 = vsel %vm342, %v1595, 0
    %v1622 = vsel %vm342, %v1596, 0
    %v1625 = vsel %vm342, %v1597, 0
    %v1628 = vsel %vm342, %v1598, 0
    %v1631 = vsel %vm342, %v1599, 0
    %1633 = vmatprep.subr.bf16.mxu0 0
    %1634 = vmatpush1.bf16.msra.mxu0 0
    %1635 = vmatprep.subr.bf16.mxu0 0
    %1636 = vmatpush1.bf16.msra.mxu0 0
    %1637 = vmatprep.subr.bf16.mxu0 0
    %1638 = vmatpush1.bf16.msra.mxu0 0
    %1639 = vmatprep.subr.bf16.mxu0 0
    %1640 = vmatpush1.bf16.msra.mxu0 0
    %1641 = vmatprep.subr.bf16.mxu0 0
    %1642 = vmatpush1.bf16.msra.mxu0 0
    %1643 = vmatprep.subr.bf16.mxu0 0
    %1644 = vmatpush1.bf16.msra.mxu0 0
    %1645 = vmatprep.subr.bf16.mxu0 %v1619
    %1646 = vmatpush1.bf16.msra.mxu0 %v1616
    %1647 = vmatprep.subr.bf16.mxu0 %v1589
    %1648 = vmatpush1.bf16.msra.mxu0 %v1588
    %1649 = vmatprep.subr.bf16.mxu0 0
    %1650 = vmatpush2.bf16.msra.mxu0 0
    %1651 = vmatprep.subr.bf16.mxu0 0
    %1652 = vmatpush2.bf16.msra.mxu0 0
    %1653 = vmatprep.subr.bf16.mxu0 0
    %1654 = vmatpush2.bf16.msra.mxu0 0
    %1655 = vmatprep.subr.bf16.mxu0 0
    %1656 = vmatpush2.bf16.msra.mxu0 0
    %1657 = vmatprep.subr.bf16.mxu0 0
    %1658 = vmatpush2.bf16.msra.mxu0 0
    %1659 = vmatprep.subr.bf16.mxu0 0
    %1660 = vmatpush2.bf16.msra.mxu0 0
    %1661 = vmatprep.subr.bf16.mxu0 0
    %1662 = vmatpush2.bf16.msra.mxu0 0
    %1663 = vmatprep.subr.bf16.mxu0 0
    %1664 = vmatpush2.bf16.msra.mxu0 0
    %1665 = vmatprep.mubr.bf16.mxu0 0
    %1666 = vmatmul.mubr.bf16.gmra.mxu0 %v1607
    %v1667 = vpop.f32.mrf.mxu0
    %v1668 = vadd.f32 0.0, %v1667
    %v1669 = vpop.f32.mrf.mxu0
    %v1670 = vadd.f32 0.0, %v1669
    %v1671 = vpop.f32.mrf.mxu0
    %v1672 = vadd.f32 0.0, %v1671
    %v1673 = vpop.f32.mrf.mxu0
    %v1674 = vadd.f32 0.0, %v1673
    %1675 = vmatprep.mubr.bf16.mxu0 0
    %1676 = vmatmul.mubr.bf16.gmra.mxu0 %v1610
    %v1677 = vpop.f32.mrf.mxu0
    %v1678 = vadd.f32 0.0, %v1677
    %v1679 = vpop.f32.mrf.mxu0
    %v1680 = vadd.f32 0.0, %v1679
    %v1681 = vpop.f32.mrf.mxu0
    %v1682 = vadd.f32 0.0, %v1681
    %v1683 = vpop.f32.mrf.mxu0
    %v1684 = vadd.f32 0.0, %v1683
    %1685 = vmatprep.mubr.bf16.mxu0 0
    %1686 = vmatmul.mubr.bf16.gmra.mxu0 %v1613
    %v1687 = vpop.f32.mrf.mxu0
    %v1688 = vadd.f32 0.0, %v1687
    %v1689 = vpop.f32.mrf.mxu0
    %v1690 = vadd.f32 0.0, %v1689
    %v1691 = vpop.f32.mrf.mxu0
    %v1692 = vadd.f32 0.0, %v1691
    %v1693 = vpop.f32.mrf.mxu0
    %v1694 = vadd.f32 0.0, %v1693
    %1695 = vdwg.mxu0
    %1696 = vmatprep.subr.bf16.mxu0 0
    %1697 = vmatpush1.bf16.msra.mxu0 0
    %1698 = vmatprep.subr.bf16.mxu0 0
    %1699 = vmatpush1.bf16.msra.mxu0 0
    %1700 = vmatprep.subr.bf16.mxu0 0
    %1701 = vmatpush1.bf16.msra.mxu0 0
    %1702 = vmatprep.subr.bf16.mxu0 0
    %1703 = vmatpush1.bf16.msra.mxu0 0
    %1704 = vmatprep.subr.bf16.mxu0 0
    %1705 = vmatpush1.bf16.msra.mxu0 0
    %1706 = vmatprep.subr.bf16.mxu0 0
    %1707 = vmatpush1.bf16.msra.mxu0 0
    %1708 = vmatprep.subr.bf16.mxu0 %v1625
    %1709 = vmatpush1.bf16.msra.mxu0 %v1622
    %1710 = vmatprep.subr.bf16.mxu0 %v1591
    %1711 = vmatpush1.bf16.msra.mxu0 %v1590
    %1712 = vmatprep.subr.bf16.mxu0 0
    %1713 = vmatpush2.bf16.msra.mxu0 0
    %1714 = vmatprep.subr.bf16.mxu0 0
    %1715 = vmatpush2.bf16.msra.mxu0 0
    %1716 = vmatprep.subr.bf16.mxu0 0
    %1717 = vmatpush2.bf16.msra.mxu0 0
    %1718 = vmatprep.subr.bf16.mxu0 0
    %1719 = vmatpush2.bf16.msra.mxu0 0
    %1720 = vmatprep.subr.bf16.mxu0 0
    %1721 = vmatpush2.bf16.msra.mxu0 0
    %1722 = vmatprep.subr.bf16.mxu0 0
    %1723 = vmatpush2.bf16.msra.mxu0 0
    %1724 = vmatprep.subr.bf16.mxu0 0
    %1725 = vmatpush2.bf16.msra.mxu0 0
    %1726 = vmatprep.subr.bf16.mxu0 0
    %1727 = vmatpush2.bf16.msra.mxu0 0
    %1728 = vmatprep.mubr.bf16.mxu0 0
    %1729 = vmatmul.mubr.bf16.gmra.mxu0 %v1607
    %v1730 = vpop.f32.mrf.mxu0
    %v1731 = vadd.f32 0.0, %v1730
    %v1732 = vpop.f32.mrf.mxu0
    %v1733 = vadd.f32 0.0, %v1732
    %v1734 = vpop.f32.mrf.mxu0
    %v1735 = vadd.f32 0.0, %v1734
    %v1736 = vpop.f32.mrf.mxu0
    %v1737 = vadd.f32 0.0, %v1736
    %1738 = vmatprep.mubr.bf16.mxu0 0
    %1739 = vmatmul.mubr.bf16.gmra.mxu0 %v1610
    %v1740 = vpop.f32.mrf.mxu0
    %v1741 = vadd.f32 0.0, %v1740
    %v1742 = vpop.f32.mrf.mxu0
    %v1743 = vadd.f32 0.0, %v1742
    %v1744 = vpop.f32.mrf.mxu0
    %v1745 = vadd.f32 0.0, %v1744
    %v1746 = vpop.f32.mrf.mxu0
    %v1747 = vadd.f32 0.0, %v1746
    %1748 = vmatprep.mubr.bf16.mxu0 0
    %1749 = vmatmul.mubr.bf16.gmra.mxu0 %v1613
    %v1750 = vpop.f32.mrf.mxu0
    %v1751 = vadd.f32 0.0, %v1750
    %v1752 = vpop.f32.mrf.mxu0
    %v1753 = vadd.f32 0.0, %v1752
    %v1754 = vpop.f32.mrf.mxu0
    %v1755 = vadd.f32 0.0, %v1754
    %v1756 = vpop.f32.mrf.mxu0
    %v1757 = vadd.f32 0.0, %v1756
    %1758 = vdwg.mxu0
    %1759 = vmatprep.subr.bf16.mxu0 0
    %1760 = vmatpush1.bf16.msra.mxu0 0
    %1761 = vmatprep.subr.bf16.mxu0 0
    %1762 = vmatpush1.bf16.msra.mxu0 0
    %1763 = vmatprep.subr.bf16.mxu0 0
    %1764 = vmatpush1.bf16.msra.mxu0 0
    %1765 = vmatprep.subr.bf16.mxu0 0
    %1766 = vmatpush1.bf16.msra.mxu0 0
    %1767 = vmatprep.subr.bf16.mxu0 0
    %1768 = vmatpush1.bf16.msra.mxu0 0
    %1769 = vmatprep.subr.bf16.mxu0 0
    %1770 = vmatpush1.bf16.msra.mxu0 0
    %1771 = vmatprep.subr.bf16.mxu0 %v1631
    %1772 = vmatpush1.bf16.msra.mxu0 %v1628
    %1773 = vmatprep.subr.bf16.mxu0 %v1593
    %1774 = vmatpush1.bf16.msra.mxu0 %v1592
    %1775 = vmatprep.subr.bf16.mxu0 0
    %1776 = vmatpush2.bf16.msra.mxu0 0
    %1777 = vmatprep.subr.bf16.mxu0 0
    %1778 = vmatpush2.bf16.msra.mxu0 0
    %1779 = vmatprep.subr.bf16.mxu0 0
    %1780 = vmatpush2.bf16.msra.mxu0 0
    %1781 = vmatprep.subr.bf16.mxu0 0
    %1782 = vmatpush2.bf16.msra.mxu0 0
    %1783 = vmatprep.subr.bf16.mxu0 0
    %1784 = vmatpush2.bf16.msra.mxu0 0
    %1785 = vmatprep.subr.bf16.mxu0 0
    %1786 = vmatpush2.bf16.msra.mxu0 0
    %1787 = vmatprep.subr.bf16.mxu0 0
    %1788 = vmatpush2.bf16.msra.mxu0 0
    %1789 = vmatprep.subr.bf16.mxu0 0
    %1790 = vmatpush2.bf16.msra.mxu0 0
    %1791 = vmatprep.mubr.bf16.mxu0 0
    %1792 = vmatmul.mubr.bf16.gmra.mxu0 %v1607
    %v1793 = vpop.f32.mrf.mxu0
    %v1794 = vadd.f32 0.0, %v1793
    %v1795 = vpop.f32.mrf.mxu0
    %v1796 = vadd.f32 0.0, %v1795
    %v1797 = vpop.f32.mrf.mxu0
    %v1798 = vadd.f32 0.0, %v1797
    %v1799 = vpop.f32.mrf.mxu0
    %v1800 = vadd.f32 0.0, %v1799
    %1801 = vmatprep.mubr.bf16.mxu0 0
    %1802 = vmatmul.mubr.bf16.gmra.mxu0 %v1610
    %v1803 = vpop.f32.mrf.mxu0
    %v1804 = vadd.f32 0.0, %v1803
    %v1805 = vpop.f32.mrf.mxu0
    %v1806 = vadd.f32 0.0, %v1805
    %v1807 = vpop.f32.mrf.mxu0
    %v1808 = vadd.f32 0.0, %v1807
    %v1809 = vpop.f32.mrf.mxu0
    %v1810 = vadd.f32 0.0, %v1809
    %1811 = vmatprep.mubr.bf16.mxu0 0
    %1812 = vmatmul.mubr.bf16.gmra.mxu0 %v1613
    %v1813 = vpop.f32.mrf.mxu0
    %v1814 = vadd.f32 0.0, %v1813
    %v1815 = vpop.f32.mrf.mxu0
    %v1816 = vadd.f32 0.0, %v1815
    %v1817 = vpop.f32.mrf.mxu0
    %v1818 = vadd.f32 0.0, %v1817
    %v1819 = vpop.f32.mrf.mxu0
    %v1820 = vadd.f32 0.0, %v1819
    %1821 = vdwg.mxu0
    %v1822 = vadd.f32 %v1481, %v1668
    %v1823 = vadd.f32 %v1482, %v1670
    %v1824 = vadd.f32 %v1483, %v1731
    %v1825 = vadd.f32 %v1484, %v1733
    %v1826 = vadd.f32 %v1485, %v1794
    %v1827 = vadd.f32 %v1486, %v1796
    %v1828 = vadd.f32 %v1487, %v1672
    %v1829 = vadd.f32 %v1488, %v1674
    %v1830 = vadd.f32 %v1489, %v1735
    %v1831 = vadd.f32 %v1490, %v1737
    %v1832 = vadd.f32 %v1491, %v1798
    %v1833 = vadd.f32 %v1492, %v1800
    %v1834 = vadd.f32 %v1493, %v1678
    %v1835 = vadd.f32 %v1494, %v1680
    %v1836 = vadd.f32 %v1495, %v1741
    %v1837 = vadd.f32 %v1496, %v1743
    %v1838 = vadd.f32 %v1497, %v1804
    %v1839 = vadd.f32 %v1498, %v1806
    %v1840 = vadd.f32 %v1499, %v1682
    %v1841 = vadd.f32 %v1500, %v1684
    %v1842 = vadd.f32 %v1501, %v1745
    %v1843 = vadd.f32 %v1502, %v1747
    %v1844 = vadd.f32 %v1503, %v1808
    %v1845 = vadd.f32 %v1504, %v1810
    %v1846 = vadd.f32 %v1505, %v1688
    %v1847 = vadd.f32 %v1506, %v1690
    %v1848 = vadd.f32 %v1507, %v1751
    %v1849 = vadd.f32 %v1508, %v1753
    %v1850 = vadd.f32 %v1509, %v1814
    %v1851 = vadd.f32 %v1510, %v1816
    %v1852 = vadd.f32 %v1511, %v1692
    %v1853 = vadd.f32 %v1512, %v1694
    %v1854 = vadd.f32 %v1513, %v1755
    %v1855 = vadd.f32 %v1514, %v1757
    %v1856 = vadd.f32 %v1515, %v1818
    %v1857 = vadd.f32 %v1516, %v1820
    %v1859 = vlaneseq
    %v1860 = vshrl.u32 %v1859, 7
    %v1861 = vsub.s32 0, %v1860
    %v1862 = vrot.slane %v223, %v1861
    %v1863 = vlaneseq
    %v1864 = vshrl.u32 %v1863, 7
    %v1865 = vsub.s32 1, %v1864
    %v1866 = vrot.slane %v223, %v1865
    %v1867 = vlaneseq
    %v1868 = vshrl.u32 %v1867, 7
    %v1869 = vsub.s32 2, %v1868
    %v1870 = vrot.slane %v223, %v1869
    %v1871 = vlaneseq
    %v1872 = vshrl.u32 %v1871, 7
    %v1873 = vsub.s32 3, %v1872
    %v1874 = vrot.slane %v223, %v1873
    %v1875 = vlaneseq
    %v1876 = vshrl.u32 %v1875, 7
    %v1877 = vsub.s32 4, %v1876
    %v1878 = vrot.slane %v223, %v1877
    %v1879 = vlaneseq
    %v1880 = vshrl.u32 %v1879, 7
    %v1881 = vsub.s32 5, %v1880
    %v1882 = vrot.slane %v223, %v1881
    %v1889 = vmul.f32 %v1822, %v1862
    %v1890 = vmul.f32 %v1823, %v1866
    %v1891 = vmul.f32 %v1824, %v1870
    %v1892 = vmul.f32 %v1825, %v1874
    %v1893 = vmul.f32 %v1826, %v1878
    %v1894 = vmul.f32 %v1827, %v1882
    %v1895 = vmul.f32 %v1828, %v1862
    %v1896 = vmul.f32 %v1829, %v1866
    %v1897 = vmul.f32 %v1830, %v1870
    %v1898 = vmul.f32 %v1831, %v1874
    %v1899 = vmul.f32 %v1832, %v1878
    %v1900 = vmul.f32 %v1833, %v1882
    %v1901 = vmul.f32 %v1834, %v1862
    %v1902 = vmul.f32 %v1835, %v1866
    %v1903 = vmul.f32 %v1836, %v1870
    %v1904 = vmul.f32 %v1837, %v1874
    %v1905 = vmul.f32 %v1838, %v1878
    %v1906 = vmul.f32 %v1839, %v1882
    %v1907 = vmul.f32 %v1840, %v1862
    %v1908 = vmul.f32 %v1841, %v1866
    %v1909 = vmul.f32 %v1842, %v1870
    %v1910 = vmul.f32 %v1843, %v1874
    %v1911 = vmul.f32 %v1844, %v1878
    %v1912 = vmul.f32 %v1845, %v1882
    %v1913 = vmul.f32 %v1846, %v1862
    %v1914 = vmul.f32 %v1847, %v1866
    %v1915 = vmul.f32 %v1848, %v1870
    %v1916 = vmul.f32 %v1849, %v1874
    %v1917 = vmul.f32 %v1850, %v1878
    %v1918 = vmul.f32 %v1851, %v1882
    %v1919 = vmul.f32 %v1852, %v1862
    %v1920 = vmul.f32 %v1853, %v1866
    %v1921 = vmul.f32 %v1854, %v1870
    %v1922 = vmul.f32 %v1855, %v1874
    %v1923 = vmul.f32 %v1856, %v1878
    %v1924 = vmul.f32 %v1857, %v1882
    %v1926 = vlaneseq
    %v1927 = vshrl.u32 %v1926, 7
    %v1928 = vsub.s32 0, %v1927
    %v1929 = vrot.slane %v224, %v1928
    %v1930 = vlaneseq
    %v1931 = vshrl.u32 %v1930, 7
    %v1932 = vsub.s32 1, %v1931
    %v1933 = vrot.slane %v224, %v1932
    %v1934 = vlaneseq
    %v1935 = vshrl.u32 %v1934, 7
    %v1936 = vsub.s32 2, %v1935
    %v1937 = vrot.slane %v224, %v1936
    %v1938 = vlaneseq
    %v1939 = vshrl.u32 %v1938, 7
    %v1940 = vsub.s32 3, %v1939
    %v1941 = vrot.slane %v224, %v1940
    %v1942 = vlaneseq
    %v1943 = vshrl.u32 %v1942, 7
    %v1944 = vsub.s32 4, %v1943
    %v1945 = vrot.slane %v224, %v1944
    %v1946 = vlaneseq
    %v1947 = vshrl.u32 %v1946, 7
    %v1948 = vsub.s32 5, %v1947
    %v1949 = vrot.slane %v224, %v1948
    %v1956 = vadd.f32 %v1889, %v1929
    %v1957 = vadd.f32 %v1890, %v1933
    %v1958 = vadd.f32 %v1891, %v1937
    %v1959 = vadd.f32 %v1892, %v1941
    %v1960 = vadd.f32 %v1893, %v1945
    %v1961 = vadd.f32 %v1894, %v1949
    %v1962 = vadd.f32 %v1895, %v1929
    %v1963 = vadd.f32 %v1896, %v1933
    %v1964 = vadd.f32 %v1897, %v1937
    %v1965 = vadd.f32 %v1898, %v1941
    %v1966 = vadd.f32 %v1899, %v1945
    %v1967 = vadd.f32 %v1900, %v1949
    %v1968 = vadd.f32 %v1901, %v1929
    %v1969 = vadd.f32 %v1902, %v1933
    %v1970 = vadd.f32 %v1903, %v1937
    %v1971 = vadd.f32 %v1904, %v1941
    %v1972 = vadd.f32 %v1905, %v1945
    %v1973 = vadd.f32 %v1906, %v1949
    %v1974 = vadd.f32 %v1907, %v1929
    %v1975 = vadd.f32 %v1908, %v1933
    %v1976 = vadd.f32 %v1909, %v1937
    %v1977 = vadd.f32 %v1910, %v1941
    %v1978 = vadd.f32 %v1911, %v1945
    %v1979 = vadd.f32 %v1912, %v1949
    %v1980 = vadd.f32 %v1913, %v1929
    %v1981 = vadd.f32 %v1914, %v1933
    %v1982 = vadd.f32 %v1915, %v1937
    %v1983 = vadd.f32 %v1916, %v1941
    %v1984 = vadd.f32 %v1917, %v1945
    %v1985 = vadd.f32 %v1918, %v1949
    %v1986 = vadd.f32 %v1919, %v1929
    %v1987 = vadd.f32 %v1920, %v1933
    %v1988 = vadd.f32 %v1921, %v1937
    %v1989 = vadd.f32 %v1922, %v1941
    %v1990 = vadd.f32 %v1923, %v1945
    %v1991 = vadd.f32 %v1924, %v1949
    %1992 = vmatprep.subr.bf16.mxu0 0
    %1993 = vmatpush1.bf16.msra.mxu0 0
    %1994 = vmatprep.subr.bf16.mxu0 0
    %1995 = vmatpush1.bf16.msra.mxu0 0
    %1996 = vmatprep.subr.bf16.mxu0 0
    %1997 = vmatpush1.bf16.msra.mxu0 0
    %1998 = vmatprep.subr.bf16.mxu0 0
    %1999 = vmatpush1.bf16.msra.mxu0 0
    %2000 = vmatprep.subr.bf16.mxu0 0
    %2001 = vmatpush1.bf16.msra.mxu0 0
    %2002 = vmatprep.subr.bf16.mxu0 0
    %2003 = vmatpush1.bf16.msra.mxu0 0
    %2004 = vmatprep.subr.bf16.mxu0 %v347
    %2005 = vmatpush1.bf16.msra.mxu0 %v344
    %2006 = vmatprep.subr.bf16.mxu0 %v315
    %2007 = vmatpush1.bf16.msra.mxu0 %v314
    %2008 = vmatprep.subr.bf16.mxu0 0
    %2009 = vmatpush2.bf16.msra.mxu0 0
    %2010 = vmatprep.subr.bf16.mxu0 0
    %2011 = vmatpush2.bf16.msra.mxu0 0
    %2012 = vmatprep.subr.bf16.mxu0 0
    %2013 = vmatpush2.bf16.msra.mxu0 0
    %2014 = vmatprep.subr.bf16.mxu0 0
    %2015 = vmatpush2.bf16.msra.mxu0 0
    %2016 = vmatprep.subr.bf16.mxu0 0
    %2017 = vmatpush2.bf16.msra.mxu0 0
    %2018 = vmatprep.subr.bf16.mxu0 0
    %2019 = vmatpush2.bf16.msra.mxu0 0
    %2020 = vmatprep.subr.bf16.mxu0 0
    %2021 = vmatpush2.bf16.msra.mxu0 0
    %2022 = vmatprep.subr.bf16.mxu0 0
    %2023 = vmatpush2.bf16.msra.mxu0 0
    %2024 = vmatprep.mubr.bf16.mxu0 0
    %2025 = vmatmul.mubr.bf16.gmra.mxu0 %v925
    %v2026 = vpop.f32.mrf.mxu0
    %v2027 = vadd.f32 0.0, %v2026
    %v2028 = vpop.f32.mrf.mxu0
    %v2029 = vadd.f32 0.0, %v2028
    %v2030 = vpop.f32.mrf.mxu0
    %v2031 = vadd.f32 0.0, %v2030
    %v2032 = vpop.f32.mrf.mxu0
    %v2033 = vadd.f32 0.0, %v2032
    %2034 = vmatprep.mubr.bf16.mxu0 0
    %2035 = vmatmul.mubr.bf16.gmra.mxu0 %v928
    %v2036 = vpop.f32.mrf.mxu0
    %v2037 = vadd.f32 0.0, %v2036
    %v2038 = vpop.f32.mrf.mxu0
    %v2039 = vadd.f32 0.0, %v2038
    %v2040 = vpop.f32.mrf.mxu0
    %v2041 = vadd.f32 0.0, %v2040
    %v2042 = vpop.f32.mrf.mxu0
    %v2043 = vadd.f32 0.0, %v2042
    %2044 = vmatprep.mubr.bf16.mxu0 0
    %2045 = vmatmul.mubr.bf16.gmra.mxu0 %v931
    %v2046 = vpop.f32.mrf.mxu0
    %v2047 = vadd.f32 0.0, %v2046
    %v2048 = vpop.f32.mrf.mxu0
    %v2049 = vadd.f32 0.0, %v2048
    %v2050 = vpop.f32.mrf.mxu0
    %v2051 = vadd.f32 0.0, %v2050
    %v2052 = vpop.f32.mrf.mxu0
    %v2053 = vadd.f32 0.0, %v2052
    %2054 = vdwg.mxu0
    %2055 = vmatprep.subr.bf16.mxu0 0
    %2056 = vmatpush1.bf16.msra.mxu0 0
    %2057 = vmatprep.subr.bf16.mxu0 0
    %2058 = vmatpush1.bf16.msra.mxu0 0
    %2059 = vmatprep.subr.bf16.mxu0 0
    %2060 = vmatpush1.bf16.msra.mxu0 0
    %2061 = vmatprep.subr.bf16.mxu0 0
    %2062 = vmatpush1.bf16.msra.mxu0 0
    %2063 = vmatprep.subr.bf16.mxu0 0
    %2064 = vmatpush1.bf16.msra.mxu0 0
    %2065 = vmatprep.subr.bf16.mxu0 0
    %2066 = vmatpush1.bf16.msra.mxu0 0
    %2067 = vmatprep.subr.bf16.mxu0 %v353
    %2068 = vmatpush1.bf16.msra.mxu0 %v350
    %2069 = vmatprep.subr.bf16.mxu0 %v317
    %2070 = vmatpush1.bf16.msra.mxu0 %v316
    %2071 = vmatprep.subr.bf16.mxu0 0
    %2072 = vmatpush2.bf16.msra.mxu0 0
    %2073 = vmatprep.subr.bf16.mxu0 0
    %2074 = vmatpush2.bf16.msra.mxu0 0
    %2075 = vmatprep.subr.bf16.mxu0 0
    %2076 = vmatpush2.bf16.msra.mxu0 0
    %2077 = vmatprep.subr.bf16.mxu0 0
    %2078 = vmatpush2.bf16.msra.mxu0 0
    %2079 = vmatprep.subr.bf16.mxu0 0
    %2080 = vmatpush2.bf16.msra.mxu0 0
    %2081 = vmatprep.subr.bf16.mxu0 0
    %2082 = vmatpush2.bf16.msra.mxu0 0
    %2083 = vmatprep.subr.bf16.mxu0 0
    %2084 = vmatpush2.bf16.msra.mxu0 0
    %2085 = vmatprep.subr.bf16.mxu0 0
    %2086 = vmatpush2.bf16.msra.mxu0 0
    %2087 = vmatprep.mubr.bf16.mxu0 0
    %2088 = vmatmul.mubr.bf16.gmra.mxu0 %v925
    %v2089 = vpop.f32.mrf.mxu0
    %v2090 = vadd.f32 0.0, %v2089
    %v2091 = vpop.f32.mrf.mxu0
    %v2092 = vadd.f32 0.0, %v2091
    %v2093 = vpop.f32.mrf.mxu0
    %v2094 = vadd.f32 0.0, %v2093
    %v2095 = vpop.f32.mrf.mxu0
    %v2096 = vadd.f32 0.0, %v2095
    %2097 = vmatprep.mubr.bf16.mxu0 0
    %2098 = vmatmul.mubr.bf16.gmra.mxu0 %v928
    %v2099 = vpop.f32.mrf.mxu0
    %v2100 = vadd.f32 0.0, %v2099
    %v2101 = vpop.f32.mrf.mxu0
    %v2102 = vadd.f32 0.0, %v2101
    %v2103 = vpop.f32.mrf.mxu0
    %v2104 = vadd.f32 0.0, %v2103
    %v2105 = vpop.f32.mrf.mxu0
    %v2106 = vadd.f32 0.0, %v2105
    %2107 = vmatprep.mubr.bf16.mxu0 0
    %2108 = vmatmul.mubr.bf16.gmra.mxu0 %v931
    %v2109 = vpop.f32.mrf.mxu0
    %v2110 = vadd.f32 0.0, %v2109
    %v2111 = vpop.f32.mrf.mxu0
    %v2112 = vadd.f32 0.0, %v2111
    %v2113 = vpop.f32.mrf.mxu0
    %v2114 = vadd.f32 0.0, %v2113
    %v2115 = vpop.f32.mrf.mxu0
    %v2116 = vadd.f32 0.0, %v2115
    %2117 = vdwg.mxu0
    %2118 = vmatprep.subr.bf16.mxu0 0
    %2119 = vmatpush1.bf16.msra.mxu0 0
    %2120 = vmatprep.subr.bf16.mxu0 0
    %2121 = vmatpush1.bf16.msra.mxu0 0
    %2122 = vmatprep.subr.bf16.mxu0 0
    %2123 = vmatpush1.bf16.msra.mxu0 0
    %2124 = vmatprep.subr.bf16.mxu0 0
    %2125 = vmatpush1.bf16.msra.mxu0 0
    %2126 = vmatprep.subr.bf16.mxu0 0
    %2127 = vmatpush1.bf16.msra.mxu0 0
    %2128 = vmatprep.subr.bf16.mxu0 0
    %2129 = vmatpush1.bf16.msra.mxu0 0
    %2130 = vmatprep.subr.bf16.mxu0 %v359
    %2131 = vmatpush1.bf16.msra.mxu0 %v356
    %2132 = vmatprep.subr.bf16.mxu0 %v319
    %2133 = vmatpush1.bf16.msra.mxu0 %v318
    %2134 = vmatprep.subr.bf16.mxu0 0
    %2135 = vmatpush2.bf16.msra.mxu0 0
    %2136 = vmatprep.subr.bf16.mxu0 0
    %2137 = vmatpush2.bf16.msra.mxu0 0
    %2138 = vmatprep.subr.bf16.mxu0 0
    %2139 = vmatpush2.bf16.msra.mxu0 0
    %2140 = vmatprep.subr.bf16.mxu0 0
    %2141 = vmatpush2.bf16.msra.mxu0 0
    %2142 = vmatprep.subr.bf16.mxu0 0
    %2143 = vmatpush2.bf16.msra.mxu0 0
    %2144 = vmatprep.subr.bf16.mxu0 0
    %2145 = vmatpush2.bf16.msra.mxu0 0
    %2146 = vmatprep.subr.bf16.mxu0 0
    %2147 = vmatpush2.bf16.msra.mxu0 0
    %2148 = vmatprep.subr.bf16.mxu0 0
    %2149 = vmatpush2.bf16.msra.mxu0 0
    %2150 = vmatprep.mubr.bf16.mxu0 0
    %2151 = vmatmul.mubr.bf16.gmra.mxu0 %v925
    %v2152 = vpop.f32.mrf.mxu0
    %v2153 = vadd.f32 0.0, %v2152
    %v2154 = vpop.f32.mrf.mxu0
    %v2155 = vadd.f32 0.0, %v2154
    %v2156 = vpop.f32.mrf.mxu0
    %v2157 = vadd.f32 0.0, %v2156
    %v2158 = vpop.f32.mrf.mxu0
    %v2159 = vadd.f32 0.0, %v2158
    %2160 = vmatprep.mubr.bf16.mxu0 0
    %2161 = vmatmul.mubr.bf16.gmra.mxu0 %v928
    %v2162 = vpop.f32.mrf.mxu0
    %v2163 = vadd.f32 0.0, %v2162
    %v2164 = vpop.f32.mrf.mxu0
    %v2165 = vadd.f32 0.0, %v2164
    %v2166 = vpop.f32.mrf.mxu0
    %v2167 = vadd.f32 0.0, %v2166
    %v2168 = vpop.f32.mrf.mxu0
    %v2169 = vadd.f32 0.0, %v2168
    %2170 = vmatprep.mubr.bf16.mxu0 0
    %2171 = vmatmul.mubr.bf16.gmra.mxu0 %v931
    %v2172 = vpop.f32.mrf.mxu0
    %v2173 = vadd.f32 0.0, %v2172
    %v2174 = vpop.f32.mrf.mxu0
    %v2175 = vadd.f32 0.0, %v2174
    %v2176 = vpop.f32.mrf.mxu0
    %v2177 = vadd.f32 0.0, %v2176
    %v2178 = vpop.f32.mrf.mxu0
    %v2179 = vadd.f32 0.0, %v2178
    %2180 = vdwg.mxu0
    %2181 = vmatprep.subr.bf16.mxu0 0
    %2182 = vmatpush1.bf16.msra.mxu0 0
    %2183 = vmatprep.subr.bf16.mxu0 0
    %2184 = vmatpush1.bf16.msra.mxu0 0
    %2185 = vmatprep.subr.bf16.mxu0 0
    %2186 = vmatpush1.bf16.msra.mxu0 0
    %2187 = vmatprep.subr.bf16.mxu0 0
    %2188 = vmatpush1.bf16.msra.mxu0 0
    %2189 = vmatprep.subr.bf16.mxu0 0
    %2190 = vmatpush1.bf16.msra.mxu0 0
    %2191 = vmatprep.subr.bf16.mxu0 0
    %2192 = vmatpush1.bf16.msra.mxu0 0
    %2193 = vmatprep.subr.bf16.mxu0 %v632
    %2194 = vmatpush1.bf16.msra.mxu0 %v629
    %2195 = vmatprep.subr.bf16.mxu0 %v602
    %2196 = vmatpush1.bf16.msra.mxu0 %v601
    %2197 = vmatprep.subr.bf16.mxu0 0
    %2198 = vmatpush2.bf16.msra.mxu0 0
    %2199 = vmatprep.subr.bf16.mxu0 0
    %2200 = vmatpush2.bf16.msra.mxu0 0
    %2201 = vmatprep.subr.bf16.mxu0 0
    %2202 = vmatpush2.bf16.msra.mxu0 0
    %2203 = vmatprep.subr.bf16.mxu0 0
    %2204 = vmatpush2.bf16.msra.mxu0 0
    %2205 = vmatprep.subr.bf16.mxu0 0
    %2206 = vmatpush2.bf16.msra.mxu0 0
    %2207 = vmatprep.subr.bf16.mxu0 0
    %2208 = vmatpush2.bf16.msra.mxu0 0
    %2209 = vmatprep.subr.bf16.mxu0 0
    %2210 = vmatpush2.bf16.msra.mxu0 0
    %2211 = vmatprep.subr.bf16.mxu0 0
    %2212 = vmatpush2.bf16.msra.mxu0 0
    %2213 = vmatprep.mubr.bf16.mxu0 0
    %2214 = vmatmul.mubr.bf16.gmra.mxu0 %v334
    %v2215 = vpop.f32.mrf.mxu0
    %v2216 = vadd.f32 %v2027, %v2215
    %v2217 = vpop.f32.mrf.mxu0
    %v2218 = vadd.f32 %v2029, %v2217
    %v2219 = vpop.f32.mrf.mxu0
    %v2220 = vadd.f32 %v2031, %v2219
    %v2221 = vpop.f32.mrf.mxu0
    %v2222 = vadd.f32 %v2033, %v2221
    %2223 = vmatprep.mubr.bf16.mxu0 0
    %2224 = vmatmul.mubr.bf16.gmra.mxu0 %v337
    %v2225 = vpop.f32.mrf.mxu0
    %v2226 = vadd.f32 %v2037, %v2225
    %v2227 = vpop.f32.mrf.mxu0
    %v2228 = vadd.f32 %v2039, %v2227
    %v2229 = vpop.f32.mrf.mxu0
    %v2230 = vadd.f32 %v2041, %v2229
    %v2231 = vpop.f32.mrf.mxu0
    %v2232 = vadd.f32 %v2043, %v2231
    %2233 = vmatprep.mubr.bf16.mxu0 0
    %2234 = vmatmul.mubr.bf16.gmra.mxu0 %v340
    %v2235 = vpop.f32.mrf.mxu0
    %v2236 = vadd.f32 %v2047, %v2235
    %v2237 = vpop.f32.mrf.mxu0
    %v2238 = vadd.f32 %v2049, %v2237
    %v2239 = vpop.f32.mrf.mxu0
    %v2240 = vadd.f32 %v2051, %v2239
    %v2241 = vpop.f32.mrf.mxu0
    %v2242 = vadd.f32 %v2053, %v2241
    %2243 = vdwg.mxu0
    %2244 = vmatprep.subr.bf16.mxu0 0
    %2245 = vmatpush1.bf16.msra.mxu0 0
    %2246 = vmatprep.subr.bf16.mxu0 0
    %2247 = vmatpush1.bf16.msra.mxu0 0
    %2248 = vmatprep.subr.bf16.mxu0 0
    %2249 = vmatpush1.bf16.msra.mxu0 0
    %2250 = vmatprep.subr.bf16.mxu0 0
    %2251 = vmatpush1.bf16.msra.mxu0 0
    %2252 = vmatprep.subr.bf16.mxu0 0
    %2253 = vmatpush1.bf16.msra.mxu0 0
    %2254 = vmatprep.subr.bf16.mxu0 0
    %2255 = vmatpush1.bf16.msra.mxu0 0
    %2256 = vmatprep.subr.bf16.mxu0 %v638
    %2257 = vmatpush1.bf16.msra.mxu0 %v635
    %2258 = vmatprep.subr.bf16.mxu0 %v604
    %2259 = vmatpush1.bf16.msra.mxu0 %v603
    %2260 = vmatprep.subr.bf16.mxu0 0
    %2261 = vmatpush2.bf16.msra.mxu0 0
    %2262 = vmatprep.subr.bf16.mxu0 0
    %2263 = vmatpush2.bf16.msra.mxu0 0
    %2264 = vmatprep.subr.bf16.mxu0 0
    %2265 = vmatpush2.bf16.msra.mxu0 0
    %2266 = vmatprep.subr.bf16.mxu0 0
    %2267 = vmatpush2.bf16.msra.mxu0 0
    %2268 = vmatprep.subr.bf16.mxu0 0
    %2269 = vmatpush2.bf16.msra.mxu0 0
    %2270 = vmatprep.subr.bf16.mxu0 0
    %2271 = vmatpush2.bf16.msra.mxu0 0
    %2272 = vmatprep.subr.bf16.mxu0 0
    %2273 = vmatpush2.bf16.msra.mxu0 0
    %2274 = vmatprep.subr.bf16.mxu0 0
    %2275 = vmatpush2.bf16.msra.mxu0 0
    %2276 = vmatprep.mubr.bf16.mxu0 0
    %2277 = vmatmul.mubr.bf16.gmra.mxu0 %v334
    %v2278 = vpop.f32.mrf.mxu0
    %v2279 = vadd.f32 %v2090, %v2278
    %v2280 = vpop.f32.mrf.mxu0
    %v2281 = vadd.f32 %v2092, %v2280
    %v2282 = vpop.f32.mrf.mxu0
    %v2283 = vadd.f32 %v2094, %v2282
    %v2284 = vpop.f32.mrf.mxu0
    %v2285 = vadd.f32 %v2096, %v2284
    %2286 = vmatprep.mubr.bf16.mxu0 0
    %2287 = vmatmul.mubr.bf16.gmra.mxu0 %v337
    %v2288 = vpop.f32.mrf.mxu0
    %v2289 = vadd.f32 %v2100, %v2288
    %v2290 = vpop.f32.mrf.mxu0
    %v2291 = vadd.f32 %v2102, %v2290
    %v2292 = vpop.f32.mrf.mxu0
    %v2293 = vadd.f32 %v2104, %v2292
    %v2294 = vpop.f32.mrf.mxu0
    %v2295 = vadd.f32 %v2106, %v2294
    %2296 = vmatprep.mubr.bf16.mxu0 0
    %2297 = vmatmul.mubr.bf16.gmra.mxu0 %v340
    %v2298 = vpop.f32.mrf.mxu0
    %v2299 = vadd.f32 %v2110, %v2298
    %v2300 = vpop.f32.mrf.mxu0
    %v2301 = vadd.f32 %v2112, %v2300
    %v2302 = vpop.f32.mrf.mxu0
    %v2303 = vadd.f32 %v2114, %v2302
    %v2304 = vpop.f32.mrf.mxu0
    %v2305 = vadd.f32 %v2116, %v2304
    %2306 = vdwg.mxu0
    %2307 = vmatprep.subr.bf16.mxu0 0
    %2308 = vmatpush1.bf16.msra.mxu0 0
    %2309 = vmatprep.subr.bf16.mxu0 0
    %2310 = vmatpush1.bf16.msra.mxu0 0
    %2311 = vmatprep.subr.bf16.mxu0 0
    %2312 = vmatpush1.bf16.msra.mxu0 0
    %2313 = vmatprep.subr.bf16.mxu0 0
    %2314 = vmatpush1.bf16.msra.mxu0 0
    %2315 = vmatprep.subr.bf16.mxu0 0
    %2316 = vmatpush1.bf16.msra.mxu0 0
    %2317 = vmatprep.subr.bf16.mxu0 0
    %2318 = vmatpush1.bf16.msra.mxu0 0
    %2319 = vmatprep.subr.bf16.mxu0 %v644
    %2320 = vmatpush1.bf16.msra.mxu0 %v641
    %2321 = vmatprep.subr.bf16.mxu0 %v606
    %2322 = vmatpush1.bf16.msra.mxu0 %v605
    %2323 = vmatprep.subr.bf16.mxu0 0
    %2324 = vmatpush2.bf16.msra.mxu0 0
    %2325 = vmatprep.subr.bf16.mxu0 0
    %2326 = vmatpush2.bf16.msra.mxu0 0
    %2327 = vmatprep.subr.bf16.mxu0 0
    %2328 = vmatpush2.bf16.msra.mxu0 0
    %2329 = vmatprep.subr.bf16.mxu0 0
    %2330 = vmatpush2.bf16.msra.mxu0 0
    %2331 = vmatprep.subr.bf16.mxu0 0
    %2332 = vmatpush2.bf16.msra.mxu0 0
    %2333 = vmatprep.subr.bf16.mxu0 0
    %2334 = vmatpush2.bf16.msra.mxu0 0
    %2335 = vmatprep.subr.bf16.mxu0 0
    %2336 = vmatpush2.bf16.msra.mxu0 0
    %2337 = vmatprep.subr.bf16.mxu0 0
    %2338 = vmatpush2.bf16.msra.mxu0 0
    %2339 = vmatprep.mubr.bf16.mxu0 0
    %2340 = vmatmul.mubr.bf16.gmra.mxu0 %v334
    %v2341 = vpop.f32.mrf.mxu0
    %v2342 = vadd.f32 %v2153, %v2341
    %v2343 = vpop.f32.mrf.mxu0
    %v2344 = vadd.f32 %v2155, %v2343
    %v2345 = vpop.f32.mrf.mxu0
    %v2346 = vadd.f32 %v2157, %v2345
    %v2347 = vpop.f32.mrf.mxu0
    %v2348 = vadd.f32 %v2159, %v2347
    %2349 = vmatprep.mubr.bf16.mxu0 0
    %2350 = vmatmul.mubr.bf16.gmra.mxu0 %v337
    %v2351 = vpop.f32.mrf.mxu0
    %v2352 = vadd.f32 %v2163, %v2351
    %v2353 = vpop.f32.mrf.mxu0
    %v2354 = vadd.f32 %v2165, %v2353
    %v2355 = vpop.f32.mrf.mxu0
    %v2356 = vadd.f32 %v2167, %v2355
    %v2357 = vpop.f32.mrf.mxu0
    %v2358 = vadd.f32 %v2169, %v2357
    %2359 = vmatprep.mubr.bf16.mxu0 0
    %2360 = vmatmul.mubr.bf16.gmra.mxu0 %v340
    %v2361 = vpop.f32.mrf.mxu0
    %v2362 = vadd.f32 %v2173, %v2361
    %v2363 = vpop.f32.mrf.mxu0
    %v2364 = vadd.f32 %v2175, %v2363
    %v2365 = vpop.f32.mrf.mxu0
    %v2366 = vadd.f32 %v2177, %v2365
    %v2367 = vpop.f32.mrf.mxu0
    %v2368 = vadd.f32 %v2179, %v2367
    %2369 = vdwg.mxu0
    %2370 = vmatprep.subr.bf16.mxu0 0
    %2371 = vmatpush1.bf16.msra.mxu0 0
    %2372 = vmatprep.subr.bf16.mxu0 0
    %2373 = vmatpush1.bf16.msra.mxu0 0
    %2374 = vmatprep.subr.bf16.mxu0 0
    %2375 = vmatpush1.bf16.msra.mxu0 0
    %2376 = vmatprep.subr.bf16.mxu0 0
    %2377 = vmatpush1.bf16.msra.mxu0 0
    %2378 = vmatprep.subr.bf16.mxu0 0
    %2379 = vmatpush1.bf16.msra.mxu0 0
    %2380 = vmatprep.subr.bf16.mxu0 0
    %2381 = vmatpush1.bf16.msra.mxu0 0
    %2382 = vmatprep.subr.bf16.mxu0 %v937
    %2383 = vmatpush1.bf16.msra.mxu0 %v934
    %2384 = vmatprep.subr.bf16.mxu0 %v907
    %2385 = vmatpush1.bf16.msra.mxu0 %v906
    %2386 = vmatprep.subr.bf16.mxu0 0
    %2387 = vmatpush2.bf16.msra.mxu0 0
    %2388 = vmatprep.subr.bf16.mxu0 0
    %2389 = vmatpush2.bf16.msra.mxu0 0
    %2390 = vmatprep.subr.bf16.mxu0 0
    %2391 = vmatpush2.bf16.msra.mxu0 0
    %2392 = vmatprep.subr.bf16.mxu0 0
    %2393 = vmatpush2.bf16.msra.mxu0 0
    %2394 = vmatprep.subr.bf16.mxu0 0
    %2395 = vmatpush2.bf16.msra.mxu0 0
    %2396 = vmatprep.subr.bf16.mxu0 0
    %2397 = vmatpush2.bf16.msra.mxu0 0
    %2398 = vmatprep.subr.bf16.mxu0 0
    %2399 = vmatpush2.bf16.msra.mxu0 0
    %2400 = vmatprep.subr.bf16.mxu0 0
    %2401 = vmatpush2.bf16.msra.mxu0 0
    %2402 = vmatprep.mubr.bf16.mxu0 0
    %2403 = vmatmul.mubr.bf16.gmra.mxu0 %v1266
    %v2404 = vpop.f32.mrf.mxu0
    %v2405 = vadd.f32 0.0, %v2404
    %v2406 = vpop.f32.mrf.mxu0
    %v2407 = vadd.f32 0.0, %v2406
    %v2408 = vpop.f32.mrf.mxu0
    %v2409 = vadd.f32 0.0, %v2408
    %v2410 = vpop.f32.mrf.mxu0
    %v2411 = vadd.f32 0.0, %v2410
    %2412 = vmatprep.mubr.bf16.mxu0 0
    %2413 = vmatmul.mubr.bf16.gmra.mxu0 %v1269
    %v2414 = vpop.f32.mrf.mxu0
    %v2415 = vadd.f32 0.0, %v2414
    %v2416 = vpop.f32.mrf.mxu0
    %v2417 = vadd.f32 0.0, %v2416
    %v2418 = vpop.f32.mrf.mxu0
    %v2419 = vadd.f32 0.0, %v2418
    %v2420 = vpop.f32.mrf.mxu0
    %v2421 = vadd.f32 0.0, %v2420
    %2422 = vmatprep.mubr.bf16.mxu0 0
    %2423 = vmatmul.mubr.bf16.gmra.mxu0 %v1272
    %v2424 = vpop.f32.mrf.mxu0
    %v2425 = vadd.f32 0.0, %v2424
    %v2426 = vpop.f32.mrf.mxu0
    %v2427 = vadd.f32 0.0, %v2426
    %v2428 = vpop.f32.mrf.mxu0
    %v2429 = vadd.f32 0.0, %v2428
    %v2430 = vpop.f32.mrf.mxu0
    %v2431 = vadd.f32 0.0, %v2430
    %2432 = vdwg.mxu0
    %2433 = vmatprep.subr.bf16.mxu0 0
    %2434 = vmatpush1.bf16.msra.mxu0 0
    %2435 = vmatprep.subr.bf16.mxu0 0
    %2436 = vmatpush1.bf16.msra.mxu0 0
    %2437 = vmatprep.subr.bf16.mxu0 0
    %2438 = vmatpush1.bf16.msra.mxu0 0
    %2439 = vmatprep.subr.bf16.mxu0 0
    %2440 = vmatpush1.bf16.msra.mxu0 0
    %2441 = vmatprep.subr.bf16.mxu0 0
    %2442 = vmatpush1.bf16.msra.mxu0 0
    %2443 = vmatprep.subr.bf16.mxu0 0
    %2444 = vmatpush1.bf16.msra.mxu0 0
    %2445 = vmatprep.subr.bf16.mxu0 %v943
    %2446 = vmatpush1.bf16.msra.mxu0 %v940
    %2447 = vmatprep.subr.bf16.mxu0 %v909
    %2448 = vmatpush1.bf16.msra.mxu0 %v908
    %2449 = vmatprep.subr.bf16.mxu0 0
    %2450 = vmatpush2.bf16.msra.mxu0 0
    %2451 = vmatprep.subr.bf16.mxu0 0
    %2452 = vmatpush2.bf16.msra.mxu0 0
    %2453 = vmatprep.subr.bf16.mxu0 0
    %2454 = vmatpush2.bf16.msra.mxu0 0
    %2455 = vmatprep.subr.bf16.mxu0 0
    %2456 = vmatpush2.bf16.msra.mxu0 0
    %2457 = vmatprep.subr.bf16.mxu0 0
    %2458 = vmatpush2.bf16.msra.mxu0 0
    %2459 = vmatprep.subr.bf16.mxu0 0
    %2460 = vmatpush2.bf16.msra.mxu0 0
    %2461 = vmatprep.subr.bf16.mxu0 0
    %2462 = vmatpush2.bf16.msra.mxu0 0
    %2463 = vmatprep.subr.bf16.mxu0 0
    %2464 = vmatpush2.bf16.msra.mxu0 0
    %2465 = vmatprep.mubr.bf16.mxu0 0
    %2466 = vmatmul.mubr.bf16.gmra.mxu0 %v1266
    %v2467 = vpop.f32.mrf.mxu0
    %v2468 = vadd.f32 0.0, %v2467
    %v2469 = vpop.f32.mrf.mxu0
    %v2470 = vadd.f32 0.0, %v2469
    %v2471 = vpop.f32.mrf.mxu0
    %v2472 = vadd.f32 0.0, %v2471
    %v2473 = vpop.f32.mrf.mxu0
    %v2474 = vadd.f32 0.0, %v2473
    %2475 = vmatprep.mubr.bf16.mxu0 0
    %2476 = vmatmul.mubr.bf16.gmra.mxu0 %v1269
    %v2477 = vpop.f32.mrf.mxu0
    %v2478 = vadd.f32 0.0, %v2477
    %v2479 = vpop.f32.mrf.mxu0
    %v2480 = vadd.f32 0.0, %v2479
    %v2481 = vpop.f32.mrf.mxu0
    %v2482 = vadd.f32 0.0, %v2481
    %v2483 = vpop.f32.mrf.mxu0
    %v2484 = vadd.f32 0.0, %v2483
    %2485 = vmatprep.mubr.bf16.mxu0 0
    %2486 = vmatmul.mubr.bf16.gmra.mxu0 %v1272
    %v2487 = vpop.f32.mrf.mxu0
    %v2488 = vadd.f32 0.0, %v2487
    %v2489 = vpop.f32.mrf.mxu0
    %v2490 = vadd.f32 0.0, %v2489
    %v2491 = vpop.f32.mrf.mxu0
    %v2492 = vadd.f32 0.0, %v2491
    %v2493 = vpop.f32.mrf.mxu0
    %v2494 = vadd.f32 0.0, %v2493
    %2495 = vdwg.mxu0
    %2496 = vmatprep.subr.bf16.mxu0 0
    %2497 = vmatpush1.bf16.msra.mxu0 0
    %2498 = vmatprep.subr.bf16.mxu0 0
    %2499 = vmatpush1.bf16.msra.mxu0 0
    %2500 = vmatprep.subr.bf16.mxu0 0
    %2501 = vmatpush1.bf16.msra.mxu0 0
    %2502 = vmatprep.subr.bf16.mxu0 0
    %2503 = vmatpush1.bf16.msra.mxu0 0
    %2504 = vmatprep.subr.bf16.mxu0 0
    %2505 = vmatpush1.bf16.msra.mxu0 0
    %2506 = vmatprep.subr.bf16.mxu0 0
    %2507 = vmatpush1.bf16.msra.mxu0 0
    %2508 = vmatprep.subr.bf16.mxu0 %v949
    %2509 = vmatpush1.bf16.msra.mxu0 %v946
    %2510 = vmatprep.subr.bf16.mxu0 %v911
    %2511 = vmatpush1.bf16.msra.mxu0 %v910
    %2512 = vmatprep.subr.bf16.mxu0 0
    %2513 = vmatpush2.bf16.msra.mxu0 0
    %2514 = vmatprep.subr.bf16.mxu0 0
    %2515 = vmatpush2.bf16.msra.mxu0 0
    %2516 = vmatprep.subr.bf16.mxu0 0
    %2517 = vmatpush2.bf16.msra.mxu0 0
    %2518 = vmatprep.subr.bf16.mxu0 0
    %2519 = vmatpush2.bf16.msra.mxu0 0
    %2520 = vmatprep.subr.bf16.mxu0 0
    %2521 = vmatpush2.bf16.msra.mxu0 0
    %2522 = vmatprep.subr.bf16.mxu0 0
    %2523 = vmatpush2.bf16.msra.mxu0 0
    %2524 = vmatprep.subr.bf16.mxu0 0
    %2525 = vmatpush2.bf16.msra.mxu0 0
    %2526 = vmatprep.subr.bf16.mxu0 0
    %2527 = vmatpush2.bf16.msra.mxu0 0
    %2528 = vmatprep.mubr.bf16.mxu0 0
    %2529 = vmatmul.mubr.bf16.gmra.mxu0 %v1266
    %v2530 = vpop.f32.mrf.mxu0
    %v2531 = vadd.f32 0.0, %v2530
    %v2532 = vpop.f32.mrf.mxu0
    %v2533 = vadd.f32 0.0, %v2532
    %v2534 = vpop.f32.mrf.mxu0
    %v2535 = vadd.f32 0.0, %v2534
    %v2536 = vpop.f32.mrf.mxu0
    %v2537 = vadd.f32 0.0, %v2536
    %2538 = vmatprep.mubr.bf16.mxu0 0
    %2539 = vmatmul.mubr.bf16.gmra.mxu0 %v1269
    %v2540 = vpop.f32.mrf.mxu0
    %v2541 = vadd.f32 0.0, %v2540
    %v2542 = vpop.f32.mrf.mxu0
    %v2543 = vadd.f32 0.0, %v2542
    %v2544 = vpop.f32.mrf.mxu0
    %v2545 = vadd.f32 0.0, %v2544
    %v2546 = vpop.f32.mrf.mxu0
    %v2547 = vadd.f32 0.0, %v2546
    %2548 = vmatprep.mubr.bf16.mxu0 0
    %2549 = vmatmul.mubr.bf16.gmra.mxu0 %v1272
    %v2550 = vpop.f32.mrf.mxu0
    %v2551 = vadd.f32 0.0, %v2550
    %v2552 = vpop.f32.mrf.mxu0
    %v2553 = vadd.f32 0.0, %v2552
    %v2554 = vpop.f32.mrf.mxu0
    %v2555 = vadd.f32 0.0, %v2554
    %v2556 = vpop.f32.mrf.mxu0
    %v2557 = vadd.f32 0.0, %v2556
    %2558 = vdwg.mxu0
    %v2559 = vadd.f32 %v2216, %v2405
    %v2560 = vadd.f32 %v2218, %v2407
    %v2561 = vadd.f32 %v2279, %v2468
    %v2562 = vadd.f32 %v2281, %v2470
    %v2563 = vadd.f32 %v2342, %v2531
    %v2564 = vadd.f32 %v2344, %v2533
    %v2565 = vadd.f32 %v2220, %v2409
    %v2566 = vadd.f32 %v2222, %v2411
    %v2567 = vadd.f32 %v2283, %v2472
    %v2568 = vadd.f32 %v2285, %v2474
    %v2569 = vadd.f32 %v2346, %v2535
    %v2570 = vadd.f32 %v2348, %v2537
    %v2571 = vadd.f32 %v2226, %v2415
    %v2572 = vadd.f32 %v2228, %v2417
    %v2573 = vadd.f32 %v2289, %v2478
    %v2574 = vadd.f32 %v2291, %v2480
    %v2575 = vadd.f32 %v2352, %v2541
    %v2576 = vadd.f32 %v2354, %v2543
    %v2577 = vadd.f32 %v2230, %v2419
    %v2578 = vadd.f32 %v2232, %v2421
    %v2579 = vadd.f32 %v2293, %v2482
    %v2580 = vadd.f32 %v2295, %v2484
    %v2581 = vadd.f32 %v2356, %v2545
    %v2582 = vadd.f32 %v2358, %v2547
    %v2583 = vadd.f32 %v2236, %v2425
    %v2584 = vadd.f32 %v2238, %v2427
    %v2585 = vadd.f32 %v2299, %v2488
    %v2586 = vadd.f32 %v2301, %v2490
    %v2587 = vadd.f32 %v2362, %v2551
    %v2588 = vadd.f32 %v2364, %v2553
    %v2589 = vadd.f32 %v2240, %v2429
    %v2590 = vadd.f32 %v2242, %v2431
    %v2591 = vadd.f32 %v2303, %v2492
    %v2592 = vadd.f32 %v2305, %v2494
    %v2593 = vadd.f32 %v2366, %v2555
    %v2594 = vadd.f32 %v2368, %v2557
    %2595 = vmatprep.subr.bf16.mxu0 0
    %2596 = vmatpush1.bf16.msra.mxu0 0
    %2597 = vmatprep.subr.bf16.mxu0 0
    %2598 = vmatpush1.bf16.msra.mxu0 0
    %2599 = vmatprep.subr.bf16.mxu0 0
    %2600 = vmatpush1.bf16.msra.mxu0 0
    %2601 = vmatprep.subr.bf16.mxu0 0
    %2602 = vmatpush1.bf16.msra.mxu0 0
    %2603 = vmatprep.subr.bf16.mxu0 0
    %2604 = vmatpush1.bf16.msra.mxu0 0
    %2605 = vmatprep.subr.bf16.mxu0 0
    %2606 = vmatpush1.bf16.msra.mxu0 0
    %2607 = vmatprep.subr.bf16.mxu0 %v1278
    %2608 = vmatpush1.bf16.msra.mxu0 %v1275
    %2609 = vmatprep.subr.bf16.mxu0 %v1248
    %2610 = vmatpush1.bf16.msra.mxu0 %v1247
    %2611 = vmatprep.subr.bf16.mxu0 0
    %2612 = vmatpush2.bf16.msra.mxu0 0
    %2613 = vmatprep.subr.bf16.mxu0 0
    %2614 = vmatpush2.bf16.msra.mxu0 0
    %2615 = vmatprep.subr.bf16.mxu0 0
    %2616 = vmatpush2.bf16.msra.mxu0 0
    %2617 = vmatprep.subr.bf16.mxu0 0
    %2618 = vmatpush2.bf16.msra.mxu0 0
    %2619 = vmatprep.subr.bf16.mxu0 0
    %2620 = vmatpush2.bf16.msra.mxu0 0
    %2621 = vmatprep.subr.bf16.mxu0 0
    %2622 = vmatpush2.bf16.msra.mxu0 0
    %2623 = vmatprep.subr.bf16.mxu0 0
    %2624 = vmatpush2.bf16.msra.mxu0 0
    %2625 = vmatprep.subr.bf16.mxu0 0
    %2626 = vmatpush2.bf16.msra.mxu0 0
    %2627 = vmatprep.mubr.bf16.mxu0 0
    %2628 = vmatmul.mubr.bf16.gmra.mxu0 %v1607
    %v2629 = vpop.f32.mrf.mxu0
    %v2630 = vadd.f32 0.0, %v2629
    %v2631 = vpop.f32.mrf.mxu0
    %v2632 = vadd.f32 0.0, %v2631
    %v2633 = vpop.f32.mrf.mxu0
    %v2634 = vadd.f32 0.0, %v2633
    %v2635 = vpop.f32.mrf.mxu0
    %v2636 = vadd.f32 0.0, %v2635
    %2637 = vmatprep.mubr.bf16.mxu0 0
    %2638 = vmatmul.mubr.bf16.gmra.mxu0 %v1610
    %v2639 = vpop.f32.mrf.mxu0
    %v2640 = vadd.f32 0.0, %v2639
    %v2641 = vpop.f32.mrf.mxu0
    %v2642 = vadd.f32 0.0, %v2641
    %v2643 = vpop.f32.mrf.mxu0
    %v2644 = vadd.f32 0.0, %v2643
    %v2645 = vpop.f32.mrf.mxu0
    %v2646 = vadd.f32 0.0, %v2645
    %2647 = vmatprep.mubr.bf16.mxu0 0
    %2648 = vmatmul.mubr.bf16.gmra.mxu0 %v1613
    %v2649 = vpop.f32.mrf.mxu0
    %v2650 = vadd.f32 0.0, %v2649
    %v2651 = vpop.f32.mrf.mxu0
    %v2652 = vadd.f32 0.0, %v2651
    %v2653 = vpop.f32.mrf.mxu0
    %v2654 = vadd.f32 0.0, %v2653
    %v2655 = vpop.f32.mrf.mxu0
    %v2656 = vadd.f32 0.0, %v2655
    %2657 = vdwg.mxu0
    %2658 = vmatprep.subr.bf16.mxu0 0
    %2659 = vmatpush1.bf16.msra.mxu0 0
    %2660 = vmatprep.subr.bf16.mxu0 0
    %2661 = vmatpush1.bf16.msra.mxu0 0
    %2662 = vmatprep.subr.bf16.mxu0 0
    %2663 = vmatpush1.bf16.msra.mxu0 0
    %2664 = vmatprep.subr.bf16.mxu0 0
    %2665 = vmatpush1.bf16.msra.mxu0 0
    %2666 = vmatprep.subr.bf16.mxu0 0
    %2667 = vmatpush1.bf16.msra.mxu0 0
    %2668 = vmatprep.subr.bf16.mxu0 0
    %2669 = vmatpush1.bf16.msra.mxu0 0
    %2670 = vmatprep.subr.bf16.mxu0 %v1284
    %2671 = vmatpush1.bf16.msra.mxu0 %v1281
    %2672 = vmatprep.subr.bf16.mxu0 %v1250
    %2673 = vmatpush1.bf16.msra.mxu0 %v1249
    %2674 = vmatprep.subr.bf16.mxu0 0
    %2675 = vmatpush2.bf16.msra.mxu0 0
    %2676 = vmatprep.subr.bf16.mxu0 0
    %2677 = vmatpush2.bf16.msra.mxu0 0
    %2678 = vmatprep.subr.bf16.mxu0 0
    %2679 = vmatpush2.bf16.msra.mxu0 0
    %2680 = vmatprep.subr.bf16.mxu0 0
    %2681 = vmatpush2.bf16.msra.mxu0 0
    %2682 = vmatprep.subr.bf16.mxu0 0
    %2683 = vmatpush2.bf16.msra.mxu0 0
    %2684 = vmatprep.subr.bf16.mxu0 0
    %2685 = vmatpush2.bf16.msra.mxu0 0
    %2686 = vmatprep.subr.bf16.mxu0 0
    %2687 = vmatpush2.bf16.msra.mxu0 0
    %2688 = vmatprep.subr.bf16.mxu0 0
    %2689 = vmatpush2.bf16.msra.mxu0 0
    %2690 = vmatprep.mubr.bf16.mxu0 0
    %2691 = vmatmul.mubr.bf16.gmra.mxu0 %v1607
    %v2692 = vpop.f32.mrf.mxu0
    %v2693 = vadd.f32 0.0, %v2692
    %v2694 = vpop.f32.mrf.mxu0
    %v2695 = vadd.f32 0.0, %v2694
    %v2696 = vpop.f32.mrf.mxu0
    %v2697 = vadd.f32 0.0, %v2696
    %v2698 = vpop.f32.mrf.mxu0
    %v2699 = vadd.f32 0.0, %v2698
    %2700 = vmatprep.mubr.bf16.mxu0 0
    %2701 = vmatmul.mubr.bf16.gmra.mxu0 %v1610
    %v2702 = vpop.f32.mrf.mxu0
    %v2703 = vadd.f32 0.0, %v2702
    %v2704 = vpop.f32.mrf.mxu0
    %v2705 = vadd.f32 0.0, %v2704
    %v2706 = vpop.f32.mrf.mxu0
    %v2707 = vadd.f32 0.0, %v2706
    %v2708 = vpop.f32.mrf.mxu0
    %v2709 = vadd.f32 0.0, %v2708
    %2710 = vmatprep.mubr.bf16.mxu0 0
    %2711 = vmatmul.mubr.bf16.gmra.mxu0 %v1613
    %v2712 = vpop.f32.mrf.mxu0
    %v2713 = vadd.f32 0.0, %v2712
    %v2714 = vpop.f32.mrf.mxu0
    %v2715 = vadd.f32 0.0, %v2714
    %v2716 = vpop.f32.mrf.mxu0
    %v2717 = vadd.f32 0.0, %v2716
    %v2718 = vpop.f32.mrf.mxu0
    %v2719 = vadd.f32 0.0, %v2718
    %2720 = vdwg.mxu0
    %2721 = vmatprep.subr.bf16.mxu0 0
    %2722 = vmatpush1.bf16.msra.mxu0 0
    %2723 = vmatprep.subr.bf16.mxu0 0
    %2724 = vmatpush1.bf16.msra.mxu0 0
    %2725 = vmatprep.subr.bf16.mxu0 0
    %2726 = vmatpush1.bf16.msra.mxu0 0
    %2727 = vmatprep.subr.bf16.mxu0 0
    %2728 = vmatpush1.bf16.msra.mxu0 0
    %2729 = vmatprep.subr.bf16.mxu0 0
    %2730 = vmatpush1.bf16.msra.mxu0 0
    %2731 = vmatprep.subr.bf16.mxu0 0
    %2732 = vmatpush1.bf16.msra.mxu0 0
    %2733 = vmatprep.subr.bf16.mxu0 %v1290
    %2734 = vmatpush1.bf16.msra.mxu0 %v1287
    %2735 = vmatprep.subr.bf16.mxu0 %v1252
    %2736 = vmatpush1.bf16.msra.mxu0 %v1251
    %2737 = vmatprep.subr.bf16.mxu0 0
    %2738 = vmatpush2.bf16.msra.mxu0 0
    %2739 = vmatprep.subr.bf16.mxu0 0
    %2740 = vmatpush2.bf16.msra.mxu0 0
    %2741 = vmatprep.subr.bf16.mxu0 0
    %2742 = vmatpush2.bf16.msra.mxu0 0
    %2743 = vmatprep.subr.bf16.mxu0 0
    %2744 = vmatpush2.bf16.msra.mxu0 0
    %2745 = vmatprep.subr.bf16.mxu0 0
    %2746 = vmatpush2.bf16.msra.mxu0 0
    %2747 = vmatprep.subr.bf16.mxu0 0
    %2748 = vmatpush2.bf16.msra.mxu0 0
    %2749 = vmatprep.subr.bf16.mxu0 0
    %2750 = vmatpush2.bf16.msra.mxu0 0
    %2751 = vmatprep.subr.bf16.mxu0 0
    %2752 = vmatpush2.bf16.msra.mxu0 0
    %2753 = vmatprep.mubr.bf16.mxu0 0
    %2754 = vmatmul.mubr.bf16.gmra.mxu0 %v1607
    %v2755 = vpop.f32.mrf.mxu0
    %v2756 = vadd.f32 0.0, %v2755
    %v2757 = vpop.f32.mrf.mxu0
    %v2758 = vadd.f32 0.0, %v2757
    %v2759 = vpop.f32.mrf.mxu0
    %v2760 = vadd.f32 0.0, %v2759
    %v2761 = vpop.f32.mrf.mxu0
    %v2762 = vadd.f32 0.0, %v2761
    %2763 = vmatprep.mubr.bf16.mxu0 0
    %2764 = vmatmul.mubr.bf16.gmra.mxu0 %v1610
    %v2765 = vpop.f32.mrf.mxu0
    %v2766 = vadd.f32 0.0, %v2765
    %v2767 = vpop.f32.mrf.mxu0
    %v2768 = vadd.f32 0.0, %v2767
    %v2769 = vpop.f32.mrf.mxu0
    %v2770 = vadd.f32 0.0, %v2769
    %v2771 = vpop.f32.mrf.mxu0
    %v2772 = vadd.f32 0.0, %v2771
    %2773 = vmatprep.mubr.bf16.mxu0 0
    %2774 = vmatmul.mubr.bf16.gmra.mxu0 %v1613
    %v2775 = vpop.f32.mrf.mxu0
    %v2776 = vadd.f32 0.0, %v2775
    %v2777 = vpop.f32.mrf.mxu0
    %v2778 = vadd.f32 0.0, %v2777
    %v2779 = vpop.f32.mrf.mxu0
    %v2780 = vadd.f32 0.0, %v2779
    %v2781 = vpop.f32.mrf.mxu0
    %v2782 = vadd.f32 0.0, %v2781
    %2783 = vdwg.mxu0
    %v2784 = vadd.f32 %v2559, %v2630
    %v2785 = vadd.f32 %v2560, %v2632
    %v2786 = vadd.f32 %v2561, %v2693
    %v2787 = vadd.f32 %v2562, %v2695
    %v2788 = vadd.f32 %v2563, %v2756
    %v2789 = vadd.f32 %v2564, %v2758
    %v2790 = vadd.f32 %v2565, %v2634
    %v2791 = vadd.f32 %v2566, %v2636
    %v2792 = vadd.f32 %v2567, %v2697
    %v2793 = vadd.f32 %v2568, %v2699
    %v2794 = vadd.f32 %v2569, %v2760
    %v2795 = vadd.f32 %v2570, %v2762
    %v2796 = vadd.f32 %v2571, %v2640
    %v2797 = vadd.f32 %v2572, %v2642
    %v2798 = vadd.f32 %v2573, %v2703
    %v2799 = vadd.f32 %v2574, %v2705
    %v2800 = vadd.f32 %v2575, %v2766
    %v2801 = vadd.f32 %v2576, %v2768
    %v2802 = vadd.f32 %v2577, %v2644
    %v2803 = vadd.f32 %v2578, %v2646
    %v2804 = vadd.f32 %v2579, %v2707
    %v2805 = vadd.f32 %v2580, %v2709
    %v2806 = vadd.f32 %v2581, %v2770
    %v2807 = vadd.f32 %v2582, %v2772
    %v2808 = vadd.f32 %v2583, %v2650
    %v2809 = vadd.f32 %v2584, %v2652
    %v2810 = vadd.f32 %v2585, %v2713
    %v2811 = vadd.f32 %v2586, %v2715
    %v2812 = vadd.f32 %v2587, %v2776
    %v2813 = vadd.f32 %v2588, %v2778
    %v2814 = vadd.f32 %v2589, %v2654
    %v2815 = vadd.f32 %v2590, %v2656
    %v2816 = vadd.f32 %v2591, %v2717
    %v2817 = vadd.f32 %v2592, %v2719
    %v2818 = vadd.f32 %v2593, %v2780
    %v2819 = vadd.f32 %v2594, %v2782
    %s2820 = scalar_lea.vmem %s0, 120
    %v2821 = vld [vmem:[%s2820] sm:$0xf]
    %v2822 = vld [vmem:[%s2820 + $0x4] sm:$0xf]
    %v2823 = vld [vmem:[%s2820 + $0x8] sm:$0xf]
    %v2824 = vld [vmem:[%s2820 + $0xc] sm:$0xf]
    %v2825 = vld [vmem:[%s2820 + $0x10] sm:$0xf]
    %v2826 = vld [vmem:[%s2820 + $0x14] sm:$0xf]
    %v2833 = vunpack.c.l.b16 %v2821
    %v2834 = vunpack.c.l.b16 %v2822
    %v2835 = vunpack.c.l.b16 %v2823
    %v2836 = vunpack.c.l.b16 %v2824
    %v2837 = vunpack.c.l.b16 %v2825
    %v2838 = vunpack.c.l.b16 %v2826
    %v2839 = vpack.c.b16 %v2834, %v2833
    %v2840 = vpack.c.b16 %v2836, %v2835
    %v2841 = vpack.c.b16 %v2838, %v2837
    %v2843 = vsel %vm332, %v2839, 0
    %v2846 = vsel %vm332, %v2840, 0
    %v2849 = vsel %vm332, %v2841, 0
    %2851 = vmatprep.subr.bf16.mxu0 0
    %2852 = vmatpush1.bf16.msra.mxu0 0
    %2853 = vmatprep.subr.bf16.mxu0 0
    %2854 = vmatpush1.bf16.msra.mxu0 0
    %2855 = vmatprep.subr.bf16.mxu0 0
    %2856 = vmatpush1.bf16.msra.mxu0 0
    %2857 = vmatprep.subr.bf16.mxu0 0
    %2858 = vmatpush1.bf16.msra.mxu0 0
    %2859 = vmatprep.subr.bf16.mxu0 0
    %2860 = vmatpush1.bf16.msra.mxu0 0
    %2861 = vmatprep.subr.bf16.mxu0 0
    %2862 = vmatpush1.bf16.msra.mxu0 0
    %2863 = vmatprep.subr.bf16.mxu0 %v1619
    %2864 = vmatpush1.bf16.msra.mxu0 %v1616
    %2865 = vmatprep.subr.bf16.mxu0 %v1589
    %2866 = vmatpush1.bf16.msra.mxu0 %v1588
    %2867 = vmatprep.subr.bf16.mxu0 0
    %2868 = vmatpush2.bf16.msra.mxu0 0
    %2869 = vmatprep.subr.bf16.mxu0 0
    %2870 = vmatpush2.bf16.msra.mxu0 0
    %2871 = vmatprep.subr.bf16.mxu0 0
    %2872 = vmatpush2.bf16.msra.mxu0 0
    %2873 = vmatprep.subr.bf16.mxu0 0
    %2874 = vmatpush2.bf16.msra.mxu0 0
    %2875 = vmatprep.subr.bf16.mxu0 0
    %2876 = vmatpush2.bf16.msra.mxu0 0
    %2877 = vmatprep.subr.bf16.mxu0 0
    %2878 = vmatpush2.bf16.msra.mxu0 0
    %2879 = vmatprep.subr.bf16.mxu0 0
    %2880 = vmatpush2.bf16.msra.mxu0 0
    %2881 = vmatprep.subr.bf16.mxu0 0
    %2882 = vmatpush2.bf16.msra.mxu0 0
    %2883 = vmatprep.mubr.bf16.mxu0 0
    %2884 = vmatmul.mubr.bf16.gmra.mxu0 %v2843
    %v2885 = vpop.f32.mrf.mxu0
    %v2886 = vadd.f32 0.0, %v2885
    %v2887 = vpop.f32.mrf.mxu0
    %v2888 = vadd.f32 0.0, %v2887
    %v2889 = vpop.f32.mrf.mxu0
    %v2890 = vadd.f32 0.0, %v2889
    %v2891 = vpop.f32.mrf.mxu0
    %v2892 = vadd.f32 0.0, %v2891
    %2893 = vmatprep.mubr.bf16.mxu0 0
    %2894 = vmatmul.mubr.bf16.gmra.mxu0 %v2846
    %v2895 = vpop.f32.mrf.mxu0
    %v2896 = vadd.f32 0.0, %v2895
    %v2897 = vpop.f32.mrf.mxu0
    %v2898 = vadd.f32 0.0, %v2897
    %v2899 = vpop.f32.mrf.mxu0
    %v2900 = vadd.f32 0.0, %v2899
    %v2901 = vpop.f32.mrf.mxu0
    %v2902 = vadd.f32 0.0, %v2901
    %2903 = vmatprep.mubr.bf16.mxu0 0
    %2904 = vmatmul.mubr.bf16.gmra.mxu0 %v2849
    %v2905 = vpop.f32.mrf.mxu0
    %v2906 = vadd.f32 0.0, %v2905
    %v2907 = vpop.f32.mrf.mxu0
    %v2908 = vadd.f32 0.0, %v2907
    %v2909 = vpop.f32.mrf.mxu0
    %v2910 = vadd.f32 0.0, %v2909
    %v2911 = vpop.f32.mrf.mxu0
    %v2912 = vadd.f32 0.0, %v2911
    %2913 = vdwg.mxu0
    %2914 = vmatprep.subr.bf16.mxu0 0
    %2915 = vmatpush1.bf16.msra.mxu0 0
    %2916 = vmatprep.subr.bf16.mxu0 0
    %2917 = vmatpush1.bf16.msra.mxu0 0
    %2918 = vmatprep.subr.bf16.mxu0 0
    %2919 = vmatpush1.bf16.msra.mxu0 0
    %2920 = vmatprep.subr.bf16.mxu0 0
    %2921 = vmatpush1.bf16.msra.mxu0 0
    %2922 = vmatprep.subr.bf16.mxu0 0
    %2923 = vmatpush1.bf16.msra.mxu0 0
    %2924 = vmatprep.subr.bf16.mxu0 0
    %2925 = vmatpush1.bf16.msra.mxu0 0
    %2926 = vmatprep.subr.bf16.mxu0 %v1625
    %2927 = vmatpush1.bf16.msra.mxu0 %v1622
    %2928 = vmatprep.subr.bf16.mxu0 %v1591
    %2929 = vmatpush1.bf16.msra.mxu0 %v1590
    %2930 = vmatprep.subr.bf16.mxu0 0
    %2931 = vmatpush2.bf16.msra.mxu0 0
    %2932 = vmatprep.subr.bf16.mxu0 0
    %2933 = vmatpush2.bf16.msra.mxu0 0
    %2934 = vmatprep.subr.bf16.mxu0 0
    %2935 = vmatpush2.bf16.msra.mxu0 0
    %2936 = vmatprep.subr.bf16.mxu0 0
    %2937 = vmatpush2.bf16.msra.mxu0 0
    %2938 = vmatprep.subr.bf16.mxu0 0
    %2939 = vmatpush2.bf16.msra.mxu0 0
    %2940 = vmatprep.subr.bf16.mxu0 0
    %2941 = vmatpush2.bf16.msra.mxu0 0
    %2942 = vmatprep.subr.bf16.mxu0 0
    %2943 = vmatpush2.bf16.msra.mxu0 0
    %2944 = vmatprep.subr.bf16.mxu0 0
    %2945 = vmatpush2.bf16.msra.mxu0 0
    %2946 = vmatprep.mubr.bf16.mxu0 0
    %2947 = vmatmul.mubr.bf16.gmra.mxu0 %v2843
    %v2948 = vpop.f32.mrf.mxu0
    %v2949 = vadd.f32 0.0, %v2948
    %v2950 = vpop.f32.mrf.mxu0
    %v2951 = vadd.f32 0.0, %v2950
    %v2952 = vpop.f32.mrf.mxu0
    %v2953 = vadd.f32 0.0, %v2952
    %v2954 = vpop.f32.mrf.mxu0
    %v2955 = vadd.f32 0.0, %v2954
    %2956 = vmatprep.mubr.bf16.mxu0 0
    %2957 = vmatmul.mubr.bf16.gmra.mxu0 %v2846
    %v2958 = vpop.f32.mrf.mxu0
    %v2959 = vadd.f32 0.0, %v2958
    %v2960 = vpop.f32.mrf.mxu0
    %v2961 = vadd.f32 0.0, %v2960
    %v2962 = vpop.f32.mrf.mxu0
    %v2963 = vadd.f32 0.0, %v2962
    %v2964 = vpop.f32.mrf.mxu0
    %v2965 = vadd.f32 0.0, %v2964
    %2966 = vmatprep.mubr.bf16.mxu0 0
    %2967 = vmatmul.mubr.bf16.gmra.mxu0 %v2849
    %v2968 = vpop.f32.mrf.mxu0
    %v2969 = vadd.f32 0.0, %v2968
    %v2970 = vpop.f32.mrf.mxu0
    %v2971 = vadd.f32 0.0, %v2970
    %v2972 = vpop.f32.mrf.mxu0
    %v2973 = vadd.f32 0.0, %v2972
    %v2974 = vpop.f32.mrf.mxu0
    %v2975 = vadd.f32 0.0, %v2974
    %2976 = vdwg.mxu0
    %2977 = vmatprep.subr.bf16.mxu0 0
    %2978 = vmatpush1.bf16.msra.mxu0 0
    %2979 = vmatprep.subr.bf16.mxu0 0
    %2980 = vmatpush1.bf16.msra.mxu0 0
    %2981 = vmatprep.subr.bf16.mxu0 0
    %2982 = vmatpush1.bf16.msra.mxu0 0
    %2983 = vmatprep.subr.bf16.mxu0 0
    %2984 = vmatpush1.bf16.msra.mxu0 0
    %2985 = vmatprep.subr.bf16.mxu0 0
    %2986 = vmatpush1.bf16.msra.mxu0 0
    %2987 = vmatprep.subr.bf16.mxu0 0
    %2988 = vmatpush1.bf16.msra.mxu0 0
    %2989 = vmatprep.subr.bf16.mxu0 %v1631
    %2990 = vmatpush1.bf16.msra.mxu0 %v1628
    %2991 = vmatprep.subr.bf16.mxu0 %v1593
    %2992 = vmatpush1.bf16.msra.mxu0 %v1592
    %2993 = vmatprep.subr.bf16.mxu0 0
    %2994 = vmatpush2.bf16.msra.mxu0 0
    %2995 = vmatprep.subr.bf16.mxu0 0
    %2996 = vmatpush2.bf16.msra.mxu0 0
    %2997 = vmatprep.subr.bf16.mxu0 0
    %2998 = vmatpush2.bf16.msra.mxu0 0
    %2999 = vmatprep.subr.bf16.mxu0 0
    %3000 = vmatpush2.bf16.msra.mxu0 0
    %3001 = vmatprep.subr.bf16.mxu0 0
    %3002 = vmatpush2.bf16.msra.mxu0 0
    %3003 = vmatprep.subr.bf16.mxu0 0
    %3004 = vmatpush2.bf16.msra.mxu0 0
    %3005 = vmatprep.subr.bf16.mxu0 0
    %3006 = vmatpush2.bf16.msra.mxu0 0
    %3007 = vmatprep.subr.bf16.mxu0 0
    %3008 = vmatpush2.bf16.msra.mxu0 0
    %3009 = vmatprep.mubr.bf16.mxu0 0
    %3010 = vmatmul.mubr.bf16.gmra.mxu0 %v2843
    %v3011 = vpop.f32.mrf.mxu0
    %v3012 = vadd.f32 0.0, %v3011
    %v3013 = vpop.f32.mrf.mxu0
    %v3014 = vadd.f32 0.0, %v3013
    %v3015 = vpop.f32.mrf.mxu0
    %v3016 = vadd.f32 0.0, %v3015
    %v3017 = vpop.f32.mrf.mxu0
    %v3018 = vadd.f32 0.0, %v3017
    %3019 = vmatprep.mubr.bf16.mxu0 0
    %3020 = vmatmul.mubr.bf16.gmra.mxu0 %v2846
    %v3021 = vpop.f32.mrf.mxu0
    %v3022 = vadd.f32 0.0, %v3021
    %v3023 = vpop.f32.mrf.mxu0
    %v3024 = vadd.f32 0.0, %v3023
    %v3025 = vpop.f32.mrf.mxu0
    %v3026 = vadd.f32 0.0, %v3025
    %v3027 = vpop.f32.mrf.mxu0
    %v3028 = vadd.f32 0.0, %v3027
    %3029 = vmatprep.mubr.bf16.mxu0 0
    %3030 = vmatmul.mubr.bf16.gmra.mxu0 %v2849
    %v3031 = vpop.f32.mrf.mxu0
    %v3032 = vadd.f32 0.0, %v3031
    %v3033 = vpop.f32.mrf.mxu0
    %v3034 = vadd.f32 0.0, %v3033
    %v3035 = vpop.f32.mrf.mxu0
    %v3036 = vadd.f32 0.0, %v3035
    %v3037 = vpop.f32.mrf.mxu0
    %v3038 = vadd.f32 0.0, %v3037
    %3039 = vdwg.mxu0
    %v3040 = vadd.f32 %v2784, %v2886
    %v3041 = vadd.f32 %v2785, %v2888
    %v3042 = vadd.f32 %v2786, %v2949
    %v3043 = vadd.f32 %v2787, %v2951
    %v3044 = vadd.f32 %v2788, %v3012
    %v3045 = vadd.f32 %v2789, %v3014
    %v3046 = vadd.f32 %v2790, %v2890
    %v3047 = vadd.f32 %v2791, %v2892
    %v3048 = vadd.f32 %v2792, %v2953
    %v3049 = vadd.f32 %v2793, %v2955
    %v3050 = vadd.f32 %v2794, %v3016
    %v3051 = vadd.f32 %v2795, %v3018
    %v3052 = vadd.f32 %v2796, %v2896
    %v3053 = vadd.f32 %v2797, %v2898
    %v3054 = vadd.f32 %v2798, %v2959
    %v3055 = vadd.f32 %v2799, %v2961
    %v3056 = vadd.f32 %v2800, %v3022
    %v3057 = vadd.f32 %v2801, %v3024
    %v3058 = vadd.f32 %v2802, %v2900
    %v3059 = vadd.f32 %v2803, %v2902
    %v3060 = vadd.f32 %v2804, %v2963
    %v3061 = vadd.f32 %v2805, %v2965
    %v3062 = vadd.f32 %v2806, %v3026
    %v3063 = vadd.f32 %v2807, %v3028
    %v3064 = vadd.f32 %v2808, %v2906
    %v3065 = vadd.f32 %v2809, %v2908
    %v3066 = vadd.f32 %v2810, %v2969
    %v3067 = vadd.f32 %v2811, %v2971
    %v3068 = vadd.f32 %v2812, %v3032
    %v3069 = vadd.f32 %v2813, %v3034
    %v3070 = vadd.f32 %v2814, %v2910
    %v3071 = vadd.f32 %v2815, %v2912
    %v3072 = vadd.f32 %v2816, %v2973
    %v3073 = vadd.f32 %v2817, %v2975
    %v3074 = vadd.f32 %v2818, %v3036
    %v3075 = vadd.f32 %v2819, %v3038
    %v3076 = vmul.f32 %v3040, %v1862
    %v3077 = vmul.f32 %v3041, %v1866
    %v3078 = vmul.f32 %v3042, %v1870
    %v3079 = vmul.f32 %v3043, %v1874
    %v3080 = vmul.f32 %v3044, %v1878
    %v3081 = vmul.f32 %v3045, %v1882
    %v3082 = vmul.f32 %v3046, %v1862
    %v3083 = vmul.f32 %v3047, %v1866
    %v3084 = vmul.f32 %v3048, %v1870
    %v3085 = vmul.f32 %v3049, %v1874
    %v3086 = vmul.f32 %v3050, %v1878
    %v3087 = vmul.f32 %v3051, %v1882
    %v3088 = vmul.f32 %v3052, %v1862
    %v3089 = vmul.f32 %v3053, %v1866
    %v3090 = vmul.f32 %v3054, %v1870
    %v3091 = vmul.f32 %v3055, %v1874
    %v3092 = vmul.f32 %v3056, %v1878
    %v3093 = vmul.f32 %v3057, %v1882
    %v3094 = vmul.f32 %v3058, %v1862
    %v3095 = vmul.f32 %v3059, %v1866
    %v3096 = vmul.f32 %v3060, %v1870
    %v3097 = vmul.f32 %v3061, %v1874
    %v3098 = vmul.f32 %v3062, %v1878
    %v3099 = vmul.f32 %v3063, %v1882
    %v3100 = vmul.f32 %v3064, %v1862
    %v3101 = vmul.f32 %v3065, %v1866
    %v3102 = vmul.f32 %v3066, %v1870
    %v3103 = vmul.f32 %v3067, %v1874
    %v3104 = vmul.f32 %v3068, %v1878
    %v3105 = vmul.f32 %v3069, %v1882
    %v3106 = vmul.f32 %v3070, %v1862
    %v3107 = vmul.f32 %v3071, %v1866
    %v3108 = vmul.f32 %v3072, %v1870
    %v3109 = vmul.f32 %v3073, %v1874
    %v3110 = vmul.f32 %v3074, %v1878
    %v3111 = vmul.f32 %v3075, %v1882
    %v3112 = vadd.f32 %v3076, %v1929
    %v3113 = vadd.f32 %v3077, %v1933
    %v3114 = vadd.f32 %v3078, %v1937
    %v3115 = vadd.f32 %v3079, %v1941
    %v3116 = vadd.f32 %v3080, %v1945
    %v3117 = vadd.f32 %v3081, %v1949
    %v3118 = vadd.f32 %v3082, %v1929
    %v3119 = vadd.f32 %v3083, %v1933
    %v3120 = vadd.f32 %v3084, %v1937
    %v3121 = vadd.f32 %v3085, %v1941
    %v3122 = vadd.f32 %v3086, %v1945
    %v3123 = vadd.f32 %v3087, %v1949
    %v3124 = vadd.f32 %v3088, %v1929
    %v3125 = vadd.f32 %v3089, %v1933
    %v3126 = vadd.f32 %v3090, %v1937
    %v3127 = vadd.f32 %v3091, %v1941
    %v3128 = vadd.f32 %v3092, %v1945
    %v3129 = vadd.f32 %v3093, %v1949
    %v3130 = vadd.f32 %v3094, %v1929
    %v3131 = vadd.f32 %v3095, %v1933
    %v3132 = vadd.f32 %v3096, %v1937
    %v3133 = vadd.f32 %v3097, %v1941
    %v3134 = vadd.f32 %v3098, %v1945
    %v3135 = vadd.f32 %v3099, %v1949
    %v3136 = vadd.f32 %v3100, %v1929
    %v3137 = vadd.f32 %v3101, %v1933
    %v3138 = vadd.f32 %v3102, %v1937
    %v3139 = vadd.f32 %v3103, %v1941
    %v3140 = vadd.f32 %v3104, %v1945
    %v3141 = vadd.f32 %v3105, %v1949
    %v3142 = vadd.f32 %v3106, %v1929
    %v3143 = vadd.f32 %v3107, %v1933
    %v3144 = vadd.f32 %v3108, %v1937
    %v3145 = vadd.f32 %v3109, %v1941
    %v3146 = vadd.f32 %v3110, %v1945
    %v3147 = vadd.f32 %v3111, %v1949
    %v3148 = vmax.f32 %v1956, %v3112
    %v3149 = vmax.f32 %v1957, %v3113
    %v3150 = vmax.f32 %v1958, %v3114
    %v3151 = vmax.f32 %v1959, %v3115
    %v3152 = vmax.f32 %v1960, %v3116
    %v3153 = vmax.f32 %v1961, %v3117
    %v3154 = vmax.f32 %v1962, %v3118
    %v3155 = vmax.f32 %v1963, %v3119
    %v3156 = vmax.f32 %v1964, %v3120
    %v3157 = vmax.f32 %v1965, %v3121
    %v3158 = vmax.f32 %v1966, %v3122
    %v3159 = vmax.f32 %v1967, %v3123
    %v3160 = vmax.f32 %v1968, %v3124
    %v3161 = vmax.f32 %v1969, %v3125
    %v3162 = vmax.f32 %v1970, %v3126
    %v3163 = vmax.f32 %v1971, %v3127
    %v3164 = vmax.f32 %v1972, %v3128
    %v3165 = vmax.f32 %v1973, %v3129
    %v3166 = vmax.f32 %v1974, %v3130
    %v3167 = vmax.f32 %v1975, %v3131
    %v3168 = vmax.f32 %v1976, %v3132
    %v3169 = vmax.f32 %v1977, %v3133
    %v3170 = vmax.f32 %v1978, %v3134
    %v3171 = vmax.f32 %v1979, %v3135
    %v3172 = vmax.f32 %v1980, %v3136
    %v3173 = vmax.f32 %v1981, %v3137
    %v3174 = vmax.f32 %v1982, %v3138
    %v3175 = vmax.f32 %v1983, %v3139
    %v3176 = vmax.f32 %v1984, %v3140
    %v3177 = vmax.f32 %v1985, %v3141
    %v3178 = vmax.f32 %v1986, %v3142
    %v3179 = vmax.f32 %v1987, %v3143
    %v3180 = vmax.f32 %v1988, %v3144
    %v3181 = vmax.f32 %v1989, %v3145
    %v3182 = vmax.f32 %v1990, %v3146
    %v3183 = vmax.f32 %v1991, %v3147
    %v3184 = vmax.f32 %v3148, %v3151
    %v3185 = vmax.f32 %v3149, %v3152
    %v3186 = vmax.f32 %v3150, %v3153
    %v3187 = vmax.f32 %v3154, %v3157
    %v3188 = vmax.f32 %v3155, %v3158
    %v3189 = vmax.f32 %v3156, %v3159
    %v3190 = vmax.f32 %v3160, %v3163
    %v3191 = vmax.f32 %v3161, %v3164
    %v3192 = vmax.f32 %v3162, %v3165
    %v3193 = vmax.f32 %v3166, %v3169
    %v3194 = vmax.f32 %v3167, %v3170
    %v3195 = vmax.f32 %v3168, %v3171
    %v3196 = vmax.f32 %v3172, %v3175
    %v3197 = vmax.f32 %v3173, %v3176
    %v3198 = vmax.f32 %v3174, %v3177
    %v3199 = vmax.f32 %v3178, %v3181
    %v3200 = vmax.f32 %v3179, %v3182
    %v3201 = vmax.f32 %v3180, %v3183
    %v3202 = vmax.f32 %v3184, 0.0
    %v3203 = vmax.f32 %v3185, 0.0
    %v3204 = vmax.f32 %v3186, 0.0
    %v3205 = vmax.f32 %v3187, 0.0
    %v3206 = vmax.f32 %v3188, 0.0
    %v3207 = vmax.f32 %v3189, 0.0
    %v3208 = vmax.f32 %v3190, 0.0
    %v3209 = vmax.f32 %v3191, 0.0
    %v3210 = vmax.f32 %v3192, 0.0
    %v3211 = vmax.f32 %v3193, 0.0
    %v3212 = vmax.f32 %v3194, 0.0
    %v3213 = vmax.f32 %v3195, 0.0
    %v3214 = vmax.f32 %v3196, 0.0
    %v3215 = vmax.f32 %v3197, 0.0
    %v3216 = vmax.f32 %v3198, 0.0
    %v3217 = vmax.f32 %v3199, 0.0
    %v3218 = vmax.f32 %v3200, 0.0
    %v3219 = vmax.f32 %v3201, 0.0
    %3220 = vmatprep.subr.bf16.mxu0 0
    %3221 = vmatpush1.bf16.msra.mxu0 0
    %3222 = vmatprep.subr.bf16.mxu0 0
    %3223 = vmatpush1.bf16.msra.mxu0 0
    %3224 = vmatprep.subr.bf16.mxu0 0
    %3225 = vmatpush1.bf16.msra.mxu0 0
    %3226 = vmatprep.subr.bf16.mxu0 0
    %3227 = vmatpush1.bf16.msra.mxu0 0
    %3228 = vmatprep.subr.bf16.mxu0 0
    %3229 = vmatpush1.bf16.msra.mxu0 0
    %3230 = vmatprep.subr.bf16.mxu0 0
    %3231 = vmatpush1.bf16.msra.mxu0 0
    %3232 = vmatprep.subr.bf16.mxu0 %v347
    %3233 = vmatpush1.bf16.msra.mxu0 %v344
    %3234 = vmatprep.subr.bf16.mxu0 %v315
    %3235 = vmatpush1.bf16.msra.mxu0 %v314
    %3236 = vmatprep.subr.bf16.mxu0 0
    %3237 = vmatpush2.bf16.msra.mxu0 0
    %3238 = vmatprep.subr.bf16.mxu0 0
    %3239 = vmatpush2.bf16.msra.mxu0 0
    %3240 = vmatprep.subr.bf16.mxu0 0
    %3241 = vmatpush2.bf16.msra.mxu0 0
    %3242 = vmatprep.subr.bf16.mxu0 0
    %3243 = vmatpush2.bf16.msra.mxu0 0
    %3244 = vmatprep.subr.bf16.mxu0 0
    %3245 = vmatpush2.bf16.msra.mxu0 0
    %3246 = vmatprep.subr.bf16.mxu0 0
    %3247 = vmatpush2.bf16.msra.mxu0 0
    %3248 = vmatprep.subr.bf16.mxu0 0
    %3249 = vmatpush2.bf16.msra.mxu0 0
    %3250 = vmatprep.subr.bf16.mxu0 0
    %3251 = vmatpush2.bf16.msra.mxu0 0
    %3252 = vmatprep.mubr.bf16.mxu0 0
    %3253 = vmatmul.mubr.bf16.gmra.mxu0 %v1266
    %v3254 = vpop.f32.mrf.mxu0
    %v3255 = vadd.f32 0.0, %v3254
    %v3256 = vpop.f32.mrf.mxu0
    %v3257 = vadd.f32 0.0, %v3256
    %v3258 = vpop.f32.mrf.mxu0
    %v3259 = vadd.f32 0.0, %v3258
    %v3260 = vpop.f32.mrf.mxu0
    %v3261 = vadd.f32 0.0, %v3260
    %3262 = vmatprep.mubr.bf16.mxu0 0
    %3263 = vmatmul.mubr.bf16.gmra.mxu0 %v1269
    %v3264 = vpop.f32.mrf.mxu0
    %v3265 = vadd.f32 0.0, %v3264
    %v3266 = vpop.f32.mrf.mxu0
    %v3267 = vadd.f32 0.0, %v3266
    %v3268 = vpop.f32.mrf.mxu0
    %v3269 = vadd.f32 0.0, %v3268
    %v3270 = vpop.f32.mrf.mxu0
    %v3271 = vadd.f32 0.0, %v3270
    %3272 = vmatprep.mubr.bf16.mxu0 0
    %3273 = vmatmul.mubr.bf16.gmra.mxu0 %v1272
    %v3274 = vpop.f32.mrf.mxu0
    %v3275 = vadd.f32 0.0, %v3274
    %v3276 = vpop.f32.mrf.mxu0
    %v3277 = vadd.f32 0.0, %v3276
    %v3278 = vpop.f32.mrf.mxu0
    %v3279 = vadd.f32 0.0, %v3278
    %v3280 = vpop.f32.mrf.mxu0
    %v3281 = vadd.f32 0.0, %v3280
    %3282 = vdwg.mxu0
    %3283 = vmatprep.subr.bf16.mxu0 0
    %3284 = vmatpush1.bf16.msra.mxu0 0
    %3285 = vmatprep.subr.bf16.mxu0 0
    %3286 = vmatpush1.bf16.msra.mxu0 0
    %3287 = vmatprep.subr.bf16.mxu0 0
    %3288 = vmatpush1.bf16.msra.mxu0 0
    %3289 = vmatprep.subr.bf16.mxu0 0
    %3290 = vmatpush1.bf16.msra.mxu0 0
    %3291 = vmatprep.subr.bf16.mxu0 0
    %3292 = vmatpush1.bf16.msra.mxu0 0
    %3293 = vmatprep.subr.bf16.mxu0 0
    %3294 = vmatpush1.bf16.msra.mxu0 0
    %3295 = vmatprep.subr.bf16.mxu0 %v353
    %3296 = vmatpush1.bf16.msra.mxu0 %v350
    %3297 = vmatprep.subr.bf16.mxu0 %v317
    %3298 = vmatpush1.bf16.msra.mxu0 %v316
    %3299 = vmatprep.subr.bf16.mxu0 0
    %3300 = vmatpush2.bf16.msra.mxu0 0
    %3301 = vmatprep.subr.bf16.mxu0 0
    %3302 = vmatpush2.bf16.msra.mxu0 0
    %3303 = vmatprep.subr.bf16.mxu0 0
    %3304 = vmatpush2.bf16.msra.mxu0 0
    %3305 = vmatprep.subr.bf16.mxu0 0
    %3306 = vmatpush2.bf16.msra.mxu0 0
    %3307 = vmatprep.subr.bf16.mxu0 0
    %3308 = vmatpush2.bf16.msra.mxu0 0
    %3309 = vmatprep.subr.bf16.mxu0 0
    %3310 = vmatpush2.bf16.msra.mxu0 0
    %3311 = vmatprep.subr.bf16.mxu0 0
    %3312 = vmatpush2.bf16.msra.mxu0 0
    %3313 = vmatprep.subr.bf16.mxu0 0
    %3314 = vmatpush2.bf16.msra.mxu0 0
    %3315 = vmatprep.mubr.bf16.mxu0 0
    %3316 = vmatmul.mubr.bf16.gmra.mxu0 %v1266
    %v3317 = vpop.f32.mrf.mxu0
    %v3318 = vadd.f32 0.0, %v3317
    %v3319 = vpop.f32.mrf.mxu0
    %v3320 = vadd.f32 0.0, %v3319
    %v3321 = vpop.f32.mrf.mxu0
    %v3322 = vadd.f32 0.0, %v3321
    %v3323 = vpop.f32.mrf.mxu0
    %v3324 = vadd.f32 0.0, %v3323
    %3325 = vmatprep.mubr.bf16.mxu0 0
    %3326 = vmatmul.mubr.bf16.gmra.mxu0 %v1269
    %v3327 = vpop.f32.mrf.mxu0
    %v3328 = vadd.f32 0.0, %v3327
    %v3329 = vpop.f32.mrf.mxu0
    %v3330 = vadd.f32 0.0, %v3329
    %v3331 = vpop.f32.mrf.mxu0
    %v3332 = vadd.f32 0.0, %v3331
    %v3333 = vpop.f32.mrf.mxu0
    %v3334 = vadd.f32 0.0, %v3333
    %3335 = vmatprep.mubr.bf16.mxu0 0
    %3336 = vmatmul.mubr.bf16.gmra.mxu0 %v1272
    %v3337 = vpop.f32.mrf.mxu0
    %v3338 = vadd.f32 0.0, %v3337
    %v3339 = vpop.f32.mrf.mxu0
    %v3340 = vadd.f32 0.0, %v3339
    %v3341 = vpop.f32.mrf.mxu0
    %v3342 = vadd.f32 0.0, %v3341
    %v3343 = vpop.f32.mrf.mxu0
    %v3344 = vadd.f32 0.0, %v3343
    %3345 = vdwg.mxu0
    %3346 = vmatprep.subr.bf16.mxu0 0
    %3347 = vmatpush1.bf16.msra.mxu0 0
    %3348 = vmatprep.subr.bf16.mxu0 0
    %3349 = vmatpush1.bf16.msra.mxu0 0
    %3350 = vmatprep.subr.bf16.mxu0 0
    %3351 = vmatpush1.bf16.msra.mxu0 0
    %3352 = vmatprep.subr.bf16.mxu0 0
    %3353 = vmatpush1.bf16.msra.mxu0 0
    %3354 = vmatprep.subr.bf16.mxu0 0
    %3355 = vmatpush1.bf16.msra.mxu0 0
    %3356 = vmatprep.subr.bf16.mxu0 0
    %3357 = vmatpush1.bf16.msra.mxu0 0
    %3358 = vmatprep.subr.bf16.mxu0 %v359
    %3359 = vmatpush1.bf16.msra.mxu0 %v356
    %3360 = vmatprep.subr.bf16.mxu0 %v319
    %3361 = vmatpush1.bf16.msra.mxu0 %v318
    %3362 = vmatprep.subr.bf16.mxu0 0
    %3363 = vmatpush2.bf16.msra.mxu0 0
    %3364 = vmatprep.subr.bf16.mxu0 0
    %3365 = vmatpush2.bf16.msra.mxu0 0
    %3366 = vmatprep.subr.bf16.mxu0 0
    %3367 = vmatpush2.bf16.msra.mxu0 0
    %3368 = vmatprep.subr.bf16.mxu0 0
    %3369 = vmatpush2.bf16.msra.mxu0 0
    %3370 = vmatprep.subr.bf16.mxu0 0
    %3371 = vmatpush2.bf16.msra.mxu0 0
    %3372 = vmatprep.subr.bf16.mxu0 0
    %3373 = vmatpush2.bf16.msra.mxu0 0
    %3374 = vmatprep.subr.bf16.mxu0 0
    %3375 = vmatpush2.bf16.msra.mxu0 0
    %3376 = vmatprep.subr.bf16.mxu0 0
    %3377 = vmatpush2.bf16.msra.mxu0 0
    %3378 = vmatprep.mubr.bf16.mxu0 0
    %3379 = vmatmul.mubr.bf16.gmra.mxu0 %v1266
    %v3380 = vpop.f32.mrf.mxu0
    %v3381 = vadd.f32 0.0, %v3380
    %v3382 = vpop.f32.mrf.mxu0
    %v3383 = vadd.f32 0.0, %v3382
    %v3384 = vpop.f32.mrf.mxu0
    %v3385 = vadd.f32 0.0, %v3384
    %v3386 = vpop.f32.mrf.mxu0
    %v3387 = vadd.f32 0.0, %v3386
    %3388 = vmatprep.mubr.bf16.mxu0 0
    %3389 = vmatmul.mubr.bf16.gmra.mxu0 %v1269
    %v3390 = vpop.f32.mrf.mxu0
    %v3391 = vadd.f32 0.0, %v3390
    %v3392 = vpop.f32.mrf.mxu0
    %v3393 = vadd.f32 0.0, %v3392
    %v3394 = vpop.f32.mrf.mxu0
    %v3395 = vadd.f32 0.0, %v3394
    %v3396 = vpop.f32.mrf.mxu0
    %v3397 = vadd.f32 0.0, %v3396
    %3398 = vmatprep.mubr.bf16.mxu0 0
    %3399 = vmatmul.mubr.bf16.gmra.mxu0 %v1272
    %v3400 = vpop.f32.mrf.mxu0
    %v3401 = vadd.f32 0.0, %v3400
    %v3402 = vpop.f32.mrf.mxu0
    %v3403 = vadd.f32 0.0, %v3402
    %v3404 = vpop.f32.mrf.mxu0
    %v3405 = vadd.f32 0.0, %v3404
    %v3406 = vpop.f32.mrf.mxu0
    %v3407 = vadd.f32 0.0, %v3406
    %3408 = vdwg.mxu0
    %3409 = vmatprep.subr.bf16.mxu0 0
    %3410 = vmatpush1.bf16.msra.mxu0 0
    %3411 = vmatprep.subr.bf16.mxu0 0
    %3412 = vmatpush1.bf16.msra.mxu0 0
    %3413 = vmatprep.subr.bf16.mxu0 0
    %3414 = vmatpush1.bf16.msra.mxu0 0
    %3415 = vmatprep.subr.bf16.mxu0 0
    %3416 = vmatpush1.bf16.msra.mxu0 0
    %3417 = vmatprep.subr.bf16.mxu0 0
    %3418 = vmatpush1.bf16.msra.mxu0 0
    %3419 = vmatprep.subr.bf16.mxu0 0
    %3420 = vmatpush1.bf16.msra.mxu0 0
    %3421 = vmatprep.subr.bf16.mxu0 %v632
    %3422 = vmatpush1.bf16.msra.mxu0 %v629
    %3423 = vmatprep.subr.bf16.mxu0 %v602
    %3424 = vmatpush1.bf16.msra.mxu0 %v601
    %3425 = vmatprep.subr.bf16.mxu0 0
    %3426 = vmatpush2.bf16.msra.mxu0 0
    %3427 = vmatprep.subr.bf16.mxu0 0
    %3428 = vmatpush2.bf16.msra.mxu0 0
    %3429 = vmatprep.subr.bf16.mxu0 0
    %3430 = vmatpush2.bf16.msra.mxu0 0
    %3431 = vmatprep.subr.bf16.mxu0 0
    %3432 = vmatpush2.bf16.msra.mxu0 0
    %3433 = vmatprep.subr.bf16.mxu0 0
    %3434 = vmatpush2.bf16.msra.mxu0 0
    %3435 = vmatprep.subr.bf16.mxu0 0
    %3436 = vmatpush2.bf16.msra.mxu0 0
    %3437 = vmatprep.subr.bf16.mxu0 0
    %3438 = vmatpush2.bf16.msra.mxu0 0
    %3439 = vmatprep.subr.bf16.mxu0 0
    %3440 = vmatpush2.bf16.msra.mxu0 0
    %3441 = vmatprep.mubr.bf16.mxu0 0
    %3442 = vmatmul.mubr.bf16.gmra.mxu0 %v925
    %v3443 = vpop.f32.mrf.mxu0
    %v3444 = vadd.f32 %v3255, %v3443
    %v3445 = vpop.f32.mrf.mxu0
    %v3446 = vadd.f32 %v3257, %v3445
    %v3447 = vpop.f32.mrf.mxu0
    %v3448 = vadd.f32 %v3259, %v3447
    %v3449 = vpop.f32.mrf.mxu0
    %v3450 = vadd.f32 %v3261, %v3449
    %3451 = vmatprep.mubr.bf16.mxu0 0
    %3452 = vmatmul.mubr.bf16.gmra.mxu0 %v928
    %v3453 = vpop.f32.mrf.mxu0
    %v3454 = vadd.f32 %v3265, %v3453
    %v3455 = vpop.f32.mrf.mxu0
    %v3456 = vadd.f32 %v3267, %v3455
    %v3457 = vpop.f32.mrf.mxu0
    %v3458 = vadd.f32 %v3269, %v3457
    %v3459 = vpop.f32.mrf.mxu0
    %v3460 = vadd.f32 %v3271, %v3459
    %3461 = vmatprep.mubr.bf16.mxu0 0
    %3462 = vmatmul.mubr.bf16.gmra.mxu0 %v931
    %v3463 = vpop.f32.mrf.mxu0
    %v3464 = vadd.f32 %v3275, %v3463
    %v3465 = vpop.f32.mrf.mxu0
    %v3466 = vadd.f32 %v3277, %v3465
    %v3467 = vpop.f32.mrf.mxu0
    %v3468 = vadd.f32 %v3279, %v3467
    %v3469 = vpop.f32.mrf.mxu0
    %v3470 = vadd.f32 %v3281, %v3469
    %3471 = vdwg.mxu0
    %3472 = vmatprep.subr.bf16.mxu0 0
    %3473 = vmatpush1.bf16.msra.mxu0 0
    %3474 = vmatprep.subr.bf16.mxu0 0
    %3475 = vmatpush1.bf16.msra.mxu0 0
    %3476 = vmatprep.subr.bf16.mxu0 0
    %3477 = vmatpush1.bf16.msra.mxu0 0
    %3478 = vmatprep.subr.bf16.mxu0 0
    %3479 = vmatpush1.bf16.msra.mxu0 0
    %3480 = vmatprep.subr.bf16.mxu0 0
    %3481 = vmatpush1.bf16.msra.mxu0 0
    %3482 = vmatprep.subr.bf16.mxu0 0
    %3483 = vmatpush1.bf16.msra.mxu0 0
    %3484 = vmatprep.subr.bf16.mxu0 %v638
    %3485 = vmatpush1.bf16.msra.mxu0 %v635
    %3486 = vmatprep.subr.bf16.mxu0 %v604
    %3487 = vmatpush1.bf16.msra.mxu0 %v603
    %3488 = vmatprep.subr.bf16.mxu0 0
    %3489 = vmatpush2.bf16.msra.mxu0 0
    %3490 = vmatprep.subr.bf16.mxu0 0
    %3491 = vmatpush2.bf16.msra.mxu0 0
    %3492 = vmatprep.subr.bf16.mxu0 0
    %3493 = vmatpush2.bf16.msra.mxu0 0
    %3494 = vmatprep.subr.bf16.mxu0 0
    %3495 = vmatpush2.bf16.msra.mxu0 0
    %3496 = vmatprep.subr.bf16.mxu0 0
    %3497 = vmatpush2.bf16.msra.mxu0 0
    %3498 = vmatprep.subr.bf16.mxu0 0
    %3499 = vmatpush2.bf16.msra.mxu0 0
    %3500 = vmatprep.subr.bf16.mxu0 0
    %3501 = vmatpush2.bf16.msra.mxu0 0
    %3502 = vmatprep.subr.bf16.mxu0 0
    %3503 = vmatpush2.bf16.msra.mxu0 0
    %3504 = vmatprep.mubr.bf16.mxu0 0
    %3505 = vmatmul.mubr.bf16.gmra.mxu0 %v925
    %v3506 = vpop.f32.mrf.mxu0
    %v3507 = vadd.f32 %v3318, %v3506
    %v3508 = vpop.f32.mrf.mxu0
    %v3509 = vadd.f32 %v3320, %v3508
    %v3510 = vpop.f32.mrf.mxu0
    %v3511 = vadd.f32 %v3322, %v3510
    %v3512 = vpop.f32.mrf.mxu0
    %v3513 = vadd.f32 %v3324, %v3512
    %3514 = vmatprep.mubr.bf16.mxu0 0
    %3515 = vmatmul.mubr.bf16.gmra.mxu0 %v928
    %v3516 = vpop.f32.mrf.mxu0
    %v3517 = vadd.f32 %v3328, %v3516
    %v3518 = vpop.f32.mrf.mxu0
    %v3519 = vadd.f32 %v3330, %v3518
    %v3520 = vpop.f32.mrf.mxu0
    %v3521 = vadd.f32 %v3332, %v3520
    %v3522 = vpop.f32.mrf.mxu0
    %v3523 = vadd.f32 %v3334, %v3522
    %3524 = vmatprep.mubr.bf16.mxu0 0
    %3525 = vmatmul.mubr.bf16.gmra.mxu0 %v931
    %v3526 = vpop.f32.mrf.mxu0
    %v3527 = vadd.f32 %v3338, %v3526
    %v3528 = vpop.f32.mrf.mxu0
    %v3529 = vadd.f32 %v3340, %v3528
    %v3530 = vpop.f32.mrf.mxu0
    %v3531 = vadd.f32 %v3342, %v3530
    %v3532 = vpop.f32.mrf.mxu0
    %v3533 = vadd.f32 %v3344, %v3532
    %3534 = vdwg.mxu0
    %3535 = vmatprep.subr.bf16.mxu0 0
    %3536 = vmatpush1.bf16.msra.mxu0 0
    %3537 = vmatprep.subr.bf16.mxu0 0
    %3538 = vmatpush1.bf16.msra.mxu0 0
    %3539 = vmatprep.subr.bf16.mxu0 0
    %3540 = vmatpush1.bf16.msra.mxu0 0
    %3541 = vmatprep.subr.bf16.mxu0 0
    %3542 = vmatpush1.bf16.msra.mxu0 0
    %3543 = vmatprep.subr.bf16.mxu0 0
    %3544 = vmatpush1.bf16.msra.mxu0 0
    %3545 = vmatprep.subr.bf16.mxu0 0
    %3546 = vmatpush1.bf16.msra.mxu0 0
    %3547 = vmatprep.subr.bf16.mxu0 %v644
    %3548 = vmatpush1.bf16.msra.mxu0 %v641
    %3549 = vmatprep.subr.bf16.mxu0 %v606
    %3550 = vmatpush1.bf16.msra.mxu0 %v605
    %3551 = vmatprep.subr.bf16.mxu0 0
    %3552 = vmatpush2.bf16.msra.mxu0 0
    %3553 = vmatprep.subr.bf16.mxu0 0
    %3554 = vmatpush2.bf16.msra.mxu0 0
    %3555 = vmatprep.subr.bf16.mxu0 0
    %3556 = vmatpush2.bf16.msra.mxu0 0
    %3557 = vmatprep.subr.bf16.mxu0 0
    %3558 = vmatpush2.bf16.msra.mxu0 0
    %3559 = vmatprep.subr.bf16.mxu0 0
    %3560 = vmatpush2.bf16.msra.mxu0 0
    %3561 = vmatprep.subr.bf16.mxu0 0
    %3562 = vmatpush2.bf16.msra.mxu0 0
    %3563 = vmatprep.subr.bf16.mxu0 0
    %3564 = vmatpush2.bf16.msra.mxu0 0
    %3565 = vmatprep.subr.bf16.mxu0 0
    %3566 = vmatpush2.bf16.msra.mxu0 0
    %3567 = vmatprep.mubr.bf16.mxu0 0
    %3568 = vmatmul.mubr.bf16.gmra.mxu0 %v925
    %v3569 = vpop.f32.mrf.mxu0
    %v3570 = vadd.f32 %v3381, %v3569
    %v3571 = vpop.f32.mrf.mxu0
    %v3572 = vadd.f32 %v3383, %v3571
    %v3573 = vpop.f32.mrf.mxu0
    %v3574 = vadd.f32 %v3385, %v3573
    %v3575 = vpop.f32.mrf.mxu0
    %v3576 = vadd.f32 %v3387, %v3575
    %3577 = vmatprep.mubr.bf16.mxu0 0
    %3578 = vmatmul.mubr.bf16.gmra.mxu0 %v928
    %v3579 = vpop.f32.mrf.mxu0
    %v3580 = vadd.f32 %v3391, %v3579
    %v3581 = vpop.f32.mrf.mxu0
    %v3582 = vadd.f32 %v3393, %v3581
    %v3583 = vpop.f32.mrf.mxu0
    %v3584 = vadd.f32 %v3395, %v3583
    %v3585 = vpop.f32.mrf.mxu0
    %v3586 = vadd.f32 %v3397, %v3585
    %3587 = vmatprep.mubr.bf16.mxu0 0
    %3588 = vmatmul.mubr.bf16.gmra.mxu0 %v931
    %v3589 = vpop.f32.mrf.mxu0
    %v3590 = vadd.f32 %v3401, %v3589
    %v3591 = vpop.f32.mrf.mxu0
    %v3592 = vadd.f32 %v3403, %v3591
    %v3593 = vpop.f32.mrf.mxu0
    %v3594 = vadd.f32 %v3405, %v3593
    %v3595 = vpop.f32.mrf.mxu0
    %v3596 = vadd.f32 %v3407, %v3595
    %3597 = vdwg.mxu0
    %3598 = vmatprep.subr.bf16.mxu0 0
    %3599 = vmatpush1.bf16.msra.mxu0 0
    %3600 = vmatprep.subr.bf16.mxu0 0
    %3601 = vmatpush1.bf16.msra.mxu0 0
    %3602 = vmatprep.subr.bf16.mxu0 0
    %3603 = vmatpush1.bf16.msra.mxu0 0
    %3604 = vmatprep.subr.bf16.mxu0 0
    %3605 = vmatpush1.bf16.msra.mxu0 0
    %3606 = vmatprep.subr.bf16.mxu0 0
    %3607 = vmatpush1.bf16.msra.mxu0 0
    %3608 = vmatprep.subr.bf16.mxu0 0
    %3609 = vmatpush1.bf16.msra.mxu0 0
    %3610 = vmatprep.subr.bf16.mxu0 %v937
    %3611 = vmatpush1.bf16.msra.mxu0 %v934
    %3612 = vmatprep.subr.bf16.mxu0 %v907
    %3613 = vmatpush1.bf16.msra.mxu0 %v906
    %3614 = vmatprep.subr.bf16.mxu0 0
    %3615 = vmatpush2.bf16.msra.mxu0 0
    %3616 = vmatprep.subr.bf16.mxu0 0
    %3617 = vmatpush2.bf16.msra.mxu0 0
    %3618 = vmatprep.subr.bf16.mxu0 0
    %3619 = vmatpush2.bf16.msra.mxu0 0
    %3620 = vmatprep.subr.bf16.mxu0 0
    %3621 = vmatpush2.bf16.msra.mxu0 0
    %3622 = vmatprep.subr.bf16.mxu0 0
    %3623 = vmatpush2.bf16.msra.mxu0 0
    %3624 = vmatprep.subr.bf16.mxu0 0
    %3625 = vmatpush2.bf16.msra.mxu0 0
    %3626 = vmatprep.subr.bf16.mxu0 0
    %3627 = vmatpush2.bf16.msra.mxu0 0
    %3628 = vmatprep.subr.bf16.mxu0 0
    %3629 = vmatpush2.bf16.msra.mxu0 0
    %3630 = vmatprep.mubr.bf16.mxu0 0
    %3631 = vmatmul.mubr.bf16.gmra.mxu0 %v1607
    %v3632 = vpop.f32.mrf.mxu0
    %v3633 = vadd.f32 0.0, %v3632
    %v3634 = vpop.f32.mrf.mxu0
    %v3635 = vadd.f32 0.0, %v3634
    %v3636 = vpop.f32.mrf.mxu0
    %v3637 = vadd.f32 0.0, %v3636
    %v3638 = vpop.f32.mrf.mxu0
    %v3639 = vadd.f32 0.0, %v3638
    %3640 = vmatprep.mubr.bf16.mxu0 0
    %3641 = vmatmul.mubr.bf16.gmra.mxu0 %v1610
    %v3642 = vpop.f32.mrf.mxu0
    %v3643 = vadd.f32 0.0, %v3642
    %v3644 = vpop.f32.mrf.mxu0
    %v3645 = vadd.f32 0.0, %v3644
    %v3646 = vpop.f32.mrf.mxu0
    %v3647 = vadd.f32 0.0, %v3646
    %v3648 = vpop.f32.mrf.mxu0
    %v3649 = vadd.f32 0.0, %v3648
    %3650 = vmatprep.mubr.bf16.mxu0 0
    %3651 = vmatmul.mubr.bf16.gmra.mxu0 %v1613
    %v3652 = vpop.f32.mrf.mxu0
    %v3653 = vadd.f32 0.0, %v3652
    %v3654 = vpop.f32.mrf.mxu0
    %v3655 = vadd.f32 0.0, %v3654
    %v3656 = vpop.f32.mrf.mxu0
    %v3657 = vadd.f32 0.0, %v3656
    %v3658 = vpop.f32.mrf.mxu0
    %v3659 = vadd.f32 0.0, %v3658
    %3660 = vdwg.mxu0
    %3661 = vmatprep.subr.bf16.mxu0 0
    %3662 = vmatpush1.bf16.msra.mxu0 0
    %3663 = vmatprep.subr.bf16.mxu0 0
    %3664 = vmatpush1.bf16.msra.mxu0 0
    %3665 = vmatprep.subr.bf16.mxu0 0
    %3666 = vmatpush1.bf16.msra.mxu0 0
    %3667 = vmatprep.subr.bf16.mxu0 0
    %3668 = vmatpush1.bf16.msra.mxu0 0
    %3669 = vmatprep.subr.bf16.mxu0 0
    %3670 = vmatpush1.bf16.msra.mxu0 0
    %3671 = vmatprep.subr.bf16.mxu0 0
    %3672 = vmatpush1.bf16.msra.mxu0 0
    %3673 = vmatprep.subr.bf16.mxu0 %v943
    %3674 = vmatpush1.bf16.msra.mxu0 %v940
    %3675 = vmatprep.subr.bf16.mxu0 %v909
    %3676 = vmatpush1.bf16.msra.mxu0 %v908
    %3677 = vmatprep.subr.bf16.mxu0 0
    %3678 = vmatpush2.bf16.msra.mxu0 0
    %3679 = vmatprep.subr.bf16.mxu0 0
    %3680 = vmatpush2.bf16.msra.mxu0 0
    %3681 = vmatprep.subr.bf16.mxu0 0
    %3682 = vmatpush2.bf16.msra.mxu0 0
    %3683 = vmatprep.subr.bf16.mxu0 0
    %3684 = vmatpush2.bf16.msra.mxu0 0
    %3685 = vmatprep.subr.bf16.mxu0 0
    %3686 = vmatpush2.bf16.msra.mxu0 0
    %3687 = vmatprep.subr.bf16.mxu0 0
    %3688 = vmatpush2.bf16.msra.mxu0 0
    %3689 = vmatprep.subr.bf16.mxu0 0
    %3690 = vmatpush2.bf16.msra.mxu0 0
    %3691 = vmatprep.subr.bf16.mxu0 0
    %3692 = vmatpush2.bf16.msra.mxu0 0
    %3693 = vmatprep.mubr.bf16.mxu0 0
    %3694 = vmatmul.mubr.bf16.gmra.mxu0 %v1607
    %v3695 = vpop.f32.mrf.mxu0
    %v3696 = vadd.f32 0.0, %v3695
    %v3697 = vpop.f32.mrf.mxu0
    %v3698 = vadd.f32 0.0, %v3697
    %v3699 = vpop.f32.mrf.mxu0
    %v3700 = vadd.f32 0.0, %v3699
    %v3701 = vpop.f32.mrf.mxu0
    %v3702 = vadd.f32 0.0, %v3701
    %3703 = vmatprep.mubr.bf16.mxu0 0
    %3704 = vmatmul.mubr.bf16.gmra.mxu0 %v1610
    %v3705 = vpop.f32.mrf.mxu0
    %v3706 = vadd.f32 0.0, %v3705
    %v3707 = vpop.f32.mrf.mxu0
    %v3708 = vadd.f32 0.0, %v3707
    %v3709 = vpop.f32.mrf.mxu0
    %v3710 = vadd.f32 0.0, %v3709
    %v3711 = vpop.f32.mrf.mxu0
    %v3712 = vadd.f32 0.0, %v3711
    %3713 = vmatprep.mubr.bf16.mxu0 0
    %3714 = vmatmul.mubr.bf16.gmra.mxu0 %v1613
    %v3715 = vpop.f32.mrf.mxu0
    %v3716 = vadd.f32 0.0, %v3715
    %v3717 = vpop.f32.mrf.mxu0
    %v3718 = vadd.f32 0.0, %v3717
    %v3719 = vpop.f32.mrf.mxu0
    %v3720 = vadd.f32 0.0, %v3719
    %v3721 = vpop.f32.mrf.mxu0
    %v3722 = vadd.f32 0.0, %v3721
    %3723 = vdwg.mxu0
    %3724 = vmatprep.subr.bf16.mxu0 0
    %3725 = vmatpush1.bf16.msra.mxu0 0
    %3726 = vmatprep.subr.bf16.mxu0 0
    %3727 = vmatpush1.bf16.msra.mxu0 0
    %3728 = vmatprep.subr.bf16.mxu0 0
    %3729 = vmatpush1.bf16.msra.mxu0 0
    %3730 = vmatprep.subr.bf16.mxu0 0
    %3731 = vmatpush1.bf16.msra.mxu0 0
    %3732 = vmatprep.subr.bf16.mxu0 0
    %3733 = vmatpush1.bf16.msra.mxu0 0
    %3734 = vmatprep.subr.bf16.mxu0 0
    %3735 = vmatpush1.bf16.msra.mxu0 0
    %3736 = vmatprep.subr.bf16.mxu0 %v949
    %3737 = vmatpush1.bf16.msra.mxu0 %v946
    %3738 = vmatprep.subr.bf16.mxu0 %v911
    %3739 = vmatpush1.bf16.msra.mxu0 %v910
    %3740 = vmatprep.subr.bf16.mxu0 0
    %3741 = vmatpush2.bf16.msra.mxu0 0
    %3742 = vmatprep.subr.bf16.mxu0 0
    %3743 = vmatpush2.bf16.msra.mxu0 0
    %3744 = vmatprep.subr.bf16.mxu0 0
    %3745 = vmatpush2.bf16.msra.mxu0 0
    %3746 = vmatprep.subr.bf16.mxu0 0
    %3747 = vmatpush2.bf16.msra.mxu0 0
    %3748 = vmatprep.subr.bf16.mxu0 0
    %3749 = vmatpush2.bf16.msra.mxu0 0
    %3750 = vmatprep.subr.bf16.mxu0 0
    %3751 = vmatpush2.bf16.msra.mxu0 0
    %3752 = vmatprep.subr.bf16.mxu0 0
    %3753 = vmatpush2.bf16.msra.mxu0 0
    %3754 = vmatprep.subr.bf16.mxu0 0
    %3755 = vmatpush2.bf16.msra.mxu0 0
    %3756 = vmatprep.mubr.bf16.mxu0 0
    %3757 = vmatmul.mubr.bf16.gmra.mxu0 %v1607
    %v3758 = vpop.f32.mrf.mxu0
    %v3759 = vadd.f32 0.0, %v3758
    %v3760 = vpop.f32.mrf.mxu0
    %v3761 = vadd.f32 0.0, %v3760
    %v3762 = vpop.f32.mrf.mxu0
    %v3763 = vadd.f32 0.0, %v3762
    %v3764 = vpop.f32.mrf.mxu0
    %v3765 = vadd.f32 0.0, %v3764
    %3766 = vmatprep.mubr.bf16.mxu0 0
    %3767 = vmatmul.mubr.bf16.gmra.mxu0 %v1610
    %v3768 = vpop.f32.mrf.mxu0
    %v3769 = vadd.f32 0.0, %v3768
    %v3770 = vpop.f32.mrf.mxu0
    %v3771 = vadd.f32 0.0, %v3770
    %v3772 = vpop.f32.mrf.mxu0
    %v3773 = vadd.f32 0.0, %v3772
    %v3774 = vpop.f32.mrf.mxu0
    %v3775 = vadd.f32 0.0, %v3774
    %3776 = vmatprep.mubr.bf16.mxu0 0
    %3777 = vmatmul.mubr.bf16.gmra.mxu0 %v1613
    %v3778 = vpop.f32.mrf.mxu0
    %v3779 = vadd.f32 0.0, %v3778
    %v3780 = vpop.f32.mrf.mxu0
    %v3781 = vadd.f32 0.0, %v3780
    %v3782 = vpop.f32.mrf.mxu0
    %v3783 = vadd.f32 0.0, %v3782
    %v3784 = vpop.f32.mrf.mxu0
    %v3785 = vadd.f32 0.0, %v3784
    %3786 = vdwg.mxu0
    %v3787 = vadd.f32 %v3444, %v3633
    %v3788 = vadd.f32 %v3446, %v3635
    %v3789 = vadd.f32 %v3507, %v3696
    %v3790 = vadd.f32 %v3509, %v3698
    %v3791 = vadd.f32 %v3570, %v3759
    %v3792 = vadd.f32 %v3572, %v3761
    %v3793 = vadd.f32 %v3448, %v3637
    %v3794 = vadd.f32 %v3450, %v3639
    %v3795 = vadd.f32 %v3511, %v3700
    %v3796 = vadd.f32 %v3513, %v3702
    %v3797 = vadd.f32 %v3574, %v3763
    %v3798 = vadd.f32 %v3576, %v3765
    %v3799 = vadd.f32 %v3454, %v3643
    %v3800 = vadd.f32 %v3456, %v3645
    %v3801 = vadd.f32 %v3517, %v3706
    %v3802 = vadd.f32 %v3519, %v3708
    %v3803 = vadd.f32 %v3580, %v3769
    %v3804 = vadd.f32 %v3582, %v3771
    %v3805 = vadd.f32 %v3458, %v3647
    %v3806 = vadd.f32 %v3460, %v3649
    %v3807 = vadd.f32 %v3521, %v3710
    %v3808 = vadd.f32 %v3523, %v3712
    %v3809 = vadd.f32 %v3584, %v3773
    %v3810 = vadd.f32 %v3586, %v3775
    %v3811 = vadd.f32 %v3464, %v3653
    %v3812 = vadd.f32 %v3466, %v3655
    %v3813 = vadd.f32 %v3527, %v3716
    %v3814 = vadd.f32 %v3529, %v3718
    %v3815 = vadd.f32 %v3590, %v3779
    %v3816 = vadd.f32 %v3592, %v3781
    %v3817 = vadd.f32 %v3468, %v3657
    %v3818 = vadd.f32 %v3470, %v3659
    %v3819 = vadd.f32 %v3531, %v3720
    %v3820 = vadd.f32 %v3533, %v3722
    %v3821 = vadd.f32 %v3594, %v3783
    %v3822 = vadd.f32 %v3596, %v3785
    %3823 = vmatprep.subr.bf16.mxu0 0
    %3824 = vmatpush1.bf16.msra.mxu0 0
    %3825 = vmatprep.subr.bf16.mxu0 0
    %3826 = vmatpush1.bf16.msra.mxu0 0
    %3827 = vmatprep.subr.bf16.mxu0 0
    %3828 = vmatpush1.bf16.msra.mxu0 0
    %3829 = vmatprep.subr.bf16.mxu0 0
    %3830 = vmatpush1.bf16.msra.mxu0 0
    %3831 = vmatprep.subr.bf16.mxu0 0
    %3832 = vmatpush1.bf16.msra.mxu0 0
    %3833 = vmatprep.subr.bf16.mxu0 0
    %3834 = vmatpush1.bf16.msra.mxu0 0
    %3835 = vmatprep.subr.bf16.mxu0 %v1278
    %3836 = vmatpush1.bf16.msra.mxu0 %v1275
    %3837 = vmatprep.subr.bf16.mxu0 %v1248
    %3838 = vmatpush1.bf16.msra.mxu0 %v1247
    %3839 = vmatprep.subr.bf16.mxu0 0
    %3840 = vmatpush2.bf16.msra.mxu0 0
    %3841 = vmatprep.subr.bf16.mxu0 0
    %3842 = vmatpush2.bf16.msra.mxu0 0
    %3843 = vmatprep.subr.bf16.mxu0 0
    %3844 = vmatpush2.bf16.msra.mxu0 0
    %3845 = vmatprep.subr.bf16.mxu0 0
    %3846 = vmatpush2.bf16.msra.mxu0 0
    %3847 = vmatprep.subr.bf16.mxu0 0
    %3848 = vmatpush2.bf16.msra.mxu0 0
    %3849 = vmatprep.subr.bf16.mxu0 0
    %3850 = vmatpush2.bf16.msra.mxu0 0
    %3851 = vmatprep.subr.bf16.mxu0 0
    %3852 = vmatpush2.bf16.msra.mxu0 0
    %3853 = vmatprep.subr.bf16.mxu0 0
    %3854 = vmatpush2.bf16.msra.mxu0 0
    %3855 = vmatprep.mubr.bf16.mxu0 0
    %3856 = vmatmul.mubr.bf16.gmra.mxu0 %v2843
    %v3857 = vpop.f32.mrf.mxu0
    %v3858 = vadd.f32 0.0, %v3857
    %v3859 = vpop.f32.mrf.mxu0
    %v3860 = vadd.f32 0.0, %v3859
    %v3861 = vpop.f32.mrf.mxu0
    %v3862 = vadd.f32 0.0, %v3861
    %v3863 = vpop.f32.mrf.mxu0
    %v3864 = vadd.f32 0.0, %v3863
    %3865 = vmatprep.mubr.bf16.mxu0 0
    %3866 = vmatmul.mubr.bf16.gmra.mxu0 %v2846
    %v3867 = vpop.f32.mrf.mxu0
    %v3868 = vadd.f32 0.0, %v3867
    %v3869 = vpop.f32.mrf.mxu0
    %v3870 = vadd.f32 0.0, %v3869
    %v3871 = vpop.f32.mrf.mxu0
    %v3872 = vadd.f32 0.0, %v3871
    %v3873 = vpop.f32.mrf.mxu0
    %v3874 = vadd.f32 0.0, %v3873
    %3875 = vmatprep.mubr.bf16.mxu0 0
    %3876 = vmatmul.mubr.bf16.gmra.mxu0 %v2849
    %v3877 = vpop.f32.mrf.mxu0
    %v3878 = vadd.f32 0.0, %v3877
    %v3879 = vpop.f32.mrf.mxu0
    %v3880 = vadd.f32 0.0, %v3879
    %v3881 = vpop.f32.mrf.mxu0
    %v3882 = vadd.f32 0.0, %v3881
    %v3883 = vpop.f32.mrf.mxu0
    %v3884 = vadd.f32 0.0, %v3883
    %3885 = vdwg.mxu0
    %3886 = vmatprep.subr.bf16.mxu0 0
    %3887 = vmatpush1.bf16.msra.mxu0 0
    %3888 = vmatprep.subr.bf16.mxu0 0
    %3889 = vmatpush1.bf16.msra.mxu0 0
    %3890 = vmatprep.subr.bf16.mxu0 0
    %3891 = vmatpush1.bf16.msra.mxu0 0
    %3892 = vmatprep.subr.bf16.mxu0 0
    %3893 = vmatpush1.bf16.msra.mxu0 0
    %3894 = vmatprep.subr.bf16.mxu0 0
    %3895 = vmatpush1.bf16.msra.mxu0 0
    %3896 = vmatprep.subr.bf16.mxu0 0
    %3897 = vmatpush1.bf16.msra.mxu0 0
    %3898 = vmatprep.subr.bf16.mxu0 %v1284
    %3899 = vmatpush1.bf16.msra.mxu0 %v1281
    %3900 = vmatprep.subr.bf16.mxu0 %v1250
    %3901 = vmatpush1.bf16.msra.mxu0 %v1249
    %3902 = vmatprep.subr.bf16.mxu0 0
    %3903 = vmatpush2.bf16.msra.mxu0 0
    %3904 = vmatprep.subr.bf16.mxu0 0
    %3905 = vmatpush2.bf16.msra.mxu0 0
    %3906 = vmatprep.subr.bf16.mxu0 0
    %3907 = vmatpush2.bf16.msra.mxu0 0
    %3908 = vmatprep.subr.bf16.mxu0 0
    %3909 = vmatpush2.bf16.msra.mxu0 0
    %3910 = vmatprep.subr.bf16.mxu0 0
    %3911 = vmatpush2.bf16.msra.mxu0 0
    %3912 = vmatprep.subr.bf16.mxu0 0
    %3913 = vmatpush2.bf16.msra.mxu0 0
    %3914 = vmatprep.subr.bf16.mxu0 0
    %3915 = vmatpush2.bf16.msra.mxu0 0
    %3916 = vmatprep.subr.bf16.mxu0 0
    %3917 = vmatpush2.bf16.msra.mxu0 0
    %3918 = vmatprep.mubr.bf16.mxu0 0
    %3919 = vmatmul.mubr.bf16.gmra.mxu0 %v2843
    %v3920 = vpop.f32.mrf.mxu0
    %v3921 = vadd.f32 0.0, %v3920
    %v3922 = vpop.f32.mrf.mxu0
    %v3923 = vadd.f32 0.0, %v3922
    %v3924 = vpop.f32.mrf.mxu0
    %v3925 = vadd.f32 0.0, %v3924
    %v3926 = vpop.f32.mrf.mxu0
    %v3927 = vadd.f32 0.0, %v3926
    %3928 = vmatprep.mubr.bf16.mxu0 0
    %3929 = vmatmul.mubr.bf16.gmra.mxu0 %v2846
    %v3930 = vpop.f32.mrf.mxu0
    %v3931 = vadd.f32 0.0, %v3930
    %v3932 = vpop.f32.mrf.mxu0
    %v3933 = vadd.f32 0.0, %v3932
    %v3934 = vpop.f32.mrf.mxu0
    %v3935 = vadd.f32 0.0, %v3934
    %v3936 = vpop.f32.mrf.mxu0
    %v3937 = vadd.f32 0.0, %v3936
    %3938 = vmatprep.mubr.bf16.mxu0 0
    %3939 = vmatmul.mubr.bf16.gmra.mxu0 %v2849
    %v3940 = vpop.f32.mrf.mxu0
    %v3941 = vadd.f32 0.0, %v3940
    %v3942 = vpop.f32.mrf.mxu0
    %v3943 = vadd.f32 0.0, %v3942
    %v3944 = vpop.f32.mrf.mxu0
    %v3945 = vadd.f32 0.0, %v3944
    %v3946 = vpop.f32.mrf.mxu0
    %v3947 = vadd.f32 0.0, %v3946
    %3948 = vdwg.mxu0
    %3949 = vmatprep.subr.bf16.mxu0 0
    %3950 = vmatpush1.bf16.msra.mxu0 0
    %3951 = vmatprep.subr.bf16.mxu0 0
    %3952 = vmatpush1.bf16.msra.mxu0 0
    %3953 = vmatprep.subr.bf16.mxu0 0
    %3954 = vmatpush1.bf16.msra.mxu0 0
    %3955 = vmatprep.subr.bf16.mxu0 0
    %3956 = vmatpush1.bf16.msra.mxu0 0
    %3957 = vmatprep.subr.bf16.mxu0 0
    %3958 = vmatpush1.bf16.msra.mxu0 0
    %3959 = vmatprep.subr.bf16.mxu0 0
    %3960 = vmatpush1.bf16.msra.mxu0 0
    %3961 = vmatprep.subr.bf16.mxu0 %v1290
    %3962 = vmatpush1.bf16.msra.mxu0 %v1287
    %3963 = vmatprep.subr.bf16.mxu0 %v1252
    %3964 = vmatpush1.bf16.msra.mxu0 %v1251
    %3965 = vmatprep.subr.bf16.mxu0 0
    %3966 = vmatpush2.bf16.msra.mxu0 0
    %3967 = vmatprep.subr.bf16.mxu0 0
    %3968 = vmatpush2.bf16.msra.mxu0 0
    %3969 = vmatprep.subr.bf16.mxu0 0
    %3970 = vmatpush2.bf16.msra.mxu0 0
    %3971 = vmatprep.subr.bf16.mxu0 0
    %3972 = vmatpush2.bf16.msra.mxu0 0
    %3973 = vmatprep.subr.bf16.mxu0 0
    %3974 = vmatpush2.bf16.msra.mxu0 0
    %3975 = vmatprep.subr.bf16.mxu0 0
    %3976 = vmatpush2.bf16.msra.mxu0 0
    %3977 = vmatprep.subr.bf16.mxu0 0
    %3978 = vmatpush2.bf16.msra.mxu0 0
    %3979 = vmatprep.subr.bf16.mxu0 0
    %3980 = vmatpush2.bf16.msra.mxu0 0
    %3981 = vmatprep.mubr.bf16.mxu0 0
    %3982 = vmatmul.mubr.bf16.gmra.mxu0 %v2843
    %v3983 = vpop.f32.mrf.mxu0
    %v3984 = vadd.f32 0.0, %v3983
    %v3985 = vpop.f32.mrf.mxu0
    %v3986 = vadd.f32 0.0, %v3985
    %v3987 = vpop.f32.mrf.mxu0
    %v3988 = vadd.f32 0.0, %v3987
    %v3989 = vpop.f32.mrf.mxu0
    %v3990 = vadd.f32 0.0, %v3989
    %3991 = vmatprep.mubr.bf16.mxu0 0
    %3992 = vmatmul.mubr.bf16.gmra.mxu0 %v2846
    %v3993 = vpop.f32.mrf.mxu0
    %v3994 = vadd.f32 0.0, %v3993
    %v3995 = vpop.f32.mrf.mxu0
    %v3996 = vadd.f32 0.0, %v3995
    %v3997 = vpop.f32.mrf.mxu0
    %v3998 = vadd.f32 0.0, %v3997
    %v3999 = vpop.f32.mrf.mxu0
    %v4000 = vadd.f32 0.0, %v3999
    %4001 = vmatprep.mubr.bf16.mxu0 0
    %4002 = vmatmul.mubr.bf16.gmra.mxu0 %v2849
    %v4003 = vpop.f32.mrf.mxu0
    %v4004 = vadd.f32 0.0, %v4003
    %v4005 = vpop.f32.mrf.mxu0
    %v4006 = vadd.f32 0.0, %v4005
    %v4007 = vpop.f32.mrf.mxu0
    %v4008 = vadd.f32 0.0, %v4007
    %v4009 = vpop.f32.mrf.mxu0
    %v4010 = vadd.f32 0.0, %v4009
    %4011 = vdwg.mxu0
    %v4012 = vadd.f32 %v3787, %v3858
    %v4013 = vadd.f32 %v3788, %v3860
    %v4014 = vadd.f32 %v3789, %v3921
    %v4015 = vadd.f32 %v3790, %v3923
    %v4016 = vadd.f32 %v3791, %v3984
    %v4017 = vadd.f32 %v3792, %v3986
    %v4018 = vadd.f32 %v3793, %v3862
    %v4019 = vadd.f32 %v3794, %v3864
    %v4020 = vadd.f32 %v3795, %v3925
    %v4021 = vadd.f32 %v3796, %v3927
    %v4022 = vadd.f32 %v3797, %v3988
    %v4023 = vadd.f32 %v3798, %v3990
    %v4024 = vadd.f32 %v3799, %v3868
    %v4025 = vadd.f32 %v3800, %v3870
    %v4026 = vadd.f32 %v3801, %v3931
    %v4027 = vadd.f32 %v3802, %v3933
    %v4028 = vadd.f32 %v3803, %v3994
    %v4029 = vadd.f32 %v3804, %v3996
    %v4030 = vadd.f32 %v3805, %v3872
    %v4031 = vadd.f32 %v3806, %v3874
    %v4032 = vadd.f32 %v3807, %v3935
    %v4033 = vadd.f32 %v3808, %v3937
    %v4034 = vadd.f32 %v3809, %v3998
    %v4035 = vadd.f32 %v3810, %v4000
    %v4036 = vadd.f32 %v3811, %v3878
    %v4037 = vadd.f32 %v3812, %v3880
    %v4038 = vadd.f32 %v3813, %v3941
    %v4039 = vadd.f32 %v3814, %v3943
    %v4040 = vadd.f32 %v3815, %v4004
    %v4041 = vadd.f32 %v3816, %v4006
    %v4042 = vadd.f32 %v3817, %v3882
    %v4043 = vadd.f32 %v3818, %v3884
    %v4044 = vadd.f32 %v3819, %v3945
    %v4045 = vadd.f32 %v3820, %v3947
    %v4046 = vadd.f32 %v3821, %v4008
    %v4047 = vadd.f32 %v3822, %v4010
    %s4048 = scalar_lea.vmem %s0, 144
    %v4049 = vld [vmem:[%s4048] sm:$0xf]
    %v4050 = vld [vmem:[%s4048 + $0x4] sm:$0xf]
    %v4051 = vld [vmem:[%s4048 + $0x8] sm:$0xf]
    %v4052 = vld [vmem:[%s4048 + $0xc] sm:$0xf]
    %v4053 = vld [vmem:[%s4048 + $0x10] sm:$0xf]
    %v4054 = vld [vmem:[%s4048 + $0x14] sm:$0xf]
    %v4061 = vunpack.c.l.b16 %v4049
    %v4062 = vunpack.c.l.b16 %v4050
    %v4063 = vunpack.c.l.b16 %v4051
    %v4064 = vunpack.c.l.b16 %v4052
    %v4065 = vunpack.c.l.b16 %v4053
    %v4066 = vunpack.c.l.b16 %v4054
    %v4067 = vpack.c.b16 %v4062, %v4061
    %v4068 = vpack.c.b16 %v4064, %v4063
    %v4069 = vpack.c.b16 %v4066, %v4065
    %v4071 = vsel %vm332, %v4067, 0
    %v4074 = vsel %vm332, %v4068, 0
    %v4077 = vsel %vm332, %v4069, 0
    %4079 = vmatprep.subr.bf16.mxu0 0
    %4080 = vmatpush1.bf16.msra.mxu0 0
    %4081 = vmatprep.subr.bf16.mxu0 0
    %4082 = vmatpush1.bf16.msra.mxu0 0
    %4083 = vmatprep.subr.bf16.mxu0 0
    %4084 = vmatpush1.bf16.msra.mxu0 0
    %4085 = vmatprep.subr.bf16.mxu0 0
    %4086 = vmatpush1.bf16.msra.mxu0 0
    %4087 = vmatprep.subr.bf16.mxu0 0
    %4088 = vmatpush1.bf16.msra.mxu0 0
    %4089 = vmatprep.subr.bf16.mxu0 0
    %4090 = vmatpush1.bf16.msra.mxu0 0
    %4091 = vmatprep.subr.bf16.mxu0 %v1619
    %4092 = vmatpush1.bf16.msra.mxu0 %v1616
    %4093 = vmatprep.subr.bf16.mxu0 %v1589
    %4094 = vmatpush1.bf16.msra.mxu0 %v1588
    %4095 = vmatprep.subr.bf16.mxu0 0
    %4096 = vmatpush2.bf16.msra.mxu0 0
    %4097 = vmatprep.subr.bf16.mxu0 0
    %4098 = vmatpush2.bf16.msra.mxu0 0
    %4099 = vmatprep.subr.bf16.mxu0 0
    %4100 = vmatpush2.bf16.msra.mxu0 0
    %4101 = vmatprep.subr.bf16.mxu0 0
    %4102 = vmatpush2.bf16.msra.mxu0 0
    %4103 = vmatprep.subr.bf16.mxu0 0
    %4104 = vmatpush2.bf16.msra.mxu0 0
    %4105 = vmatprep.subr.bf16.mxu0 0
    %4106 = vmatpush2.bf16.msra.mxu0 0
    %4107 = vmatprep.subr.bf16.mxu0 0
    %4108 = vmatpush2.bf16.msra.mxu0 0
    %4109 = vmatprep.subr.bf16.mxu0 0
    %4110 = vmatpush2.bf16.msra.mxu0 0
    %4111 = vmatprep.mubr.bf16.mxu0 0
    %4112 = vmatmul.mubr.bf16.gmra.mxu0 %v4071
    %v4113 = vpop.f32.mrf.mxu0
    %v4114 = vadd.f32 0.0, %v4113
    %v4115 = vpop.f32.mrf.mxu0
    %v4116 = vadd.f32 0.0, %v4115
    %v4117 = vpop.f32.mrf.mxu0
    %v4118 = vadd.f32 0.0, %v4117
    %v4119 = vpop.f32.mrf.mxu0
    %v4120 = vadd.f32 0.0, %v4119
    %4121 = vmatprep.mubr.bf16.mxu0 0
    %4122 = vmatmul.mubr.bf16.gmra.mxu0 %v4074
    %v4123 = vpop.f32.mrf.mxu0
    %v4124 = vadd.f32 0.0, %v4123
    %v4125 = vpop.f32.mrf.mxu0
    %v4126 = vadd.f32 0.0, %v4125
    %v4127 = vpop.f32.mrf.mxu0
    %v4128 = vadd.f32 0.0, %v4127
    %v4129 = vpop.f32.mrf.mxu0
    %v4130 = vadd.f32 0.0, %v4129
    %4131 = vmatprep.mubr.bf16.mxu0 0
    %4132 = vmatmul.mubr.bf16.gmra.mxu0 %v4077
    %v4133 = vpop.f32.mrf.mxu0
    %v4134 = vadd.f32 0.0, %v4133
    %v4135 = vpop.f32.mrf.mxu0
    %v4136 = vadd.f32 0.0, %v4135
    %v4137 = vpop.f32.mrf.mxu0
    %v4138 = vadd.f32 0.0, %v4137
    %v4139 = vpop.f32.mrf.mxu0
    %v4140 = vadd.f32 0.0, %v4139
    %4141 = vdwg.mxu0
    %4142 = vmatprep.subr.bf16.mxu0 0
    %4143 = vmatpush1.bf16.msra.mxu0 0
    %4144 = vmatprep.subr.bf16.mxu0 0
    %4145 = vmatpush1.bf16.msra.mxu0 0
    %4146 = vmatprep.subr.bf16.mxu0 0
    %4147 = vmatpush1.bf16.msra.mxu0 0
    %4148 = vmatprep.subr.bf16.mxu0 0
    %4149 = vmatpush1.bf16.msra.mxu0 0
    %4150 = vmatprep.subr.bf16.mxu0 0
    %4151 = vmatpush1.bf16.msra.mxu0 0
    %4152 = vmatprep.subr.bf16.mxu0 0
    %4153 = vmatpush1.bf16.msra.mxu0 0
    %4154 = vmatprep.subr.bf16.mxu0 %v1625
    %4155 = vmatpush1.bf16.msra.mxu0 %v1622
    %4156 = vmatprep.subr.bf16.mxu0 %v1591
    %4157 = vmatpush1.bf16.msra.mxu0 %v1590
    %4158 = vmatprep.subr.bf16.mxu0 0
    %4159 = vmatpush2.bf16.msra.mxu0 0
    %4160 = vmatprep.subr.bf16.mxu0 0
    %4161 = vmatpush2.bf16.msra.mxu0 0
    %4162 = vmatprep.subr.bf16.mxu0 0
    %4163 = vmatpush2.bf16.msra.mxu0 0
    %4164 = vmatprep.subr.bf16.mxu0 0
    %4165 = vmatpush2.bf16.msra.mxu0 0
    %4166 = vmatprep.subr.bf16.mxu0 0
    %4167 = vmatpush2.bf16.msra.mxu0 0
    %4168 = vmatprep.subr.bf16.mxu0 0
    %4169 = vmatpush2.bf16.msra.mxu0 0
    %4170 = vmatprep.subr.bf16.mxu0 0
    %4171 = vmatpush2.bf16.msra.mxu0 0
    %4172 = vmatprep.subr.bf16.mxu0 0
    %4173 = vmatpush2.bf16.msra.mxu0 0
    %4174 = vmatprep.mubr.bf16.mxu0 0
    %4175 = vmatmul.mubr.bf16.gmra.mxu0 %v4071
    %v4176 = vpop.f32.mrf.mxu0
    %v4177 = vadd.f32 0.0, %v4176
    %v4178 = vpop.f32.mrf.mxu0
    %v4179 = vadd.f32 0.0, %v4178
    %v4180 = vpop.f32.mrf.mxu0
    %v4181 = vadd.f32 0.0, %v4180
    %v4182 = vpop.f32.mrf.mxu0
    %v4183 = vadd.f32 0.0, %v4182
    %4184 = vmatprep.mubr.bf16.mxu0 0
    %4185 = vmatmul.mubr.bf16.gmra.mxu0 %v4074
    %v4186 = vpop.f32.mrf.mxu0
    %v4187 = vadd.f32 0.0, %v4186
    %v4188 = vpop.f32.mrf.mxu0
    %v4189 = vadd.f32 0.0, %v4188
    %v4190 = vpop.f32.mrf.mxu0
    %v4191 = vadd.f32 0.0, %v4190
    %v4192 = vpop.f32.mrf.mxu0
    %v4193 = vadd.f32 0.0, %v4192
    %4194 = vmatprep.mubr.bf16.mxu0 0
    %4195 = vmatmul.mubr.bf16.gmra.mxu0 %v4077
    %v4196 = vpop.f32.mrf.mxu0
    %v4197 = vadd.f32 0.0, %v4196
    %v4198 = vpop.f32.mrf.mxu0
    %v4199 = vadd.f32 0.0, %v4198
    %v4200 = vpop.f32.mrf.mxu0
    %v4201 = vadd.f32 0.0, %v4200
    %v4202 = vpop.f32.mrf.mxu0
    %v4203 = vadd.f32 0.0, %v4202
    %4204 = vdwg.mxu0
    %4205 = vmatprep.subr.bf16.mxu0 0
    %4206 = vmatpush1.bf16.msra.mxu0 0
    %4207 = vmatprep.subr.bf16.mxu0 0
    %4208 = vmatpush1.bf16.msra.mxu0 0
    %4209 = vmatprep.subr.bf16.mxu0 0
    %4210 = vmatpush1.bf16.msra.mxu0 0
    %4211 = vmatprep.subr.bf16.mxu0 0
    %4212 = vmatpush1.bf16.msra.mxu0 0
    %4213 = vmatprep.subr.bf16.mxu0 0
    %4214 = vmatpush1.bf16.msra.mxu0 0
    %4215 = vmatprep.subr.bf16.mxu0 0
    %4216 = vmatpush1.bf16.msra.mxu0 0
    %4217 = vmatprep.subr.bf16.mxu0 %v1631
    %4218 = vmatpush1.bf16.msra.mxu0 %v1628
    %4219 = vmatprep.subr.bf16.mxu0 %v1593
    %4220 = vmatpush1.bf16.msra.mxu0 %v1592
    %4221 = vmatprep.subr.bf16.mxu0 0
    %4222 = vmatpush2.bf16.msra.mxu0 0
    %4223 = vmatprep.subr.bf16.mxu0 0
    %4224 = vmatpush2.bf16.msra.mxu0 0
    %4225 = vmatprep.subr.bf16.mxu0 0
    %4226 = vmatpush2.bf16.msra.mxu0 0
    %4227 = vmatprep.subr.bf16.mxu0 0
    %4228 = vmatpush2.bf16.msra.mxu0 0
    %4229 = vmatprep.subr.bf16.mxu0 0
    %4230 = vmatpush2.bf16.msra.mxu0 0
    %4231 = vmatprep.subr.bf16.mxu0 0
    %4232 = vmatpush2.bf16.msra.mxu0 0
    %4233 = vmatprep.subr.bf16.mxu0 0
    %4234 = vmatpush2.bf16.msra.mxu0 0
    %4235 = vmatprep.subr.bf16.mxu0 0
    %4236 = vmatpush2.bf16.msra.mxu0 0
    %4237 = vmatprep.mubr.bf16.mxu0 0
    %4238 = vmatmul.mubr.bf16.gmra.mxu0 %v4071
    %v4239 = vpop.f32.mrf.mxu0
    %v4240 = vadd.f32 0.0, %v4239
    %v4241 = vpop.f32.mrf.mxu0
    %v4242 = vadd.f32 0.0, %v4241
    %v4243 = vpop.f32.mrf.mxu0
    %v4244 = vadd.f32 0.0, %v4243
    %v4245 = vpop.f32.mrf.mxu0
    %v4246 = vadd.f32 0.0, %v4245
    %4247 = vmatprep.mubr.bf16.mxu0 0
    %4248 = vmatmul.mubr.bf16.gmra.mxu0 %v4074
    %v4249 = vpop.f32.mrf.mxu0
    %v4250 = vadd.f32 0.0, %v4249
    %v4251 = vpop.f32.mrf.mxu0
    %v4252 = vadd.f32 0.0, %v4251
    %v4253 = vpop.f32.mrf.mxu0
    %v4254 = vadd.f32 0.0, %v4253
    %v4255 = vpop.f32.mrf.mxu0
    %v4256 = vadd.f32 0.0, %v4255
    %4257 = vmatprep.mubr.bf16.mxu0 0
    %4258 = vmatmul.mubr.bf16.gmra.mxu0 %v4077
    %v4259 = vpop.f32.mrf.mxu0
    %v4260 = vadd.f32 0.0, %v4259
    %v4261 = vpop.f32.mrf.mxu0
    %v4262 = vadd.f32 0.0, %v4261
    %v4263 = vpop.f32.mrf.mxu0
    %v4264 = vadd.f32 0.0, %v4263
    %v4265 = vpop.f32.mrf.mxu0
    %v4266 = vadd.f32 0.0, %v4265
    %4267 = vdwg.mxu0
    %v4268 = vadd.f32 %v4012, %v4114
    %v4269 = vadd.f32 %v4013, %v4116
    %v4270 = vadd.f32 %v4014, %v4177
    %v4271 = vadd.f32 %v4015, %v4179
    %v4272 = vadd.f32 %v4016, %v4240
    %v4273 = vadd.f32 %v4017, %v4242
    %v4274 = vadd.f32 %v4018, %v4118
    %v4275 = vadd.f32 %v4019, %v4120
    %v4276 = vadd.f32 %v4020, %v4181
    %v4277 = vadd.f32 %v4021, %v4183
    %v4278 = vadd.f32 %v4022, %v4244
    %v4279 = vadd.f32 %v4023, %v4246
    %v4280 = vadd.f32 %v4024, %v4124
    %v4281 = vadd.f32 %v4025, %v4126
    %v4282 = vadd.f32 %v4026, %v4187
    %v4283 = vadd.f32 %v4027, %v4189
    %v4284 = vadd.f32 %v4028, %v4250
    %v4285 = vadd.f32 %v4029, %v4252
    %v4286 = vadd.f32 %v4030, %v4128
    %v4287 = vadd.f32 %v4031, %v4130
    %v4288 = vadd.f32 %v4032, %v4191
    %v4289 = vadd.f32 %v4033, %v4193
    %v4290 = vadd.f32 %v4034, %v4254
    %v4291 = vadd.f32 %v4035, %v4256
    %v4292 = vadd.f32 %v4036, %v4134
    %v4293 = vadd.f32 %v4037, %v4136
    %v4294 = vadd.f32 %v4038, %v4197
    %v4295 = vadd.f32 %v4039, %v4199
    %v4296 = vadd.f32 %v4040, %v4260
    %v4297 = vadd.f32 %v4041, %v4262
    %v4298 = vadd.f32 %v4042, %v4138
    %v4299 = vadd.f32 %v4043, %v4140
    %v4300 = vadd.f32 %v4044, %v4201
    %v4301 = vadd.f32 %v4045, %v4203
    %v4302 = vadd.f32 %v4046, %v4264
    %v4303 = vadd.f32 %v4047, %v4266
    %v4304 = vmul.f32 %v4268, %v1862
    %v4305 = vmul.f32 %v4269, %v1866
    %v4306 = vmul.f32 %v4270, %v1870
    %v4307 = vmul.f32 %v4271, %v1874
    %v4308 = vmul.f32 %v4272, %v1878
    %v4309 = vmul.f32 %v4273, %v1882
    %v4310 = vmul.f32 %v4274, %v1862
    %v4311 = vmul.f32 %v4275, %v1866
    %v4312 = vmul.f32 %v4276, %v1870
    %v4313 = vmul.f32 %v4277, %v1874
    %v4314 = vmul.f32 %v4278, %v1878
    %v4315 = vmul.f32 %v4279, %v1882
    %v4316 = vmul.f32 %v4280, %v1862
    %v4317 = vmul.f32 %v4281, %v1866
    %v4318 = vmul.f32 %v4282, %v1870
    %v4319 = vmul.f32 %v4283, %v1874
    %v4320 = vmul.f32 %v4284, %v1878
    %v4321 = vmul.f32 %v4285, %v1882
    %v4322 = vmul.f32 %v4286, %v1862
    %v4323 = vmul.f32 %v4287, %v1866
    %v4324 = vmul.f32 %v4288, %v1870
    %v4325 = vmul.f32 %v4289, %v1874
    %v4326 = vmul.f32 %v4290, %v1878
    %v4327 = vmul.f32 %v4291, %v1882
    %v4328 = vmul.f32 %v4292, %v1862
    %v4329 = vmul.f32 %v4293, %v1866
    %v4330 = vmul.f32 %v4294, %v1870
    %v4331 = vmul.f32 %v4295, %v1874
    %v4332 = vmul.f32 %v4296, %v1878
    %v4333 = vmul.f32 %v4297, %v1882
    %v4334 = vmul.f32 %v4298, %v1862
    %v4335 = vmul.f32 %v4299, %v1866
    %v4336 = vmul.f32 %v4300, %v1870
    %v4337 = vmul.f32 %v4301, %v1874
    %v4338 = vmul.f32 %v4302, %v1878
    %v4339 = vmul.f32 %v4303, %v1882
    %v4340 = vadd.f32 %v4304, %v1929
    %v4341 = vadd.f32 %v4305, %v1933
    %v4342 = vadd.f32 %v4306, %v1937
    %v4343 = vadd.f32 %v4307, %v1941
    %v4344 = vadd.f32 %v4308, %v1945
    %v4345 = vadd.f32 %v4309, %v1949
    %v4346 = vadd.f32 %v4310, %v1929
    %v4347 = vadd.f32 %v4311, %v1933
    %v4348 = vadd.f32 %v4312, %v1937
    %v4349 = vadd.f32 %v4313, %v1941
    %v4350 = vadd.f32 %v4314, %v1945
    %v4351 = vadd.f32 %v4315, %v1949
    %v4352 = vadd.f32 %v4316, %v1929
    %v4353 = vadd.f32 %v4317, %v1933
    %v4354 = vadd.f32 %v4318, %v1937
    %v4355 = vadd.f32 %v4319, %v1941
    %v4356 = vadd.f32 %v4320, %v1945
    %v4357 = vadd.f32 %v4321, %v1949
    %v4358 = vadd.f32 %v4322, %v1929
    %v4359 = vadd.f32 %v4323, %v1933
    %v4360 = vadd.f32 %v4324, %v1937
    %v4361 = vadd.f32 %v4325, %v1941
    %v4362 = vadd.f32 %v4326, %v1945
    %v4363 = vadd.f32 %v4327, %v1949
    %v4364 = vadd.f32 %v4328, %v1929
    %v4365 = vadd.f32 %v4329, %v1933
    %v4366 = vadd.f32 %v4330, %v1937
    %v4367 = vadd.f32 %v4331, %v1941
    %v4368 = vadd.f32 %v4332, %v1945
    %v4369 = vadd.f32 %v4333, %v1949
    %v4370 = vadd.f32 %v4334, %v1929
    %v4371 = vadd.f32 %v4335, %v1933
    %v4372 = vadd.f32 %v4336, %v1937
    %v4373 = vadd.f32 %v4337, %v1941
    %v4374 = vadd.f32 %v4338, %v1945
    %v4375 = vadd.f32 %v4339, %v1949
    %4376 = vmatprep.subr.bf16.mxu0 0
    %4377 = vmatpush1.bf16.msra.mxu0 0
    %4378 = vmatprep.subr.bf16.mxu0 0
    %4379 = vmatpush1.bf16.msra.mxu0 0
    %4380 = vmatprep.subr.bf16.mxu0 0
    %4381 = vmatpush1.bf16.msra.mxu0 0
    %4382 = vmatprep.subr.bf16.mxu0 0
    %4383 = vmatpush1.bf16.msra.mxu0 0
    %4384 = vmatprep.subr.bf16.mxu0 0
    %4385 = vmatpush1.bf16.msra.mxu0 0
    %4386 = vmatprep.subr.bf16.mxu0 0
    %4387 = vmatpush1.bf16.msra.mxu0 0
    %4388 = vmatprep.subr.bf16.mxu0 %v347
    %4389 = vmatpush1.bf16.msra.mxu0 %v344
    %4390 = vmatprep.subr.bf16.mxu0 %v315
    %4391 = vmatpush1.bf16.msra.mxu0 %v314
    %4392 = vmatprep.subr.bf16.mxu0 0
    %4393 = vmatpush2.bf16.msra.mxu0 0
    %4394 = vmatprep.subr.bf16.mxu0 0
    %4395 = vmatpush2.bf16.msra.mxu0 0
    %4396 = vmatprep.subr.bf16.mxu0 0
    %4397 = vmatpush2.bf16.msra.mxu0 0
    %4398 = vmatprep.subr.bf16.mxu0 0
    %4399 = vmatpush2.bf16.msra.mxu0 0
    %4400 = vmatprep.subr.bf16.mxu0 0
    %4401 = vmatpush2.bf16.msra.mxu0 0
    %4402 = vmatprep.subr.bf16.mxu0 0
    %4403 = vmatpush2.bf16.msra.mxu0 0
    %4404 = vmatprep.subr.bf16.mxu0 0
    %4405 = vmatpush2.bf16.msra.mxu0 0
    %4406 = vmatprep.subr.bf16.mxu0 0
    %4407 = vmatpush2.bf16.msra.mxu0 0
    %4408 = vmatprep.mubr.bf16.mxu0 0
    %4409 = vmatmul.mubr.bf16.gmra.mxu0 %v1607
    %v4410 = vpop.f32.mrf.mxu0
    %v4411 = vadd.f32 0.0, %v4410
    %v4412 = vpop.f32.mrf.mxu0
    %v4413 = vadd.f32 0.0, %v4412
    %v4414 = vpop.f32.mrf.mxu0
    %v4415 = vadd.f32 0.0, %v4414
    %v4416 = vpop.f32.mrf.mxu0
    %v4417 = vadd.f32 0.0, %v4416
    %4418 = vmatprep.mubr.bf16.mxu0 0
    %4419 = vmatmul.mubr.bf16.gmra.mxu0 %v1610
    %v4420 = vpop.f32.mrf.mxu0
    %v4421 = vadd.f32 0.0, %v4420
    %v4422 = vpop.f32.mrf.mxu0
    %v4423 = vadd.f32 0.0, %v4422
    %v4424 = vpop.f32.mrf.mxu0
    %v4425 = vadd.f32 0.0, %v4424
    %v4426 = vpop.f32.mrf.mxu0
    %v4427 = vadd.f32 0.0, %v4426
    %4428 = vmatprep.mubr.bf16.mxu0 0
    %4429 = vmatmul.mubr.bf16.gmra.mxu0 %v1613
    %v4430 = vpop.f32.mrf.mxu0
    %v4431 = vadd.f32 0.0, %v4430
    %v4432 = vpop.f32.mrf.mxu0
    %v4433 = vadd.f32 0.0, %v4432
    %v4434 = vpop.f32.mrf.mxu0
    %v4435 = vadd.f32 0.0, %v4434
    %v4436 = vpop.f32.mrf.mxu0
    %v4437 = vadd.f32 0.0, %v4436
    %4438 = vdwg.mxu0
    %4439 = vmatprep.subr.bf16.mxu0 0
    %4440 = vmatpush1.bf16.msra.mxu0 0
    %4441 = vmatprep.subr.bf16.mxu0 0
    %4442 = vmatpush1.bf16.msra.mxu0 0
    %4443 = vmatprep.subr.bf16.mxu0 0
    %4444 = vmatpush1.bf16.msra.mxu0 0
    %4445 = vmatprep.subr.bf16.mxu0 0
    %4446 = vmatpush1.bf16.msra.mxu0 0
    %4447 = vmatprep.subr.bf16.mxu0 0
    %4448 = vmatpush1.bf16.msra.mxu0 0
    %4449 = vmatprep.subr.bf16.mxu0 0
    %4450 = vmatpush1.bf16.msra.mxu0 0
    %4451 = vmatprep.subr.bf16.mxu0 %v353
    %4452 = vmatpush1.bf16.msra.mxu0 %v350
    %4453 = vmatprep.subr.bf16.mxu0 %v317
    %4454 = vmatpush1.bf16.msra.mxu0 %v316
    %4455 = vmatprep.subr.bf16.mxu0 0
    %4456 = vmatpush2.bf16.msra.mxu0 0
    %4457 = vmatprep.subr.bf16.mxu0 0
    %4458 = vmatpush2.bf16.msra.mxu0 0
    %4459 = vmatprep.subr.bf16.mxu0 0
    %4460 = vmatpush2.bf16.msra.mxu0 0
    %4461 = vmatprep.subr.bf16.mxu0 0
    %4462 = vmatpush2.bf16.msra.mxu0 0
    %4463 = vmatprep.subr.bf16.mxu0 0
    %4464 = vmatpush2.bf16.msra.mxu0 0
    %4465 = vmatprep.subr.bf16.mxu0 0
    %4466 = vmatpush2.bf16.msra.mxu0 0
    %4467 = vmatprep.subr.bf16.mxu0 0
    %4468 = vmatpush2.bf16.msra.mxu0 0
    %4469 = vmatprep.subr.bf16.mxu0 0
    %4470 = vmatpush2.bf16.msra.mxu0 0
    %4471 = vmatprep.mubr.bf16.mxu0 0
    %4472 = vmatmul.mubr.bf16.gmra.mxu0 %v1607
    %v4473 = vpop.f32.mrf.mxu0
    %v4474 = vadd.f32 0.0, %v4473
    %v4475 = vpop.f32.mrf.mxu0
    %v4476 = vadd.f32 0.0, %v4475
    %v4477 = vpop.f32.mrf.mxu0
    %v4478 = vadd.f32 0.0, %v4477
    %v4479 = vpop.f32.mrf.mxu0
    %v4480 = vadd.f32 0.0, %v4479
    %4481 = vmatprep.mubr.bf16.mxu0 0
    %4482 = vmatmul.mubr.bf16.gmra.mxu0 %v1610
    %v4483 = vpop.f32.mrf.mxu0
    %v4484 = vadd.f32 0.0, %v4483
    %v4485 = vpop.f32.mrf.mxu0
    %v4486 = vadd.f32 0.0, %v4485
    %v4487 = vpop.f32.mrf.mxu0
    %v4488 = vadd.f32 0.0, %v4487
    %v4489 = vpop.f32.mrf.mxu0
    %v4490 = vadd.f32 0.0, %v4489
    %4491 = vmatprep.mubr.bf16.mxu0 0
    %4492 = vmatmul.mubr.bf16.gmra.mxu0 %v1613
    %v4493 = vpop.f32.mrf.mxu0
    %v4494 = vadd.f32 0.0, %v4493
    %v4495 = vpop.f32.mrf.mxu0
    %v4496 = vadd.f32 0.0, %v4495
    %v4497 = vpop.f32.mrf.mxu0
    %v4498 = vadd.f32 0.0, %v4497
    %v4499 = vpop.f32.mrf.mxu0
    %v4500 = vadd.f32 0.0, %v4499
    %4501 = vdwg.mxu0
    %4502 = vmatprep.subr.bf16.mxu0 0
    %4503 = vmatpush1.bf16.msra.mxu0 0
    %4504 = vmatprep.subr.bf16.mxu0 0
    %4505 = vmatpush1.bf16.msra.mxu0 0
    %4506 = vmatprep.subr.bf16.mxu0 0
    %4507 = vmatpush1.bf16.msra.mxu0 0
    %4508 = vmatprep.subr.bf16.mxu0 0
    %4509 = vmatpush1.bf16.msra.mxu0 0
    %4510 = vmatprep.subr.bf16.mxu0 0
    %4511 = vmatpush1.bf16.msra.mxu0 0
    %4512 = vmatprep.subr.bf16.mxu0 0
    %4513 = vmatpush1.bf16.msra.mxu0 0
    %4514 = vmatprep.subr.bf16.mxu0 %v359
    %4515 = vmatpush1.bf16.msra.mxu0 %v356
    %4516 = vmatprep.subr.bf16.mxu0 %v319
    %4517 = vmatpush1.bf16.msra.mxu0 %v318
    %4518 = vmatprep.subr.bf16.mxu0 0
    %4519 = vmatpush2.bf16.msra.mxu0 0
    %4520 = vmatprep.subr.bf16.mxu0 0
    %4521 = vmatpush2.bf16.msra.mxu0 0
    %4522 = vmatprep.subr.bf16.mxu0 0
    %4523 = vmatpush2.bf16.msra.mxu0 0
    %4524 = vmatprep.subr.bf16.mxu0 0
    %4525 = vmatpush2.bf16.msra.mxu0 0
    %4526 = vmatprep.subr.bf16.mxu0 0
    %4527 = vmatpush2.bf16.msra.mxu0 0
    %4528 = vmatprep.subr.bf16.mxu0 0
    %4529 = vmatpush2.bf16.msra.mxu0 0
    %4530 = vmatprep.subr.bf16.mxu0 0
    %4531 = vmatpush2.bf16.msra.mxu0 0
    %4532 = vmatprep.subr.bf16.mxu0 0
    %4533 = vmatpush2.bf16.msra.mxu0 0
    %4534 = vmatprep.mubr.bf16.mxu0 0
    %4535 = vmatmul.mubr.bf16.gmra.mxu0 %v1607
    %v4536 = vpop.f32.mrf.mxu0
    %v4537 = vadd.f32 0.0, %v4536
    %v4538 = vpop.f32.mrf.mxu0
    %v4539 = vadd.f32 0.0, %v4538
    %v4540 = vpop.f32.mrf.mxu0
    %v4541 = vadd.f32 0.0, %v4540
    %v4542 = vpop.f32.mrf.mxu0
    %v4543 = vadd.f32 0.0, %v4542
    %4544 = vmatprep.mubr.bf16.mxu0 0
    %4545 = vmatmul.mubr.bf16.gmra.mxu0 %v1610
    %v4546 = vpop.f32.mrf.mxu0
    %v4547 = vadd.f32 0.0, %v4546
    %v4548 = vpop.f32.mrf.mxu0
    %v4549 = vadd.f32 0.0, %v4548
    %v4550 = vpop.f32.mrf.mxu0
    %v4551 = vadd.f32 0.0, %v4550
    %v4552 = vpop.f32.mrf.mxu0
    %v4553 = vadd.f32 0.0, %v4552
    %4554 = vmatprep.mubr.bf16.mxu0 0
    %4555 = vmatmul.mubr.bf16.gmra.mxu0 %v1613
    %v4556 = vpop.f32.mrf.mxu0
    %v4557 = vadd.f32 0.0, %v4556
    %v4558 = vpop.f32.mrf.mxu0
    %v4559 = vadd.f32 0.0, %v4558
    %v4560 = vpop.f32.mrf.mxu0
    %v4561 = vadd.f32 0.0, %v4560
    %v4562 = vpop.f32.mrf.mxu0
    %v4563 = vadd.f32 0.0, %v4562
    %4564 = vdwg.mxu0
    %4565 = vmatprep.subr.bf16.mxu0 0
    %4566 = vmatpush1.bf16.msra.mxu0 0
    %4567 = vmatprep.subr.bf16.mxu0 0
    %4568 = vmatpush1.bf16.msra.mxu0 0
    %4569 = vmatprep.subr.bf16.mxu0 0
    %4570 = vmatpush1.bf16.msra.mxu0 0
    %4571 = vmatprep.subr.bf16.mxu0 0
    %4572 = vmatpush1.bf16.msra.mxu0 0
    %4573 = vmatprep.subr.bf16.mxu0 0
    %4574 = vmatpush1.bf16.msra.mxu0 0
    %4575 = vmatprep.subr.bf16.mxu0 0
    %4576 = vmatpush1.bf16.msra.mxu0 0
    %4577 = vmatprep.subr.bf16.mxu0 %v632
    %4578 = vmatpush1.bf16.msra.mxu0 %v629
    %4579 = vmatprep.subr.bf16.mxu0 %v602
    %4580 = vmatpush1.bf16.msra.mxu0 %v601
    %4581 = vmatprep.subr.bf16.mxu0 0
    %4582 = vmatpush2.bf16.msra.mxu0 0
    %4583 = vmatprep.subr.bf16.mxu0 0
    %4584 = vmatpush2.bf16.msra.mxu0 0
    %4585 = vmatprep.subr.bf16.mxu0 0
    %4586 = vmatpush2.bf16.msra.mxu0 0
    %4587 = vmatprep.subr.bf16.mxu0 0
    %4588 = vmatpush2.bf16.msra.mxu0 0
    %4589 = vmatprep.subr.bf16.mxu0 0
    %4590 = vmatpush2.bf16.msra.mxu0 0
    %4591 = vmatprep.subr.bf16.mxu0 0
    %4592 = vmatpush2.bf16.msra.mxu0 0
    %4593 = vmatprep.subr.bf16.mxu0 0
    %4594 = vmatpush2.bf16.msra.mxu0 0
    %4595 = vmatprep.subr.bf16.mxu0 0
    %4596 = vmatpush2.bf16.msra.mxu0 0
    %4597 = vmatprep.mubr.bf16.mxu0 0
    %4598 = vmatmul.mubr.bf16.gmra.mxu0 %v1266
    %v4599 = vpop.f32.mrf.mxu0
    %v4600 = vadd.f32 %v4411, %v4599
    %v4601 = vpop.f32.mrf.mxu0
    %v4602 = vadd.f32 %v4413, %v4601
    %v4603 = vpop.f32.mrf.mxu0
    %v4604 = vadd.f32 %v4415, %v4603
    %v4605 = vpop.f32.mrf.mxu0
    %v4606 = vadd.f32 %v4417, %v4605
    %4607 = vmatprep.mubr.bf16.mxu0 0
    %4608 = vmatmul.mubr.bf16.gmra.mxu0 %v1269
    %v4609 = vpop.f32.mrf.mxu0
    %v4610 = vadd.f32 %v4421, %v4609
    %v4611 = vpop.f32.mrf.mxu0
    %v4612 = vadd.f32 %v4423, %v4611
    %v4613 = vpop.f32.mrf.mxu0
    %v4614 = vadd.f32 %v4425, %v4613
    %v4615 = vpop.f32.mrf.mxu0
    %v4616 = vadd.f32 %v4427, %v4615
    %4617 = vmatprep.mubr.bf16.mxu0 0
    %4618 = vmatmul.mubr.bf16.gmra.mxu0 %v1272
    %v4619 = vpop.f32.mrf.mxu0
    %v4620 = vadd.f32 %v4431, %v4619
    %v4621 = vpop.f32.mrf.mxu0
    %v4622 = vadd.f32 %v4433, %v4621
    %v4623 = vpop.f32.mrf.mxu0
    %v4624 = vadd.f32 %v4435, %v4623
    %v4625 = vpop.f32.mrf.mxu0
    %v4626 = vadd.f32 %v4437, %v4625
    %4627 = vdwg.mxu0
    %4628 = vmatprep.subr.bf16.mxu0 0
    %4629 = vmatpush1.bf16.msra.mxu0 0
    %4630 = vmatprep.subr.bf16.mxu0 0
    %4631 = vmatpush1.bf16.msra.mxu0 0
    %4632 = vmatprep.subr.bf16.mxu0 0
    %4633 = vmatpush1.bf16.msra.mxu0 0
    %4634 = vmatprep.subr.bf16.mxu0 0
    %4635 = vmatpush1.bf16.msra.mxu0 0
    %4636 = vmatprep.subr.bf16.mxu0 0
    %4637 = vmatpush1.bf16.msra.mxu0 0
    %4638 = vmatprep.subr.bf16.mxu0 0
    %4639 = vmatpush1.bf16.msra.mxu0 0
    %4640 = vmatprep.subr.bf16.mxu0 %v638
    %4641 = vmatpush1.bf16.msra.mxu0 %v635
    %4642 = vmatprep.subr.bf16.mxu0 %v604
    %4643 = vmatpush1.bf16.msra.mxu0 %v603
    %4644 = vmatprep.subr.bf16.mxu0 0
    %4645 = vmatpush2.bf16.msra.mxu0 0
    %4646 = vmatprep.subr.bf16.mxu0 0
    %4647 = vmatpush2.bf16.msra.mxu0 0
    %4648 = vmatprep.subr.bf16.mxu0 0
    %4649 = vmatpush2.bf16.msra.mxu0 0
    %4650 = vmatprep.subr.bf16.mxu0 0
    %4651 = vmatpush2.bf16.msra.mxu0 0
    %4652 = vmatprep.subr.bf16.mxu0 0
    %4653 = vmatpush2.bf16.msra.mxu0 0
    %4654 = vmatprep.subr.bf16.mxu0 0
    %4655 = vmatpush2.bf16.msra.mxu0 0
    %4656 = vmatprep.subr.bf16.mxu0 0
    %4657 = vmatpush2.bf16.msra.mxu0 0
    %4658 = vmatprep.subr.bf16.mxu0 0
    %4659 = vmatpush2.bf16.msra.mxu0 0
    %4660 = vmatprep.mubr.bf16.mxu0 0
    %4661 = vmatmul.mubr.bf16.gmra.mxu0 %v1266
    %v4662 = vpop.f32.mrf.mxu0
    %v4663 = vadd.f32 %v4474, %v4662
    %v4664 = vpop.f32.mrf.mxu0
    %v4665 = vadd.f32 %v4476, %v4664
    %v4666 = vpop.f32.mrf.mxu0
    %v4667 = vadd.f32 %v4478, %v4666
    %v4668 = vpop.f32.mrf.mxu0
    %v4669 = vadd.f32 %v4480, %v4668
    %4670 = vmatprep.mubr.bf16.mxu0 0
    %4671 = vmatmul.mubr.bf16.gmra.mxu0 %v1269
    %v4672 = vpop.f32.mrf.mxu0
    %v4673 = vadd.f32 %v4484, %v4672
    %v4674 = vpop.f32.mrf.mxu0
    %v4675 = vadd.f32 %v4486, %v4674
    %v4676 = vpop.f32.mrf.mxu0
    %v4677 = vadd.f32 %v4488, %v4676
    %v4678 = vpop.f32.mrf.mxu0
    %v4679 = vadd.f32 %v4490, %v4678
    %4680 = vmatprep.mubr.bf16.mxu0 0
    %4681 = vmatmul.mubr.bf16.gmra.mxu0 %v1272
    %v4682 = vpop.f32.mrf.mxu0
    %v4683 = vadd.f32 %v4494, %v4682
    %v4684 = vpop.f32.mrf.mxu0
    %v4685 = vadd.f32 %v4496, %v4684
    %v4686 = vpop.f32.mrf.mxu0
    %v4687 = vadd.f32 %v4498, %v4686
    %v4688 = vpop.f32.mrf.mxu0
    %v4689 = vadd.f32 %v4500, %v4688
    %4690 = vdwg.mxu0
    %4691 = vmatprep.subr.bf16.mxu0 0
    %4692 = vmatpush1.bf16.msra.mxu0 0
    %4693 = vmatprep.subr.bf16.mxu0 0
    %4694 = vmatpush1.bf16.msra.mxu0 0
    %4695 = vmatprep.subr.bf16.mxu0 0
    %4696 = vmatpush1.bf16.msra.mxu0 0
    %4697 = vmatprep.subr.bf16.mxu0 0
    %4698 = vmatpush1.bf16.msra.mxu0 0
    %4699 = vmatprep.subr.bf16.mxu0 0
    %4700 = vmatpush1.bf16.msra.mxu0 0
    %4701 = vmatprep.subr.bf16.mxu0 0
    %4702 = vmatpush1.bf16.msra.mxu0 0
    %4703 = vmatprep.subr.bf16.mxu0 %v644
    %4704 = vmatpush1.bf16.msra.mxu0 %v641
    %4705 = vmatprep.subr.bf16.mxu0 %v606
    %4706 = vmatpush1.bf16.msra.mxu0 %v605
    %4707 = vmatprep.subr.bf16.mxu0 0
    %4708 = vmatpush2.bf16.msra.mxu0 0
    %4709 = vmatprep.subr.bf16.mxu0 0
    %4710 = vmatpush2.bf16.msra.mxu0 0
    %4711 = vmatprep.subr.bf16.mxu0 0
    %4712 = vmatpush2.bf16.msra.mxu0 0
    %4713 = vmatprep.subr.bf16.mxu0 0
    %4714 = vmatpush2.bf16.msra.mxu0 0
    %4715 = vmatprep.subr.bf16.mxu0 0
    %4716 = vmatpush2.bf16.msra.mxu0 0
    %4717 = vmatprep.subr.bf16.mxu0 0
    %4718 = vmatpush2.bf16.msra.mxu0 0
    %4719 = vmatprep.subr.bf16.mxu0 0
    %4720 = vmatpush2.bf16.msra.mxu0 0
    %4721 = vmatprep.subr.bf16.mxu0 0
    %4722 = vmatpush2.bf16.msra.mxu0 0
    %4723 = vmatprep.mubr.bf16.mxu0 0
    %4724 = vmatmul.mubr.bf16.gmra.mxu0 %v1266
    %v4725 = vpop.f32.mrf.mxu0
    %v4726 = vadd.f32 %v4537, %v4725
    %v4727 = vpop.f32.mrf.mxu0
    %v4728 = vadd.f32 %v4539, %v4727
    %v4729 = vpop.f32.mrf.mxu0
    %v4730 = vadd.f32 %v4541, %v4729
    %v4731 = vpop.f32.mrf.mxu0
    %v4732 = vadd.f32 %v4543, %v4731
    %4733 = vmatprep.mubr.bf16.mxu0 0
    %4734 = vmatmul.mubr.bf16.gmra.mxu0 %v1269
    %v4735 = vpop.f32.mrf.mxu0
    %v4736 = vadd.f32 %v4547, %v4735
    %v4737 = vpop.f32.mrf.mxu0
    %v4738 = vadd.f32 %v4549, %v4737
    %v4739 = vpop.f32.mrf.mxu0
    %v4740 = vadd.f32 %v4551, %v4739
    %v4741 = vpop.f32.mrf.mxu0
    %v4742 = vadd.f32 %v4553, %v4741
    %4743 = vmatprep.mubr.bf16.mxu0 0
    %4744 = vmatmul.mubr.bf16.gmra.mxu0 %v1272
    %v4745 = vpop.f32.mrf.mxu0
    %v4746 = vadd.f32 %v4557, %v4745
    %v4747 = vpop.f32.mrf.mxu0
    %v4748 = vadd.f32 %v4559, %v4747
    %v4749 = vpop.f32.mrf.mxu0
    %v4750 = vadd.f32 %v4561, %v4749
    %v4751 = vpop.f32.mrf.mxu0
    %v4752 = vadd.f32 %v4563, %v4751
    %4753 = vdwg.mxu0
    %4754 = vmatprep.subr.bf16.mxu0 0
    %4755 = vmatpush1.bf16.msra.mxu0 0
    %4756 = vmatprep.subr.bf16.mxu0 0
    %4757 = vmatpush1.bf16.msra.mxu0 0
    %4758 = vmatprep.subr.bf16.mxu0 0
    %4759 = vmatpush1.bf16.msra.mxu0 0
    %4760 = vmatprep.subr.bf16.mxu0 0
    %4761 = vmatpush1.bf16.msra.mxu0 0
    %4762 = vmatprep.subr.bf16.mxu0 0
    %4763 = vmatpush1.bf16.msra.mxu0 0
    %4764 = vmatprep.subr.bf16.mxu0 0
    %4765 = vmatpush1.bf16.msra.mxu0 0
    %4766 = vmatprep.subr.bf16.mxu0 %v937
    %4767 = vmatpush1.bf16.msra.mxu0 %v934
    %4768 = vmatprep.subr.bf16.mxu0 %v907
    %4769 = vmatpush1.bf16.msra.mxu0 %v906
    %4770 = vmatprep.subr.bf16.mxu0 0
    %4771 = vmatpush2.bf16.msra.mxu0 0
    %4772 = vmatprep.subr.bf16.mxu0 0
    %4773 = vmatpush2.bf16.msra.mxu0 0
    %4774 = vmatprep.subr.bf16.mxu0 0
    %4775 = vmatpush2.bf16.msra.mxu0 0
    %4776 = vmatprep.subr.bf16.mxu0 0
    %4777 = vmatpush2.bf16.msra.mxu0 0
    %4778 = vmatprep.subr.bf16.mxu0 0
    %4779 = vmatpush2.bf16.msra.mxu0 0
    %4780 = vmatprep.subr.bf16.mxu0 0
    %4781 = vmatpush2.bf16.msra.mxu0 0
    %4782 = vmatprep.subr.bf16.mxu0 0
    %4783 = vmatpush2.bf16.msra.mxu0 0
    %4784 = vmatprep.subr.bf16.mxu0 0
    %4785 = vmatpush2.bf16.msra.mxu0 0
    %4786 = vmatprep.mubr.bf16.mxu0 0
    %4787 = vmatmul.mubr.bf16.gmra.mxu0 %v2843
    %v4788 = vpop.f32.mrf.mxu0
    %v4789 = vadd.f32 0.0, %v4788
    %v4790 = vpop.f32.mrf.mxu0
    %v4791 = vadd.f32 0.0, %v4790
    %v4792 = vpop.f32.mrf.mxu0
    %v4793 = vadd.f32 0.0, %v4792
    %v4794 = vpop.f32.mrf.mxu0
    %v4795 = vadd.f32 0.0, %v4794
    %4796 = vmatprep.mubr.bf16.mxu0 0
    %4797 = vmatmul.mubr.bf16.gmra.mxu0 %v2846
    %v4798 = vpop.f32.mrf.mxu0
    %v4799 = vadd.f32 0.0, %v4798
    %v4800 = vpop.f32.mrf.mxu0
    %v4801 = vadd.f32 0.0, %v4800
    %v4802 = vpop.f32.mrf.mxu0
    %v4803 = vadd.f32 0.0, %v4802
    %v4804 = vpop.f32.mrf.mxu0
    %v4805 = vadd.f32 0.0, %v4804
    %4806 = vmatprep.mubr.bf16.mxu0 0
    %4807 = vmatmul.mubr.bf16.gmra.mxu0 %v2849
    %v4808 = vpop.f32.mrf.mxu0
    %v4809 = vadd.f32 0.0, %v4808
    %v4810 = vpop.f32.mrf.mxu0
    %v4811 = vadd.f32 0.0, %v4810
    %v4812 = vpop.f32.mrf.mxu0
    %v4813 = vadd.f32 0.0, %v4812
    %v4814 = vpop.f32.mrf.mxu0
    %v4815 = vadd.f32 0.0, %v4814
    %4816 = vdwg.mxu0
    %4817 = vmatprep.subr.bf16.mxu0 0
    %4818 = vmatpush1.bf16.msra.mxu0 0
    %4819 = vmatprep.subr.bf16.mxu0 0
    %4820 = vmatpush1.bf16.msra.mxu0 0
    %4821 = vmatprep.subr.bf16.mxu0 0
    %4822 = vmatpush1.bf16.msra.mxu0 0
    %4823 = vmatprep.subr.bf16.mxu0 0
    %4824 = vmatpush1.bf16.msra.mxu0 0
    %4825 = vmatprep.subr.bf16.mxu0 0
    %4826 = vmatpush1.bf16.msra.mxu0 0
    %4827 = vmatprep.subr.bf16.mxu0 0
    %4828 = vmatpush1.bf16.msra.mxu0 0
    %4829 = vmatprep.subr.bf16.mxu0 %v943
    %4830 = vmatpush1.bf16.msra.mxu0 %v940
    %4831 = vmatprep.subr.bf16.mxu0 %v909
    %4832 = vmatpush1.bf16.msra.mxu0 %v908
    %4833 = vmatprep.subr.bf16.mxu0 0
    %4834 = vmatpush2.bf16.msra.mxu0 0
    %4835 = vmatprep.subr.bf16.mxu0 0
    %4836 = vmatpush2.bf16.msra.mxu0 0
    %4837 = vmatprep.subr.bf16.mxu0 0
    %4838 = vmatpush2.bf16.msra.mxu0 0
    %4839 = vmatprep.subr.bf16.mxu0 0
    %4840 = vmatpush2.bf16.msra.mxu0 0
    %4841 = vmatprep.subr.bf16.mxu0 0
    %4842 = vmatpush2.bf16.msra.mxu0 0
    %4843 = vmatprep.subr.bf16.mxu0 0
    %4844 = vmatpush2.bf16.msra.mxu0 0
    %4845 = vmatprep.subr.bf16.mxu0 0
    %4846 = vmatpush2.bf16.msra.mxu0 0
    %4847 = vmatprep.subr.bf16.mxu0 0
    %4848 = vmatpush2.bf16.msra.mxu0 0
    %4849 = vmatprep.mubr.bf16.mxu0 0
    %4850 = vmatmul.mubr.bf16.gmra.mxu0 %v2843
    %v4851 = vpop.f32.mrf.mxu0
    %v4852 = vadd.f32 0.0, %v4851
    %v4853 = vpop.f32.mrf.mxu0
    %v4854 = vadd.f32 0.0, %v4853
    %v4855 = vpop.f32.mrf.mxu0
    %v4856 = vadd.f32 0.0, %v4855
    %v4857 = vpop.f32.mrf.mxu0
    %v4858 = vadd.f32 0.0, %v4857
    %4859 = vmatprep.mubr.bf16.mxu0 0
    %4860 = vmatmul.mubr.bf16.gmra.mxu0 %v2846
    %v4861 = vpop.f32.mrf.mxu0
    %v4862 = vadd.f32 0.0, %v4861
    %v4863 = vpop.f32.mrf.mxu0
    %v4864 = vadd.f32 0.0, %v4863
    %v4865 = vpop.f32.mrf.mxu0
    %v4866 = vadd.f32 0.0, %v4865
    %v4867 = vpop.f32.mrf.mxu0
    %v4868 = vadd.f32 0.0, %v4867
    %4869 = vmatprep.mubr.bf16.mxu0 0
    %4870 = vmatmul.mubr.bf16.gmra.mxu0 %v2849
    %v4871 = vpop.f32.mrf.mxu0
    %v4872 = vadd.f32 0.0, %v4871
    %v4873 = vpop.f32.mrf.mxu0
    %v4874 = vadd.f32 0.0, %v4873
    %v4875 = vpop.f32.mrf.mxu0
    %v4876 = vadd.f32 0.0, %v4875
    %v4877 = vpop.f32.mrf.mxu0
    %v4878 = vadd.f32 0.0, %v4877
    %4879 = vdwg.mxu0
    %4880 = vmatprep.subr.bf16.mxu0 0
    %4881 = vmatpush1.bf16.msra.mxu0 0
    %4882 = vmatprep.subr.bf16.mxu0 0
    %4883 = vmatpush1.bf16.msra.mxu0 0
    %4884 = vmatprep.subr.bf16.mxu0 0
    %4885 = vmatpush1.bf16.msra.mxu0 0
    %4886 = vmatprep.subr.bf16.mxu0 0
    %4887 = vmatpush1.bf16.msra.mxu0 0
    %4888 = vmatprep.subr.bf16.mxu0 0
    %4889 = vmatpush1.bf16.msra.mxu0 0
    %4890 = vmatprep.subr.bf16.mxu0 0
    %4891 = vmatpush1.bf16.msra.mxu0 0
    %4892 = vmatprep.subr.bf16.mxu0 %v949
    %4893 = vmatpush1.bf16.msra.mxu0 %v946
    %4894 = vmatprep.subr.bf16.mxu0 %v911
    %4895 = vmatpush1.bf16.msra.mxu0 %v910
    %4896 = vmatprep.subr.bf16.mxu0 0
    %4897 = vmatpush2.bf16.msra.mxu0 0
    %4898 = vmatprep.subr.bf16.mxu0 0
    %4899 = vmatpush2.bf16.msra.mxu0 0
    %4900 = vmatprep.subr.bf16.mxu0 0
    %4901 = vmatpush2.bf16.msra.mxu0 0
    %4902 = vmatprep.subr.bf16.mxu0 0
    %4903 = vmatpush2.bf16.msra.mxu0 0
    %4904 = vmatprep.subr.bf16.mxu0 0
    %4905 = vmatpush2.bf16.msra.mxu0 0
    %4906 = vmatprep.subr.bf16.mxu0 0
    %4907 = vmatpush2.bf16.msra.mxu0 0
    %4908 = vmatprep.subr.bf16.mxu0 0
    %4909 = vmatpush2.bf16.msra.mxu0 0
    %4910 = vmatprep.subr.bf16.mxu0 0
    %4911 = vmatpush2.bf16.msra.mxu0 0
    %4912 = vmatprep.mubr.bf16.mxu0 0
    %4913 = vmatmul.mubr.bf16.gmra.mxu0 %v2843
    %v4914 = vpop.f32.mrf.mxu0
    %v4915 = vadd.f32 0.0, %v4914
    %v4916 = vpop.f32.mrf.mxu0
    %v4917 = vadd.f32 0.0, %v4916
    %v4918 = vpop.f32.mrf.mxu0
    %v4919 = vadd.f32 0.0, %v4918
    %v4920 = vpop.f32.mrf.mxu0
    %v4921 = vadd.f32 0.0, %v4920
    %4922 = vmatprep.mubr.bf16.mxu0 0
    %4923 = vmatmul.mubr.bf16.gmra.mxu0 %v2846
    %v4924 = vpop.f32.mrf.mxu0
    %v4925 = vadd.f32 0.0, %v4924
    %v4926 = vpop.f32.mrf.mxu0
    %v4927 = vadd.f32 0.0, %v4926
    %v4928 = vpop.f32.mrf.mxu0
    %v4929 = vadd.f32 0.0, %v4928
    %v4930 = vpop.f32.mrf.mxu0
    %v4931 = vadd.f32 0.0, %v4930
    %4932 = vmatprep.mubr.bf16.mxu0 0
    %4933 = vmatmul.mubr.bf16.gmra.mxu0 %v2849
    %v4934 = vpop.f32.mrf.mxu0
    %v4935 = vadd.f32 0.0, %v4934
    %v4936 = vpop.f32.mrf.mxu0
    %v4937 = vadd.f32 0.0, %v4936
    %v4938 = vpop.f32.mrf.mxu0
    %v4939 = vadd.f32 0.0, %v4938
    %v4940 = vpop.f32.mrf.mxu0
    %v4941 = vadd.f32 0.0, %v4940
    %4942 = vdwg.mxu0
    %v4943 = vadd.f32 %v4600, %v4789
    %v4944 = vadd.f32 %v4602, %v4791
    %v4945 = vadd.f32 %v4663, %v4852
    %v4946 = vadd.f32 %v4665, %v4854
    %v4947 = vadd.f32 %v4726, %v4915
    %v4948 = vadd.f32 %v4728, %v4917
    %v4949 = vadd.f32 %v4604, %v4793
    %v4950 = vadd.f32 %v4606, %v4795
    %v4951 = vadd.f32 %v4667, %v4856
    %v4952 = vadd.f32 %v4669, %v4858
    %v4953 = vadd.f32 %v4730, %v4919
    %v4954 = vadd.f32 %v4732, %v4921
    %v4955 = vadd.f32 %v4610, %v4799
    %v4956 = vadd.f32 %v4612, %v4801
    %v4957 = vadd.f32 %v4673, %v4862
    %v4958 = vadd.f32 %v4675, %v4864
    %v4959 = vadd.f32 %v4736, %v4925
    %v4960 = vadd.f32 %v4738, %v4927
    %v4961 = vadd.f32 %v4614, %v4803
    %v4962 = vadd.f32 %v4616, %v4805
    %v4963 = vadd.f32 %v4677, %v4866
    %v4964 = vadd.f32 %v4679, %v4868
    %v4965 = vadd.f32 %v4740, %v4929
    %v4966 = vadd.f32 %v4742, %v4931
    %v4967 = vadd.f32 %v4620, %v4809
    %v4968 = vadd.f32 %v4622, %v4811
    %v4969 = vadd.f32 %v4683, %v4872
    %v4970 = vadd.f32 %v4685, %v4874
    %v4971 = vadd.f32 %v4746, %v4935
    %v4972 = vadd.f32 %v4748, %v4937
    %v4973 = vadd.f32 %v4624, %v4813
    %v4974 = vadd.f32 %v4626, %v4815
    %v4975 = vadd.f32 %v4687, %v4876
    %v4976 = vadd.f32 %v4689, %v4878
    %v4977 = vadd.f32 %v4750, %v4939
    %v4978 = vadd.f32 %v4752, %v4941
    %4979 = vmatprep.subr.bf16.mxu0 0
    %4980 = vmatpush1.bf16.msra.mxu0 0
    %4981 = vmatprep.subr.bf16.mxu0 0
    %4982 = vmatpush1.bf16.msra.mxu0 0
    %4983 = vmatprep.subr.bf16.mxu0 0
    %4984 = vmatpush1.bf16.msra.mxu0 0
    %4985 = vmatprep.subr.bf16.mxu0 0
    %4986 = vmatpush1.bf16.msra.mxu0 0
    %4987 = vmatprep.subr.bf16.mxu0 0
    %4988 = vmatpush1.bf16.msra.mxu0 0
    %4989 = vmatprep.subr.bf16.mxu0 0
    %4990 = vmatpush1.bf16.msra.mxu0 0
    %4991 = vmatprep.subr.bf16.mxu0 %v1278
    %4992 = vmatpush1.bf16.msra.mxu0 %v1275
    %4993 = vmatprep.subr.bf16.mxu0 %v1248
    %4994 = vmatpush1.bf16.msra.mxu0 %v1247
    %4995 = vmatprep.subr.bf16.mxu0 0
    %4996 = vmatpush2.bf16.msra.mxu0 0
    %4997 = vmatprep.subr.bf16.mxu0 0
    %4998 = vmatpush2.bf16.msra.mxu0 0
    %4999 = vmatprep.subr.bf16.mxu0 0
    %5000 = vmatpush2.bf16.msra.mxu0 0
    %5001 = vmatprep.subr.bf16.mxu0 0
    %5002 = vmatpush2.bf16.msra.mxu0 0
    %5003 = vmatprep.subr.bf16.mxu0 0
    %5004 = vmatpush2.bf16.msra.mxu0 0
    %5005 = vmatprep.subr.bf16.mxu0 0
    %5006 = vmatpush2.bf16.msra.mxu0 0
    %5007 = vmatprep.subr.bf16.mxu0 0
    %5008 = vmatpush2.bf16.msra.mxu0 0
    %5009 = vmatprep.subr.bf16.mxu0 0
    %5010 = vmatpush2.bf16.msra.mxu0 0
    %5011 = vmatprep.mubr.bf16.mxu0 0
    %5012 = vmatmul.mubr.bf16.gmra.mxu0 %v4071
    %v5013 = vpop.f32.mrf.mxu0
    %v5014 = vadd.f32 0.0, %v5013
    %v5015 = vpop.f32.mrf.mxu0
    %v5016 = vadd.f32 0.0, %v5015
    %v5017 = vpop.f32.mrf.mxu0
    %v5018 = vadd.f32 0.0, %v5017
    %v5019 = vpop.f32.mrf.mxu0
    %v5020 = vadd.f32 0.0, %v5019
    %5021 = vmatprep.mubr.bf16.mxu0 0
    %5022 = vmatmul.mubr.bf16.gmra.mxu0 %v4074
    %v5023 = vpop.f32.mrf.mxu0
    %v5024 = vadd.f32 0.0, %v5023
    %v5025 = vpop.f32.mrf.mxu0
    %v5026 = vadd.f32 0.0, %v5025
    %v5027 = vpop.f32.mrf.mxu0
    %v5028 = vadd.f32 0.0, %v5027
    %v5029 = vpop.f32.mrf.mxu0
    %v5030 = vadd.f32 0.0, %v5029
    %5031 = vmatprep.mubr.bf16.mxu0 0
    %5032 = vmatmul.mubr.bf16.gmra.mxu0 %v4077
    %v5033 = vpop.f32.mrf.mxu0
    %v5034 = vadd.f32 0.0, %v5033
    %v5035 = vpop.f32.mrf.mxu0
    %v5036 = vadd.f32 0.0, %v5035
    %v5037 = vpop.f32.mrf.mxu0
    %v5038 = vadd.f32 0.0, %v5037
    %v5039 = vpop.f32.mrf.mxu0
    %v5040 = vadd.f32 0.0, %v5039
    %5041 = vdwg.mxu0
    %5042 = vmatprep.subr.bf16.mxu0 0
    %5043 = vmatpush1.bf16.msra.mxu0 0
    %5044 = vmatprep.subr.bf16.mxu0 0
    %5045 = vmatpush1.bf16.msra.mxu0 0
    %5046 = vmatprep.subr.bf16.mxu0 0
    %5047 = vmatpush1.bf16.msra.mxu0 0
    %5048 = vmatprep.subr.bf16.mxu0 0
    %5049 = vmatpush1.bf16.msra.mxu0 0
    %5050 = vmatprep.subr.bf16.mxu0 0
    %5051 = vmatpush1.bf16.msra.mxu0 0
    %5052 = vmatprep.subr.bf16.mxu0 0
    %5053 = vmatpush1.bf16.msra.mxu0 0
    %5054 = vmatprep.subr.bf16.mxu0 %v1284
    %5055 = vmatpush1.bf16.msra.mxu0 %v1281
    %5056 = vmatprep.subr.bf16.mxu0 %v1250
    %5057 = vmatpush1.bf16.msra.mxu0 %v1249
    %5058 = vmatprep.subr.bf16.mxu0 0
    %5059 = vmatpush2.bf16.msra.mxu0 0
    %5060 = vmatprep.subr.bf16.mxu0 0
    %5061 = vmatpush2.bf16.msra.mxu0 0
    %5062 = vmatprep.subr.bf16.mxu0 0
    %5063 = vmatpush2.bf16.msra.mxu0 0
    %5064 = vmatprep.subr.bf16.mxu0 0
    %5065 = vmatpush2.bf16.msra.mxu0 0
    %5066 = vmatprep.subr.bf16.mxu0 0
    %5067 = vmatpush2.bf16.msra.mxu0 0
    %5068 = vmatprep.subr.bf16.mxu0 0
    %5069 = vmatpush2.bf16.msra.mxu0 0
    %5070 = vmatprep.subr.bf16.mxu0 0
    %5071 = vmatpush2.bf16.msra.mxu0 0
    %5072 = vmatprep.subr.bf16.mxu0 0
    %5073 = vmatpush2.bf16.msra.mxu0 0
    %5074 = vmatprep.mubr.bf16.mxu0 0
    %5075 = vmatmul.mubr.bf16.gmra.mxu0 %v4071
    %v5076 = vpop.f32.mrf.mxu0
    %v5077 = vadd.f32 0.0, %v5076
    %v5078 = vpop.f32.mrf.mxu0
    %v5079 = vadd.f32 0.0, %v5078
    %v5080 = vpop.f32.mrf.mxu0
    %v5081 = vadd.f32 0.0, %v5080
    %v5082 = vpop.f32.mrf.mxu0
    %v5083 = vadd.f32 0.0, %v5082
    %5084 = vmatprep.mubr.bf16.mxu0 0
    %5085 = vmatmul.mubr.bf16.gmra.mxu0 %v4074
    %v5086 = vpop.f32.mrf.mxu0
    %v5087 = vadd.f32 0.0, %v5086
    %v5088 = vpop.f32.mrf.mxu0
    %v5089 = vadd.f32 0.0, %v5088
    %v5090 = vpop.f32.mrf.mxu0
    %v5091 = vadd.f32 0.0, %v5090
    %v5092 = vpop.f32.mrf.mxu0
    %v5093 = vadd.f32 0.0, %v5092
    %5094 = vmatprep.mubr.bf16.mxu0 0
    %5095 = vmatmul.mubr.bf16.gmra.mxu0 %v4077
    %v5096 = vpop.f32.mrf.mxu0
    %v5097 = vadd.f32 0.0, %v5096
    %v5098 = vpop.f32.mrf.mxu0
    %v5099 = vadd.f32 0.0, %v5098
    %v5100 = vpop.f32.mrf.mxu0
    %v5101 = vadd.f32 0.0, %v5100
    %v5102 = vpop.f32.mrf.mxu0
    %v5103 = vadd.f32 0.0, %v5102
    %5104 = vdwg.mxu0
    %5105 = vmatprep.subr.bf16.mxu0 0
    %5106 = vmatpush1.bf16.msra.mxu0 0
    %5107 = vmatprep.subr.bf16.mxu0 0
    %5108 = vmatpush1.bf16.msra.mxu0 0
    %5109 = vmatprep.subr.bf16.mxu0 0
    %5110 = vmatpush1.bf16.msra.mxu0 0
    %5111 = vmatprep.subr.bf16.mxu0 0
    %5112 = vmatpush1.bf16.msra.mxu0 0
    %5113 = vmatprep.subr.bf16.mxu0 0
    %5114 = vmatpush1.bf16.msra.mxu0 0
    %5115 = vmatprep.subr.bf16.mxu0 0
    %5116 = vmatpush1.bf16.msra.mxu0 0
    %5117 = vmatprep.subr.bf16.mxu0 %v1290
    %5118 = vmatpush1.bf16.msra.mxu0 %v1287
    %5119 = vmatprep.subr.bf16.mxu0 %v1252
    %5120 = vmatpush1.bf16.msra.mxu0 %v1251
    %5121 = vmatprep.subr.bf16.mxu0 0
    %5122 = vmatpush2.bf16.msra.mxu0 0
    %5123 = vmatprep.subr.bf16.mxu0 0
    %5124 = vmatpush2.bf16.msra.mxu0 0
    %5125 = vmatprep.subr.bf16.mxu0 0
    %5126 = vmatpush2.bf16.msra.mxu0 0
    %5127 = vmatprep.subr.bf16.mxu0 0
    %5128 = vmatpush2.bf16.msra.mxu0 0
    %5129 = vmatprep.subr.bf16.mxu0 0
    %5130 = vmatpush2.bf16.msra.mxu0 0
    %5131 = vmatprep.subr.bf16.mxu0 0
    %5132 = vmatpush2.bf16.msra.mxu0 0
    %5133 = vmatprep.subr.bf16.mxu0 0
    %5134 = vmatpush2.bf16.msra.mxu0 0
    %5135 = vmatprep.subr.bf16.mxu0 0
    %5136 = vmatpush2.bf16.msra.mxu0 0
    %5137 = vmatprep.mubr.bf16.mxu0 0
    %5138 = vmatmul.mubr.bf16.gmra.mxu0 %v4071
    %v5139 = vpop.f32.mrf.mxu0
    %v5140 = vadd.f32 0.0, %v5139
    %v5141 = vpop.f32.mrf.mxu0
    %v5142 = vadd.f32 0.0, %v5141
    %v5143 = vpop.f32.mrf.mxu0
    %v5144 = vadd.f32 0.0, %v5143
    %v5145 = vpop.f32.mrf.mxu0
    %v5146 = vadd.f32 0.0, %v5145
    %5147 = vmatprep.mubr.bf16.mxu0 0
    %5148 = vmatmul.mubr.bf16.gmra.mxu0 %v4074
    %v5149 = vpop.f32.mrf.mxu0
    %v5150 = vadd.f32 0.0, %v5149
    %v5151 = vpop.f32.mrf.mxu0
    %v5152 = vadd.f32 0.0, %v5151
    %v5153 = vpop.f32.mrf.mxu0
    %v5154 = vadd.f32 0.0, %v5153
    %v5155 = vpop.f32.mrf.mxu0
    %v5156 = vadd.f32 0.0, %v5155
    %5157 = vmatprep.mubr.bf16.mxu0 0
    %5158 = vmatmul.mubr.bf16.gmra.mxu0 %v4077
    %v5159 = vpop.f32.mrf.mxu0
    %v5160 = vadd.f32 0.0, %v5159
    %v5161 = vpop.f32.mrf.mxu0
    %v5162 = vadd.f32 0.0, %v5161
    %v5163 = vpop.f32.mrf.mxu0
    %v5164 = vadd.f32 0.0, %v5163
    %v5165 = vpop.f32.mrf.mxu0
    %v5166 = vadd.f32 0.0, %v5165
    %5167 = vdwg.mxu0
    %v5168 = vadd.f32 %v4943, %v5014
    %v5169 = vadd.f32 %v4944, %v5016
    %v5170 = vadd.f32 %v4945, %v5077
    %v5171 = vadd.f32 %v4946, %v5079
    %v5172 = vadd.f32 %v4947, %v5140
    %v5173 = vadd.f32 %v4948, %v5142
    %v5174 = vadd.f32 %v4949, %v5018
    %v5175 = vadd.f32 %v4950, %v5020
    %v5176 = vadd.f32 %v4951, %v5081
    %v5177 = vadd.f32 %v4952, %v5083
    %v5178 = vadd.f32 %v4953, %v5144
    %v5179 = vadd.f32 %v4954, %v5146
    %v5180 = vadd.f32 %v4955, %v5024
    %v5181 = vadd.f32 %v4956, %v5026
    %v5182 = vadd.f32 %v4957, %v5087
    %v5183 = vadd.f32 %v4958, %v5089
    %v5184 = vadd.f32 %v4959, %v5150
    %v5185 = vadd.f32 %v4960, %v5152
    %v5186 = vadd.f32 %v4961, %v5028
    %v5187 = vadd.f32 %v4962, %v5030
    %v5188 = vadd.f32 %v4963, %v5091
    %v5189 = vadd.f32 %v4964, %v5093
    %v5190 = vadd.f32 %v4965, %v5154
    %v5191 = vadd.f32 %v4966, %v5156
    %v5192 = vadd.f32 %v4967, %v5034
    %v5193 = vadd.f32 %v4968, %v5036
    %v5194 = vadd.f32 %v4969, %v5097
    %v5195 = vadd.f32 %v4970, %v5099
    %v5196 = vadd.f32 %v4971, %v5160
    %v5197 = vadd.f32 %v4972, %v5162
    %v5198 = vadd.f32 %v4973, %v5038
    %v5199 = vadd.f32 %v4974, %v5040
    %v5200 = vadd.f32 %v4975, %v5101
    %v5201 = vadd.f32 %v4976, %v5103
    %v5202 = vadd.f32 %v4977, %v5164
    %v5203 = vadd.f32 %v4978, %v5166
    %s5204 = scalar_lea.vmem %s0, 168
    %v5205 = vld [vmem:[%s5204] sm:$0xf]
    %v5206 = vld [vmem:[%s5204 + $0x4] sm:$0xf]
    %v5207 = vld [vmem:[%s5204 + $0x8] sm:$0xf]
    %v5208 = vld [vmem:[%s5204 + $0xc] sm:$0xf]
    %v5209 = vld [vmem:[%s5204 + $0x10] sm:$0xf]
    %v5210 = vld [vmem:[%s5204 + $0x14] sm:$0xf]
    %v5217 = vunpack.c.l.b16 %v5205
    %v5218 = vunpack.c.l.b16 %v5206
    %v5219 = vunpack.c.l.b16 %v5207
    %v5220 = vunpack.c.l.b16 %v5208
    %v5221 = vunpack.c.l.b16 %v5209
    %v5222 = vunpack.c.l.b16 %v5210
    %v5223 = vpack.c.b16 %v5218, %v5217
    %v5224 = vpack.c.b16 %v5220, %v5219
    %v5225 = vpack.c.b16 %v5222, %v5221
    %v5227 = vsel %vm332, %v5223, 0
    %v5230 = vsel %vm332, %v5224, 0
    %v5233 = vsel %vm332, %v5225, 0
    %5235 = vmatprep.subr.bf16.mxu0 0
    %5236 = vmatpush1.bf16.msra.mxu0 0
    %5237 = vmatprep.subr.bf16.mxu0 0
    %5238 = vmatpush1.bf16.msra.mxu0 0
    %5239 = vmatprep.subr.bf16.mxu0 0
    %5240 = vmatpush1.bf16.msra.mxu0 0
    %5241 = vmatprep.subr.bf16.mxu0 0
    %5242 = vmatpush1.bf16.msra.mxu0 0
    %5243 = vmatprep.subr.bf16.mxu0 0
    %5244 = vmatpush1.bf16.msra.mxu0 0
    %5245 = vmatprep.subr.bf16.mxu0 0
    %5246 = vmatpush1.bf16.msra.mxu0 0
    %5247 = vmatprep.subr.bf16.mxu0 %v1619
    %5248 = vmatpush1.bf16.msra.mxu0 %v1616
    %5249 = vmatprep.subr.bf16.mxu0 %v1589
    %5250 = vmatpush1.bf16.msra.mxu0 %v1588
    %5251 = vmatprep.subr.bf16.mxu0 0
    %5252 = vmatpush2.bf16.msra.mxu0 0
    %5253 = vmatprep.subr.bf16.mxu0 0
    %5254 = vmatpush2.bf16.msra.mxu0 0
    %5255 = vmatprep.subr.bf16.mxu0 0
    %5256 = vmatpush2.bf16.msra.mxu0 0
    %5257 = vmatprep.subr.bf16.mxu0 0
    %5258 = vmatpush2.bf16.msra.mxu0 0
    %5259 = vmatprep.subr.bf16.mxu0 0
    %5260 = vmatpush2.bf16.msra.mxu0 0
    %5261 = vmatprep.subr.bf16.mxu0 0
    %5262 = vmatpush2.bf16.msra.mxu0 0
    %5263 = vmatprep.subr.bf16.mxu0 0
    %5264 = vmatpush2.bf16.msra.mxu0 0
    %5265 = vmatprep.subr.bf16.mxu0 0
    %5266 = vmatpush2.bf16.msra.mxu0 0
    %5267 = vmatprep.mubr.bf16.mxu0 0
    %5268 = vmatmul.mubr.bf16.gmra.mxu0 %v5227
    %v5269 = vpop.f32.mrf.mxu0
    %v5270 = vadd.f32 0.0, %v5269
    %v5271 = vpop.f32.mrf.mxu0
    %v5272 = vadd.f32 0.0, %v5271
    %v5273 = vpop.f32.mrf.mxu0
    %v5274 = vadd.f32 0.0, %v5273
    %v5275 = vpop.f32.mrf.mxu0
    %v5276 = vadd.f32 0.0, %v5275
    %5277 = vmatprep.mubr.bf16.mxu0 0
    %5278 = vmatmul.mubr.bf16.gmra.mxu0 %v5230
    %v5279 = vpop.f32.mrf.mxu0
    %v5280 = vadd.f32 0.0, %v5279
    %v5281 = vpop.f32.mrf.mxu0
    %v5282 = vadd.f32 0.0, %v5281
    %v5283 = vpop.f32.mrf.mxu0
    %v5284 = vadd.f32 0.0, %v5283
    %v5285 = vpop.f32.mrf.mxu0
    %v5286 = vadd.f32 0.0, %v5285
    %5287 = vmatprep.mubr.bf16.mxu0 0
    %5288 = vmatmul.mubr.bf16.gmra.mxu0 %v5233
    %v5289 = vpop.f32.mrf.mxu0
    %v5290 = vadd.f32 0.0, %v5289
    %v5291 = vpop.f32.mrf.mxu0
    %v5292 = vadd.f32 0.0, %v5291
    %v5293 = vpop.f32.mrf.mxu0
    %v5294 = vadd.f32 0.0, %v5293
    %v5295 = vpop.f32.mrf.mxu0
    %v5296 = vadd.f32 0.0, %v5295
    %5297 = vdwg.mxu0
    %5298 = vmatprep.subr.bf16.mxu0 0
    %5299 = vmatpush1.bf16.msra.mxu0 0
    %5300 = vmatprep.subr.bf16.mxu0 0
    %5301 = vmatpush1.bf16.msra.mxu0 0
    %5302 = vmatprep.subr.bf16.mxu0 0
    %5303 = vmatpush1.bf16.msra.mxu0 0
    %5304 = vmatprep.subr.bf16.mxu0 0
    %5305 = vmatpush1.bf16.msra.mxu0 0
    %5306 = vmatprep.subr.bf16.mxu0 0
    %5307 = vmatpush1.bf16.msra.mxu0 0
    %5308 = vmatprep.subr.bf16.mxu0 0
    %5309 = vmatpush1.bf16.msra.mxu0 0
    %5310 = vmatprep.subr.bf16.mxu0 %v1625
    %5311 = vmatpush1.bf16.msra.mxu0 %v1622
    %5312 = vmatprep.subr.bf16.mxu0 %v1591
    %5313 = vmatpush1.bf16.msra.mxu0 %v1590
    %5314 = vmatprep.subr.bf16.mxu0 0
    %5315 = vmatpush2.bf16.msra.mxu0 0
    %5316 = vmatprep.subr.bf16.mxu0 0
    %5317 = vmatpush2.bf16.msra.mxu0 0
    %5318 = vmatprep.subr.bf16.mxu0 0
    %5319 = vmatpush2.bf16.msra.mxu0 0
    %5320 = vmatprep.subr.bf16.mxu0 0
    %5321 = vmatpush2.bf16.msra.mxu0 0
    %5322 = vmatprep.subr.bf16.mxu0 0
    %5323 = vmatpush2.bf16.msra.mxu0 0
    %5324 = vmatprep.subr.bf16.mxu0 0
    %5325 = vmatpush2.bf16.msra.mxu0 0
    %5326 = vmatprep.subr.bf16.mxu0 0
    %5327 = vmatpush2.bf16.msra.mxu0 0
    %5328 = vmatprep.subr.bf16.mxu0 0
    %5329 = vmatpush2.bf16.msra.mxu0 0
    %5330 = vmatprep.mubr.bf16.mxu0 0
    %5331 = vmatmul.mubr.bf16.gmra.mxu0 %v5227
    %v5332 = vpop.f32.mrf.mxu0
    %v5333 = vadd.f32 0.0, %v5332
    %v5334 = vpop.f32.mrf.mxu0
    %v5335 = vadd.f32 0.0, %v5334
    %v5336 = vpop.f32.mrf.mxu0
    %v5337 = vadd.f32 0.0, %v5336
    %v5338 = vpop.f32.mrf.mxu0
    %v5339 = vadd.f32 0.0, %v5338
    %5340 = vmatprep.mubr.bf16.mxu0 0
    %5341 = vmatmul.mubr.bf16.gmra.mxu0 %v5230
    %v5342 = vpop.f32.mrf.mxu0
    %v5343 = vadd.f32 0.0, %v5342
    %v5344 = vpop.f32.mrf.mxu0
    %v5345 = vadd.f32 0.0, %v5344
    %v5346 = vpop.f32.mrf.mxu0
    %v5347 = vadd.f32 0.0, %v5346
    %v5348 = vpop.f32.mrf.mxu0
    %v5349 = vadd.f32 0.0, %v5348
    %5350 = vmatprep.mubr.bf16.mxu0 0
    %5351 = vmatmul.mubr.bf16.gmra.mxu0 %v5233
    %v5352 = vpop.f32.mrf.mxu0
    %v5353 = vadd.f32 0.0, %v5352
    %v5354 = vpop.f32.mrf.mxu0
    %v5355 = vadd.f32 0.0, %v5354
    %v5356 = vpop.f32.mrf.mxu0
    %v5357 = vadd.f32 0.0, %v5356
    %v5358 = vpop.f32.mrf.mxu0
    %v5359 = vadd.f32 0.0, %v5358
    %5360 = vdwg.mxu0
    %5361 = vmatprep.subr.bf16.mxu0 0
    %5362 = vmatpush1.bf16.msra.mxu0 0
    %5363 = vmatprep.subr.bf16.mxu0 0
    %5364 = vmatpush1.bf16.msra.mxu0 0
    %5365 = vmatprep.subr.bf16.mxu0 0
    %5366 = vmatpush1.bf16.msra.mxu0 0
    %5367 = vmatprep.subr.bf16.mxu0 0
    %5368 = vmatpush1.bf16.msra.mxu0 0
    %5369 = vmatprep.subr.bf16.mxu0 0
    %5370 = vmatpush1.bf16.msra.mxu0 0
    %5371 = vmatprep.subr.bf16.mxu0 0
    %5372 = vmatpush1.bf16.msra.mxu0 0
    %5373 = vmatprep.subr.bf16.mxu0 %v1631
    %5374 = vmatpush1.bf16.msra.mxu0 %v1628
    %5375 = vmatprep.subr.bf16.mxu0 %v1593
    %5376 = vmatpush1.bf16.msra.mxu0 %v1592
    %5377 = vmatprep.subr.bf16.mxu0 0
    %5378 = vmatpush2.bf16.msra.mxu0 0
    %5379 = vmatprep.subr.bf16.mxu0 0
    %5380 = vmatpush2.bf16.msra.mxu0 0
    %5381 = vmatprep.subr.bf16.mxu0 0
    %5382 = vmatpush2.bf16.msra.mxu0 0
    %5383 = vmatprep.subr.bf16.mxu0 0
    %5384 = vmatpush2.bf16.msra.mxu0 0
    %5385 = vmatprep.subr.bf16.mxu0 0
    %5386 = vmatpush2.bf16.msra.mxu0 0
    %5387 = vmatprep.subr.bf16.mxu0 0
    %5388 = vmatpush2.bf16.msra.mxu0 0
    %5389 = vmatprep.subr.bf16.mxu0 0
    %5390 = vmatpush2.bf16.msra.mxu0 0
    %5391 = vmatprep.subr.bf16.mxu0 0
    %5392 = vmatpush2.bf16.msra.mxu0 0
    %5393 = vmatprep.mubr.bf16.mxu0 0
    %5394 = vmatmul.mubr.bf16.gmra.mxu0 %v5227
    %v5395 = vpop.f32.mrf.mxu0
    %v5396 = vadd.f32 0.0, %v5395
    %v5397 = vpop.f32.mrf.mxu0
    %v5398 = vadd.f32 0.0, %v5397
    %v5399 = vpop.f32.mrf.mxu0
    %v5400 = vadd.f32 0.0, %v5399
    %v5401 = vpop.f32.mrf.mxu0
    %v5402 = vadd.f32 0.0, %v5401
    %5403 = vmatprep.mubr.bf16.mxu0 0
    %5404 = vmatmul.mubr.bf16.gmra.mxu0 %v5230
    %v5405 = vpop.f32.mrf.mxu0
    %v5406 = vadd.f32 0.0, %v5405
    %v5407 = vpop.f32.mrf.mxu0
    %v5408 = vadd.f32 0.0, %v5407
    %v5409 = vpop.f32.mrf.mxu0
    %v5410 = vadd.f32 0.0, %v5409
    %v5411 = vpop.f32.mrf.mxu0
    %v5412 = vadd.f32 0.0, %v5411
    %5413 = vmatprep.mubr.bf16.mxu0 0
    %5414 = vmatmul.mubr.bf16.gmra.mxu0 %v5233
    %v5415 = vpop.f32.mrf.mxu0
    %v5416 = vadd.f32 0.0, %v5415
    %v5417 = vpop.f32.mrf.mxu0
    %v5418 = vadd.f32 0.0, %v5417
    %v5419 = vpop.f32.mrf.mxu0
    %v5420 = vadd.f32 0.0, %v5419
    %v5421 = vpop.f32.mrf.mxu0
    %v5422 = vadd.f32 0.0, %v5421
    %5423 = vdwg.mxu0
    %v5424 = vadd.f32 %v5168, %v5270
    %v5425 = vadd.f32 %v5169, %v5272
    %v5426 = vadd.f32 %v5170, %v5333
    %v5427 = vadd.f32 %v5171, %v5335
    %v5428 = vadd.f32 %v5172, %v5396
    %v5429 = vadd.f32 %v5173, %v5398
    %v5430 = vadd.f32 %v5174, %v5274
    %v5431 = vadd.f32 %v5175, %v5276
    %v5432 = vadd.f32 %v5176, %v5337
    %v5433 = vadd.f32 %v5177, %v5339
    %v5434 = vadd.f32 %v5178, %v5400
    %v5435 = vadd.f32 %v5179, %v5402
    %v5436 = vadd.f32 %v5180, %v5280
    %v5437 = vadd.f32 %v5181, %v5282
    %v5438 = vadd.f32 %v5182, %v5343
    %v5439 = vadd.f32 %v5183, %v5345
    %v5440 = vadd.f32 %v5184, %v5406
    %v5441 = vadd.f32 %v5185, %v5408
    %v5442 = vadd.f32 %v5186, %v5284
    %v5443 = vadd.f32 %v5187, %v5286
    %v5444 = vadd.f32 %v5188, %v5347
    %v5445 = vadd.f32 %v5189, %v5349
    %v5446 = vadd.f32 %v5190, %v5410
    %v5447 = vadd.f32 %v5191, %v5412
    %v5448 = vadd.f32 %v5192, %v5290
    %v5449 = vadd.f32 %v5193, %v5292
    %v5450 = vadd.f32 %v5194, %v5353
    %v5451 = vadd.f32 %v5195, %v5355
    %v5452 = vadd.f32 %v5196, %v5416
    %v5453 = vadd.f32 %v5197, %v5418
    %v5454 = vadd.f32 %v5198, %v5294
    %v5455 = vadd.f32 %v5199, %v5296
    %v5456 = vadd.f32 %v5200, %v5357
    %v5457 = vadd.f32 %v5201, %v5359
    %v5458 = vadd.f32 %v5202, %v5420
    %v5459 = vadd.f32 %v5203, %v5422
    %v5460 = vmul.f32 %v5424, %v1862
    %v5461 = vmul.f32 %v5425, %v1866
    %v5462 = vmul.f32 %v5426, %v1870
    %v5463 = vmul.f32 %v5427, %v1874
    %v5464 = vmul.f32 %v5428, %v1878
    %v5465 = vmul.f32 %v5429, %v1882
    %v5466 = vmul.f32 %v5430, %v1862
    %v5467 = vmul.f32 %v5431, %v1866
    %v5468 = vmul.f32 %v5432, %v1870
    %v5469 = vmul.f32 %v5433, %v1874
    %v5470 = vmul.f32 %v5434, %v1878
    %v5471 = vmul.f32 %v5435, %v1882
    %v5472 = vmul.f32 %v5436, %v1862
    %v5473 = vmul.f32 %v5437, %v1866
    %v5474 = vmul.f32 %v5438, %v1870
    %v5475 = vmul.f32 %v5439, %v1874
    %v5476 = vmul.f32 %v5440, %v1878
    %v5477 = vmul.f32 %v5441, %v1882
    %v5478 = vmul.f32 %v5442, %v1862
    %v5479 = vmul.f32 %v5443, %v1866
    %v5480 = vmul.f32 %v5444, %v1870
    %v5481 = vmul.f32 %v5445, %v1874
    %v5482 = vmul.f32 %v5446, %v1878
    %v5483 = vmul.f32 %v5447, %v1882
    %v5484 = vmul.f32 %v5448, %v1862
    %v5485 = vmul.f32 %v5449, %v1866
    %v5486 = vmul.f32 %v5450, %v1870
    %v5487 = vmul.f32 %v5451, %v1874
    %v5488 = vmul.f32 %v5452, %v1878
    %v5489 = vmul.f32 %v5453, %v1882
    %v5490 = vmul.f32 %v5454, %v1862
    %v5491 = vmul.f32 %v5455, %v1866
    %v5492 = vmul.f32 %v5456, %v1870
    %v5493 = vmul.f32 %v5457, %v1874
    %v5494 = vmul.f32 %v5458, %v1878
    %v5495 = vmul.f32 %v5459, %v1882
    %v5496 = vadd.f32 %v5460, %v1929
    %v5497 = vadd.f32 %v5461, %v1933
    %v5498 = vadd.f32 %v5462, %v1937
    %v5499 = vadd.f32 %v5463, %v1941
    %v5500 = vadd.f32 %v5464, %v1945
    %v5501 = vadd.f32 %v5465, %v1949
    %v5502 = vadd.f32 %v5466, %v1929
    %v5503 = vadd.f32 %v5467, %v1933
    %v5504 = vadd.f32 %v5468, %v1937
    %v5505 = vadd.f32 %v5469, %v1941
    %v5506 = vadd.f32 %v5470, %v1945
    %v5507 = vadd.f32 %v5471, %v1949
    %v5508 = vadd.f32 %v5472, %v1929
    %v5509 = vadd.f32 %v5473, %v1933
    %v5510 = vadd.f32 %v5474, %v1937
    %v5511 = vadd.f32 %v5475, %v1941
    %v5512 = vadd.f32 %v5476, %v1945
    %v5513 = vadd.f32 %v5477, %v1949
    %v5514 = vadd.f32 %v5478, %v1929
    %v5515 = vadd.f32 %v5479, %v1933
    %v5516 = vadd.f32 %v5480, %v1937
    %v5517 = vadd.f32 %v5481, %v1941
    %v5518 = vadd.f32 %v5482, %v1945
    %v5519 = vadd.f32 %v5483, %v1949
    %v5520 = vadd.f32 %v5484, %v1929
    %v5521 = vadd.f32 %v5485, %v1933
    %v5522 = vadd.f32 %v5486, %v1937
    %v5523 = vadd.f32 %v5487, %v1941
    %v5524 = vadd.f32 %v5488, %v1945
    %v5525 = vadd.f32 %v5489, %v1949
    %v5526 = vadd.f32 %v5490, %v1929
    %v5527 = vadd.f32 %v5491, %v1933
    %v5528 = vadd.f32 %v5492, %v1937
    %v5529 = vadd.f32 %v5493, %v1941
    %v5530 = vadd.f32 %v5494, %v1945
    %v5531 = vadd.f32 %v5495, %v1949
    %v5532 = vmax.f32 %v4340, %v5496
    %v5533 = vmax.f32 %v4341, %v5497
    %v5534 = vmax.f32 %v4342, %v5498
    %v5535 = vmax.f32 %v4343, %v5499
    %v5536 = vmax.f32 %v4344, %v5500
    %v5537 = vmax.f32 %v4345, %v5501
    %v5538 = vmax.f32 %v4346, %v5502
    %v5539 = vmax.f32 %v4347, %v5503
    %v5540 = vmax.f32 %v4348, %v5504
    %v5541 = vmax.f32 %v4349, %v5505
    %v5542 = vmax.f32 %v4350, %v5506
    %v5543 = vmax.f32 %v4351, %v5507
    %v5544 = vmax.f32 %v4352, %v5508
    %v5545 = vmax.f32 %v4353, %v5509
    %v5546 = vmax.f32 %v4354, %v5510
    %v5547 = vmax.f32 %v4355, %v5511
    %v5548 = vmax.f32 %v4356, %v5512
    %v5549 = vmax.f32 %v4357, %v5513
    %v5550 = vmax.f32 %v4358, %v5514
    %v5551 = vmax.f32 %v4359, %v5515
    %v5552 = vmax.f32 %v4360, %v5516
    %v5553 = vmax.f32 %v4361, %v5517
    %v5554 = vmax.f32 %v4362, %v5518
    %v5555 = vmax.f32 %v4363, %v5519
    %v5556 = vmax.f32 %v4364, %v5520
    %v5557 = vmax.f32 %v4365, %v5521
    %v5558 = vmax.f32 %v4366, %v5522
    %v5559 = vmax.f32 %v4367, %v5523
    %v5560 = vmax.f32 %v4368, %v5524
    %v5561 = vmax.f32 %v4369, %v5525
    %v5562 = vmax.f32 %v4370, %v5526
    %v5563 = vmax.f32 %v4371, %v5527
    %v5564 = vmax.f32 %v4372, %v5528
    %v5565 = vmax.f32 %v4373, %v5529
    %v5566 = vmax.f32 %v4374, %v5530
    %v5567 = vmax.f32 %v4375, %v5531
    %v5568 = vmax.f32 %v5532, %v5535
    %v5569 = vmax.f32 %v5533, %v5536
    %v5570 = vmax.f32 %v5534, %v5537
    %v5571 = vmax.f32 %v5538, %v5541
    %v5572 = vmax.f32 %v5539, %v5542
    %v5573 = vmax.f32 %v5540, %v5543
    %v5574 = vmax.f32 %v5544, %v5547
    %v5575 = vmax.f32 %v5545, %v5548
    %v5576 = vmax.f32 %v5546, %v5549
    %v5577 = vmax.f32 %v5550, %v5553
    %v5578 = vmax.f32 %v5551, %v5554
    %v5579 = vmax.f32 %v5552, %v5555
    %v5580 = vmax.f32 %v5556, %v5559
    %v5581 = vmax.f32 %v5557, %v5560
    %v5582 = vmax.f32 %v5558, %v5561
    %v5583 = vmax.f32 %v5562, %v5565
    %v5584 = vmax.f32 %v5563, %v5566
    %v5585 = vmax.f32 %v5564, %v5567
    %v5586 = vmax.f32 %v5568, 0.0
    %v5587 = vmax.f32 %v5569, 0.0
    %v5588 = vmax.f32 %v5570, 0.0
    %v5589 = vmax.f32 %v5571, 0.0
    %v5590 = vmax.f32 %v5572, 0.0
    %v5591 = vmax.f32 %v5573, 0.0
    %v5592 = vmax.f32 %v5574, 0.0
    %v5593 = vmax.f32 %v5575, 0.0
    %v5594 = vmax.f32 %v5576, 0.0
    %v5595 = vmax.f32 %v5577, 0.0
    %v5596 = vmax.f32 %v5578, 0.0
    %v5597 = vmax.f32 %v5579, 0.0
    %v5598 = vmax.f32 %v5580, 0.0
    %v5599 = vmax.f32 %v5581, 0.0
    %v5600 = vmax.f32 %v5582, 0.0
    %v5601 = vmax.f32 %v5583, 0.0
    %v5602 = vmax.f32 %v5584, 0.0
    %v5603 = vmax.f32 %v5585, 0.0
    %v5604 = vld [vmem:[#allocation9] sm:$0xf]
    %v5605 = vld [vmem:[#allocation10] sm:$0xf]
    %v5606 = vpack.c.bf16 %v3205, %v3202
    %v5607 = vpack.c.bf16 %v3206, %v3203
    %v5608 = vpack.c.bf16 %v3207, %v3204
    %v5609 = vpack.c.bf16 %v3211, %v3208
    %v5610 = vpack.c.bf16 %v3212, %v3209
    %v5611 = vpack.c.bf16 %v3213, %v3210
    %v5612 = vld [vmem:[#allocation7] sm:$0xff]
    %v5613 = vld [vmem:[#allocation7 + $0x8] sm:$0xff]
    %v5614 = vld [vmem:[#allocation7 + $0x10] sm:$0xff]
    %v5615 = vld [vmem:[#allocation7 + $0x18] sm:$0xff]
    %v5616 = vld [vmem:[#allocation7 + $0x20] sm:$0xff]
    %v5617 = vld [vmem:[#allocation7 + $0x28] sm:$0xff]
    %v5618 = vld [vmem:[#allocation7 + $0x30] sm:$0xff]
    %v5619 = vld [vmem:[#allocation7 + $0x38] sm:$0xff]
    %v5620 = vld [vmem:[#allocation7 + $0x40] sm:$0xff]
    %v5621 = vld [vmem:[#allocation7 + $0x48] sm:$0xff]
    %v5622 = vld [vmem:[#allocation7 + $0x50] sm:$0xff]
    %v5623 = vld [vmem:[#allocation7 + $0x58] sm:$0xff]
    %v5624 = vld [vmem:[#allocation7 + $0x60] sm:$0xff]
    %v5625 = vld [vmem:[#allocation7 + $0x68] sm:$0xff]
    %v5626 = vld [vmem:[#allocation7 + $0x70] sm:$0xff]
    %v5627 = vld [vmem:[#allocation7 + $0x78] sm:$0xff]
    %v5628 = vld [vmem:[#allocation7 + $0x80] sm:$0xff]
    %v5629 = vld [vmem:[#allocation7 + $0x88] sm:$0xff]
    %v5630 = vld [vmem:[#allocation7 + $0x90] sm:$0xff]
    %v5631 = vld [vmem:[#allocation7 + $0x98] sm:$0xff]
    %v5632 = vld [vmem:[#allocation7 + $0xa0] sm:$0xff]
    %v5633 = vld [vmem:[#allocation7 + $0xa8] sm:$0xff]
    %v5634 = vld [vmem:[#allocation7 + $0xb0] sm:$0xff]
    %v5635 = vld [vmem:[#allocation7 + $0xb8] sm:$0xff]
    %v5636 = vld [vmem:[#allocation7 + $0xc0] sm:$0xff]
    %v5637 = vld [vmem:[#allocation7 + $0xc8] sm:$0xff]
    %v5638 = vld [vmem:[#allocation7 + $0xd0] sm:$0xff]
    %v5639 = vld [vmem:[#allocation7 + $0xd8] sm:$0xff]
    %v5640 = vld [vmem:[#allocation7 + $0xe0] sm:$0xff]
    %v5641 = vld [vmem:[#allocation7 + $0xe8] sm:$0xff]
    %v5642 = vld [vmem:[#allocation7 + $0xf0] sm:$0xff]
    %v5643 = vld [vmem:[#allocation7 + $0xf8] sm:$0xff]
    %v5644 = vld [vmem:[#allocation7 + $0x100] sm:$0xff]
    %v5645 = vld [vmem:[#allocation7 + $0x108] sm:$0xff]
    %v5646 = vld [vmem:[#allocation7 + $0x110] sm:$0xff]
    %v5647 = vld [vmem:[#allocation7 + $0x118] sm:$0xff]
    %v5648 = vld [vmem:[#allocation7 + $0x120] sm:$0xff]
    %v5649 = vld [vmem:[#allocation7 + $0x128] sm:$0xff]
    %v5650 = vld [vmem:[#allocation7 + $0x130] sm:$0xff]
    %v5651 = vld [vmem:[#allocation7 + $0x138] sm:$0xff]
    %v5652 = vld [vmem:[#allocation7 + $0x140] sm:$0xff]
    %v5653 = vld [vmem:[#allocation7 + $0x148] sm:$0xff]
    %v5654 = vld [vmem:[#allocation7 + $0x150] sm:$0xff]
    %v5655 = vld [vmem:[#allocation7 + $0x158] sm:$0xff]
    %v5656 = vld [vmem:[#allocation7 + $0x160] sm:$0xff]
    %v5657 = vld [vmem:[#allocation7 + $0x168] sm:$0xff]
    %v5658 = vld [vmem:[#allocation7 + $0x170] sm:$0xff]
    %v5659 = vld [vmem:[#allocation7 + $0x178] sm:$0xff]
    %v5660 = vld [vmem:[#allocation7 + $0x180] sm:$0xff]
    %v5661 = vld [vmem:[#allocation7 + $0x188] sm:$0xff]
    %v5662 = vld [vmem:[#allocation7 + $0x190] sm:$0xff]
    %v5663 = vld [vmem:[#allocation7 + $0x198] sm:$0xff]
    %v5664 = vld [vmem:[#allocation7 + $0x1a0] sm:$0xff]
    %v5665 = vld [vmem:[#allocation7 + $0x1a8] sm:$0xff]
    %v5666 = vld [vmem:[#allocation7 + $0x1b0] sm:$0xff]
    %v5667 = vld [vmem:[#allocation7 + $0x1b8] sm:$0xff]
    %v5668 = vld [vmem:[#allocation7 + $0x1c0] sm:$0xff]
    %v5669 = vld [vmem:[#allocation7 + $0x1c8] sm:$0xff]
    %v5670 = vld [vmem:[#allocation7 + $0x1d0] sm:$0xff]
    %v5671 = vld [vmem:[#allocation7 + $0x1d8] sm:$0xff]
    %v5672 = vld [vmem:[#allocation7 + $0x1e0] sm:$0xff]
    %v5673 = vld [vmem:[#allocation7 + $0x1e8] sm:$0xff]
    %v5674 = vld [vmem:[#allocation7 + $0x1f0] sm:$0xff]
    %v5675 = vld [vmem:[#allocation7 + $0x1f8] sm:$0xff]
    %v5676 = vld [vmem:[#allocation7 + $0x200] sm:$0xff]
    %v5677 = vld [vmem:[#allocation7 + $0x208] sm:$0xff]
    %v5678 = vld [vmem:[#allocation7 + $0x210] sm:$0xff]
    %v5679 = vld [vmem:[#allocation7 + $0x218] sm:$0xff]
    %v5680 = vld [vmem:[#allocation7 + $0x220] sm:$0xff]
    %v5681 = vld [vmem:[#allocation7 + $0x228] sm:$0xff]
    %v5682 = vld [vmem:[#allocation7 + $0x230] sm:$0xff]
    %v5683 = vld [vmem:[#allocation7 + $0x238] sm:$0xff]
    %v5684 = vld [vmem:[#allocation7 + $0x240] sm:$0xff]
    %v5685 = vld [vmem:[#allocation7 + $0x248] sm:$0xff]
    %v5686 = vld [vmem:[#allocation7 + $0x250] sm:$0xff]
    %v5687 = vld [vmem:[#allocation7 + $0x258] sm:$0xff]
    %v5688 = vld [vmem:[#allocation7 + $0x260] sm:$0xff]
    %v5689 = vld [vmem:[#allocation7 + $0x268] sm:$0xff]
    %v5690 = vld [vmem:[#allocation7 + $0x270] sm:$0xff]
    %v5691 = vld [vmem:[#allocation7 + $0x278] sm:$0xff]
    %v5692 = vld [vmem:[#allocation7 + $0x280] sm:$0xff]
    %v5693 = vld [vmem:[#allocation7 + $0x288] sm:$0xff]
    %v5694 = vld [vmem:[#allocation7 + $0x290] sm:$0xff]
    %v5695 = vld [vmem:[#allocation7 + $0x298] sm:$0xff]
    %v5696 = vld [vmem:[#allocation7 + $0x2a0] sm:$0xff]
    %v5697 = vld [vmem:[#allocation7 + $0x2a8] sm:$0xff]
    %v5698 = vld [vmem:[#allocation7 + $0x2b0] sm:$0xff]
    %v5699 = vld [vmem:[#allocation7 + $0x2b8] sm:$0xff]
    %v5700 = vld [vmem:[#allocation7 + $0x2c0] sm:$0xff]
    %v5701 = vld [vmem:[#allocation7 + $0x2c8] sm:$0xff]
    %v5702 = vld [vmem:[#allocation7 + $0x2d0] sm:$0xff]
    %v5703 = vld [vmem:[#allocation7 + $0x2d8] sm:$0xff]
    %v5704 = vld [vmem:[#allocation7 + $0x2e0] sm:$0xff]
    %v5705 = vld [vmem:[#allocation7 + $0x2e8] sm:$0xff]
    %v5706 = vld [vmem:[#allocation7 + $0x2f0] sm:$0xff]
    %v5707 = vld [vmem:[#allocation7 + $0x2f8] sm:$0xff]
    %v5708 = vpack.c.bf16 %v5589, %v5586
    %v5709 = vpack.c.bf16 %v5590, %v5587
    %v5710 = vpack.c.bf16 %v5591, %v5588
    %v5711 = vpack.c.bf16 %v5595, %v5592
    %v5712 = vpack.c.bf16 %v5596, %v5593
    %v5713 = vpack.c.bf16 %v5597, %v5594
    %s5714 = scalar_lea.vmem [#allocation7], 768
    %v5715 = vld [vmem:[%s5714] sm:$0xff]
    %v5716 = vld [vmem:[%s5714 + $0x8] sm:$0xff]
    %v5717 = vld [vmem:[%s5714 + $0x10] sm:$0xff]
    %v5718 = vld [vmem:[%s5714 + $0x18] sm:$0xff]
    %v5719 = vld [vmem:[%s5714 + $0x20] sm:$0xff]
    %v5720 = vld [vmem:[%s5714 + $0x28] sm:$0xff]
    %v5721 = vld [vmem:[%s5714 + $0x30] sm:$0xff]
    %v5722 = vld [vmem:[%s5714 + $0x38] sm:$0xff]
    %v5723 = vld [vmem:[%s5714 + $0x40] sm:$0xff]
    %v5724 = vld [vmem:[%s5714 + $0x48] sm:$0xff]
    %v5725 = vld [vmem:[%s5714 + $0x50] sm:$0xff]
    %v5726 = vld [vmem:[%s5714 + $0x58] sm:$0xff]
    %v5727 = vld [vmem:[%s5714 + $0x60] sm:$0xff]
    %v5728 = vld [vmem:[%s5714 + $0x68] sm:$0xff]
    %v5729 = vld [vmem:[%s5714 + $0x70] sm:$0xff]
    %v5730 = vld [vmem:[%s5714 + $0x78] sm:$0xff]
    %v5731 = vld [vmem:[%s5714 + $0x80] sm:$0xff]
    %v5732 = vld [vmem:[%s5714 + $0x88] sm:$0xff]
    %v5733 = vld [vmem:[%s5714 + $0x90] sm:$0xff]
    %v5734 = vld [vmem:[%s5714 + $0x98] sm:$0xff]
    %v5735 = vld [vmem:[%s5714 + $0xa0] sm:$0xff]
    %v5736 = vld [vmem:[%s5714 + $0xa8] sm:$0xff]
    %v5737 = vld [vmem:[%s5714 + $0xb0] sm:$0xff]
    %v5738 = vld [vmem:[%s5714 + $0xb8] sm:$0xff]
    %v5739 = vld [vmem:[%s5714 + $0xc0] sm:$0xff]
    %v5740 = vld [vmem:[%s5714 + $0xc8] sm:$0xff]
    %v5741 = vld [vmem:[%s5714 + $0xd0] sm:$0xff]
    %v5742 = vld [vmem:[%s5714 + $0xd8] sm:$0xff]
    %v5743 = vld [vmem:[%s5714 + $0xe0] sm:$0xff]
    %v5744 = vld [vmem:[%s5714 + $0xe8] sm:$0xff]
    %v5745 = vld [vmem:[%s5714 + $0xf0] sm:$0xff]
    %v5746 = vld [vmem:[%s5714 + $0xf8] sm:$0xff]
    %v5747 = vld [vmem:[%s5714 + $0x100] sm:$0xff]
    %v5748 = vld [vmem:[%s5714 + $0x108] sm:$0xff]
    %v5749 = vld [vmem:[%s5714 + $0x110] sm:$0xff]
    %v5750 = vld [vmem:[%s5714 + $0x118] sm:$0xff]
    %v5751 = vld [vmem:[%s5714 + $0x120] sm:$0xff]
    %v5752 = vld [vmem:[%s5714 + $0x128] sm:$0xff]
    %v5753 = vld [vmem:[%s5714 + $0x130] sm:$0xff]
    %v5754 = vld [vmem:[%s5714 + $0x138] sm:$0xff]
    %v5755 = vld [vmem:[%s5714 + $0x140] sm:$0xff]
    %v5756 = vld [vmem:[%s5714 + $0x148] sm:$0xff]
    %v5757 = vld [vmem:[%s5714 + $0x150] sm:$0xff]
    %v5758 = vld [vmem:[%s5714 + $0x158] sm:$0xff]
    %v5759 = vld [vmem:[%s5714 + $0x160] sm:$0xff]
    %v5760 = vld [vmem:[%s5714 + $0x168] sm:$0xff]
    %v5761 = vld [vmem:[%s5714 + $0x170] sm:$0xff]
    %v5762 = vld [vmem:[%s5714 + $0x178] sm:$0xff]
    %v5763 = vld [vmem:[%s5714 + $0x180] sm:$0xff]
    %v5764 = vld [vmem:[%s5714 + $0x188] sm:$0xff]
    %v5765 = vld [vmem:[%s5714 + $0x190] sm:$0xff]
    %v5766 = vld [vmem:[%s5714 + $0x198] sm:$0xff]
    %v5767 = vld [vmem:[%s5714 + $0x1a0] sm:$0xff]
    %v5768 = vld [vmem:[%s5714 + $0x1a8] sm:$0xff]
    %v5769 = vld [vmem:[%s5714 + $0x1b0] sm:$0xff]
    %v5770 = vld [vmem:[%s5714 + $0x1b8] sm:$0xff]
    %v5771 = vld [vmem:[%s5714 + $0x1c0] sm:$0xff]
    %v5772 = vld [vmem:[%s5714 + $0x1c8] sm:$0xff]
    %v5773 = vld [vmem:[%s5714 + $0x1d0] sm:$0xff]
    %v5774 = vld [vmem:[%s5714 + $0x1d8] sm:$0xff]
    %v5775 = vld [vmem:[%s5714 + $0x1e0] sm:$0xff]
    %v5776 = vld [vmem:[%s5714 + $0x1e8] sm:$0xff]
    %v5777 = vld [vmem:[%s5714 + $0x1f0] sm:$0xff]
    %v5778 = vld [vmem:[%s5714 + $0x1f8] sm:$0xff]
    %v5779 = vld [vmem:[%s5714 + $0x200] sm:$0xff]
    %v5780 = vld [vmem:[%s5714 + $0x208] sm:$0xff]
    %v5781 = vld [vmem:[%s5714 + $0x210] sm:$0xff]
    %v5782 = vld [vmem:[%s5714 + $0x218] sm:$0xff]
    %v5783 = vld [vmem:[%s5714 + $0x220] sm:$0xff]
    %v5784 = vld [vmem:[%s5714 + $0x228] sm:$0xff]
    %v5785 = vld [vmem:[%s5714 + $0x230] sm:$0xff]
    %v5786 = vld [vmem:[%s5714 + $0x238] sm:$0xff]
    %v5787 = vld [vmem:[%s5714 + $0x240] sm:$0xff]
    %v5788 = vld [vmem:[%s5714 + $0x248] sm:$0xff]
    %v5789 = vld [vmem:[%s5714 + $0x250] sm:$0xff]
    %v5790 = vld [vmem:[%s5714 + $0x258] sm:$0xff]
    %v5791 = vld [vmem:[%s5714 + $0x260] sm:$0xff]
    %v5792 = vld [vmem:[%s5714 + $0x268] sm:$0xff]
    %v5793 = vld [vmem:[%s5714 + $0x270] sm:$0xff]
    %v5794 = vld [vmem:[%s5714 + $0x278] sm:$0xff]
    %v5795 = vld [vmem:[%s5714 + $0x280] sm:$0xff]
    %v5796 = vld [vmem:[%s5714 + $0x288] sm:$0xff]
    %v5797 = vld [vmem:[%s5714 + $0x290] sm:$0xff]
    %v5798 = vld [vmem:[%s5714 + $0x298] sm:$0xff]
    %v5799 = vld [vmem:[%s5714 + $0x2a0] sm:$0xff]
    %v5800 = vld [vmem:[%s5714 + $0x2a8] sm:$0xff]
    %v5801 = vld [vmem:[%s5714 + $0x2b0] sm:$0xff]
    %v5802 = vld [vmem:[%s5714 + $0x2b8] sm:$0xff]
    %v5803 = vld [vmem:[%s5714 + $0x2c0] sm:$0xff]
    %v5804 = vld [vmem:[%s5714 + $0x2c8] sm:$0xff]
    %v5805 = vld [vmem:[%s5714 + $0x2d0] sm:$0xff]
    %v5806 = vld [vmem:[%s5714 + $0x2d8] sm:$0xff]
    %v5807 = vld [vmem:[%s5714 + $0x2e0] sm:$0xff]
    %v5808 = vld [vmem:[%s5714 + $0x2e8] sm:$0xff]
    %v5809 = vld [vmem:[%s5714 + $0x2f0] sm:$0xff]
    %v5810 = vld [vmem:[%s5714 + $0x2f8] sm:$0xff]
    %v5907 = vunpack.c.l.b16 %v5715
    %v5908 = vunpack.c.h.b16 %v5715
    %v5909 = vunpack.c.l.b16 %v5716
    %v5910 = vunpack.c.h.b16 %v5716
    %v5911 = vunpack.c.l.b16 %v5717
    %v5912 = vunpack.c.h.b16 %v5717
    %v5913 = vunpack.c.l.b16 %v5718
    %v5914 = vunpack.c.h.b16 %v5718
    %v5915 = vunpack.c.l.b16 %v5719
    %v5916 = vunpack.c.h.b16 %v5719
    %v5917 = vunpack.c.l.b16 %v5720
    %v5918 = vunpack.c.h.b16 %v5720
    %v5919 = vunpack.c.l.b16 %v5721
    %v5920 = vunpack.c.h.b16 %v5721
    %v5921 = vunpack.c.l.b16 %v5722
    %v5922 = vunpack.c.h.b16 %v5722
    %v5923 = vunpack.c.l.b16 %v5723
    %v5924 = vunpack.c.h.b16 %v5723
    %v5925 = vunpack.c.l.b16 %v5724
    %v5926 = vunpack.c.h.b16 %v5724
    %v5927 = vunpack.c.l.b16 %v5725
    %v5928 = vunpack.c.h.b16 %v5725
    %v5929 = vunpack.c.l.b16 %v5726
    %v5930 = vunpack.c.h.b16 %v5726
    %v5931 = vunpack.c.l.b16 %v5727
    %v5932 = vunpack.c.h.b16 %v5727
    %v5933 = vunpack.c.l.b16 %v5728
    %v5934 = vunpack.c.h.b16 %v5728
    %v5935 = vunpack.c.l.b16 %v5729
    %v5936 = vunpack.c.h.b16 %v5729
    %v5937 = vunpack.c.l.b16 %v5730
    %v5938 = vunpack.c.h.b16 %v5730
    %v5939 = vunpack.c.l.b16 %v5731
    %v5940 = vunpack.c.h.b16 %v5731
    %v5941 = vunpack.c.l.b16 %v5732
    %v5942 = vunpack.c.h.b16 %v5732
    %v5943 = vunpack.c.l.b16 %v5733
    %v5944 = vunpack.c.h.b16 %v5733
    %v5945 = vunpack.c.l.b16 %v5734
    %v5946 = vunpack.c.h.b16 %v5734
    %v5947 = vunpack.c.l.b16 %v5735
    %v5948 = vunpack.c.h.b16 %v5735
    %v5949 = vunpack.c.l.b16 %v5736
    %v5950 = vunpack.c.h.b16 %v5736
    %v5951 = vunpack.c.l.b16 %v5737
    %v5952 = vunpack.c.h.b16 %v5737
    %v5953 = vunpack.c.l.b16 %v5738
    %v5954 = vunpack.c.h.b16 %v5738
    %v5955 = vunpack.c.l.b16 %v5739
    %v5956 = vunpack.c.h.b16 %v5739
    %v5957 = vunpack.c.l.b16 %v5740
    %v5958 = vunpack.c.h.b16 %v5740
    %v5959 = vunpack.c.l.b16 %v5741
    %v5960 = vunpack.c.h.b16 %v5741
    %v5961 = vunpack.c.l.b16 %v5742
    %v5962 = vunpack.c.h.b16 %v5742
    %v5963 = vunpack.c.l.b16 %v5743
    %v5964 = vunpack.c.h.b16 %v5743
    %v5965 = vunpack.c.l.b16 %v5744
    %v5966 = vunpack.c.h.b16 %v5744
    %v5967 = vunpack.c.l.b16 %v5745
    %v5968 = vunpack.c.h.b16 %v5745
    %v5969 = vunpack.c.l.b16 %v5746
    %v5970 = vunpack.c.h.b16 %v5746
    %v5971 = vunpack.c.l.b16 %v5747
    %v5972 = vunpack.c.h.b16 %v5747
    %v5973 = vunpack.c.l.b16 %v5748
    %v5974 = vunpack.c.h.b16 %v5748
    %v5975 = vunpack.c.l.b16 %v5749
    %v5976 = vunpack.c.h.b16 %v5749
    %v5977 = vunpack.c.l.b16 %v5750
    %v5978 = vunpack.c.h.b16 %v5750
    %v5979 = vunpack.c.l.b16 %v5751
    %v5980 = vunpack.c.h.b16 %v5751
    %v5981 = vunpack.c.l.b16 %v5752
    %v5982 = vunpack.c.h.b16 %v5752
    %v5983 = vunpack.c.l.b16 %v5753
    %v5984 = vunpack.c.h.b16 %v5753
    %v5985 = vunpack.c.l.b16 %v5754
    %v5986 = vunpack.c.h.b16 %v5754
    %v5987 = vunpack.c.l.b16 %v5755
    %v5988 = vunpack.c.h.b16 %v5755
    %v5989 = vunpack.c.l.b16 %v5756
    %v5990 = vunpack.c.h.b16 %v5756
    %v5991 = vunpack.c.l.b16 %v5757
    %v5992 = vunpack.c.h.b16 %v5757
    %v5993 = vunpack.c.l.b16 %v5758
    %v5994 = vunpack.c.h.b16 %v5758
    %v5995 = vunpack.c.l.b16 %v5759
    %v5996 = vunpack.c.h.b16 %v5759
    %v5997 = vunpack.c.l.b16 %v5760
    %v5998 = vunpack.c.h.b16 %v5760
    %v5999 = vunpack.c.l.b16 %v5761
    %v6000 = vunpack.c.h.b16 %v5761
    %v6001 = vunpack.c.l.b16 %v5762
    %v6002 = vunpack.c.h.b16 %v5762
    %v6003 = vunpack.c.l.b16 %v5763
    %v6004 = vunpack.c.h.b16 %v5763
    %v6005 = vunpack.c.l.b16 %v5764
    %v6006 = vunpack.c.h.b16 %v5764
    %v6007 = vunpack.c.l.b16 %v5765
    %v6008 = vunpack.c.h.b16 %v5765
    %v6009 = vunpack.c.l.b16 %v5766
    %v6010 = vunpack.c.h.b16 %v5766
    %v6011 = vunpack.c.l.b16 %v5767
    %v6012 = vunpack.c.h.b16 %v5767
    %v6013 = vunpack.c.l.b16 %v5768
    %v6014 = vunpack.c.h.b16 %v5768
    %v6015 = vunpack.c.l.b16 %v5769
    %v6016 = vunpack.c.h.b16 %v5769
    %v6017 = vunpack.c.l.b16 %v5770
    %v6018 = vunpack.c.h.b16 %v5770
    %v6019 = vunpack.c.l.b16 %v5771
    %v6020 = vunpack.c.h.b16 %v5771
    %v6021 = vunpack.c.l.b16 %v5772
    %v6022 = vunpack.c.h.b16 %v5772
    %v6023 = vunpack.c.l.b16 %v5773
    %v6024 = vunpack.c.h.b16 %v5773
    %v6025 = vunpack.c.l.b16 %v5774
    %v6026 = vunpack.c.h.b16 %v5774
    %v6027 = vunpack.c.l.b16 %v5775
    %v6028 = vunpack.c.h.b16 %v5775
    %v6029 = vunpack.c.l.b16 %v5776
    %v6030 = vunpack.c.h.b16 %v5776
    %v6031 = vunpack.c.l.b16 %v5777
    %v6032 = vunpack.c.h.b16 %v5777
    %v6033 = vunpack.c.l.b16 %v5778
    %v6034 = vunpack.c.h.b16 %v5778
    %v6035 = vunpack.c.l.b16 %v5779
    %v6036 = vunpack.c.h.b16 %v5779
    %v6037 = vunpack.c.l.b16 %v5780
    %v6038 = vunpack.c.h.b16 %v5780
    %v6039 = vunpack.c.l.b16 %v5781
    %v6040 = vunpack.c.h.b16 %v5781
    %v6041 = vunpack.c.l.b16 %v5782
    %v6042 = vunpack.c.h.b16 %v5782
    %v6043 = vunpack.c.l.b16 %v5783
    %v6044 = vunpack.c.h.b16 %v5783
    %v6045 = vunpack.c.l.b16 %v5784
    %v6046 = vunpack.c.h.b16 %v5784
    %v6047 = vunpack.c.l.b16 %v5785
    %v6048 = vunpack.c.h.b16 %v5785
    %v6049 = vunpack.c.l.b16 %v5786
    %v6050 = vunpack.c.h.b16 %v5786
    %v6051 = vunpack.c.l.b16 %v5787
    %v6052 = vunpack.c.h.b16 %v5787
    %v6053 = vunpack.c.l.b16 %v5788
    %v6054 = vunpack.c.h.b16 %v5788
    %v6055 = vunpack.c.l.b16 %v5789
    %v6056 = vunpack.c.h.b16 %v5789
    %v6057 = vunpack.c.l.b16 %v5790
    %v6058 = vunpack.c.h.b16 %v5790
    %v6059 = vunpack.c.l.b16 %v5791
    %v6060 = vunpack.c.h.b16 %v5791
    %v6061 = vunpack.c.l.b16 %v5792
    %v6062 = vunpack.c.h.b16 %v5792
    %v6063 = vunpack.c.l.b16 %v5793
    %v6064 = vunpack.c.h.b16 %v5793
    %v6065 = vunpack.c.l.b16 %v5794
    %v6066 = vunpack.c.h.b16 %v5794
    %v6067 = vunpack.c.l.b16 %v5795
    %v6068 = vunpack.c.h.b16 %v5795
    %v6069 = vunpack.c.l.b16 %v5796
    %v6070 = vunpack.c.h.b16 %v5796
    %v6071 = vunpack.c.l.b16 %v5797
    %v6072 = vunpack.c.h.b16 %v5797
    %v6073 = vunpack.c.l.b16 %v5798
    %v6074 = vunpack.c.h.b16 %v5798
    %v6075 = vunpack.c.l.b16 %v5799
    %v6076 = vunpack.c.h.b16 %v5799
    %v6077 = vunpack.c.l.b16 %v5800
    %v6078 = vunpack.c.h.b16 %v5800
    %v6079 = vunpack.c.l.b16 %v5801
    %v6080 = vunpack.c.h.b16 %v5801
    %v6081 = vunpack.c.l.b16 %v5802
    %v6082 = vunpack.c.h.b16 %v5802
    %v6083 = vunpack.c.l.b16 %v5803
    %v6084 = vunpack.c.h.b16 %v5803
    %v6085 = vunpack.c.l.b16 %v5804
    %v6086 = vunpack.c.h.b16 %v5804
    %v6087 = vunpack.c.l.b16 %v5805
    %v6088 = vunpack.c.h.b16 %v5805
    %v6089 = vunpack.c.l.b16 %v5806
    %v6090 = vunpack.c.h.b16 %v5806
    %v6091 = vunpack.c.l.b16 %v5807
    %v6092 = vunpack.c.h.b16 %v5807
    %v6093 = vunpack.c.l.b16 %v5808
    %v6094 = vunpack.c.h.b16 %v5808
    %v6095 = vunpack.c.l.b16 %v5809
    %v6096 = vunpack.c.h.b16 %v5809
    %v6097 = vunpack.c.l.b16 %v5810
    %v6098 = vunpack.c.h.b16 %v5810
    %v6099 = vpack.c.b16 %v5911, %v5907
    %v6100 = vpack.c.b16 %v5912, %v5908
    %v6101 = vpack.c.b16 %v5913, %v5909
    %v6102 = vpack.c.b16 %v5914, %v5910
    %v6103 = vpack.c.b16 %v5919, %v5915
    %v6104 = vpack.c.b16 %v5920, %v5916
    %v6105 = vpack.c.b16 %v5921, %v5917
    %v6106 = vpack.c.b16 %v5922, %v5918
    %v6107 = vpack.c.b16 %v5927, %v5923
    %v6108 = vpack.c.b16 %v5928, %v5924
    %v6109 = vpack.c.b16 %v5929, %v5925
    %v6110 = vpack.c.b16 %v5930, %v5926
    %v6111 = vpack.c.b16 %v5935, %v5931
    %v6112 = vpack.c.b16 %v5936, %v5932
    %v6113 = vpack.c.b16 %v5937, %v5933
    %v6114 = vpack.c.b16 %v5938, %v5934
    %v6115 = vpack.c.b16 %v5943, %v5939
    %v6116 = vpack.c.b16 %v5944, %v5940
    %v6117 = vpack.c.b16 %v5945, %v5941
    %v6118 = vpack.c.b16 %v5946, %v5942
    %v6119 = vpack.c.b16 %v5951, %v5947
    %v6120 = vpack.c.b16 %v5952, %v5948
    %v6121 = vpack.c.b16 %v5953, %v5949
    %v6122 = vpack.c.b16 %v5954, %v5950
    %v6123 = vpack.c.b16 %v5959, %v5955
    %v6124 = vpack.c.b16 %v5960, %v5956
    %v6125 = vpack.c.b16 %v5961, %v5957
    %v6126 = vpack.c.b16 %v5962, %v5958
    %v6127 = vpack.c.b16 %v5967, %v5963
    %v6128 = vpack.c.b16 %v5968, %v5964
    %v6129 = vpack.c.b16 %v5969, %v5965
    %v6130 = vpack.c.b16 %v5970, %v5966
    %v6131 = vpack.c.b16 %v5975, %v5971
    %v6132 = vpack.c.b16 %v5976, %v5972
    %v6133 = vpack.c.b16 %v5977, %v5973
    %v6134 = vpack.c.b16 %v5978, %v5974
    %v6135 = vpack.c.b16 %v5983, %v5979
    %v6136 = vpack.c.b16 %v5984, %v5980
    %v6137 = vpack.c.b16 %v5985, %v5981
    %v6138 = vpack.c.b16 %v5986, %v5982
    %v6139 = vpack.c.b16 %v5991, %v5987
    %v6140 = vpack.c.b16 %v5992, %v5988
    %v6141 = vpack.c.b16 %v5993, %v5989
    %v6142 = vpack.c.b16 %v5994, %v5990
    %v6143 = vpack.c.b16 %v5999, %v5995
    %v6144 = vpack.c.b16 %v6000, %v5996
    %v6145 = vpack.c.b16 %v6001, %v5997
    %v6146 = vpack.c.b16 %v6002, %v5998
    %v6147 = vpack.c.b16 %v6007, %v6003
    %v6148 = vpack.c.b16 %v6008, %v6004
    %v6149 = vpack.c.b16 %v6009, %v6005
    %v6150 = vpack.c.b16 %v6010, %v6006
    %v6151 = vpack.c.b16 %v6015, %v6011
    %v6152 = vpack.c.b16 %v6016, %v6012
    %v6153 = vpack.c.b16 %v6017, %v6013
    %v6154 = vpack.c.b16 %v6018, %v6014
    %v6155 = vpack.c.b16 %v6023, %v6019
    %v6156 = vpack.c.b16 %v6024, %v6020
    %v6157 = vpack.c.b16 %v6025, %v6021
    %v6158 = vpack.c.b16 %v6026, %v6022
    %v6159 = vpack.c.b16 %v6031, %v6027
    %v6160 = vpack.c.b16 %v6032, %v6028
    %v6161 = vpack.c.b16 %v6033, %v6029
    %v6162 = vpack.c.b16 %v6034, %v6030
    %v6163 = vpack.c.b16 %v6039, %v6035
    %v6164 = vpack.c.b16 %v6040, %v6036
    %v6165 = vpack.c.b16 %v6041, %v6037
    %v6166 = vpack.c.b16 %v6042, %v6038
    %v6167 = vpack.c.b16 %v6047, %v6043
    %v6168 = vpack.c.b16 %v6048, %v6044
    %v6169 = vpack.c.b16 %v6049, %v6045
    %v6170 = vpack.c.b16 %v6050, %v6046
    %v6171 = vpack.c.b16 %v6055, %v6051
    %v6172 = vpack.c.b16 %v6056, %v6052
    %v6173 = vpack.c.b16 %v6057, %v6053
    %v6174 = vpack.c.b16 %v6058, %v6054
    %v6175 = vpack.c.b16 %v6063, %v6059
    %v6176 = vpack.c.b16 %v6064, %v6060
    %v6177 = vpack.c.b16 %v6065, %v6061
    %v6178 = vpack.c.b16 %v6066, %v6062
    %v6179 = vpack.c.b16 %v6071, %v6067
    %v6180 = vpack.c.b16 %v6072, %v6068
    %v6181 = vpack.c.b16 %v6073, %v6069
    %v6182 = vpack.c.b16 %v6074, %v6070
    %v6183 = vpack.c.b16 %v6079, %v6075
    %v6184 = vpack.c.b16 %v6080, %v6076
    %v6185 = vpack.c.b16 %v6081, %v6077
    %v6186 = vpack.c.b16 %v6082, %v6078
    %v6187 = vpack.c.b16 %v6087, %v6083
    %v6188 = vpack.c.b16 %v6088, %v6084
    %v6189 = vpack.c.b16 %v6089, %v6085
    %v6190 = vpack.c.b16 %v6090, %v6086
    %v6191 = vpack.c.b16 %v6095, %v6091
    %v6192 = vpack.c.b16 %v6096, %v6092
    %v6193 = vpack.c.b16 %v6097, %v6093
    %v6194 = vpack.c.b16 %v6098, %v6094
    %6291 = vmatprep.subr.bf16.mxu0 %v6128
    %6292 = vmatpush1.bf16.msra.mxu0 %v6127
    %6293 = vmatprep.subr.bf16.mxu0 %v6124
    %6294 = vmatpush1.bf16.msra.mxu0 %v6123
    %6295 = vmatprep.subr.bf16.mxu0 %v6120
    %6296 = vmatpush1.bf16.msra.mxu0 %v6119
    %6297 = vmatprep.subr.bf16.mxu0 %v6116
    %6298 = vmatpush1.bf16.msra.mxu0 %v6115
    %6299 = vmatprep.subr.bf16.mxu0 %v6112
    %6300 = vmatpush1.bf16.msra.mxu0 %v6111
    %6301 = vmatprep.subr.bf16.mxu0 %v6108
    %6302 = vmatpush1.bf16.msra.mxu0 %v6107
    %6303 = vmatprep.subr.bf16.mxu0 %v6104
    %6304 = vmatpush1.bf16.msra.mxu0 %v6103
    %6305 = vmatprep.subr.bf16.mxu0 %v6100
    %6306 = vmatpush1.bf16.msra.mxu0 %v6099
    %6307 = vmatprep.subr.bf16.mxu0 %v6160
    %6308 = vmatpush2.bf16.msra.mxu0 %v6159
    %6309 = vmatprep.subr.bf16.mxu0 %v6156
    %6310 = vmatpush2.bf16.msra.mxu0 %v6155
    %6311 = vmatprep.subr.bf16.mxu0 %v6152
    %6312 = vmatpush2.bf16.msra.mxu0 %v6151
    %6313 = vmatprep.subr.bf16.mxu0 %v6148
    %6314 = vmatpush2.bf16.msra.mxu0 %v6147
    %6315 = vmatprep.subr.bf16.mxu0 %v6144
    %6316 = vmatpush2.bf16.msra.mxu0 %v6143
    %6317 = vmatprep.subr.bf16.mxu0 %v6140
    %6318 = vmatpush2.bf16.msra.mxu0 %v6139
    %6319 = vmatprep.subr.bf16.mxu0 %v6136
    %6320 = vmatpush2.bf16.msra.mxu0 %v6135
    %6321 = vmatprep.subr.bf16.mxu0 %v6132
    %6322 = vmatpush2.bf16.msra.mxu0 %v6131
    %6323 = vmatprep.mubr.bf16.mxu0 %v5709
    %6324 = vmatmul.mubr.bf16.gmra.mxu0 %v5708
    %v6325 = vpop.f32.mrf.mxu0
    %v6326 = vadd.f32 0.0, %v6325
    %v6327 = vpop.f32.mrf.mxu0
    %v6328 = vadd.f32 0.0, %v6327
    %v6329 = vpop.f32.mrf.mxu0
    %v6330 = vadd.f32 0.0, %v6329
    %v6331 = vpop.f32.mrf.mxu0
    %v6332 = vadd.f32 0.0, %v6331
    %6333 = vmatprep.mubr.bf16.mxu0 %v5712
    %6334 = vmatmul.mubr.bf16.gmra.mxu0 %v5711
    %v6335 = vpop.f32.mrf.mxu0
    %v6336 = vadd.f32 0.0, %v6335
    %v6337 = vpop.f32.mrf.mxu0
    %v6338 = vadd.f32 0.0, %v6337
    %v6339 = vpop.f32.mrf.mxu0
    %v6340 = vadd.f32 0.0, %v6339
    %v6341 = vpop.f32.mrf.mxu0
    %v6342 = vadd.f32 0.0, %v6341
    %6343 = vdwg.mxu0
    %6344 = vmatprep.subr.bf16.mxu0 %v6192
    %6345 = vmatpush1.bf16.msra.mxu0 %v6191
    %6346 = vmatprep.subr.bf16.mxu0 %v6188
    %6347 = vmatpush1.bf16.msra.mxu0 %v6187
    %6348 = vmatprep.subr.bf16.mxu0 %v6184
    %6349 = vmatpush1.bf16.msra.mxu0 %v6183
    %6350 = vmatprep.subr.bf16.mxu0 %v6180
    %6351 = vmatpush1.bf16.msra.mxu0 %v6179
    %6352 = vmatprep.subr.bf16.mxu0 %v6176
    %6353 = vmatpush1.bf16.msra.mxu0 %v6175
    %6354 = vmatprep.subr.bf16.mxu0 %v6172
    %6355 = vmatpush1.bf16.msra.mxu0 %v6171
    %6356 = vmatprep.subr.bf16.mxu0 %v6168
    %6357 = vmatpush1.bf16.msra.mxu0 %v6167
    %6358 = vmatprep.subr.bf16.mxu0 %v6164
    %6359 = vmatpush1.bf16.msra.mxu0 %v6163
    %6360 = vmatprep.subr.bf16.mxu0 0
    %6361 = vmatpush2.bf16.msra.mxu0 0
    %6362 = vmatprep.subr.bf16.mxu0 0
    %6363 = vmatpush2.bf16.msra.mxu0 0
    %6364 = vmatprep.subr.bf16.mxu0 0
    %6365 = vmatpush2.bf16.msra.mxu0 0
    %6366 = vmatprep.subr.bf16.mxu0 0
    %6367 = vmatpush2.bf16.msra.mxu0 0
    %6368 = vmatprep.subr.bf16.mxu0 0
    %6369 = vmatpush2.bf16.msra.mxu0 0
    %6370 = vmatprep.subr.bf16.mxu0 0
    %6371 = vmatpush2.bf16.msra.mxu0 0
    %6372 = vmatprep.subr.bf16.mxu0 0
    %6373 = vmatpush2.bf16.msra.mxu0 0
    %6374 = vmatprep.subr.bf16.mxu0 0
    %6375 = vmatpush2.bf16.msra.mxu0 0
    %6376 = vmatprep.mubr.bf16.mxu0 0
    %6377 = vmatmul.mubr.bf16.gmra.mxu0 %v5710
    %v6378 = vpop.f32.mrf.mxu0
    %v6379 = vadd.f32 %v6326, %v6378
    %v6380 = vpop.f32.mrf.mxu0
    %v6381 = vadd.f32 %v6328, %v6380
    %v6382 = vpop.f32.mrf.mxu0
    %v6383 = vadd.f32 %v6330, %v6382
    %v6384 = vpop.f32.mrf.mxu0
    %v6385 = vadd.f32 %v6332, %v6384
    %6386 = vmatprep.mubr.bf16.mxu0 0
    %6387 = vmatmul.mubr.bf16.gmra.mxu0 %v5713
    %v6388 = vpop.f32.mrf.mxu0
    %v6389 = vadd.f32 %v6336, %v6388
    %v6390 = vpop.f32.mrf.mxu0
    %v6391 = vadd.f32 %v6338, %v6390
    %v6392 = vpop.f32.mrf.mxu0
    %v6393 = vadd.f32 %v6340, %v6392
    %v6394 = vpop.f32.mrf.mxu0
    %v6395 = vadd.f32 %v6342, %v6394
    %6396 = vdwg.mxu0
    %6397 = vmatprep.subr.bf16.mxu0 %v6130
    %6398 = vmatpush1.bf16.msra.mxu0 %v6129
    %6399 = vmatprep.subr.bf16.mxu0 %v6126
    %6400 = vmatpush1.bf16.msra.mxu0 %v6125
    %6401 = vmatprep.subr.bf16.mxu0 %v6122
    %6402 = vmatpush1.bf16.msra.mxu0 %v6121
    %6403 = vmatprep.subr.bf16.mxu0 %v6118
    %6404 = vmatpush1.bf16.msra.mxu0 %v6117
    %6405 = vmatprep.subr.bf16.mxu0 %v6114
    %6406 = vmatpush1.bf16.msra.mxu0 %v6113
    %6407 = vmatprep.subr.bf16.mxu0 %v6110
    %6408 = vmatpush1.bf16.msra.mxu0 %v6109
    %6409 = vmatprep.subr.bf16.mxu0 %v6106
    %6410 = vmatpush1.bf16.msra.mxu0 %v6105
    %6411 = vmatprep.subr.bf16.mxu0 %v6102
    %6412 = vmatpush1.bf16.msra.mxu0 %v6101
    %6413 = vmatprep.subr.bf16.mxu0 %v6162
    %6414 = vmatpush2.bf16.msra.mxu0 %v6161
    %6415 = vmatprep.subr.bf16.mxu0 %v6158
    %6416 = vmatpush2.bf16.msra.mxu0 %v6157
    %6417 = vmatprep.subr.bf16.mxu0 %v6154
    %6418 = vmatpush2.bf16.msra.mxu0 %v6153
    %6419 = vmatprep.subr.bf16.mxu0 %v6150
    %6420 = vmatpush2.bf16.msra.mxu0 %v6149
    %6421 = vmatprep.subr.bf16.mxu0 %v6146
    %6422 = vmatpush2.bf16.msra.mxu0 %v6145
    %6423 = vmatprep.subr.bf16.mxu0 %v6142
    %6424 = vmatpush2.bf16.msra.mxu0 %v6141
    %6425 = vmatprep.subr.bf16.mxu0 %v6138
    %6426 = vmatpush2.bf16.msra.mxu0 %v6137
    %6427 = vmatprep.subr.bf16.mxu0 %v6134
    %6428 = vmatpush2.bf16.msra.mxu0 %v6133
    %6429 = vmatprep.mubr.bf16.mxu0 %v5709
    %6430 = vmatmul.mubr.bf16.gmra.mxu0 %v5708
    %v6431 = vpop.f32.mrf.mxu0
    %v6432 = vadd.f32 0.0, %v6431
    %v6433 = vpop.f32.mrf.mxu0
    %v6434 = vadd.f32 0.0, %v6433
    %v6435 = vpop.f32.mrf.mxu0
    %v6436 = vadd.f32 0.0, %v6435
    %v6437 = vpop.f32.mrf.mxu0
    %v6438 = vadd.f32 0.0, %v6437
    %6439 = vmatprep.mubr.bf16.mxu0 %v5712
    %6440 = vmatmul.mubr.bf16.gmra.mxu0 %v5711
    %v6441 = vpop.f32.mrf.mxu0
    %v6442 = vadd.f32 0.0, %v6441
    %v6443 = vpop.f32.mrf.mxu0
    %v6444 = vadd.f32 0.0, %v6443
    %v6445 = vpop.f32.mrf.mxu0
    %v6446 = vadd.f32 0.0, %v6445
    %v6447 = vpop.f32.mrf.mxu0
    %v6448 = vadd.f32 0.0, %v6447
    %6449 = vdwg.mxu0
    %6450 = vmatprep.subr.bf16.mxu0 %v6194
    %6451 = vmatpush1.bf16.msra.mxu0 %v6193
    %6452 = vmatprep.subr.bf16.mxu0 %v6190
    %6453 = vmatpush1.bf16.msra.mxu0 %v6189
    %6454 = vmatprep.subr.bf16.mxu0 %v6186
    %6455 = vmatpush1.bf16.msra.mxu0 %v6185
    %6456 = vmatprep.subr.bf16.mxu0 %v6182
    %6457 = vmatpush1.bf16.msra.mxu0 %v6181
    %6458 = vmatprep.subr.bf16.mxu0 %v6178
    %6459 = vmatpush1.bf16.msra.mxu0 %v6177
    %6460 = vmatprep.subr.bf16.mxu0 %v6174
    %6461 = vmatpush1.bf16.msra.mxu0 %v6173
    %6462 = vmatprep.subr.bf16.mxu0 %v6170
    %6463 = vmatpush1.bf16.msra.mxu0 %v6169
    %6464 = vmatprep.subr.bf16.mxu0 %v6166
    %6465 = vmatpush1.bf16.msra.mxu0 %v6165
    %6466 = vmatprep.subr.bf16.mxu0 0
    %6467 = vmatpush2.bf16.msra.mxu0 0
    %6468 = vmatprep.subr.bf16.mxu0 0
    %6469 = vmatpush2.bf16.msra.mxu0 0
    %6470 = vmatprep.subr.bf16.mxu0 0
    %6471 = vmatpush2.bf16.msra.mxu0 0
    %6472 = vmatprep.subr.bf16.mxu0 0
    %6473 = vmatpush2.bf16.msra.mxu0 0
    %6474 = vmatprep.subr.bf16.mxu0 0
    %6475 = vmatpush2.bf16.msra.mxu0 0
    %6476 = vmatprep.subr.bf16.mxu0 0
    %6477 = vmatpush2.bf16.msra.mxu0 0
    %6478 = vmatprep.subr.bf16.mxu0 0
    %6479 = vmatpush2.bf16.msra.mxu0 0
    %6480 = vmatprep.subr.bf16.mxu0 0
    %6481 = vmatpush2.bf16.msra.mxu0 0
    %6482 = vmatprep.mubr.bf16.mxu0 0
    %6483 = vmatmul.mubr.bf16.gmra.mxu0 %v5710
    %v6484 = vpop.f32.mrf.mxu0
    %v6485 = vadd.f32 %v6432, %v6484
    %v6486 = vpop.f32.mrf.mxu0
    %v6487 = vadd.f32 %v6434, %v6486
    %v6488 = vpop.f32.mrf.mxu0
    %v6489 = vadd.f32 %v6436, %v6488
    %v6490 = vpop.f32.mrf.mxu0
    %v6491 = vadd.f32 %v6438, %v6490
    %6492 = vmatprep.mubr.bf16.mxu0 0
    %6493 = vmatmul.mubr.bf16.gmra.mxu0 %v5713
    %v6494 = vpop.f32.mrf.mxu0
    %v6495 = vadd.f32 %v6442, %v6494
    %v6496 = vpop.f32.mrf.mxu0
    %v6497 = vadd.f32 %v6444, %v6496
    %v6498 = vpop.f32.mrf.mxu0
    %v6499 = vadd.f32 %v6446, %v6498
    %v6500 = vpop.f32.mrf.mxu0
    %v6501 = vadd.f32 %v6448, %v6500
    %6502 = vdwg.mxu0
    %v6599 = vunpack.c.l.b16 %v5612
    %v6600 = vunpack.c.h.b16 %v5612
    %v6601 = vunpack.c.l.b16 %v5613
    %v6602 = vunpack.c.h.b16 %v5613
    %v6603 = vunpack.c.l.b16 %v5614
    %v6604 = vunpack.c.h.b16 %v5614
    %v6605 = vunpack.c.l.b16 %v5615
    %v6606 = vunpack.c.h.b16 %v5615
    %v6607 = vunpack.c.l.b16 %v5616
    %v6608 = vunpack.c.h.b16 %v5616
    %v6609 = vunpack.c.l.b16 %v5617
    %v6610 = vunpack.c.h.b16 %v5617
    %v6611 = vunpack.c.l.b16 %v5618
    %v6612 = vunpack.c.h.b16 %v5618
    %v6613 = vunpack.c.l.b16 %v5619
    %v6614 = vunpack.c.h.b16 %v5619
    %v6615 = vunpack.c.l.b16 %v5620
    %v6616 = vunpack.c.h.b16 %v5620
    %v6617 = vunpack.c.l.b16 %v5621
    %v6618 = vunpack.c.h.b16 %v5621
    %v6619 = vunpack.c.l.b16 %v5622
    %v6620 = vunpack.c.h.b16 %v5622
    %v6621 = vunpack.c.l.b16 %v5623
    %v6622 = vunpack.c.h.b16 %v5623
    %v6623 = vunpack.c.l.b16 %v5624
    %v6624 = vunpack.c.h.b16 %v5624
    %v6625 = vunpack.c.l.b16 %v5625
    %v6626 = vunpack.c.h.b16 %v5625
    %v6627 = vunpack.c.l.b16 %v5626
    %v6628 = vunpack.c.h.b16 %v5626
    %v6629 = vunpack.c.l.b16 %v5627
    %v6630 = vunpack.c.h.b16 %v5627
    %v6631 = vunpack.c.l.b16 %v5628
    %v6632 = vunpack.c.h.b16 %v5628
    %v6633 = vunpack.c.l.b16 %v5629
    %v6634 = vunpack.c.h.b16 %v5629
    %v6635 = vunpack.c.l.b16 %v5630
    %v6636 = vunpack.c.h.b16 %v5630
    %v6637 = vunpack.c.l.b16 %v5631
    %v6638 = vunpack.c.h.b16 %v5631
    %v6639 = vunpack.c.l.b16 %v5632
    %v6640 = vunpack.c.h.b16 %v5632
    %v6641 = vunpack.c.l.b16 %v5633
    %v6642 = vunpack.c.h.b16 %v5633
    %v6643 = vunpack.c.l.b16 %v5634
    %v6644 = vunpack.c.h.b16 %v5634
    %v6645 = vunpack.c.l.b16 %v5635
    %v6646 = vunpack.c.h.b16 %v5635
    %v6647 = vunpack.c.l.b16 %v5636
    %v6648 = vunpack.c.h.b16 %v5636
    %v6649 = vunpack.c.l.b16 %v5637
    %v6650 = vunpack.c.h.b16 %v5637
    %v6651 = vunpack.c.l.b16 %v5638
    %v6652 = vunpack.c.h.b16 %v5638
    %v6653 = vunpack.c.l.b16 %v5639
    %v6654 = vunpack.c.h.b16 %v5639
    %v6655 = vunpack.c.l.b16 %v5640
    %v6656 = vunpack.c.h.b16 %v5640
    %v6657 = vunpack.c.l.b16 %v5641
    %v6658 = vunpack.c.h.b16 %v5641
    %v6659 = vunpack.c.l.b16 %v5642
    %v6660 = vunpack.c.h.b16 %v5642
    %v6661 = vunpack.c.l.b16 %v5643
    %v6662 = vunpack.c.h.b16 %v5643
    %v6663 = vunpack.c.l.b16 %v5644
    %v6664 = vunpack.c.h.b16 %v5644
    %v6665 = vunpack.c.l.b16 %v5645
    %v6666 = vunpack.c.h.b16 %v5645
    %v6667 = vunpack.c.l.b16 %v5646
    %v6668 = vunpack.c.h.b16 %v5646
    %v6669 = vunpack.c.l.b16 %v5647
    %v6670 = vunpack.c.h.b16 %v5647
    %v6671 = vunpack.c.l.b16 %v5648
    %v6672 = vunpack.c.h.b16 %v5648
    %v6673 = vunpack.c.l.b16 %v5649
    %v6674 = vunpack.c.h.b16 %v5649
    %v6675 = vunpack.c.l.b16 %v5650
    %v6676 = vunpack.c.h.b16 %v5650
    %v6677 = vunpack.c.l.b16 %v5651
    %v6678 = vunpack.c.h.b16 %v5651
    %v6679 = vunpack.c.l.b16 %v5652
    %v6680 = vunpack.c.h.b16 %v5652
    %v6681 = vunpack.c.l.b16 %v5653
    %v6682 = vunpack.c.h.b16 %v5653
    %v6683 = vunpack.c.l.b16 %v5654
    %v6684 = vunpack.c.h.b16 %v5654
    %v6685 = vunpack.c.l.b16 %v5655
    %v6686 = vunpack.c.h.b16 %v5655
    %v6687 = vunpack.c.l.b16 %v5656
    %v6688 = vunpack.c.h.b16 %v5656
    %v6689 = vunpack.c.l.b16 %v5657
    %v6690 = vunpack.c.h.b16 %v5657
    %v6691 = vunpack.c.l.b16 %v5658
    %v6692 = vunpack.c.h.b16 %v5658
    %v6693 = vunpack.c.l.b16 %v5659
    %v6694 = vunpack.c.h.b16 %v5659
    %v6695 = vunpack.c.l.b16 %v5660
    %v6696 = vunpack.c.h.b16 %v5660
    %v6697 = vunpack.c.l.b16 %v5661
    %v6698 = vunpack.c.h.b16 %v5661
    %v6699 = vunpack.c.l.b16 %v5662
    %v6700 = vunpack.c.h.b16 %v5662
    %v6701 = vunpack.c.l.b16 %v5663
    %v6702 = vunpack.c.h.b16 %v5663
    %v6703 = vunpack.c.l.b16 %v5664
    %v6704 = vunpack.c.h.b16 %v5664
    %v6705 = vunpack.c.l.b16 %v5665
    %v6706 = vunpack.c.h.b16 %v5665
    %v6707 = vunpack.c.l.b16 %v5666
    %v6708 = vunpack.c.h.b16 %v5666
    %v6709 = vunpack.c.l.b16 %v5667
    %v6710 = vunpack.c.h.b16 %v5667
    %v6711 = vunpack.c.l.b16 %v5668
    %v6712 = vunpack.c.h.b16 %v5668
    %v6713 = vunpack.c.l.b16 %v5669
    %v6714 = vunpack.c.h.b16 %v5669
    %v6715 = vunpack.c.l.b16 %v5670
    %v6716 = vunpack.c.h.b16 %v5670
    %v6717 = vunpack.c.l.b16 %v5671
    %v6718 = vunpack.c.h.b16 %v5671
    %v6719 = vunpack.c.l.b16 %v5672
    %v6720 = vunpack.c.h.b16 %v5672
    %v6721 = vunpack.c.l.b16 %v5673
    %v6722 = vunpack.c.h.b16 %v5673
    %v6723 = vunpack.c.l.b16 %v5674
    %v6724 = vunpack.c.h.b16 %v5674
    %v6725 = vunpack.c.l.b16 %v5675
    %v6726 = vunpack.c.h.b16 %v5675
    %v6727 = vunpack.c.l.b16 %v5676
    %v6728 = vunpack.c.h.b16 %v5676
    %v6729 = vunpack.c.l.b16 %v5677
    %v6730 = vunpack.c.h.b16 %v5677
    %v6731 = vunpack.c.l.b16 %v5678
    %v6732 = vunpack.c.h.b16 %v5678
    %v6733 = vunpack.c.l.b16 %v5679
    %v6734 = vunpack.c.h.b16 %v5679
    %v6735 = vunpack.c.l.b16 %v5680
    %v6736 = vunpack.c.h.b16 %v5680
    %v6737 = vunpack.c.l.b16 %v5681
    %v6738 = vunpack.c.h.b16 %v5681
    %v6739 = vunpack.c.l.b16 %v5682
    %v6740 = vunpack.c.h.b16 %v5682
    %v6741 = vunpack.c.l.b16 %v5683
    %v6742 = vunpack.c.h.b16 %v5683
    %v6743 = vunpack.c.l.b16 %v5684
    %v6744 = vunpack.c.h.b16 %v5684
    %v6745 = vunpack.c.l.b16 %v5685
    %v6746 = vunpack.c.h.b16 %v5685
    %v6747 = vunpack.c.l.b16 %v5686
    %v6748 = vunpack.c.h.b16 %v5686
    %v6749 = vunpack.c.l.b16 %v5687
    %v6750 = vunpack.c.h.b16 %v5687
    %v6751 = vunpack.c.l.b16 %v5688
    %v6752 = vunpack.c.h.b16 %v5688
    %v6753 = vunpack.c.l.b16 %v5689
    %v6754 = vunpack.c.h.b16 %v5689
    %v6755 = vunpack.c.l.b16 %v5690
    %v6756 = vunpack.c.h.b16 %v5690
    %v6757 = vunpack.c.l.b16 %v5691
    %v6758 = vunpack.c.h.b16 %v5691
    %v6759 = vunpack.c.l.b16 %v5692
    %v6760 = vunpack.c.h.b16 %v5692
    %v6761 = vunpack.c.l.b16 %v5693
    %v6762 = vunpack.c.h.b16 %v5693
    %v6763 = vunpack.c.l.b16 %v5694
    %v6764 = vunpack.c.h.b16 %v5694
    %v6765 = vunpack.c.l.b16 %v5695
    %v6766 = vunpack.c.h.b16 %v5695
    %v6767 = vunpack.c.l.b16 %v5696
    %v6768 = vunpack.c.h.b16 %v5696
    %v6769 = vunpack.c.l.b16 %v5697
    %v6770 = vunpack.c.h.b16 %v5697
    %v6771 = vunpack.c.l.b16 %v5698
    %v6772 = vunpack.c.h.b16 %v5698
    %v6773 = vunpack.c.l.b16 %v5699
    %v6774 = vunpack.c.h.b16 %v5699
    %v6775 = vunpack.c.l.b16 %v5700
    %v6776 = vunpack.c.h.b16 %v5700
    %v6777 = vunpack.c.l.b16 %v5701
    %v6778 = vunpack.c.h.b16 %v5701
    %v6779 = vunpack.c.l.b16 %v5702
    %v6780 = vunpack.c.h.b16 %v5702
    %v6781 = vunpack.c.l.b16 %v5703
    %v6782 = vunpack.c.h.b16 %v5703
    %v6783 = vunpack.c.l.b16 %v5704
    %v6784 = vunpack.c.h.b16 %v5704
    %v6785 = vunpack.c.l.b16 %v5705
    %v6786 = vunpack.c.h.b16 %v5705
    %v6787 = vunpack.c.l.b16 %v5706
    %v6788 = vunpack.c.h.b16 %v5706
    %v6789 = vunpack.c.l.b16 %v5707
    %v6790 = vunpack.c.h.b16 %v5707
    %v6791 = vpack.c.b16 %v6603, %v6599
    %v6792 = vpack.c.b16 %v6604, %v6600
    %v6793 = vpack.c.b16 %v6605, %v6601
    %v6794 = vpack.c.b16 %v6606, %v6602
    %v6795 = vpack.c.b16 %v6611, %v6607
    %v6796 = vpack.c.b16 %v6612, %v6608
    %v6797 = vpack.c.b16 %v6613, %v6609
    %v6798 = vpack.c.b16 %v6614, %v6610
    %v6799 = vpack.c.b16 %v6619, %v6615
    %v6800 = vpack.c.b16 %v6620, %v6616
    %v6801 = vpack.c.b16 %v6621, %v6617
    %v6802 = vpack.c.b16 %v6622, %v6618
    %v6803 = vpack.c.b16 %v6627, %v6623
    %v6804 = vpack.c.b16 %v6628, %v6624
    %v6805 = vpack.c.b16 %v6629, %v6625
    %v6806 = vpack.c.b16 %v6630, %v6626
    %v6807 = vpack.c.b16 %v6635, %v6631
    %v6808 = vpack.c.b16 %v6636, %v6632
    %v6809 = vpack.c.b16 %v6637, %v6633
    %v6810 = vpack.c.b16 %v6638, %v6634
    %v6811 = vpack.c.b16 %v6643, %v6639
    %v6812 = vpack.c.b16 %v6644, %v6640
    %v6813 = vpack.c.b16 %v6645, %v6641
    %v6814 = vpack.c.b16 %v6646, %v6642
    %v6815 = vpack.c.b16 %v6651, %v6647
    %v6816 = vpack.c.b16 %v6652, %v6648
    %v6817 = vpack.c.b16 %v6653, %v6649
    %v6818 = vpack.c.b16 %v6654, %v6650
    %v6819 = vpack.c.b16 %v6659, %v6655
    %v6820 = vpack.c.b16 %v6660, %v6656
    %v6821 = vpack.c.b16 %v6661, %v6657
    %v6822 = vpack.c.b16 %v6662, %v6658
    %v6823 = vpack.c.b16 %v6667, %v6663
    %v6824 = vpack.c.b16 %v6668, %v6664
    %v6825 = vpack.c.b16 %v6669, %v6665
    %v6826 = vpack.c.b16 %v6670, %v6666
    %v6827 = vpack.c.b16 %v6675, %v6671
    %v6828 = vpack.c.b16 %v6676, %v6672
    %v6829 = vpack.c.b16 %v6677, %v6673
    %v6830 = vpack.c.b16 %v6678, %v6674
    %v6831 = vpack.c.b16 %v6683, %v6679
    %v6832 = vpack.c.b16 %v6684, %v6680
    %v6833 = vpack.c.b16 %v6685, %v6681
    %v6834 = vpack.c.b16 %v6686, %v6682
    %v6835 = vpack.c.b16 %v6691, %v6687
    %v6836 = vpack.c.b16 %v6692, %v6688
    %v6837 = vpack.c.b16 %v6693, %v6689
    %v6838 = vpack.c.b16 %v6694, %v6690
    %v6839 = vpack.c.b16 %v6699, %v6695
    %v6840 = vpack.c.b16 %v6700, %v6696
    %v6841 = vpack.c.b16 %v6701, %v6697
    %v6842 = vpack.c.b16 %v6702, %v6698
    %v6843 = vpack.c.b16 %v6707, %v6703
    %v6844 = vpack.c.b16 %v6708, %v6704
    %v6845 = vpack.c.b16 %v6709, %v6705
    %v6846 = vpack.c.b16 %v6710, %v6706
    %v6847 = vpack.c.b16 %v6715, %v6711
    %v6848 = vpack.c.b16 %v6716, %v6712
    %v6849 = vpack.c.b16 %v6717, %v6713
    %v6850 = vpack.c.b16 %v6718, %v6714
    %v6851 = vpack.c.b16 %v6723, %v6719
    %v6852 = vpack.c.b16 %v6724, %v6720
    %v6853 = vpack.c.b16 %v6725, %v6721
    %v6854 = vpack.c.b16 %v6726, %v6722
    %v6855 = vpack.c.b16 %v6731, %v6727
    %v6856 = vpack.c.b16 %v6732, %v6728
    %v6857 = vpack.c.b16 %v6733, %v6729
    %v6858 = vpack.c.b16 %v6734, %v6730
    %v6859 = vpack.c.b16 %v6739, %v6735
    %v6860 = vpack.c.b16 %v6740, %v6736
    %v6861 = vpack.c.b16 %v6741, %v6737
    %v6862 = vpack.c.b16 %v6742, %v6738
    %v6863 = vpack.c.b16 %v6747, %v6743
    %v6864 = vpack.c.b16 %v6748, %v6744
    %v6865 = vpack.c.b16 %v6749, %v6745
    %v6866 = vpack.c.b16 %v6750, %v6746
    %v6867 = vpack.c.b16 %v6755, %v6751
    %v6868 = vpack.c.b16 %v6756, %v6752
    %v6869 = vpack.c.b16 %v6757, %v6753
    %v6870 = vpack.c.b16 %v6758, %v6754
    %v6871 = vpack.c.b16 %v6763, %v6759
    %v6872 = vpack.c.b16 %v6764, %v6760
    %v6873 = vpack.c.b16 %v6765, %v6761
    %v6874 = vpack.c.b16 %v6766, %v6762
    %v6875 = vpack.c.b16 %v6771, %v6767
    %v6876 = vpack.c.b16 %v6772, %v6768
    %v6877 = vpack.c.b16 %v6773, %v6769
    %v6878 = vpack.c.b16 %v6774, %v6770
    %v6879 = vpack.c.b16 %v6779, %v6775
    %v6880 = vpack.c.b16 %v6780, %v6776
    %v6881 = vpack.c.b16 %v6781, %v6777
    %v6882 = vpack.c.b16 %v6782, %v6778
    %v6883 = vpack.c.b16 %v6787, %v6783
    %v6884 = vpack.c.b16 %v6788, %v6784
    %v6885 = vpack.c.b16 %v6789, %v6785
    %v6886 = vpack.c.b16 %v6790, %v6786
    %6983 = vmatprep.subr.bf16.mxu0 %v6820
    %6984 = vmatpush1.bf16.msra.mxu0 %v6819
    %6985 = vmatprep.subr.bf16.mxu0 %v6816
    %6986 = vmatpush1.bf16.msra.mxu0 %v6815
    %6987 = vmatprep.subr.bf16.mxu0 %v6812
    %6988 = vmatpush1.bf16.msra.mxu0 %v6811
    %6989 = vmatprep.subr.bf16.mxu0 %v6808
    %6990 = vmatpush1.bf16.msra.mxu0 %v6807
    %6991 = vmatprep.subr.bf16.mxu0 %v6804
    %6992 = vmatpush1.bf16.msra.mxu0 %v6803
    %6993 = vmatprep.subr.bf16.mxu0 %v6800
    %6994 = vmatpush1.bf16.msra.mxu0 %v6799
    %6995 = vmatprep.subr.bf16.mxu0 %v6796
    %6996 = vmatpush1.bf16.msra.mxu0 %v6795
    %6997 = vmatprep.subr.bf16.mxu0 %v6792
    %6998 = vmatpush1.bf16.msra.mxu0 %v6791
    %6999 = vmatprep.subr.bf16.mxu0 %v6852
    %7000 = vmatpush2.bf16.msra.mxu0 %v6851
    %7001 = vmatprep.subr.bf16.mxu0 %v6848
    %7002 = vmatpush2.bf16.msra.mxu0 %v6847
    %7003 = vmatprep.subr.bf16.mxu0 %v6844
    %7004 = vmatpush2.bf16.msra.mxu0 %v6843
    %7005 = vmatprep.subr.bf16.mxu0 %v6840
    %7006 = vmatpush2.bf16.msra.mxu0 %v6839
    %7007 = vmatprep.subr.bf16.mxu0 %v6836
    %7008 = vmatpush2.bf16.msra.mxu0 %v6835
    %7009 = vmatprep.subr.bf16.mxu0 %v6832
    %7010 = vmatpush2.bf16.msra.mxu0 %v6831
    %7011 = vmatprep.subr.bf16.mxu0 %v6828
    %7012 = vmatpush2.bf16.msra.mxu0 %v6827
    %7013 = vmatprep.subr.bf16.mxu0 %v6824
    %7014 = vmatpush2.bf16.msra.mxu0 %v6823
    %7015 = vmatprep.mubr.bf16.mxu0 %v5607
    %7016 = vmatmul.mubr.bf16.gmra.mxu0 %v5606
    %v7017 = vpop.f32.mrf.mxu0
    %v7018 = vadd.f32 %v6379, %v7017
    %v7019 = vpop.f32.mrf.mxu0
    %v7020 = vadd.f32 %v6381, %v7019
    %v7021 = vpop.f32.mrf.mxu0
    %v7022 = vadd.f32 %v6383, %v7021
    %v7023 = vpop.f32.mrf.mxu0
    %v7024 = vadd.f32 %v6385, %v7023
    %7025 = vmatprep.mubr.bf16.mxu0 %v5610
    %7026 = vmatmul.mubr.bf16.gmra.mxu0 %v5609
    %v7027 = vpop.f32.mrf.mxu0
    %v7028 = vadd.f32 %v6389, %v7027
    %v7029 = vpop.f32.mrf.mxu0
    %v7030 = vadd.f32 %v6391, %v7029
    %v7031 = vpop.f32.mrf.mxu0
    %v7032 = vadd.f32 %v6393, %v7031
    %v7033 = vpop.f32.mrf.mxu0
    %v7034 = vadd.f32 %v6395, %v7033
    %7035 = vdwg.mxu0
    %7036 = vmatprep.subr.bf16.mxu0 %v6884
    %7037 = vmatpush1.bf16.msra.mxu0 %v6883
    %7038 = vmatprep.subr.bf16.mxu0 %v6880
    %7039 = vmatpush1.bf16.msra.mxu0 %v6879
    %7040 = vmatprep.subr.bf16.mxu0 %v6876
    %7041 = vmatpush1.bf16.msra.mxu0 %v6875
    %7042 = vmatprep.subr.bf16.mxu0 %v6872
    %7043 = vmatpush1.bf16.msra.mxu0 %v6871
    %7044 = vmatprep.subr.bf16.mxu0 %v6868
    %7045 = vmatpush1.bf16.msra.mxu0 %v6867
    %7046 = vmatprep.subr.bf16.mxu0 %v6864
    %7047 = vmatpush1.bf16.msra.mxu0 %v6863
    %7048 = vmatprep.subr.bf16.mxu0 %v6860
    %7049 = vmatpush1.bf16.msra.mxu0 %v6859
    %7050 = vmatprep.subr.bf16.mxu0 %v6856
    %7051 = vmatpush1.bf16.msra.mxu0 %v6855
    %7052 = vmatprep.subr.bf16.mxu0 0
    %7053 = vmatpush2.bf16.msra.mxu0 0
    %7054 = vmatprep.subr.bf16.mxu0 0
    %7055 = vmatpush2.bf16.msra.mxu0 0
    %7056 = vmatprep.subr.bf16.mxu0 0
    %7057 = vmatpush2.bf16.msra.mxu0 0
    %7058 = vmatprep.subr.bf16.mxu0 0
    %7059 = vmatpush2.bf16.msra.mxu0 0
    %7060 = vmatprep.subr.bf16.mxu0 0
    %7061 = vmatpush2.bf16.msra.mxu0 0
    %7062 = vmatprep.subr.bf16.mxu0 0
    %7063 = vmatpush2.bf16.msra.mxu0 0
    %7064 = vmatprep.subr.bf16.mxu0 0
    %7065 = vmatpush2.bf16.msra.mxu0 0
    %7066 = vmatprep.subr.bf16.mxu0 0
    %7067 = vmatpush2.bf16.msra.mxu0 0
    %7068 = vmatprep.mubr.bf16.mxu0 0
    %7069 = vmatmul.mubr.bf16.gmra.mxu0 %v5608
    %v7070 = vpop.f32.mrf.mxu0
    %v7071 = vadd.f32 %v7018, %v7070
    %v7072 = vpop.f32.mrf.mxu0
    %v7073 = vadd.f32 %v7020, %v7072
    %v7074 = vpop.f32.mrf.mxu0
    %v7075 = vadd.f32 %v7022, %v7074
    %v7076 = vpop.f32.mrf.mxu0
    %v7077 = vadd.f32 %v7024, %v7076
    %7078 = vmatprep.mubr.bf16.mxu0 0
    %7079 = vmatmul.mubr.bf16.gmra.mxu0 %v5611
    %v7080 = vpop.f32.mrf.mxu0
    %v7081 = vadd.f32 %v7028, %v7080
    %v7082 = vpop.f32.mrf.mxu0
    %v7083 = vadd.f32 %v7030, %v7082
    %v7084 = vpop.f32.mrf.mxu0
    %v7085 = vadd.f32 %v7032, %v7084
    %v7086 = vpop.f32.mrf.mxu0
    %v7087 = vadd.f32 %v7034, %v7086
    %7088 = vdwg.mxu0
    %7089 = vmatprep.subr.bf16.mxu0 %v6822
    %7090 = vmatpush1.bf16.msra.mxu0 %v6821
    %7091 = vmatprep.subr.bf16.mxu0 %v6818
    %7092 = vmatpush1.bf16.msra.mxu0 %v6817
    %7093 = vmatprep.subr.bf16.mxu0 %v6814
    %7094 = vmatpush1.bf16.msra.mxu0 %v6813
    %7095 = vmatprep.subr.bf16.mxu0 %v6810
    %7096 = vmatpush1.bf16.msra.mxu0 %v6809
    %7097 = vmatprep.subr.bf16.mxu0 %v6806
    %7098 = vmatpush1.bf16.msra.mxu0 %v6805
    %7099 = vmatprep.subr.bf16.mxu0 %v6802
    %7100 = vmatpush1.bf16.msra.mxu0 %v6801
    %7101 = vmatprep.subr.bf16.mxu0 %v6798
    %7102 = vmatpush1.bf16.msra.mxu0 %v6797
    %7103 = vmatprep.subr.bf16.mxu0 %v6794
    %7104 = vmatpush1.bf16.msra.mxu0 %v6793
    %7105 = vmatprep.subr.bf16.mxu0 %v6854
    %7106 = vmatpush2.bf16.msra.mxu0 %v6853
    %7107 = vmatprep.subr.bf16.mxu0 %v6850
    %7108 = vmatpush2.bf16.msra.mxu0 %v6849
    %7109 = vmatprep.subr.bf16.mxu0 %v6846
    %7110 = vmatpush2.bf16.msra.mxu0 %v6845
    %7111 = vmatprep.subr.bf16.mxu0 %v6842
    %7112 = vmatpush2.bf16.msra.mxu0 %v6841
    %7113 = vmatprep.subr.bf16.mxu0 %v6838
    %7114 = vmatpush2.bf16.msra.mxu0 %v6837
    %7115 = vmatprep.subr.bf16.mxu0 %v6834
    %7116 = vmatpush2.bf16.msra.mxu0 %v6833
    %7117 = vmatprep.subr.bf16.mxu0 %v6830
    %7118 = vmatpush2.bf16.msra.mxu0 %v6829
    %7119 = vmatprep.subr.bf16.mxu0 %v6826
    %7120 = vmatpush2.bf16.msra.mxu0 %v6825
    %7121 = vmatprep.mubr.bf16.mxu0 %v5607
    %7122 = vmatmul.mubr.bf16.gmra.mxu0 %v5606
    %v7123 = vpop.f32.mrf.mxu0
    %v7124 = vadd.f32 %v6485, %v7123
    %v7125 = vpop.f32.mrf.mxu0
    %v7126 = vadd.f32 %v6487, %v7125
    %v7127 = vpop.f32.mrf.mxu0
    %v7128 = vadd.f32 %v6489, %v7127
    %v7129 = vpop.f32.mrf.mxu0
    %v7130 = vadd.f32 %v6491, %v7129
    %7131 = vmatprep.mubr.bf16.mxu0 %v5610
    %7132 = vmatmul.mubr.bf16.gmra.mxu0 %v5609
    %v7133 = vpop.f32.mrf.mxu0
    %v7134 = vadd.f32 %v6495, %v7133
    %v7135 = vpop.f32.mrf.mxu0
    %v7136 = vadd.f32 %v6497, %v7135
    %v7137 = vpop.f32.mrf.mxu0
    %v7138 = vadd.f32 %v6499, %v7137
    %v7139 = vpop.f32.mrf.mxu0
    %v7140 = vadd.f32 %v6501, %v7139
    %7141 = vdwg.mxu0
    %7142 = vmatprep.subr.bf16.mxu0 %v6886
    %7143 = vmatpush1.bf16.msra.mxu0 %v6885
    %7144 = vmatprep.subr.bf16.mxu0 %v6882
    %7145 = vmatpush1.bf16.msra.mxu0 %v6881
    %7146 = vmatprep.subr.bf16.mxu0 %v6878
    %7147 = vmatpush1.bf16.msra.mxu0 %v6877
    %7148 = vmatprep.subr.bf16.mxu0 %v6874
    %7149 = vmatpush1.bf16.msra.mxu0 %v6873
    %7150 = vmatprep.subr.bf16.mxu0 %v6870
    %7151 = vmatpush1.bf16.msra.mxu0 %v6869
    %7152 = vmatprep.subr.bf16.mxu0 %v6866
    %7153 = vmatpush1.bf16.msra.mxu0 %v6865
    %7154 = vmatprep.subr.bf16.mxu0 %v6862
    %7155 = vmatpush1.bf16.msra.mxu0 %v6861
    %7156 = vmatprep.subr.bf16.mxu0 %v6858
    %7157 = vmatpush1.bf16.msra.mxu0 %v6857
    %7158 = vmatprep.subr.bf16.mxu0 0
    %7159 = vmatpush2.bf16.msra.mxu0 0
    %7160 = vmatprep.subr.bf16.mxu0 0
    %7161 = vmatpush2.bf16.msra.mxu0 0
    %7162 = vmatprep.subr.bf16.mxu0 0
    %7163 = vmatpush2.bf16.msra.mxu0 0
    %7164 = vmatprep.subr.bf16.mxu0 0
    %7165 = vmatpush2.bf16.msra.mxu0 0
    %7166 = vmatprep.subr.bf16.mxu0 0
    %7167 = vmatpush2.bf16.msra.mxu0 0
    %7168 = vmatprep.subr.bf16.mxu0 0
    %7169 = vmatpush2.bf16.msra.mxu0 0
    %7170 = vmatprep.subr.bf16.mxu0 0
    %7171 = vmatpush2.bf16.msra.mxu0 0
    %7172 = vmatprep.subr.bf16.mxu0 0
    %7173 = vmatpush2.bf16.msra.mxu0 0
    %7174 = vmatprep.mubr.bf16.mxu0 0
    %7175 = vmatmul.mubr.bf16.gmra.mxu0 %v5608
    %v7176 = vpop.f32.mrf.mxu0
    %v7177 = vadd.f32 %v7124, %v7176
    %v7178 = vpop.f32.mrf.mxu0
    %v7179 = vadd.f32 %v7126, %v7178
    %v7180 = vpop.f32.mrf.mxu0
    %v7181 = vadd.f32 %v7128, %v7180
    %v7182 = vpop.f32.mrf.mxu0
    %v7183 = vadd.f32 %v7130, %v7182
    %7184 = vmatprep.mubr.bf16.mxu0 0
    %7185 = vmatmul.mubr.bf16.gmra.mxu0 %v5611
    %v7186 = vpop.f32.mrf.mxu0
    %v7187 = vadd.f32 %v7134, %v7186
    %v7188 = vpop.f32.mrf.mxu0
    %v7189 = vadd.f32 %v7136, %v7188
    %v7190 = vpop.f32.mrf.mxu0
    %v7191 = vadd.f32 %v7138, %v7190
    %v7192 = vpop.f32.mrf.mxu0
    %v7193 = vadd.f32 %v7140, %v7192
    %7194 = vdwg.mxu0
    %v7195 = vpack.c.bf16 %v3208, %v3205
    %v7196 = vpack.c.bf16 %v3209, %v3206
    %v7197 = vpack.c.bf16 %v3210, %v3207
    %v7198 = vpack.c.bf16 %v3214, %v3211
    %v7199 = vpack.c.bf16 %v3215, %v3212
    %v7200 = vpack.c.bf16 %v3216, %v3213
    %s7201 = scalar_lea.vmem [#allocation7], 1536
    %v7202 = vld [vmem:[%s7201] sm:$0xff]
    %v7203 = vld [vmem:[%s7201 + $0x8] sm:$0xff]
    %v7204 = vld [vmem:[%s7201 + $0x10] sm:$0xff]
    %v7205 = vld [vmem:[%s7201 + $0x18] sm:$0xff]
    %v7206 = vld [vmem:[%s7201 + $0x20] sm:$0xff]
    %v7207 = vld [vmem:[%s7201 + $0x28] sm:$0xff]
    %v7208 = vld [vmem:[%s7201 + $0x30] sm:$0xff]
    %v7209 = vld [vmem:[%s7201 + $0x38] sm:$0xff]
    %v7210 = vld [vmem:[%s7201 + $0x40] sm:$0xff]
    %v7211 = vld [vmem:[%s7201 + $0x48] sm:$0xff]
    %v7212 = vld [vmem:[%s7201 + $0x50] sm:$0xff]
    %v7213 = vld [vmem:[%s7201 + $0x58] sm:$0xff]
    %v7214 = vld [vmem:[%s7201 + $0x60] sm:$0xff]
    %v7215 = vld [vmem:[%s7201 + $0x68] sm:$0xff]
    %v7216 = vld [vmem:[%s7201 + $0x70] sm:$0xff]
    %v7217 = vld [vmem:[%s7201 + $0x78] sm:$0xff]
    %v7218 = vld [vmem:[%s7201 + $0x80] sm:$0xff]
    %v7219 = vld [vmem:[%s7201 + $0x88] sm:$0xff]
    %v7220 = vld [vmem:[%s7201 + $0x90] sm:$0xff]
    %v7221 = vld [vmem:[%s7201 + $0x98] sm:$0xff]
    %v7222 = vld [vmem:[%s7201 + $0xa0] sm:$0xff]
    %v7223 = vld [vmem:[%s7201 + $0xa8] sm:$0xff]
    %v7224 = vld [vmem:[%s7201 + $0xb0] sm:$0xff]
    %v7225 = vld [vmem:[%s7201 + $0xb8] sm:$0xff]
    %v7226 = vld [vmem:[%s7201 + $0xc0] sm:$0xff]
    %v7227 = vld [vmem:[%s7201 + $0xc8] sm:$0xff]
    %v7228 = vld [vmem:[%s7201 + $0xd0] sm:$0xff]
    %v7229 = vld [vmem:[%s7201 + $0xd8] sm:$0xff]
    %v7230 = vld [vmem:[%s7201 + $0xe0] sm:$0xff]
    %v7231 = vld [vmem:[%s7201 + $0xe8] sm:$0xff]
    %v7232 = vld [vmem:[%s7201 + $0xf0] sm:$0xff]
    %v7233 = vld [vmem:[%s7201 + $0xf8] sm:$0xff]
    %v7234 = vld [vmem:[%s7201 + $0x100] sm:$0xff]
    %v7235 = vld [vmem:[%s7201 + $0x108] sm:$0xff]
    %v7236 = vld [vmem:[%s7201 + $0x110] sm:$0xff]
    %v7237 = vld [vmem:[%s7201 + $0x118] sm:$0xff]
    %v7238 = vld [vmem:[%s7201 + $0x120] sm:$0xff]
    %v7239 = vld [vmem:[%s7201 + $0x128] sm:$0xff]
    %v7240 = vld [vmem:[%s7201 + $0x130] sm:$0xff]
    %v7241 = vld [vmem:[%s7201 + $0x138] sm:$0xff]
    %v7242 = vld [vmem:[%s7201 + $0x140] sm:$0xff]
    %v7243 = vld [vmem:[%s7201 + $0x148] sm:$0xff]
    %v7244 = vld [vmem:[%s7201 + $0x150] sm:$0xff]
    %v7245 = vld [vmem:[%s7201 + $0x158] sm:$0xff]
    %v7246 = vld [vmem:[%s7201 + $0x160] sm:$0xff]
    %v7247 = vld [vmem:[%s7201 + $0x168] sm:$0xff]
    %v7248 = vld [vmem:[%s7201 + $0x170] sm:$0xff]
    %v7249 = vld [vmem:[%s7201 + $0x178] sm:$0xff]
    %v7250 = vld [vmem:[%s7201 + $0x180] sm:$0xff]
    %v7251 = vld [vmem:[%s7201 + $0x188] sm:$0xff]
    %v7252 = vld [vmem:[%s7201 + $0x190] sm:$0xff]
    %v7253 = vld [vmem:[%s7201 + $0x198] sm:$0xff]
    %v7254 = vld [vmem:[%s7201 + $0x1a0] sm:$0xff]
    %v7255 = vld [vmem:[%s7201 + $0x1a8] sm:$0xff]
    %v7256 = vld [vmem:[%s7201 + $0x1b0] sm:$0xff]
    %v7257 = vld [vmem:[%s7201 + $0x1b8] sm:$0xff]
    %v7258 = vld [vmem:[%s7201 + $0x1c0] sm:$0xff]
    %v7259 = vld [vmem:[%s7201 + $0x1c8] sm:$0xff]
    %v7260 = vld [vmem:[%s7201 + $0x1d0] sm:$0xff]
    %v7261 = vld [vmem:[%s7201 + $0x1d8] sm:$0xff]
    %v7262 = vld [vmem:[%s7201 + $0x1e0] sm:$0xff]
    %v7263 = vld [vmem:[%s7201 + $0x1e8] sm:$0xff]
    %v7264 = vld [vmem:[%s7201 + $0x1f0] sm:$0xff]
    %v7265 = vld [vmem:[%s7201 + $0x1f8] sm:$0xff]
    %v7266 = vld [vmem:[%s7201 + $0x200] sm:$0xff]
    %v7267 = vld [vmem:[%s7201 + $0x208] sm:$0xff]
    %v7268 = vld [vmem:[%s7201 + $0x210] sm:$0xff]
    %v7269 = vld [vmem:[%s7201 + $0x218] sm:$0xff]
    %v7270 = vld [vmem:[%s7201 + $0x220] sm:$0xff]
    %v7271 = vld [vmem:[%s7201 + $0x228] sm:$0xff]
    %v7272 = vld [vmem:[%s7201 + $0x230] sm:$0xff]
    %v7273 = vld [vmem:[%s7201 + $0x238] sm:$0xff]
    %v7274 = vld [vmem:[%s7201 + $0x240] sm:$0xff]
    %v7275 = vld [vmem:[%s7201 + $0x248] sm:$0xff]
    %v7276 = vld [vmem:[%s7201 + $0x250] sm:$0xff]
    %v7277 = vld [vmem:[%s7201 + $0x258] sm:$0xff]
    %v7278 = vld [vmem:[%s7201 + $0x260] sm:$0xff]
    %v7279 = vld [vmem:[%s7201 + $0x268] sm:$0xff]
    %v7280 = vld [vmem:[%s7201 + $0x270] sm:$0xff]
    %v7281 = vld [vmem:[%s7201 + $0x278] sm:$0xff]
    %v7282 = vld [vmem:[%s7201 + $0x280] sm:$0xff]
    %v7283 = vld [vmem:[%s7201 + $0x288] sm:$0xff]
    %v7284 = vld [vmem:[%s7201 + $0x290] sm:$0xff]
    %v7285 = vld [vmem:[%s7201 + $0x298] sm:$0xff]
    %v7286 = vld [vmem:[%s7201 + $0x2a0] sm:$0xff]
    %v7287 = vld [vmem:[%s7201 + $0x2a8] sm:$0xff]
    %v7288 = vld [vmem:[%s7201 + $0x2b0] sm:$0xff]
    %v7289 = vld [vmem:[%s7201 + $0x2b8] sm:$0xff]
    %v7290 = vld [vmem:[%s7201 + $0x2c0] sm:$0xff]
    %v7291 = vld [vmem:[%s7201 + $0x2c8] sm:$0xff]
    %v7292 = vld [vmem:[%s7201 + $0x2d0] sm:$0xff]
    %v7293 = vld [vmem:[%s7201 + $0x2d8] sm:$0xff]
    %v7294 = vld [vmem:[%s7201 + $0x2e0] sm:$0xff]
    %v7295 = vld [vmem:[%s7201 + $0x2e8] sm:$0xff]
    %v7296 = vld [vmem:[%s7201 + $0x2f0] sm:$0xff]
    %v7297 = vld [vmem:[%s7201 + $0x2f8] sm:$0xff]
    %v7394 = vunpack.c.l.b16 %v7202
    %v7395 = vunpack.c.h.b16 %v7202
    %v7396 = vunpack.c.l.b16 %v7203
    %v7397 = vunpack.c.h.b16 %v7203
    %v7398 = vunpack.c.l.b16 %v7204
    %v7399 = vunpack.c.h.b16 %v7204
    %v7400 = vunpack.c.l.b16 %v7205
    %v7401 = vunpack.c.h.b16 %v7205
    %v7402 = vunpack.c.l.b16 %v7206
    %v7403 = vunpack.c.h.b16 %v7206
    %v7404 = vunpack.c.l.b16 %v7207
    %v7405 = vunpack.c.h.b16 %v7207
    %v7406 = vunpack.c.l.b16 %v7208
    %v7407 = vunpack.c.h.b16 %v7208
    %v7408 = vunpack.c.l.b16 %v7209
    %v7409 = vunpack.c.h.b16 %v7209
    %v7410 = vunpack.c.l.b16 %v7210
    %v7411 = vunpack.c.h.b16 %v7210
    %v7412 = vunpack.c.l.b16 %v7211
    %v7413 = vunpack.c.h.b16 %v7211
    %v7414 = vunpack.c.l.b16 %v7212
    %v7415 = vunpack.c.h.b16 %v7212
    %v7416 = vunpack.c.l.b16 %v7213
    %v7417 = vunpack.c.h.b16 %v7213
    %v7418 = vunpack.c.l.b16 %v7214
    %v7419 = vunpack.c.h.b16 %v7214
    %v7420 = vunpack.c.l.b16 %v7215
    %v7421 = vunpack.c.h.b16 %v7215
    %v7422 = vunpack.c.l.b16 %v7216
    %v7423 = vunpack.c.h.b16 %v7216
    %v7424 = vunpack.c.l.b16 %v7217
    %v7425 = vunpack.c.h.b16 %v7217
    %v7426 = vunpack.c.l.b16 %v7218
    %v7427 = vunpack.c.h.b16 %v7218
    %v7428 = vunpack.c.l.b16 %v7219
    %v7429 = vunpack.c.h.b16 %v7219
    %v7430 = vunpack.c.l.b16 %v7220
    %v7431 = vunpack.c.h.b16 %v7220
    %v7432 = vunpack.c.l.b16 %v7221
    %v7433 = vunpack.c.h.b16 %v7221
    %v7434 = vunpack.c.l.b16 %v7222
    %v7435 = vunpack.c.h.b16 %v7222
    %v7436 = vunpack.c.l.b16 %v7223
    %v7437 = vunpack.c.h.b16 %v7223
    %v7438 = vunpack.c.l.b16 %v7224
    %v7439 = vunpack.c.h.b16 %v7224
    %v7440 = vunpack.c.l.b16 %v7225
    %v7441 = vunpack.c.h.b16 %v7225
    %v7442 = vunpack.c.l.b16 %v7226
    %v7443 = vunpack.c.h.b16 %v7226
    %v7444 = vunpack.c.l.b16 %v7227
    %v7445 = vunpack.c.h.b16 %v7227
    %v7446 = vunpack.c.l.b16 %v7228
    %v7447 = vunpack.c.h.b16 %v7228
    %v7448 = vunpack.c.l.b16 %v7229
    %v7449 = vunpack.c.h.b16 %v7229
    %v7450 = vunpack.c.l.b16 %v7230
    %v7451 = vunpack.c.h.b16 %v7230
    %v7452 = vunpack.c.l.b16 %v7231
    %v7453 = vunpack.c.h.b16 %v7231
    %v7454 = vunpack.c.l.b16 %v7232
    %v7455 = vunpack.c.h.b16 %v7232
    %v7456 = vunpack.c.l.b16 %v7233
    %v7457 = vunpack.c.h.b16 %v7233
    %v7458 = vunpack.c.l.b16 %v7234
    %v7459 = vunpack.c.h.b16 %v7234
    %v7460 = vunpack.c.l.b16 %v7235
    %v7461 = vunpack.c.h.b16 %v7235
    %v7462 = vunpack.c.l.b16 %v7236
    %v7463 = vunpack.c.h.b16 %v7236
    %v7464 = vunpack.c.l.b16 %v7237
    %v7465 = vunpack.c.h.b16 %v7237
    %v7466 = vunpack.c.l.b16 %v7238
    %v7467 = vunpack.c.h.b16 %v7238
    %v7468 = vunpack.c.l.b16 %v7239
    %v7469 = vunpack.c.h.b16 %v7239
    %v7470 = vunpack.c.l.b16 %v7240
    %v7471 = vunpack.c.h.b16 %v7240
    %v7472 = vunpack.c.l.b16 %v7241
    %v7473 = vunpack.c.h.b16 %v7241
    %v7474 = vunpack.c.l.b16 %v7242
    %v7475 = vunpack.c.h.b16 %v7242
    %v7476 = vunpack.c.l.b16 %v7243
    %v7477 = vunpack.c.h.b16 %v7243
    %v7478 = vunpack.c.l.b16 %v7244
    %v7479 = vunpack.c.h.b16 %v7244
    %v7480 = vunpack.c.l.b16 %v7245
    %v7481 = vunpack.c.h.b16 %v7245
    %v7482 = vunpack.c.l.b16 %v7246
    %v7483 = vunpack.c.h.b16 %v7246
    %v7484 = vunpack.c.l.b16 %v7247
    %v7485 = vunpack.c.h.b16 %v7247
    %v7486 = vunpack.c.l.b16 %v7248
    %v7487 = vunpack.c.h.b16 %v7248
    %v7488 = vunpack.c.l.b16 %v7249
    %v7489 = vunpack.c.h.b16 %v7249
    %v7490 = vunpack.c.l.b16 %v7250
    %v7491 = vunpack.c.h.b16 %v7250
    %v7492 = vunpack.c.l.b16 %v7251
    %v7493 = vunpack.c.h.b16 %v7251
    %v7494 = vunpack.c.l.b16 %v7252
    %v7495 = vunpack.c.h.b16 %v7252
    %v7496 = vunpack.c.l.b16 %v7253
    %v7497 = vunpack.c.h.b16 %v7253
    %v7498 = vunpack.c.l.b16 %v7254
    %v7499 = vunpack.c.h.b16 %v7254
    %v7500 = vunpack.c.l.b16 %v7255
    %v7501 = vunpack.c.h.b16 %v7255
    %v7502 = vunpack.c.l.b16 %v7256
    %v7503 = vunpack.c.h.b16 %v7256
    %v7504 = vunpack.c.l.b16 %v7257
    %v7505 = vunpack.c.h.b16 %v7257
    %v7506 = vunpack.c.l.b16 %v7258
    %v7507 = vunpack.c.h.b16 %v7258
    %v7508 = vunpack.c.l.b16 %v7259
    %v7509 = vunpack.c.h.b16 %v7259
    %v7510 = vunpack.c.l.b16 %v7260
    %v7511 = vunpack.c.h.b16 %v7260
    %v7512 = vunpack.c.l.b16 %v7261
    %v7513 = vunpack.c.h.b16 %v7261
    %v7514 = vunpack.c.l.b16 %v7262
    %v7515 = vunpack.c.h.b16 %v7262
    %v7516 = vunpack.c.l.b16 %v7263
    %v7517 = vunpack.c.h.b16 %v7263
    %v7518 = vunpack.c.l.b16 %v7264
    %v7519 = vunpack.c.h.b16 %v7264
    %v7520 = vunpack.c.l.b16 %v7265
    %v7521 = vunpack.c.h.b16 %v7265
    %v7522 = vunpack.c.l.b16 %v7266
    %v7523 = vunpack.c.h.b16 %v7266
    %v7524 = vunpack.c.l.b16 %v7267
    %v7525 = vunpack.c.h.b16 %v7267
    %v7526 = vunpack.c.l.b16 %v7268
    %v7527 = vunpack.c.h.b16 %v7268
    %v7528 = vunpack.c.l.b16 %v7269
    %v7529 = vunpack.c.h.b16 %v7269
    %v7530 = vunpack.c.l.b16 %v7270
    %v7531 = vunpack.c.h.b16 %v7270
    %v7532 = vunpack.c.l.b16 %v7271
    %v7533 = vunpack.c.h.b16 %v7271
    %v7534 = vunpack.c.l.b16 %v7272
    %v7535 = vunpack.c.h.b16 %v7272
    %v7536 = vunpack.c.l.b16 %v7273
    %v7537 = vunpack.c.h.b16 %v7273
    %v7538 = vunpack.c.l.b16 %v7274
    %v7539 = vunpack.c.h.b16 %v7274
    %v7540 = vunpack.c.l.b16 %v7275
    %v7541 = vunpack.c.h.b16 %v7275
    %v7542 = vunpack.c.l.b16 %v7276
    %v7543 = vunpack.c.h.b16 %v7276
    %v7544 = vunpack.c.l.b16 %v7277
    %v7545 = vunpack.c.h.b16 %v7277
    %v7546 = vunpack.c.l.b16 %v7278
    %v7547 = vunpack.c.h.b16 %v7278
    %v7548 = vunpack.c.l.b16 %v7279
    %v7549 = vunpack.c.h.b16 %v7279
    %v7550 = vunpack.c.l.b16 %v7280
    %v7551 = vunpack.c.h.b16 %v7280
    %v7552 = vunpack.c.l.b16 %v7281
    %v7553 = vunpack.c.h.b16 %v7281
    %v7554 = vunpack.c.l.b16 %v7282
    %v7555 = vunpack.c.h.b16 %v7282
    %v7556 = vunpack.c.l.b16 %v7283
    %v7557 = vunpack.c.h.b16 %v7283
    %v7558 = vunpack.c.l.b16 %v7284
    %v7559 = vunpack.c.h.b16 %v7284
    %v7560 = vunpack.c.l.b16 %v7285
    %v7561 = vunpack.c.h.b16 %v7285
    %v7562 = vunpack.c.l.b16 %v7286
    %v7563 = vunpack.c.h.b16 %v7286
    %v7564 = vunpack.c.l.b16 %v7287
    %v7565 = vunpack.c.h.b16 %v7287
    %v7566 = vunpack.c.l.b16 %v7288
    %v7567 = vunpack.c.h.b16 %v7288
    %v7568 = vunpack.c.l.b16 %v7289
    %v7569 = vunpack.c.h.b16 %v7289
    %v7570 = vunpack.c.l.b16 %v7290
    %v7571 = vunpack.c.h.b16 %v7290
    %v7572 = vunpack.c.l.b16 %v7291
    %v7573 = vunpack.c.h.b16 %v7291
    %v7574 = vunpack.c.l.b16 %v7292
    %v7575 = vunpack.c.h.b16 %v7292
    %v7576 = vunpack.c.l.b16 %v7293
    %v7577 = vunpack.c.h.b16 %v7293
    %v7578 = vunpack.c.l.b16 %v7294
    %v7579 = vunpack.c.h.b16 %v7294
    %v7580 = vunpack.c.l.b16 %v7295
    %v7581 = vunpack.c.h.b16 %v7295
    %v7582 = vunpack.c.l.b16 %v7296
    %v7583 = vunpack.c.h.b16 %v7296
    %v7584 = vunpack.c.l.b16 %v7297
    %v7585 = vunpack.c.h.b16 %v7297
    %v7586 = vpack.c.b16 %v7398, %v7394
    %v7587 = vpack.c.b16 %v7399, %v7395
    %v7588 = vpack.c.b16 %v7400, %v7396
    %v7589 = vpack.c.b16 %v7401, %v7397
    %v7590 = vpack.c.b16 %v7406, %v7402
    %v7591 = vpack.c.b16 %v7407, %v7403
    %v7592 = vpack.c.b16 %v7408, %v7404
    %v7593 = vpack.c.b16 %v7409, %v7405
    %v7594 = vpack.c.b16 %v7414, %v7410
    %v7595 = vpack.c.b16 %v7415, %v7411
    %v7596 = vpack.c.b16 %v7416, %v7412
    %v7597 = vpack.c.b16 %v7417, %v7413
    %v7598 = vpack.c.b16 %v7422, %v7418
    %v7599 = vpack.c.b16 %v7423, %v7419
    %v7600 = vpack.c.b16 %v7424, %v7420
    %v7601 = vpack.c.b16 %v7425, %v7421
    %v7602 = vpack.c.b16 %v7430, %v7426
    %v7603 = vpack.c.b16 %v7431, %v7427
    %v7604 = vpack.c.b16 %v7432, %v7428
    %v7605 = vpack.c.b16 %v7433, %v7429
    %v7606 = vpack.c.b16 %v7438, %v7434
    %v7607 = vpack.c.b16 %v7439, %v7435
    %v7608 = vpack.c.b16 %v7440, %v7436
    %v7609 = vpack.c.b16 %v7441, %v7437
    %v7610 = vpack.c.b16 %v7446, %v7442
    %v7611 = vpack.c.b16 %v7447, %v7443
    %v7612 = vpack.c.b16 %v7448, %v7444
    %v7613 = vpack.c.b16 %v7449, %v7445
    %v7614 = vpack.c.b16 %v7454, %v7450
    %v7615 = vpack.c.b16 %v7455, %v7451
    %v7616 = vpack.c.b16 %v7456, %v7452
    %v7617 = vpack.c.b16 %v7457, %v7453
    %v7618 = vpack.c.b16 %v7462, %v7458
    %v7619 = vpack.c.b16 %v7463, %v7459
    %v7620 = vpack.c.b16 %v7464, %v7460
    %v7621 = vpack.c.b16 %v7465, %v7461
    %v7622 = vpack.c.b16 %v7470, %v7466
    %v7623 = vpack.c.b16 %v7471, %v7467
    %v7624 = vpack.c.b16 %v7472, %v7468
    %v7625 = vpack.c.b16 %v7473, %v7469
    %v7626 = vpack.c.b16 %v7478, %v7474
    %v7627 = vpack.c.b16 %v7479, %v7475
    %v7628 = vpack.c.b16 %v7480, %v7476
    %v7629 = vpack.c.b16 %v7481, %v7477
    %v7630 = vpack.c.b16 %v7486, %v7482
    %v7631 = vpack.c.b16 %v7487, %v7483
    %v7632 = vpack.c.b16 %v7488, %v7484
    %v7633 = vpack.c.b16 %v7489, %v7485
    %v7634 = vpack.c.b16 %v7494, %v7490
    %v7635 = vpack.c.b16 %v7495, %v7491
    %v7636 = vpack.c.b16 %v7496, %v7492
    %v7637 = vpack.c.b16 %v7497, %v7493
    %v7638 = vpack.c.b16 %v7502, %v7498
    %v7639 = vpack.c.b16 %v7503, %v7499
    %v7640 = vpack.c.b16 %v7504, %v7500
    %v7641 = vpack.c.b16 %v7505, %v7501
    %v7642 = vpack.c.b16 %v7510, %v7506
    %v7643 = vpack.c.b16 %v7511, %v7507
    %v7644 = vpack.c.b16 %v7512, %v7508
    %v7645 = vpack.c.b16 %v7513, %v7509
    %v7646 = vpack.c.b16 %v7518, %v7514
    %v7647 = vpack.c.b16 %v7519, %v7515
    %v7648 = vpack.c.b16 %v7520, %v7516
    %v7649 = vpack.c.b16 %v7521, %v7517
    %v7650 = vpack.c.b16 %v7526, %v7522
    %v7651 = vpack.c.b16 %v7527, %v7523
    %v7652 = vpack.c.b16 %v7528, %v7524
    %v7653 = vpack.c.b16 %v7529, %v7525
    %v7654 = vpack.c.b16 %v7534, %v7530
    %v7655 = vpack.c.b16 %v7535, %v7531
    %v7656 = vpack.c.b16 %v7536, %v7532
    %v7657 = vpack.c.b16 %v7537, %v7533
    %v7658 = vpack.c.b16 %v7542, %v7538
    %v7659 = vpack.c.b16 %v7543, %v7539
    %v7660 = vpack.c.b16 %v7544, %v7540
    %v7661 = vpack.c.b16 %v7545, %v7541
    %v7662 = vpack.c.b16 %v7550, %v7546
    %v7663 = vpack.c.b16 %v7551, %v7547
    %v7664 = vpack.c.b16 %v7552, %v7548
    %v7665 = vpack.c.b16 %v7553, %v7549
    %v7666 = vpack.c.b16 %v7558, %v7554
    %v7667 = vpack.c.b16 %v7559, %v7555
    %v7668 = vpack.c.b16 %v7560, %v7556
    %v7669 = vpack.c.b16 %v7561, %v7557
    %v7670 = vpack.c.b16 %v7566, %v7562
    %v7671 = vpack.c.b16 %v7567, %v7563
    %v7672 = vpack.c.b16 %v7568, %v7564
    %v7673 = vpack.c.b16 %v7569, %v7565
    %v7674 = vpack.c.b16 %v7574, %v7570
    %v7675 = vpack.c.b16 %v7575, %v7571
    %v7676 = vpack.c.b16 %v7576, %v7572
    %v7677 = vpack.c.b16 %v7577, %v7573
    %v7678 = vpack.c.b16 %v7582, %v7578
    %v7679 = vpack.c.b16 %v7583, %v7579
    %v7680 = vpack.c.b16 %v7584, %v7580
    %v7681 = vpack.c.b16 %v7585, %v7581
    %7778 = vmatprep.subr.bf16.mxu0 %v7615
    %7779 = vmatpush1.bf16.msra.mxu0 %v7614
    %7780 = vmatprep.subr.bf16.mxu0 %v7611
    %7781 = vmatpush1.bf16.msra.mxu0 %v7610
    %7782 = vmatprep.subr.bf16.mxu0 %v7607
    %7783 = vmatpush1.bf16.msra.mxu0 %v7606
    %7784 = vmatprep.subr.bf16.mxu0 %v7603
    %7785 = vmatpush1.bf16.msra.mxu0 %v7602
    %7786 = vmatprep.subr.bf16.mxu0 %v7599
    %7787 = vmatpush1.bf16.msra.mxu0 %v7598
    %7788 = vmatprep.subr.bf16.mxu0 %v7595
    %7789 = vmatpush1.bf16.msra.mxu0 %v7594
    %7790 = vmatprep.subr.bf16.mxu0 %v7591
    %7791 = vmatpush1.bf16.msra.mxu0 %v7590
    %7792 = vmatprep.subr.bf16.mxu0 %v7587
    %7793 = vmatpush1.bf16.msra.mxu0 %v7586
    %7794 = vmatprep.subr.bf16.mxu0 %v7647
    %7795 = vmatpush2.bf16.msra.mxu0 %v7646
    %7796 = vmatprep.subr.bf16.mxu0 %v7643
    %7797 = vmatpush2.bf16.msra.mxu0 %v7642
    %7798 = vmatprep.subr.bf16.mxu0 %v7639
    %7799 = vmatpush2.bf16.msra.mxu0 %v7638
    %7800 = vmatprep.subr.bf16.mxu0 %v7635
    %7801 = vmatpush2.bf16.msra.mxu0 %v7634
    %7802 = vmatprep.subr.bf16.mxu0 %v7631
    %7803 = vmatpush2.bf16.msra.mxu0 %v7630
    %7804 = vmatprep.subr.bf16.mxu0 %v7627
    %7805 = vmatpush2.bf16.msra.mxu0 %v7626
    %7806 = vmatprep.subr.bf16.mxu0 %v7623
    %7807 = vmatpush2.bf16.msra.mxu0 %v7622
    %7808 = vmatprep.subr.bf16.mxu0 %v7619
    %7809 = vmatpush2.bf16.msra.mxu0 %v7618
    %7810 = vmatprep.mubr.bf16.mxu0 %v7196
    %7811 = vmatmul.mubr.bf16.gmra.mxu0 %v7195
    %v7812 = vpop.f32.mrf.mxu0
    %v7813 = vadd.f32 0.0, %v7812
    %v7814 = vpop.f32.mrf.mxu0
    %v7815 = vadd.f32 0.0, %v7814
    %v7816 = vpop.f32.mrf.mxu0
    %v7817 = vadd.f32 0.0, %v7816
    %v7818 = vpop.f32.mrf.mxu0
    %v7819 = vadd.f32 0.0, %v7818
    %7820 = vmatprep.mubr.bf16.mxu0 %v7199
    %7821 = vmatmul.mubr.bf16.gmra.mxu0 %v7198
    %v7822 = vpop.f32.mrf.mxu0
    %v7823 = vadd.f32 0.0, %v7822
    %v7824 = vpop.f32.mrf.mxu0
    %v7825 = vadd.f32 0.0, %v7824
    %v7826 = vpop.f32.mrf.mxu0
    %v7827 = vadd.f32 0.0, %v7826
    %v7828 = vpop.f32.mrf.mxu0
    %v7829 = vadd.f32 0.0, %v7828
    %7830 = vdwg.mxu0
    %7831 = vmatprep.subr.bf16.mxu0 %v7679
    %7832 = vmatpush1.bf16.msra.mxu0 %v7678
    %7833 = vmatprep.subr.bf16.mxu0 %v7675
    %7834 = vmatpush1.bf16.msra.mxu0 %v7674
    %7835 = vmatprep.subr.bf16.mxu0 %v7671
    %7836 = vmatpush1.bf16.msra.mxu0 %v7670
    %7837 = vmatprep.subr.bf16.mxu0 %v7667
    %7838 = vmatpush1.bf16.msra.mxu0 %v7666
    %7839 = vmatprep.subr.bf16.mxu0 %v7663
    %7840 = vmatpush1.bf16.msra.mxu0 %v7662
    %7841 = vmatprep.subr.bf16.mxu0 %v7659
    %7842 = vmatpush1.bf16.msra.mxu0 %v7658
    %7843 = vmatprep.subr.bf16.mxu0 %v7655
    %7844 = vmatpush1.bf16.msra.mxu0 %v7654
    %7845 = vmatprep.subr.bf16.mxu0 %v7651
    %7846 = vmatpush1.bf16.msra.mxu0 %v7650
    %7847 = vmatprep.subr.bf16.mxu0 0
    %7848 = vmatpush2.bf16.msra.mxu0 0
    %7849 = vmatprep.subr.bf16.mxu0 0
    %7850 = vmatpush2.bf16.msra.mxu0 0
    %7851 = vmatprep.subr.bf16.mxu0 0
    %7852 = vmatpush2.bf16.msra.mxu0 0
    %7853 = vmatprep.subr.bf16.mxu0 0
    %7854 = vmatpush2.bf16.msra.mxu0 0
    %7855 = vmatprep.subr.bf16.mxu0 0
    %7856 = vmatpush2.bf16.msra.mxu0 0
    %7857 = vmatprep.subr.bf16.mxu0 0
    %7858 = vmatpush2.bf16.msra.mxu0 0
    %7859 = vmatprep.subr.bf16.mxu0 0
    %7860 = vmatpush2.bf16.msra.mxu0 0
    %7861 = vmatprep.subr.bf16.mxu0 0
    %7862 = vmatpush2.bf16.msra.mxu0 0
    %7863 = vmatprep.mubr.bf16.mxu0 0
    %7864 = vmatmul.mubr.bf16.gmra.mxu0 %v7197
    %v7865 = vpop.f32.mrf.mxu0
    %v7866 = vadd.f32 %v7813, %v7865
    %v7867 = vpop.f32.mrf.mxu0
    %v7868 = vadd.f32 %v7815, %v7867
    %v7869 = vpop.f32.mrf.mxu0
    %v7870 = vadd.f32 %v7817, %v7869
    %v7871 = vpop.f32.mrf.mxu0
    %v7872 = vadd.f32 %v7819, %v7871
    %7873 = vmatprep.mubr.bf16.mxu0 0
    %7874 = vmatmul.mubr.bf16.gmra.mxu0 %v7200
    %v7875 = vpop.f32.mrf.mxu0
    %v7876 = vadd.f32 %v7823, %v7875
    %v7877 = vpop.f32.mrf.mxu0
    %v7878 = vadd.f32 %v7825, %v7877
    %v7879 = vpop.f32.mrf.mxu0
    %v7880 = vadd.f32 %v7827, %v7879
    %v7881 = vpop.f32.mrf.mxu0
    %v7882 = vadd.f32 %v7829, %v7881
    %7883 = vdwg.mxu0
    %7884 = vmatprep.subr.bf16.mxu0 %v7617
    %7885 = vmatpush1.bf16.msra.mxu0 %v7616
    %7886 = vmatprep.subr.bf16.mxu0 %v7613
    %7887 = vmatpush1.bf16.msra.mxu0 %v7612
    %7888 = vmatprep.subr.bf16.mxu0 %v7609
    %7889 = vmatpush1.bf16.msra.mxu0 %v7608
    %7890 = vmatprep.subr.bf16.mxu0 %v7605
    %7891 = vmatpush1.bf16.msra.mxu0 %v7604
    %7892 = vmatprep.subr.bf16.mxu0 %v7601
    %7893 = vmatpush1.bf16.msra.mxu0 %v7600
    %7894 = vmatprep.subr.bf16.mxu0 %v7597
    %7895 = vmatpush1.bf16.msra.mxu0 %v7596
    %7896 = vmatprep.subr.bf16.mxu0 %v7593
    %7897 = vmatpush1.bf16.msra.mxu0 %v7592
    %7898 = vmatprep.subr.bf16.mxu0 %v7589
    %7899 = vmatpush1.bf16.msra.mxu0 %v7588
    %7900 = vmatprep.subr.bf16.mxu0 %v7649
    %7901 = vmatpush2.bf16.msra.mxu0 %v7648
    %7902 = vmatprep.subr.bf16.mxu0 %v7645
    %7903 = vmatpush2.bf16.msra.mxu0 %v7644
    %7904 = vmatprep.subr.bf16.mxu0 %v7641
    %7905 = vmatpush2.bf16.msra.mxu0 %v7640
    %7906 = vmatprep.subr.bf16.mxu0 %v7637
    %7907 = vmatpush2.bf16.msra.mxu0 %v7636
    %7908 = vmatprep.subr.bf16.mxu0 %v7633
    %7909 = vmatpush2.bf16.msra.mxu0 %v7632
    %7910 = vmatprep.subr.bf16.mxu0 %v7629
    %7911 = vmatpush2.bf16.msra.mxu0 %v7628
    %7912 = vmatprep.subr.bf16.mxu0 %v7625
    %7913 = vmatpush2.bf16.msra.mxu0 %v7624
    %7914 = vmatprep.subr.bf16.mxu0 %v7621
    %7915 = vmatpush2.bf16.msra.mxu0 %v7620
    %7916 = vmatprep.mubr.bf16.mxu0 %v7196
    %7917 = vmatmul.mubr.bf16.gmra.mxu0 %v7195
    %v7918 = vpop.f32.mrf.mxu0
    %v7919 = vadd.f32 0.0, %v7918
    %v7920 = vpop.f32.mrf.mxu0
    %v7921 = vadd.f32 0.0, %v7920
    %v7922 = vpop.f32.mrf.mxu0
    %v7923 = vadd.f32 0.0, %v7922
    %v7924 = vpop.f32.mrf.mxu0
    %v7925 = vadd.f32 0.0, %v7924
    %7926 = vmatprep.mubr.bf16.mxu0 %v7199
    %7927 = vmatmul.mubr.bf16.gmra.mxu0 %v7198
    %v7928 = vpop.f32.mrf.mxu0
    %v7929 = vadd.f32 0.0, %v7928
    %v7930 = vpop.f32.mrf.mxu0
    %v7931 = vadd.f32 0.0, %v7930
    %v7932 = vpop.f32.mrf.mxu0
    %v7933 = vadd.f32 0.0, %v7932
    %v7934 = vpop.f32.mrf.mxu0
    %v7935 = vadd.f32 0.0, %v7934
    %7936 = vdwg.mxu0
    %7937 = vmatprep.subr.bf16.mxu0 %v7681
    %7938 = vmatpush1.bf16.msra.mxu0 %v7680
    %7939 = vmatprep.subr.bf16.mxu0 %v7677
    %7940 = vmatpush1.bf16.msra.mxu0 %v7676
    %7941 = vmatprep.subr.bf16.mxu0 %v7673
    %7942 = vmatpush1.bf16.msra.mxu0 %v7672
    %7943 = vmatprep.subr.bf16.mxu0 %v7669
    %7944 = vmatpush1.bf16.msra.mxu0 %v7668
    %7945 = vmatprep.subr.bf16.mxu0 %v7665
    %7946 = vmatpush1.bf16.msra.mxu0 %v7664
    %7947 = vmatprep.subr.bf16.mxu0 %v7661
    %7948 = vmatpush1.bf16.msra.mxu0 %v7660
    %7949 = vmatprep.subr.bf16.mxu0 %v7657
    %7950 = vmatpush1.bf16.msra.mxu0 %v7656
    %7951 = vmatprep.subr.bf16.mxu0 %v7653
    %7952 = vmatpush1.bf16.msra.mxu0 %v7652
    %7953 = vmatprep.subr.bf16.mxu0 0
    %7954 = vmatpush2.bf16.msra.mxu0 0
    %7955 = vmatprep.subr.bf16.mxu0 0
    %7956 = vmatpush2.bf16.msra.mxu0 0
    %7957 = vmatprep.subr.bf16.mxu0 0
    %7958 = vmatpush2.bf16.msra.mxu0 0
    %7959 = vmatprep.subr.bf16.mxu0 0
    %7960 = vmatpush2.bf16.msra.mxu0 0
    %7961 = vmatprep.subr.bf16.mxu0 0
    %7962 = vmatpush2.bf16.msra.mxu0 0
    %7963 = vmatprep.subr.bf16.mxu0 0
    %7964 = vmatpush2.bf16.msra.mxu0 0
    %7965 = vmatprep.subr.bf16.mxu0 0
    %7966 = vmatpush2.bf16.msra.mxu0 0
    %7967 = vmatprep.subr.bf16.mxu0 0
    %7968 = vmatpush2.bf16.msra.mxu0 0
    %7969 = vmatprep.mubr.bf16.mxu0 0
    %7970 = vmatmul.mubr.bf16.gmra.mxu0 %v7197
    %v7971 = vpop.f32.mrf.mxu0
    %v7972 = vadd.f32 %v7919, %v7971
    %v7973 = vpop.f32.mrf.mxu0
    %v7974 = vadd.f32 %v7921, %v7973
    %v7975 = vpop.f32.mrf.mxu0
    %v7976 = vadd.f32 %v7923, %v7975
    %v7977 = vpop.f32.mrf.mxu0
    %v7978 = vadd.f32 %v7925, %v7977
    %7979 = vmatprep.mubr.bf16.mxu0 0
    %7980 = vmatmul.mubr.bf16.gmra.mxu0 %v7200
    %v7981 = vpop.f32.mrf.mxu0
    %v7982 = vadd.f32 %v7929, %v7981
    %v7983 = vpop.f32.mrf.mxu0
    %v7984 = vadd.f32 %v7931, %v7983
    %v7985 = vpop.f32.mrf.mxu0
    %v7986 = vadd.f32 %v7933, %v7985
    %v7987 = vpop.f32.mrf.mxu0
    %v7988 = vadd.f32 %v7935, %v7987
    %7989 = vdwg.mxu0
    %v7990 = vadd.f32 %v7071, %v7866
    %v7991 = vadd.f32 %v7073, %v7868
    %v7992 = vadd.f32 %v7177, %v7972
    %v7993 = vadd.f32 %v7179, %v7974
    %v7994 = vadd.f32 %v7075, %v7870
    %v7995 = vadd.f32 %v7077, %v7872
    %v7996 = vadd.f32 %v7181, %v7976
    %v7997 = vadd.f32 %v7183, %v7978
    %v7998 = vadd.f32 %v7081, %v7876
    %v7999 = vadd.f32 %v7083, %v7878
    %v8000 = vadd.f32 %v7187, %v7982
    %v8001 = vadd.f32 %v7189, %v7984
    %v8002 = vadd.f32 %v7085, %v7880
    %v8003 = vadd.f32 %v7087, %v7882
    %v8004 = vadd.f32 %v7191, %v7986
    %v8005 = vadd.f32 %v7193, %v7988
    %v8006 = vpack.c.bf16 %v5592, %v5589
    %v8007 = vpack.c.bf16 %v5593, %v5590
    %v8008 = vpack.c.bf16 %v5594, %v5591
    %v8009 = vpack.c.bf16 %v5598, %v5595
    %v8010 = vpack.c.bf16 %v5599, %v5596
    %v8011 = vpack.c.bf16 %v5600, %v5597
    %s8012 = scalar_lea.vmem [#allocation7], 2304
    %v8013 = vld [vmem:[%s8012] sm:$0xff]
    %v8014 = vld [vmem:[%s8012 + $0x8] sm:$0xff]
    %v8015 = vld [vmem:[%s8012 + $0x10] sm:$0xff]
    %v8016 = vld [vmem:[%s8012 + $0x18] sm:$0xff]
    %v8017 = vld [vmem:[%s8012 + $0x20] sm:$0xff]
    %v8018 = vld [vmem:[%s8012 + $0x28] sm:$0xff]
    %v8019 = vld [vmem:[%s8012 + $0x30] sm:$0xff]
    %v8020 = vld [vmem:[%s8012 + $0x38] sm:$0xff]
    %v8021 = vld [vmem:[%s8012 + $0x40] sm:$0xff]
    %v8022 = vld [vmem:[%s8012 + $0x48] sm:$0xff]
    %v8023 = vld [vmem:[%s8012 + $0x50] sm:$0xff]
    %v8024 = vld [vmem:[%s8012 + $0x58] sm:$0xff]
    %v8025 = vld [vmem:[%s8012 + $0x60] sm:$0xff]
    %v8026 = vld [vmem:[%s8012 + $0x68] sm:$0xff]
    %v8027 = vld [vmem:[%s8012 + $0x70] sm:$0xff]
    %v8028 = vld [vmem:[%s8012 + $0x78] sm:$0xff]
    %v8029 = vld [vmem:[%s8012 + $0x80] sm:$0xff]
    %v8030 = vld [vmem:[%s8012 + $0x88] sm:$0xff]
    %v8031 = vld [vmem:[%s8012 + $0x90] sm:$0xff]
    %v8032 = vld [vmem:[%s8012 + $0x98] sm:$0xff]
    %v8033 = vld [vmem:[%s8012 + $0xa0] sm:$0xff]
    %v8034 = vld [vmem:[%s8012 + $0xa8] sm:$0xff]
    %v8035 = vld [vmem:[%s8012 + $0xb0] sm:$0xff]
    %v8036 = vld [vmem:[%s8012 + $0xb8] sm:$0xff]
    %v8037 = vld [vmem:[%s8012 + $0xc0] sm:$0xff]
    %v8038 = vld [vmem:[%s8012 + $0xc8] sm:$0xff]
    %v8039 = vld [vmem:[%s8012 + $0xd0] sm:$0xff]
    %v8040 = vld [vmem:[%s8012 + $0xd8] sm:$0xff]
    %v8041 = vld [vmem:[%s8012 + $0xe0] sm:$0xff]
    %v8042 = vld [vmem:[%s8012 + $0xe8] sm:$0xff]
    %v8043 = vld [vmem:[%s8012 + $0xf0] sm:$0xff]
    %v8044 = vld [vmem:[%s8012 + $0xf8] sm:$0xff]
    %v8045 = vld [vmem:[%s8012 + $0x100] sm:$0xff]
    %v8046 = vld [vmem:[%s8012 + $0x108] sm:$0xff]
    %v8047 = vld [vmem:[%s8012 + $0x110] sm:$0xff]
    %v8048 = vld [vmem:[%s8012 + $0x118] sm:$0xff]
    %v8049 = vld [vmem:[%s8012 + $0x120] sm:$0xff]
    %v8050 = vld [vmem:[%s8012 + $0x128] sm:$0xff]
    %v8051 = vld [vmem:[%s8012 + $0x130] sm:$0xff]
    %v8052 = vld [vmem:[%s8012 + $0x138] sm:$0xff]
    %v8053 = vld [vmem:[%s8012 + $0x140] sm:$0xff]
    %v8054 = vld [vmem:[%s8012 + $0x148] sm:$0xff]
    %v8055 = vld [vmem:[%s8012 + $0x150] sm:$0xff]
    %v8056 = vld [vmem:[%s8012 + $0x158] sm:$0xff]
    %v8057 = vld [vmem:[%s8012 + $0x160] sm:$0xff]
    %v8058 = vld [vmem:[%s8012 + $0x168] sm:$0xff]
    %v8059 = vld [vmem:[%s8012 + $0x170] sm:$0xff]
    %v8060 = vld [vmem:[%s8012 + $0x178] sm:$0xff]
    %v8061 = vld [vmem:[%s8012 + $0x180] sm:$0xff]
    %v8062 = vld [vmem:[%s8012 + $0x188] sm:$0xff]
    %v8063 = vld [vmem:[%s8012 + $0x190] sm:$0xff]
    %v8064 = vld [vmem:[%s8012 + $0x198] sm:$0xff]
    %v8065 = vld [vmem:[%s8012 + $0x1a0] sm:$0xff]
    %v8066 = vld [vmem:[%s8012 + $0x1a8] sm:$0xff]
    %v8067 = vld [vmem:[%s8012 + $0x1b0] sm:$0xff]
    %v8068 = vld [vmem:[%s8012 + $0x1b8] sm:$0xff]
    %v8069 = vld [vmem:[%s8012 + $0x1c0] sm:$0xff]
    %v8070 = vld [vmem:[%s8012 + $0x1c8] sm:$0xff]
    %v8071 = vld [vmem:[%s8012 + $0x1d0] sm:$0xff]
    %v8072 = vld [vmem:[%s8012 + $0x1d8] sm:$0xff]
    %v8073 = vld [vmem:[%s8012 + $0x1e0] sm:$0xff]
    %v8074 = vld [vmem:[%s8012 + $0x1e8] sm:$0xff]
    %v8075 = vld [vmem:[%s8012 + $0x1f0] sm:$0xff]
    %v8076 = vld [vmem:[%s8012 + $0x1f8] sm:$0xff]
    %v8077 = vld [vmem:[%s8012 + $0x200] sm:$0xff]
    %v8078 = vld [vmem:[%s8012 + $0x208] sm:$0xff]
    %v8079 = vld [vmem:[%s8012 + $0x210] sm:$0xff]
    %v8080 = vld [vmem:[%s8012 + $0x218] sm:$0xff]
    %v8081 = vld [vmem:[%s8012 + $0x220] sm:$0xff]
    %v8082 = vld [vmem:[%s8012 + $0x228] sm:$0xff]
    %v8083 = vld [vmem:[%s8012 + $0x230] sm:$0xff]
    %v8084 = vld [vmem:[%s8012 + $0x238] sm:$0xff]
    %v8085 = vld [vmem:[%s8012 + $0x240] sm:$0xff]
    %v8086 = vld [vmem:[%s8012 + $0x248] sm:$0xff]
    %v8087 = vld [vmem:[%s8012 + $0x250] sm:$0xff]
    %v8088 = vld [vmem:[%s8012 + $0x258] sm:$0xff]
    %v8089 = vld [vmem:[%s8012 + $0x260] sm:$0xff]
    %v8090 = vld [vmem:[%s8012 + $0x268] sm:$0xff]
    %v8091 = vld [vmem:[%s8012 + $0x270] sm:$0xff]
    %v8092 = vld [vmem:[%s8012 + $0x278] sm:$0xff]
    %v8093 = vld [vmem:[%s8012 + $0x280] sm:$0xff]
    %v8094 = vld [vmem:[%s8012 + $0x288] sm:$0xff]
    %v8095 = vld [vmem:[%s8012 + $0x290] sm:$0xff]
    %v8096 = vld [vmem:[%s8012 + $0x298] sm:$0xff]
    %v8097 = vld [vmem:[%s8012 + $0x2a0] sm:$0xff]
    %v8098 = vld [vmem:[%s8012 + $0x2a8] sm:$0xff]
    %v8099 = vld [vmem:[%s8012 + $0x2b0] sm:$0xff]
    %v8100 = vld [vmem:[%s8012 + $0x2b8] sm:$0xff]
    %v8101 = vld [vmem:[%s8012 + $0x2c0] sm:$0xff]
    %v8102 = vld [vmem:[%s8012 + $0x2c8] sm:$0xff]
    %v8103 = vld [vmem:[%s8012 + $0x2d0] sm:$0xff]
    %v8104 = vld [vmem:[%s8012 + $0x2d8] sm:$0xff]
    %v8105 = vld [vmem:[%s8012 + $0x2e0] sm:$0xff]
    %v8106 = vld [vmem:[%s8012 + $0x2e8] sm:$0xff]
    %v8107 = vld [vmem:[%s8012 + $0x2f0] sm:$0xff]
    %v8108 = vld [vmem:[%s8012 + $0x2f8] sm:$0xff]
    %v8205 = vunpack.c.l.b16 %v8013
    %v8206 = vunpack.c.h.b16 %v8013
    %v8207 = vunpack.c.l.b16 %v8014
    %v8208 = vunpack.c.h.b16 %v8014
    %v8209 = vunpack.c.l.b16 %v8015
    %v8210 = vunpack.c.h.b16 %v8015
    %v8211 = vunpack.c.l.b16 %v8016
    %v8212 = vunpack.c.h.b16 %v8016
    %v8213 = vunpack.c.l.b16 %v8017
    %v8214 = vunpack.c.h.b16 %v8017
    %v8215 = vunpack.c.l.b16 %v8018
    %v8216 = vunpack.c.h.b16 %v8018
    %v8217 = vunpack.c.l.b16 %v8019
    %v8218 = vunpack.c.h.b16 %v8019
    %v8219 = vunpack.c.l.b16 %v8020
    %v8220 = vunpack.c.h.b16 %v8020
    %v8221 = vunpack.c.l.b16 %v8021
    %v8222 = vunpack.c.h.b16 %v8021
    %v8223 = vunpack.c.l.b16 %v8022
    %v8224 = vunpack.c.h.b16 %v8022
    %v8225 = vunpack.c.l.b16 %v8023
    %v8226 = vunpack.c.h.b16 %v8023
    %v8227 = vunpack.c.l.b16 %v8024
    %v8228 = vunpack.c.h.b16 %v8024
    %v8229 = vunpack.c.l.b16 %v8025
    %v8230 = vunpack.c.h.b16 %v8025
    %v8231 = vunpack.c.l.b16 %v8026
    %v8232 = vunpack.c.h.b16 %v8026
    %v8233 = vunpack.c.l.b16 %v8027
    %v8234 = vunpack.c.h.b16 %v8027
    %v8235 = vunpack.c.l.b16 %v8028
    %v8236 = vunpack.c.h.b16 %v8028
    %v8237 = vunpack.c.l.b16 %v8029
    %v8238 = vunpack.c.h.b16 %v8029
    %v8239 = vunpack.c.l.b16 %v8030
    %v8240 = vunpack.c.h.b16 %v8030
    %v8241 = vunpack.c.l.b16 %v8031
    %v8242 = vunpack.c.h.b16 %v8031
    %v8243 = vunpack.c.l.b16 %v8032
    %v8244 = vunpack.c.h.b16 %v8032
    %v8245 = vunpack.c.l.b16 %v8033
    %v8246 = vunpack.c.h.b16 %v8033
    %v8247 = vunpack.c.l.b16 %v8034
    %v8248 = vunpack.c.h.b16 %v8034
    %v8249 = vunpack.c.l.b16 %v8035
    %v8250 = vunpack.c.h.b16 %v8035
    %v8251 = vunpack.c.l.b16 %v8036
    %v8252 = vunpack.c.h.b16 %v8036
    %v8253 = vunpack.c.l.b16 %v8037
    %v8254 = vunpack.c.h.b16 %v8037
    %v8255 = vunpack.c.l.b16 %v8038
    %v8256 = vunpack.c.h.b16 %v8038
    %v8257 = vunpack.c.l.b16 %v8039
    %v8258 = vunpack.c.h.b16 %v8039
    %v8259 = vunpack.c.l.b16 %v8040
    %v8260 = vunpack.c.h.b16 %v8040
    %v8261 = vunpack.c.l.b16 %v8041
    %v8262 = vunpack.c.h.b16 %v8041
    %v8263 = vunpack.c.l.b16 %v8042
    %v8264 = vunpack.c.h.b16 %v8042
    %v8265 = vunpack.c.l.b16 %v8043
    %v8266 = vunpack.c.h.b16 %v8043
    %v8267 = vunpack.c.l.b16 %v8044
    %v8268 = vunpack.c.h.b16 %v8044
    %v8269 = vunpack.c.l.b16 %v8045
    %v8270 = vunpack.c.h.b16 %v8045
    %v8271 = vunpack.c.l.b16 %v8046
    %v8272 = vunpack.c.h.b16 %v8046
    %v8273 = vunpack.c.l.b16 %v8047
    %v8274 = vunpack.c.h.b16 %v8047
    %v8275 = vunpack.c.l.b16 %v8048
    %v8276 = vunpack.c.h.b16 %v8048
    %v8277 = vunpack.c.l.b16 %v8049
    %v8278 = vunpack.c.h.b16 %v8049
    %v8279 = vunpack.c.l.b16 %v8050
    %v8280 = vunpack.c.h.b16 %v8050
    %v8281 = vunpack.c.l.b16 %v8051
    %v8282 = vunpack.c.h.b16 %v8051
    %v8283 = vunpack.c.l.b16 %v8052
    %v8284 = vunpack.c.h.b16 %v8052
    %v8285 = vunpack.c.l.b16 %v8053
    %v8286 = vunpack.c.h.b16 %v8053
    %v8287 = vunpack.c.l.b16 %v8054
    %v8288 = vunpack.c.h.b16 %v8054
    %v8289 = vunpack.c.l.b16 %v8055
    %v8290 = vunpack.c.h.b16 %v8055
    %v8291 = vunpack.c.l.b16 %v8056
    %v8292 = vunpack.c.h.b16 %v8056
    %v8293 = vunpack.c.l.b16 %v8057
    %v8294 = vunpack.c.h.b16 %v8057
    %v8295 = vunpack.c.l.b16 %v8058
    %v8296 = vunpack.c.h.b16 %v8058
    %v8297 = vunpack.c.l.b16 %v8059
    %v8298 = vunpack.c.h.b16 %v8059
    %v8299 = vunpack.c.l.b16 %v8060
    %v8300 = vunpack.c.h.b16 %v8060
    %v8301 = vunpack.c.l.b16 %v8061
    %v8302 = vunpack.c.h.b16 %v8061
    %v8303 = vunpack.c.l.b16 %v8062
    %v8304 = vunpack.c.h.b16 %v8062
    %v8305 = vunpack.c.l.b16 %v8063
    %v8306 = vunpack.c.h.b16 %v8063
    %v8307 = vunpack.c.l.b16 %v8064
    %v8308 = vunpack.c.h.b16 %v8064
    %v8309 = vunpack.c.l.b16 %v8065
    %v8310 = vunpack.c.h.b16 %v8065
    %v8311 = vunpack.c.l.b16 %v8066
    %v8312 = vunpack.c.h.b16 %v8066
    %v8313 = vunpack.c.l.b16 %v8067
    %v8314 = vunpack.c.h.b16 %v8067
    %v8315 = vunpack.c.l.b16 %v8068
    %v8316 = vunpack.c.h.b16 %v8068
    %v8317 = vunpack.c.l.b16 %v8069
    %v8318 = vunpack.c.h.b16 %v8069
    %v8319 = vunpack.c.l.b16 %v8070
    %v8320 = vunpack.c.h.b16 %v8070
    %v8321 = vunpack.c.l.b16 %v8071
    %v8322 = vunpack.c.h.b16 %v8071
    %v8323 = vunpack.c.l.b16 %v8072
    %v8324 = vunpack.c.h.b16 %v8072
    %v8325 = vunpack.c.l.b16 %v8073
    %v8326 = vunpack.c.h.b16 %v8073
    %v8327 = vunpack.c.l.b16 %v8074
    %v8328 = vunpack.c.h.b16 %v8074
    %v8329 = vunpack.c.l.b16 %v8075
    %v8330 = vunpack.c.h.b16 %v8075
    %v8331 = vunpack.c.l.b16 %v8076
    %v8332 = vunpack.c.h.b16 %v8076
    %v8333 = vunpack.c.l.b16 %v8077
    %v8334 = vunpack.c.h.b16 %v8077
    %v8335 = vunpack.c.l.b16 %v8078
    %v8336 = vunpack.c.h.b16 %v8078
    %v8337 = vunpack.c.l.b16 %v8079
    %v8338 = vunpack.c.h.b16 %v8079
    %v8339 = vunpack.c.l.b16 %v8080
    %v8340 = vunpack.c.h.b16 %v8080
    %v8341 = vunpack.c.l.b16 %v8081
    %v8342 = vunpack.c.h.b16 %v8081
    %v8343 = vunpack.c.l.b16 %v8082
    %v8344 = vunpack.c.h.b16 %v8082
    %v8345 = vunpack.c.l.b16 %v8083
    %v8346 = vunpack.c.h.b16 %v8083
    %v8347 = vunpack.c.l.b16 %v8084
    %v8348 = vunpack.c.h.b16 %v8084
    %v8349 = vunpack.c.l.b16 %v8085
    %v8350 = vunpack.c.h.b16 %v8085
    %v8351 = vunpack.c.l.b16 %v8086
    %v8352 = vunpack.c.h.b16 %v8086
    %v8353 = vunpack.c.l.b16 %v8087
    %v8354 = vunpack.c.h.b16 %v8087
    %v8355 = vunpack.c.l.b16 %v8088
    %v8356 = vunpack.c.h.b16 %v8088
    %v8357 = vunpack.c.l.b16 %v8089
    %v8358 = vunpack.c.h.b16 %v8089
    %v8359 = vunpack.c.l.b16 %v8090
    %v8360 = vunpack.c.h.b16 %v8090
    %v8361 = vunpack.c.l.b16 %v8091
    %v8362 = vunpack.c.h.b16 %v8091
    %v8363 = vunpack.c.l.b16 %v8092
    %v8364 = vunpack.c.h.b16 %v8092
    %v8365 = vunpack.c.l.b16 %v8093
    %v8366 = vunpack.c.h.b16 %v8093
    %v8367 = vunpack.c.l.b16 %v8094
    %v8368 = vunpack.c.h.b16 %v8094
    %v8369 = vunpack.c.l.b16 %v8095
    %v8370 = vunpack.c.h.b16 %v8095
    %v8371 = vunpack.c.l.b16 %v8096
    %v8372 = vunpack.c.h.b16 %v8096
    %v8373 = vunpack.c.l.b16 %v8097
    %v8374 = vunpack.c.h.b16 %v8097
    %v8375 = vunpack.c.l.b16 %v8098
    %v8376 = vunpack.c.h.b16 %v8098
    %v8377 = vunpack.c.l.b16 %v8099
    %v8378 = vunpack.c.h.b16 %v8099
    %v8379 = vunpack.c.l.b16 %v8100
    %v8380 = vunpack.c.h.b16 %v8100
    %v8381 = vunpack.c.l.b16 %v8101
    %v8382 = vunpack.c.h.b16 %v8101
    %v8383 = vunpack.c.l.b16 %v8102
    %v8384 = vunpack.c.h.b16 %v8102
    %v8385 = vunpack.c.l.b16 %v8103
    %v8386 = vunpack.c.h.b16 %v8103
    %v8387 = vunpack.c.l.b16 %v8104
    %v8388 = vunpack.c.h.b16 %v8104
    %v8389 = vunpack.c.l.b16 %v8105
    %v8390 = vunpack.c.h.b16 %v8105
    %v8391 = vunpack.c.l.b16 %v8106
    %v8392 = vunpack.c.h.b16 %v8106
    %v8393 = vunpack.c.l.b16 %v8107
    %v8394 = vunpack.c.h.b16 %v8107
    %v8395 = vunpack.c.l.b16 %v8108
    %v8396 = vunpack.c.h.b16 %v8108
    %v8397 = vpack.c.b16 %v8209, %v8205
    %v8398 = vpack.c.b16 %v8210, %v8206
    %v8399 = vpack.c.b16 %v8211, %v8207
    %v8400 = vpack.c.b16 %v8212, %v8208
    %v8401 = vpack.c.b16 %v8217, %v8213
    %v8402 = vpack.c.b16 %v8218, %v8214
    %v8403 = vpack.c.b16 %v8219, %v8215
    %v8404 = vpack.c.b16 %v8220, %v8216
    %v8405 = vpack.c.b16 %v8225, %v8221
    %v8406 = vpack.c.b16 %v8226, %v8222
    %v8407 = vpack.c.b16 %v8227, %v8223
    %v8408 = vpack.c.b16 %v8228, %v8224
    %v8409 = vpack.c.b16 %v8233, %v8229
    %v8410 = vpack.c.b16 %v8234, %v8230
    %v8411 = vpack.c.b16 %v8235, %v8231
    %v8412 = vpack.c.b16 %v8236, %v8232
    %v8413 = vpack.c.b16 %v8241, %v8237
    %v8414 = vpack.c.b16 %v8242, %v8238
    %v8415 = vpack.c.b16 %v8243, %v8239
    %v8416 = vpack.c.b16 %v8244, %v8240
    %v8417 = vpack.c.b16 %v8249, %v8245
    %v8418 = vpack.c.b16 %v8250, %v8246
    %v8419 = vpack.c.b16 %v8251, %v8247
    %v8420 = vpack.c.b16 %v8252, %v8248
    %v8421 = vpack.c.b16 %v8257, %v8253
    %v8422 = vpack.c.b16 %v8258, %v8254
    %v8423 = vpack.c.b16 %v8259, %v8255
    %v8424 = vpack.c.b16 %v8260, %v8256
    %v8425 = vpack.c.b16 %v8265, %v8261
    %v8426 = vpack.c.b16 %v8266, %v8262
    %v8427 = vpack.c.b16 %v8267, %v8263
    %v8428 = vpack.c.b16 %v8268, %v8264
    %v8429 = vpack.c.b16 %v8273, %v8269
    %v8430 = vpack.c.b16 %v8274, %v8270
    %v8431 = vpack.c.b16 %v8275, %v8271
    %v8432 = vpack.c.b16 %v8276, %v8272
    %v8433 = vpack.c.b16 %v8281, %v8277
    %v8434 = vpack.c.b16 %v8282, %v8278
    %v8435 = vpack.c.b16 %v8283, %v8279
    %v8436 = vpack.c.b16 %v8284, %v8280
    %v8437 = vpack.c.b16 %v8289, %v8285
    %v8438 = vpack.c.b16 %v8290, %v8286
    %v8439 = vpack.c.b16 %v8291, %v8287
    %v8440 = vpack.c.b16 %v8292, %v8288
    %v8441 = vpack.c.b16 %v8297, %v8293
    %v8442 = vpack.c.b16 %v8298, %v8294
    %v8443 = vpack.c.b16 %v8299, %v8295
    %v8444 = vpack.c.b16 %v8300, %v8296
    %v8445 = vpack.c.b16 %v8305, %v8301
    %v8446 = vpack.c.b16 %v8306, %v8302
    %v8447 = vpack.c.b16 %v8307, %v8303
    %v8448 = vpack.c.b16 %v8308, %v8304
    %v8449 = vpack.c.b16 %v8313, %v8309
    %v8450 = vpack.c.b16 %v8314, %v8310
    %v8451 = vpack.c.b16 %v8315, %v8311
    %v8452 = vpack.c.b16 %v8316, %v8312
    %v8453 = vpack.c.b16 %v8321, %v8317
    %v8454 = vpack.c.b16 %v8322, %v8318
    %v8455 = vpack.c.b16 %v8323, %v8319
    %v8456 = vpack.c.b16 %v8324, %v8320
    %v8457 = vpack.c.b16 %v8329, %v8325
    %v8458 = vpack.c.b16 %v8330, %v8326
    %v8459 = vpack.c.b16 %v8331, %v8327
    %v8460 = vpack.c.b16 %v8332, %v8328
    %v8461 = vpack.c.b16 %v8337, %v8333
    %v8462 = vpack.c.b16 %v8338, %v8334
    %v8463 = vpack.c.b16 %v8339, %v8335
    %v8464 = vpack.c.b16 %v8340, %v8336
    %v8465 = vpack.c.b16 %v8345, %v8341
    %v8466 = vpack.c.b16 %v8346, %v8342
    %v8467 = vpack.c.b16 %v8347, %v8343
    %v8468 = vpack.c.b16 %v8348, %v8344
    %v8469 = vpack.c.b16 %v8353, %v8349
    %v8470 = vpack.c.b16 %v8354, %v8350
    %v8471 = vpack.c.b16 %v8355, %v8351
    %v8472 = vpack.c.b16 %v8356, %v8352
    %v8473 = vpack.c.b16 %v8361, %v8357
    %v8474 = vpack.c.b16 %v8362, %v8358
    %v8475 = vpack.c.b16 %v8363, %v8359
    %v8476 = vpack.c.b16 %v8364, %v8360
    %v8477 = vpack.c.b16 %v8369, %v8365
    %v8478 = vpack.c.b16 %v8370, %v8366
    %v8479 = vpack.c.b16 %v8371, %v8367
    %v8480 = vpack.c.b16 %v8372, %v8368
    %v8481 = vpack.c.b16 %v8377, %v8373
    %v8482 = vpack.c.b16 %v8378, %v8374
    %v8483 = vpack.c.b16 %v8379, %v8375
    %v8484 = vpack.c.b16 %v8380, %v8376
    %v8485 = vpack.c.b16 %v8385, %v8381
    %v8486 = vpack.c.b16 %v8386, %v8382
    %v8487 = vpack.c.b16 %v8387, %v8383
    %v8488 = vpack.c.b16 %v8388, %v8384
    %v8489 = vpack.c.b16 %v8393, %v8389
    %v8490 = vpack.c.b16 %v8394, %v8390
    %v8491 = vpack.c.b16 %v8395, %v8391
    %v8492 = vpack.c.b16 %v8396, %v8392
    %8589 = vmatprep.subr.bf16.mxu0 %v8426
    %8590 = vmatpush1.bf16.msra.mxu0 %v8425
    %8591 = vmatprep.subr.bf16.mxu0 %v8422
    %8592 = vmatpush1.bf16.msra.mxu0 %v8421
    %8593 = vmatprep.subr.bf16.mxu0 %v8418
    %8594 = vmatpush1.bf16.msra.mxu0 %v8417
    %8595 = vmatprep.subr.bf16.mxu0 %v8414
    %8596 = vmatpush1.bf16.msra.mxu0 %v8413
    %8597 = vmatprep.subr.bf16.mxu0 %v8410
    %8598 = vmatpush1.bf16.msra.mxu0 %v8409
    %8599 = vmatprep.subr.bf16.mxu0 %v8406
    %8600 = vmatpush1.bf16.msra.mxu0 %v8405
    %8601 = vmatprep.subr.bf16.mxu0 %v8402
    %8602 = vmatpush1.bf16.msra.mxu0 %v8401
    %8603 = vmatprep.subr.bf16.mxu0 %v8398
    %8604 = vmatpush1.bf16.msra.mxu0 %v8397
    %8605 = vmatprep.subr.bf16.mxu0 %v8458
    %8606 = vmatpush2.bf16.msra.mxu0 %v8457
    %8607 = vmatprep.subr.bf16.mxu0 %v8454
    %8608 = vmatpush2.bf16.msra.mxu0 %v8453
    %8609 = vmatprep.subr.bf16.mxu0 %v8450
    %8610 = vmatpush2.bf16.msra.mxu0 %v8449
    %8611 = vmatprep.subr.bf16.mxu0 %v8446
    %8612 = vmatpush2.bf16.msra.mxu0 %v8445
    %8613 = vmatprep.subr.bf16.mxu0 %v8442
    %8614 = vmatpush2.bf16.msra.mxu0 %v8441
    %8615 = vmatprep.subr.bf16.mxu0 %v8438
    %8616 = vmatpush2.bf16.msra.mxu0 %v8437
    %8617 = vmatprep.subr.bf16.mxu0 %v8434
    %8618 = vmatpush2.bf16.msra.mxu0 %v8433
    %8619 = vmatprep.subr.bf16.mxu0 %v8430
    %8620 = vmatpush2.bf16.msra.mxu0 %v8429
    %8621 = vmatprep.mubr.bf16.mxu0 %v8007
    %8622 = vmatmul.mubr.bf16.gmra.mxu0 %v8006
    %v8623 = vpop.f32.mrf.mxu0
    %v8624 = vadd.f32 0.0, %v8623
    %v8625 = vpop.f32.mrf.mxu0
    %v8626 = vadd.f32 0.0, %v8625
    %v8627 = vpop.f32.mrf.mxu0
    %v8628 = vadd.f32 0.0, %v8627
    %v8629 = vpop.f32.mrf.mxu0
    %v8630 = vadd.f32 0.0, %v8629
    %8631 = vmatprep.mubr.bf16.mxu0 %v8010
    %8632 = vmatmul.mubr.bf16.gmra.mxu0 %v8009
    %v8633 = vpop.f32.mrf.mxu0
    %v8634 = vadd.f32 0.0, %v8633
    %v8635 = vpop.f32.mrf.mxu0
    %v8636 = vadd.f32 0.0, %v8635
    %v8637 = vpop.f32.mrf.mxu0
    %v8638 = vadd.f32 0.0, %v8637
    %v8639 = vpop.f32.mrf.mxu0
    %v8640 = vadd.f32 0.0, %v8639
    %8641 = vdwg.mxu0
    %8642 = vmatprep.subr.bf16.mxu0 %v8490
    %8643 = vmatpush1.bf16.msra.mxu0 %v8489
    %8644 = vmatprep.subr.bf16.mxu0 %v8486
    %8645 = vmatpush1.bf16.msra.mxu0 %v8485
    %8646 = vmatprep.subr.bf16.mxu0 %v8482
    %8647 = vmatpush1.bf16.msra.mxu0 %v8481
    %8648 = vmatprep.subr.bf16.mxu0 %v8478
    %8649 = vmatpush1.bf16.msra.mxu0 %v8477
    %8650 = vmatprep.subr.bf16.mxu0 %v8474
    %8651 = vmatpush1.bf16.msra.mxu0 %v8473
    %8652 = vmatprep.subr.bf16.mxu0 %v8470
    %8653 = vmatpush1.bf16.msra.mxu0 %v8469
    %8654 = vmatprep.subr.bf16.mxu0 %v8466
    %8655 = vmatpush1.bf16.msra.mxu0 %v8465
    %8656 = vmatprep.subr.bf16.mxu0 %v8462
    %8657 = vmatpush1.bf16.msra.mxu0 %v8461
    %8658 = vmatprep.subr.bf16.mxu0 0
    %8659 = vmatpush2.bf16.msra.mxu0 0
    %8660 = vmatprep.subr.bf16.mxu0 0
    %8661 = vmatpush2.bf16.msra.mxu0 0
    %8662 = vmatprep.subr.bf16.mxu0 0
    %8663 = vmatpush2.bf16.msra.mxu0 0
    %8664 = vmatprep.subr.bf16.mxu0 0
    %8665 = vmatpush2.bf16.msra.mxu0 0
    %8666 = vmatprep.subr.bf16.mxu0 0
    %8667 = vmatpush2.bf16.msra.mxu0 0
    %8668 = vmatprep.subr.bf16.mxu0 0
    %8669 = vmatpush2.bf16.msra.mxu0 0
    %8670 = vmatprep.subr.bf16.mxu0 0
    %8671 = vmatpush2.bf16.msra.mxu0 0
    %8672 = vmatprep.subr.bf16.mxu0 0
    %8673 = vmatpush2.bf16.msra.mxu0 0
    %8674 = vmatprep.mubr.bf16.mxu0 0
    %8675 = vmatmul.mubr.bf16.gmra.mxu0 %v8008
    %v8676 = vpop.f32.mrf.mxu0
    %v8677 = vadd.f32 %v8624, %v8676
    %v8678 = vpop.f32.mrf.mxu0
    %v8679 = vadd.f32 %v8626, %v8678
    %v8680 = vpop.f32.mrf.mxu0
    %v8681 = vadd.f32 %v8628, %v8680
    %v8682 = vpop.f32.mrf.mxu0
    %v8683 = vadd.f32 %v8630, %v8682
    %8684 = vmatprep.mubr.bf16.mxu0 0
    %8685 = vmatmul.mubr.bf16.gmra.mxu0 %v8011
    %v8686 = vpop.f32.mrf.mxu0
    %v8687 = vadd.f32 %v8634, %v8686
    %v8688 = vpop.f32.mrf.mxu0
    %v8689 = vadd.f32 %v8636, %v8688
    %v8690 = vpop.f32.mrf.mxu0
    %v8691 = vadd.f32 %v8638, %v8690
    %v8692 = vpop.f32.mrf.mxu0
    %v8693 = vadd.f32 %v8640, %v8692
    %8694 = vdwg.mxu0
    %8695 = vmatprep.subr.bf16.mxu0 %v8428
    %8696 = vmatpush1.bf16.msra.mxu0 %v8427
    %8697 = vmatprep.subr.bf16.mxu0 %v8424
    %8698 = vmatpush1.bf16.msra.mxu0 %v8423
    %8699 = vmatprep.subr.bf16.mxu0 %v8420
    %8700 = vmatpush1.bf16.msra.mxu0 %v8419
    %8701 = vmatprep.subr.bf16.mxu0 %v8416
    %8702 = vmatpush1.bf16.msra.mxu0 %v8415
    %8703 = vmatprep.subr.bf16.mxu0 %v8412
    %8704 = vmatpush1.bf16.msra.mxu0 %v8411
    %8705 = vmatprep.subr.bf16.mxu0 %v8408
    %8706 = vmatpush1.bf16.msra.mxu0 %v8407
    %8707 = vmatprep.subr.bf16.mxu0 %v8404
    %8708 = vmatpush1.bf16.msra.mxu0 %v8403
    %8709 = vmatprep.subr.bf16.mxu0 %v8400
    %8710 = vmatpush1.bf16.msra.mxu0 %v8399
    %8711 = vmatprep.subr.bf16.mxu0 %v8460
    %8712 = vmatpush2.bf16.msra.mxu0 %v8459
    %8713 = vmatprep.subr.bf16.mxu0 %v8456
    %8714 = vmatpush2.bf16.msra.mxu0 %v8455
    %8715 = vmatprep.subr.bf16.mxu0 %v8452
    %8716 = vmatpush2.bf16.msra.mxu0 %v8451
    %8717 = vmatprep.subr.bf16.mxu0 %v8448
    %8718 = vmatpush2.bf16.msra.mxu0 %v8447
    %8719 = vmatprep.subr.bf16.mxu0 %v8444
    %8720 = vmatpush2.bf16.msra.mxu0 %v8443
    %8721 = vmatprep.subr.bf16.mxu0 %v8440
    %8722 = vmatpush2.bf16.msra.mxu0 %v8439
    %8723 = vmatprep.subr.bf16.mxu0 %v8436
    %8724 = vmatpush2.bf16.msra.mxu0 %v8435
    %8725 = vmatprep.subr.bf16.mxu0 %v8432
    %8726 = vmatpush2.bf16.msra.mxu0 %v8431
    %8727 = vmatprep.mubr.bf16.mxu0 %v8007
    %8728 = vmatmul.mubr.bf16.gmra.mxu0 %v8006
    %v8729 = vpop.f32.mrf.mxu0
    %v8730 = vadd.f32 0.0, %v8729
    %v8731 = vpop.f32.mrf.mxu0
    %v8732 = vadd.f32 0.0, %v8731
    %v8733 = vpop.f32.mrf.mxu0
    %v8734 = vadd.f32 0.0, %v8733
    %v8735 = vpop.f32.mrf.mxu0
    %v8736 = vadd.f32 0.0, %v8735
    %8737 = vmatprep.mubr.bf16.mxu0 %v8010
    %8738 = vmatmul.mubr.bf16.gmra.mxu0 %v8009
    %v8739 = vpop.f32.mrf.mxu0
    %v8740 = vadd.f32 0.0, %v8739
    %v8741 = vpop.f32.mrf.mxu0
    %v8742 = vadd.f32 0.0, %v8741
    %v8743 = vpop.f32.mrf.mxu0
    %v8744 = vadd.f32 0.0, %v8743
    %v8745 = vpop.f32.mrf.mxu0
    %v8746 = vadd.f32 0.0, %v8745
    %8747 = vdwg.mxu0
    %8748 = vmatprep.subr.bf16.mxu0 %v8492
    %8749 = vmatpush1.bf16.msra.mxu0 %v8491
    %8750 = vmatprep.subr.bf16.mxu0 %v8488
    %8751 = vmatpush1.bf16.msra.mxu0 %v8487
    %8752 = vmatprep.subr.bf16.mxu0 %v8484
    %8753 = vmatpush1.bf16.msra.mxu0 %v8483
    %8754 = vmatprep.subr.bf16.mxu0 %v8480
    %8755 = vmatpush1.bf16.msra.mxu0 %v8479
    %8756 = vmatprep.subr.bf16.mxu0 %v8476
    %8757 = vmatpush1.bf16.msra.mxu0 %v8475
    %8758 = vmatprep.subr.bf16.mxu0 %v8472
    %8759 = vmatpush1.bf16.msra.mxu0 %v8471
    %8760 = vmatprep.subr.bf16.mxu0 %v8468
    %8761 = vmatpush1.bf16.msra.mxu0 %v8467
    %8762 = vmatprep.subr.bf16.mxu0 %v8464
    %8763 = vmatpush1.bf16.msra.mxu0 %v8463
    %8764 = vmatprep.subr.bf16.mxu0 0
    %8765 = vmatpush2.bf16.msra.mxu0 0
    %8766 = vmatprep.subr.bf16.mxu0 0
    %8767 = vmatpush2.bf16.msra.mxu0 0
    %8768 = vmatprep.subr.bf16.mxu0 0
    %8769 = vmatpush2.bf16.msra.mxu0 0
    %8770 = vmatprep.subr.bf16.mxu0 0
    %8771 = vmatpush2.bf16.msra.mxu0 0
    %8772 = vmatprep.subr.bf16.mxu0 0
    %8773 = vmatpush2.bf16.msra.mxu0 0
    %8774 = vmatprep.subr.bf16.mxu0 0
    %8775 = vmatpush2.bf16.msra.mxu0 0
    %8776 = vmatprep.subr.bf16.mxu0 0
    %8777 = vmatpush2.bf16.msra.mxu0 0
    %8778 = vmatprep.subr.bf16.mxu0 0
    %8779 = vmatpush2.bf16.msra.mxu0 0
    %8780 = vmatprep.mubr.bf16.mxu0 0
    %8781 = vmatmul.mubr.bf16.gmra.mxu0 %v8008
    %v8782 = vpop.f32.mrf.mxu0
    %v8783 = vadd.f32 %v8730, %v8782
    %v8784 = vpop.f32.mrf.mxu0
    %v8785 = vadd.f32 %v8732, %v8784
    %v8786 = vpop.f32.mrf.mxu0
    %v8787 = vadd.f32 %v8734, %v8786
    %v8788 = vpop.f32.mrf.mxu0
    %v8789 = vadd.f32 %v8736, %v8788
    %8790 = vmatprep.mubr.bf16.mxu0 0
    %8791 = vmatmul.mubr.bf16.gmra.mxu0 %v8011
    %v8792 = vpop.f32.mrf.mxu0
    %v8793 = vadd.f32 %v8740, %v8792
    %v8794 = vpop.f32.mrf.mxu0
    %v8795 = vadd.f32 %v8742, %v8794
    %v8796 = vpop.f32.mrf.mxu0
    %v8797 = vadd.f32 %v8744, %v8796
    %v8798 = vpop.f32.mrf.mxu0
    %v8799 = vadd.f32 %v8746, %v8798
    %8800 = vdwg.mxu0
    %v8801 = vadd.f32 %v7990, %v8677
    %v8802 = vadd.f32 %v7991, %v8679
    %v8803 = vadd.f32 %v7992, %v8783
    %v8804 = vadd.f32 %v7993, %v8785
    %v8805 = vadd.f32 %v7994, %v8681
    %v8806 = vadd.f32 %v7995, %v8683
    %v8807 = vadd.f32 %v7996, %v8787
    %v8808 = vadd.f32 %v7997, %v8789
    %v8809 = vadd.f32 %v7998, %v8687
    %v8810 = vadd.f32 %v7999, %v8689
    %v8811 = vadd.f32 %v8000, %v8793
    %v8812 = vadd.f32 %v8001, %v8795
    %v8813 = vadd.f32 %v8002, %v8691
    %v8814 = vadd.f32 %v8003, %v8693
    %v8815 = vadd.f32 %v8004, %v8797
    %v8816 = vadd.f32 %v8005, %v8799
    %v8817 = vpack.c.bf16 %v3217, %v3214
    %v8818 = vpack.c.bf16 %v3218, %v3215
    %v8819 = vpack.c.bf16 %v3219, %v3216
    %s8820 = scalar_lea.vmem [#allocation7], 3072
    %v8821 = vld [vmem:[%s8820] sm:$0xff]
    %v8822 = vld [vmem:[%s8820 + $0x8] sm:$0xff]
    %v8823 = vld [vmem:[%s8820 + $0x10] sm:$0xff]
    %v8824 = vld [vmem:[%s8820 + $0x18] sm:$0xff]
    %v8825 = vld [vmem:[%s8820 + $0x20] sm:$0xff]
    %v8826 = vld [vmem:[%s8820 + $0x28] sm:$0xff]
    %v8827 = vld [vmem:[%s8820 + $0x30] sm:$0xff]
    %v8828 = vld [vmem:[%s8820 + $0x38] sm:$0xff]
    %v8829 = vld [vmem:[%s8820 + $0x40] sm:$0xff]
    %v8830 = vld [vmem:[%s8820 + $0x48] sm:$0xff]
    %v8831 = vld [vmem:[%s8820 + $0x50] sm:$0xff]
    %v8832 = vld [vmem:[%s8820 + $0x58] sm:$0xff]
    %v8833 = vld [vmem:[%s8820 + $0x60] sm:$0xff]
    %v8834 = vld [vmem:[%s8820 + $0x68] sm:$0xff]
    %v8835 = vld [vmem:[%s8820 + $0x70] sm:$0xff]
    %v8836 = vld [vmem:[%s8820 + $0x78] sm:$0xff]
    %v8837 = vld [vmem:[%s8820 + $0x80] sm:$0xff]
    %v8838 = vld [vmem:[%s8820 + $0x88] sm:$0xff]
    %v8839 = vld [vmem:[%s8820 + $0x90] sm:$0xff]
    %v8840 = vld [vmem:[%s8820 + $0x98] sm:$0xff]
    %v8841 = vld [vmem:[%s8820 + $0xa0] sm:$0xff]
    %v8842 = vld [vmem:[%s8820 + $0xa8] sm:$0xff]
    %v8843 = vld [vmem:[%s8820 + $0xb0] sm:$0xff]
    %v8844 = vld [vmem:[%s8820 + $0xb8] sm:$0xff]
    %v8845 = vld [vmem:[%s8820 + $0xc0] sm:$0xff]
    %v8846 = vld [vmem:[%s8820 + $0xc8] sm:$0xff]
    %v8847 = vld [vmem:[%s8820 + $0xd0] sm:$0xff]
    %v8848 = vld [vmem:[%s8820 + $0xd8] sm:$0xff]
    %v8849 = vld [vmem:[%s8820 + $0xe0] sm:$0xff]
    %v8850 = vld [vmem:[%s8820 + $0xe8] sm:$0xff]
    %v8851 = vld [vmem:[%s8820 + $0xf0] sm:$0xff]
    %v8852 = vld [vmem:[%s8820 + $0xf8] sm:$0xff]
    %v8853 = vld [vmem:[%s8820 + $0x100] sm:$0xff]
    %v8854 = vld [vmem:[%s8820 + $0x108] sm:$0xff]
    %v8855 = vld [vmem:[%s8820 + $0x110] sm:$0xff]
    %v8856 = vld [vmem:[%s8820 + $0x118] sm:$0xff]
    %v8857 = vld [vmem:[%s8820 + $0x120] sm:$0xff]
    %v8858 = vld [vmem:[%s8820 + $0x128] sm:$0xff]
    %v8859 = vld [vmem:[%s8820 + $0x130] sm:$0xff]
    %v8860 = vld [vmem:[%s8820 + $0x138] sm:$0xff]
    %v8861 = vld [vmem:[%s8820 + $0x140] sm:$0xff]
    %v8862 = vld [vmem:[%s8820 + $0x148] sm:$0xff]
    %v8863 = vld [vmem:[%s8820 + $0x150] sm:$0xff]
    %v8864 = vld [vmem:[%s8820 + $0x158] sm:$0xff]
    %v8865 = vld [vmem:[%s8820 + $0x160] sm:$0xff]
    %v8866 = vld [vmem:[%s8820 + $0x168] sm:$0xff]
    %v8867 = vld [vmem:[%s8820 + $0x170] sm:$0xff]
    %v8868 = vld [vmem:[%s8820 + $0x178] sm:$0xff]
    %v8869 = vld [vmem:[%s8820 + $0x180] sm:$0xff]
    %v8870 = vld [vmem:[%s8820 + $0x188] sm:$0xff]
    %v8871 = vld [vmem:[%s8820 + $0x190] sm:$0xff]
    %v8872 = vld [vmem:[%s8820 + $0x198] sm:$0xff]
    %v8873 = vld [vmem:[%s8820 + $0x1a0] sm:$0xff]
    %v8874 = vld [vmem:[%s8820 + $0x1a8] sm:$0xff]
    %v8875 = vld [vmem:[%s8820 + $0x1b0] sm:$0xff]
    %v8876 = vld [vmem:[%s8820 + $0x1b8] sm:$0xff]
    %v8877 = vld [vmem:[%s8820 + $0x1c0] sm:$0xff]
    %v8878 = vld [vmem:[%s8820 + $0x1c8] sm:$0xff]
    %v8879 = vld [vmem:[%s8820 + $0x1d0] sm:$0xff]
    %v8880 = vld [vmem:[%s8820 + $0x1d8] sm:$0xff]
    %v8881 = vld [vmem:[%s8820 + $0x1e0] sm:$0xff]
    %v8882 = vld [vmem:[%s8820 + $0x1e8] sm:$0xff]
    %v8883 = vld [vmem:[%s8820 + $0x1f0] sm:$0xff]
    %v8884 = vld [vmem:[%s8820 + $0x1f8] sm:$0xff]
    %v8885 = vld [vmem:[%s8820 + $0x200] sm:$0xff]
    %v8886 = vld [vmem:[%s8820 + $0x208] sm:$0xff]
    %v8887 = vld [vmem:[%s8820 + $0x210] sm:$0xff]
    %v8888 = vld [vmem:[%s8820 + $0x218] sm:$0xff]
    %v8889 = vld [vmem:[%s8820 + $0x220] sm:$0xff]
    %v8890 = vld [vmem:[%s8820 + $0x228] sm:$0xff]
    %v8891 = vld [vmem:[%s8820 + $0x230] sm:$0xff]
    %v8892 = vld [vmem:[%s8820 + $0x238] sm:$0xff]
    %v8893 = vld [vmem:[%s8820 + $0x240] sm:$0xff]
    %v8894 = vld [vmem:[%s8820 + $0x248] sm:$0xff]
    %v8895 = vld [vmem:[%s8820 + $0x250] sm:$0xff]
    %v8896 = vld [vmem:[%s8820 + $0x258] sm:$0xff]
    %v8897 = vld [vmem:[%s8820 + $0x260] sm:$0xff]
    %v8898 = vld [vmem:[%s8820 + $0x268] sm:$0xff]
    %v8899 = vld [vmem:[%s8820 + $0x270] sm:$0xff]
    %v8900 = vld [vmem:[%s8820 + $0x278] sm:$0xff]
    %v8901 = vld [vmem:[%s8820 + $0x280] sm:$0xff]
    %v8902 = vld [vmem:[%s8820 + $0x288] sm:$0xff]
    %v8903 = vld [vmem:[%s8820 + $0x290] sm:$0xff]
    %v8904 = vld [vmem:[%s8820 + $0x298] sm:$0xff]
    %v8905 = vld [vmem:[%s8820 + $0x2a0] sm:$0xff]
    %v8906 = vld [vmem:[%s8820 + $0x2a8] sm:$0xff]
    %v8907 = vld [vmem:[%s8820 + $0x2b0] sm:$0xff]
    %v8908 = vld [vmem:[%s8820 + $0x2b8] sm:$0xff]
    %v8909 = vld [vmem:[%s8820 + $0x2c0] sm:$0xff]
    %v8910 = vld [vmem:[%s8820 + $0x2c8] sm:$0xff]
    %v8911 = vld [vmem:[%s8820 + $0x2d0] sm:$0xff]
    %v8912 = vld [vmem:[%s8820 + $0x2d8] sm:$0xff]
    %v8913 = vld [vmem:[%s8820 + $0x2e0] sm:$0xff]
    %v8914 = vld [vmem:[%s8820 + $0x2e8] sm:$0xff]
    %v8915 = vld [vmem:[%s8820 + $0x2f0] sm:$0xff]
    %v8916 = vld [vmem:[%s8820 + $0x2f8] sm:$0xff]
    %v9013 = vunpack.c.l.b16 %v8821
    %v9014 = vunpack.c.h.b16 %v8821
    %v9015 = vunpack.c.l.b16 %v8822
    %v9016 = vunpack.c.h.b16 %v8822
    %v9017 = vunpack.c.l.b16 %v8823
    %v9018 = vunpack.c.h.b16 %v8823
    %v9019 = vunpack.c.l.b16 %v8824
    %v9020 = vunpack.c.h.b16 %v8824
    %v9021 = vunpack.c.l.b16 %v8825
    %v9022 = vunpack.c.h.b16 %v8825
    %v9023 = vunpack.c.l.b16 %v8826
    %v9024 = vunpack.c.h.b16 %v8826
    %v9025 = vunpack.c.l.b16 %v8827
    %v9026 = vunpack.c.h.b16 %v8827
    %v9027 = vunpack.c.l.b16 %v8828
    %v9028 = vunpack.c.h.b16 %v8828
    %v9029 = vunpack.c.l.b16 %v8829
    %v9030 = vunpack.c.h.b16 %v8829
    %v9031 = vunpack.c.l.b16 %v8830
    %v9032 = vunpack.c.h.b16 %v8830
    %v9033 = vunpack.c.l.b16 %v8831
    %v9034 = vunpack.c.h.b16 %v8831
    %v9035 = vunpack.c.l.b16 %v8832
    %v9036 = vunpack.c.h.b16 %v8832
    %v9037 = vunpack.c.l.b16 %v8833
    %v9038 = vunpack.c.h.b16 %v8833
    %v9039 = vunpack.c.l.b16 %v8834
    %v9040 = vunpack.c.h.b16 %v8834
    %v9041 = vunpack.c.l.b16 %v8835
    %v9042 = vunpack.c.h.b16 %v8835
    %v9043 = vunpack.c.l.b16 %v8836
    %v9044 = vunpack.c.h.b16 %v8836
    %v9045 = vunpack.c.l.b16 %v8837
    %v9046 = vunpack.c.h.b16 %v8837
    %v9047 = vunpack.c.l.b16 %v8838
    %v9048 = vunpack.c.h.b16 %v8838
    %v9049 = vunpack.c.l.b16 %v8839
    %v9050 = vunpack.c.h.b16 %v8839
    %v9051 = vunpack.c.l.b16 %v8840
    %v9052 = vunpack.c.h.b16 %v8840
    %v9053 = vunpack.c.l.b16 %v8841
    %v9054 = vunpack.c.h.b16 %v8841
    %v9055 = vunpack.c.l.b16 %v8842
    %v9056 = vunpack.c.h.b16 %v8842
    %v9057 = vunpack.c.l.b16 %v8843
    %v9058 = vunpack.c.h.b16 %v8843
    %v9059 = vunpack.c.l.b16 %v8844
    %v9060 = vunpack.c.h.b16 %v8844
    %v9061 = vunpack.c.l.b16 %v8845
    %v9062 = vunpack.c.h.b16 %v8845
    %v9063 = vunpack.c.l.b16 %v8846
    %v9064 = vunpack.c.h.b16 %v8846
    %v9065 = vunpack.c.l.b16 %v8847
    %v9066 = vunpack.c.h.b16 %v8847
    %v9067 = vunpack.c.l.b16 %v8848
    %v9068 = vunpack.c.h.b16 %v8848
    %v9069 = vunpack.c.l.b16 %v8849
    %v9070 = vunpack.c.h.b16 %v8849
    %v9071 = vunpack.c.l.b16 %v8850
    %v9072 = vunpack.c.h.b16 %v8850
    %v9073 = vunpack.c.l.b16 %v8851
    %v9074 = vunpack.c.h.b16 %v8851
    %v9075 = vunpack.c.l.b16 %v8852
    %v9076 = vunpack.c.h.b16 %v8852
    %v9077 = vunpack.c.l.b16 %v8853
    %v9078 = vunpack.c.h.b16 %v8853
    %v9079 = vunpack.c.l.b16 %v8854
    %v9080 = vunpack.c.h.b16 %v8854
    %v9081 = vunpack.c.l.b16 %v8855
    %v9082 = vunpack.c.h.b16 %v8855
    %v9083 = vunpack.c.l.b16 %v8856
    %v9084 = vunpack.c.h.b16 %v8856
    %v9085 = vunpack.c.l.b16 %v8857
    %v9086 = vunpack.c.h.b16 %v8857
    %v9087 = vunpack.c.l.b16 %v8858
    %v9088 = vunpack.c.h.b16 %v8858
    %v9089 = vunpack.c.l.b16 %v8859
    %v9090 = vunpack.c.h.b16 %v8859
    %v9091 = vunpack.c.l.b16 %v8860
    %v9092 = vunpack.c.h.b16 %v8860
    %v9093 = vunpack.c.l.b16 %v8861
    %v9094 = vunpack.c.h.b16 %v8861
    %v9095 = vunpack.c.l.b16 %v8862
    %v9096 = vunpack.c.h.b16 %v8862
    %v9097 = vunpack.c.l.b16 %v8863
    %v9098 = vunpack.c.h.b16 %v8863
    %v9099 = vunpack.c.l.b16 %v8864
    %v9100 = vunpack.c.h.b16 %v8864
    %v9101 = vunpack.c.l.b16 %v8865
    %v9102 = vunpack.c.h.b16 %v8865
    %v9103 = vunpack.c.l.b16 %v8866
    %v9104 = vunpack.c.h.b16 %v8866
    %v9105 = vunpack.c.l.b16 %v8867
    %v9106 = vunpack.c.h.b16 %v8867
    %v9107 = vunpack.c.l.b16 %v8868
    %v9108 = vunpack.c.h.b16 %v8868
    %v9109 = vunpack.c.l.b16 %v8869
    %v9110 = vunpack.c.h.b16 %v8869
    %v9111 = vunpack.c.l.b16 %v8870
    %v9112 = vunpack.c.h.b16 %v8870
    %v9113 = vunpack.c.l.b16 %v8871
    %v9114 = vunpack.c.h.b16 %v8871
    %v9115 = vunpack.c.l.b16 %v8872
    %v9116 = vunpack.c.h.b16 %v8872
    %v9117 = vunpack.c.l.b16 %v8873
    %v9118 = vunpack.c.h.b16 %v8873
    %v9119 = vunpack.c.l.b16 %v8874
    %v9120 = vunpack.c.h.b16 %v8874
    %v9121 = vunpack.c.l.b16 %v8875
    %v9122 = vunpack.c.h.b16 %v8875
    %v9123 = vunpack.c.l.b16 %v8876
    %v9124 = vunpack.c.h.b16 %v8876
    %v9125 = vunpack.c.l.b16 %v8877
    %v9126 = vunpack.c.h.b16 %v8877
    %v9127 = vunpack.c.l.b16 %v8878
    %v9128 = vunpack.c.h.b16 %v8878
    %v9129 = vunpack.c.l.b16 %v8879
    %v9130 = vunpack.c.h.b16 %v8879
    %v9131 = vunpack.c.l.b16 %v8880
    %v9132 = vunpack.c.h.b16 %v8880
    %v9133 = vunpack.c.l.b16 %v8881
    %v9134 = vunpack.c.h.b16 %v8881
    %v9135 = vunpack.c.l.b16 %v8882
    %v9136 = vunpack.c.h.b16 %v8882
    %v9137 = vunpack.c.l.b16 %v8883
    %v9138 = vunpack.c.h.b16 %v8883
    %v9139 = vunpack.c.l.b16 %v8884
    %v9140 = vunpack.c.h.b16 %v8884
    %v9141 = vunpack.c.l.b16 %v8885
    %v9142 = vunpack.c.h.b16 %v8885
    %v9143 = vunpack.c.l.b16 %v8886
    %v9144 = vunpack.c.h.b16 %v8886
    %v9145 = vunpack.c.l.b16 %v8887
    %v9146 = vunpack.c.h.b16 %v8887
    %v9147 = vunpack.c.l.b16 %v8888
    %v9148 = vunpack.c.h.b16 %v8888
    %v9149 = vunpack.c.l.b16 %v8889
    %v9150 = vunpack.c.h.b16 %v8889
    %v9151 = vunpack.c.l.b16 %v8890
    %v9152 = vunpack.c.h.b16 %v8890
    %v9153 = vunpack.c.l.b16 %v8891
    %v9154 = vunpack.c.h.b16 %v8891
    %v9155 = vunpack.c.l.b16 %v8892
    %v9156 = vunpack.c.h.b16 %v8892
    %v9157 = vunpack.c.l.b16 %v8893
    %v9158 = vunpack.c.h.b16 %v8893
    %v9159 = vunpack.c.l.b16 %v8894
    %v9160 = vunpack.c.h.b16 %v8894
    %v9161 = vunpack.c.l.b16 %v8895
    %v9162 = vunpack.c.h.b16 %v8895
    %v9163 = vunpack.c.l.b16 %v8896
    %v9164 = vunpack.c.h.b16 %v8896
    %v9165 = vunpack.c.l.b16 %v8897
    %v9166 = vunpack.c.h.b16 %v8897
    %v9167 = vunpack.c.l.b16 %v8898
    %v9168 = vunpack.c.h.b16 %v8898
    %v9169 = vunpack.c.l.b16 %v8899
    %v9170 = vunpack.c.h.b16 %v8899
    %v9171 = vunpack.c.l.b16 %v8900
    %v9172 = vunpack.c.h.b16 %v8900
    %v9173 = vunpack.c.l.b16 %v8901
    %v9174 = vunpack.c.h.b16 %v8901
    %v9175 = vunpack.c.l.b16 %v8902
    %v9176 = vunpack.c.h.b16 %v8902
    %v9177 = vunpack.c.l.b16 %v8903
    %v9178 = vunpack.c.h.b16 %v8903
    %v9179 = vunpack.c.l.b16 %v8904
    %v9180 = vunpack.c.h.b16 %v8904
    %v9181 = vunpack.c.l.b16 %v8905
    %v9182 = vunpack.c.h.b16 %v8905
    %v9183 = vunpack.c.l.b16 %v8906
    %v9184 = vunpack.c.h.b16 %v8906
    %v9185 = vunpack.c.l.b16 %v8907
    %v9186 = vunpack.c.h.b16 %v8907
    %v9187 = vunpack.c.l.b16 %v8908
    %v9188 = vunpack.c.h.b16 %v8908
    %v9189 = vunpack.c.l.b16 %v8909
    %v9190 = vunpack.c.h.b16 %v8909
    %v9191 = vunpack.c.l.b16 %v8910
    %v9192 = vunpack.c.h.b16 %v8910
    %v9193 = vunpack.c.l.b16 %v8911
    %v9194 = vunpack.c.h.b16 %v8911
    %v9195 = vunpack.c.l.b16 %v8912
    %v9196 = vunpack.c.h.b16 %v8912
    %v9197 = vunpack.c.l.b16 %v8913
    %v9198 = vunpack.c.h.b16 %v8913
    %v9199 = vunpack.c.l.b16 %v8914
    %v9200 = vunpack.c.h.b16 %v8914
    %v9201 = vunpack.c.l.b16 %v8915
    %v9202 = vunpack.c.h.b16 %v8915
    %v9203 = vunpack.c.l.b16 %v8916
    %v9204 = vunpack.c.h.b16 %v8916
    %v9205 = vpack.c.b16 %v9017, %v9013
    %v9206 = vpack.c.b16 %v9018, %v9014
    %v9207 = vpack.c.b16 %v9019, %v9015
    %v9208 = vpack.c.b16 %v9020, %v9016
    %v9209 = vpack.c.b16 %v9025, %v9021
    %v9210 = vpack.c.b16 %v9026, %v9022
    %v9211 = vpack.c.b16 %v9027, %v9023
    %v9212 = vpack.c.b16 %v9028, %v9024
    %v9213 = vpack.c.b16 %v9033, %v9029
    %v9214 = vpack.c.b16 %v9034, %v9030
    %v9215 = vpack.c.b16 %v9035, %v9031
    %v9216 = vpack.c.b16 %v9036, %v9032
    %v9217 = vpack.c.b16 %v9041, %v9037
    %v9218 = vpack.c.b16 %v9042, %v9038
    %v9219 = vpack.c.b16 %v9043, %v9039
    %v9220 = vpack.c.b16 %v9044, %v9040
    %v9221 = vpack.c.b16 %v9049, %v9045
    %v9222 = vpack.c.b16 %v9050, %v9046
    %v9223 = vpack.c.b16 %v9051, %v9047
    %v9224 = vpack.c.b16 %v9052, %v9048
    %v9225 = vpack.c.b16 %v9057, %v9053
    %v9226 = vpack.c.b16 %v9058, %v9054
    %v9227 = vpack.c.b16 %v9059, %v9055
    %v9228 = vpack.c.b16 %v9060, %v9056
    %v9229 = vpack.c.b16 %v9065, %v9061
    %v9230 = vpack.c.b16 %v9066, %v9062
    %v9231 = vpack.c.b16 %v9067, %v9063
    %v9232 = vpack.c.b16 %v9068, %v9064
    %v9233 = vpack.c.b16 %v9073, %v9069
    %v9234 = vpack.c.b16 %v9074, %v9070
    %v9235 = vpack.c.b16 %v9075, %v9071
    %v9236 = vpack.c.b16 %v9076, %v9072
    %v9237 = vpack.c.b16 %v9081, %v9077
    %v9238 = vpack.c.b16 %v9082, %v9078
    %v9239 = vpack.c.b16 %v9083, %v9079
    %v9240 = vpack.c.b16 %v9084, %v9080
    %v9241 = vpack.c.b16 %v9089, %v9085
    %v9242 = vpack.c.b16 %v9090, %v9086
    %v9243 = vpack.c.b16 %v9091, %v9087
    %v9244 = vpack.c.b16 %v9092, %v9088
    %v9245 = vpack.c.b16 %v9097, %v9093
    %v9246 = vpack.c.b16 %v9098, %v9094
    %v9247 = vpack.c.b16 %v9099, %v9095
    %v9248 = vpack.c.b16 %v9100, %v9096
    %v9249 = vpack.c.b16 %v9105, %v9101
    %v9250 = vpack.c.b16 %v9106, %v9102
    %v9251 = vpack.c.b16 %v9107, %v9103
    %v9252 = vpack.c.b16 %v9108, %v9104
    %v9253 = vpack.c.b16 %v9113, %v9109
    %v9254 = vpack.c.b16 %v9114, %v9110
    %v9255 = vpack.c.b16 %v9115, %v9111
    %v9256 = vpack.c.b16 %v9116, %v9112
    %v9257 = vpack.c.b16 %v9121, %v9117
    %v9258 = vpack.c.b16 %v9122, %v9118
    %v9259 = vpack.c.b16 %v9123, %v9119
    %v9260 = vpack.c.b16 %v9124, %v9120
    %v9261 = vpack.c.b16 %v9129, %v9125
    %v9262 = vpack.c.b16 %v9130, %v9126
    %v9263 = vpack.c.b16 %v9131, %v9127
    %v9264 = vpack.c.b16 %v9132, %v9128
    %v9265 = vpack.c.b16 %v9137, %v9133
    %v9266 = vpack.c.b16 %v9138, %v9134
    %v9267 = vpack.c.b16 %v9139, %v9135
    %v9268 = vpack.c.b16 %v9140, %v9136
    %v9269 = vpack.c.b16 %v9145, %v9141
    %v9270 = vpack.c.b16 %v9146, %v9142
    %v9271 = vpack.c.b16 %v9147, %v9143
    %v9272 = vpack.c.b16 %v9148, %v9144
    %v9273 = vpack.c.b16 %v9153, %v9149
    %v9274 = vpack.c.b16 %v9154, %v9150
    %v9275 = vpack.c.b16 %v9155, %v9151
    %v9276 = vpack.c.b16 %v9156, %v9152
    %v9277 = vpack.c.b16 %v9161, %v9157
    %v9278 = vpack.c.b16 %v9162, %v9158
    %v9279 = vpack.c.b16 %v9163, %v9159
    %v9280 = vpack.c.b16 %v9164, %v9160
    %v9281 = vpack.c.b16 %v9169, %v9165
    %v9282 = vpack.c.b16 %v9170, %v9166
    %v9283 = vpack.c.b16 %v9171, %v9167
    %v9284 = vpack.c.b16 %v9172, %v9168
    %v9285 = vpack.c.b16 %v9177, %v9173
    %v9286 = vpack.c.b16 %v9178, %v9174
    %v9287 = vpack.c.b16 %v9179, %v9175
    %v9288 = vpack.c.b16 %v9180, %v9176
    %v9289 = vpack.c.b16 %v9185, %v9181
    %v9290 = vpack.c.b16 %v9186, %v9182
    %v9291 = vpack.c.b16 %v9187, %v9183
    %v9292 = vpack.c.b16 %v9188, %v9184
    %v9293 = vpack.c.b16 %v9193, %v9189
    %v9294 = vpack.c.b16 %v9194, %v9190
    %v9295 = vpack.c.b16 %v9195, %v9191
    %v9296 = vpack.c.b16 %v9196, %v9192
    %v9297 = vpack.c.b16 %v9201, %v9197
    %v9298 = vpack.c.b16 %v9202, %v9198
    %v9299 = vpack.c.b16 %v9203, %v9199
    %v9300 = vpack.c.b16 %v9204, %v9200
    %9397 = vmatprep.subr.bf16.mxu0 %v9234
    %9398 = vmatpush1.bf16.msra.mxu0 %v9233
    %9399 = vmatprep.subr.bf16.mxu0 %v9230
    %9400 = vmatpush1.bf16.msra.mxu0 %v9229
    %9401 = vmatprep.subr.bf16.mxu0 %v9226
    %9402 = vmatpush1.bf16.msra.mxu0 %v9225
    %9403 = vmatprep.subr.bf16.mxu0 %v9222
    %9404 = vmatpush1.bf16.msra.mxu0 %v9221
    %9405 = vmatprep.subr.bf16.mxu0 %v9218
    %9406 = vmatpush1.bf16.msra.mxu0 %v9217
    %9407 = vmatprep.subr.bf16.mxu0 %v9214
    %9408 = vmatpush1.bf16.msra.mxu0 %v9213
    %9409 = vmatprep.subr.bf16.mxu0 %v9210
    %9410 = vmatpush1.bf16.msra.mxu0 %v9209
    %9411 = vmatprep.subr.bf16.mxu0 %v9206
    %9412 = vmatpush1.bf16.msra.mxu0 %v9205
    %9413 = vmatprep.subr.bf16.mxu0 %v9266
    %9414 = vmatpush2.bf16.msra.mxu0 %v9265
    %9415 = vmatprep.subr.bf16.mxu0 %v9262
    %9416 = vmatpush2.bf16.msra.mxu0 %v9261
    %9417 = vmatprep.subr.bf16.mxu0 %v9258
    %9418 = vmatpush2.bf16.msra.mxu0 %v9257
    %9419 = vmatprep.subr.bf16.mxu0 %v9254
    %9420 = vmatpush2.bf16.msra.mxu0 %v9253
    %9421 = vmatprep.subr.bf16.mxu0 %v9250
    %9422 = vmatpush2.bf16.msra.mxu0 %v9249
    %9423 = vmatprep.subr.bf16.mxu0 %v9246
    %9424 = vmatpush2.bf16.msra.mxu0 %v9245
    %9425 = vmatprep.subr.bf16.mxu0 %v9242
    %9426 = vmatpush2.bf16.msra.mxu0 %v9241
    %9427 = vmatprep.subr.bf16.mxu0 %v9238
    %9428 = vmatpush2.bf16.msra.mxu0 %v9237
    %9429 = vmatprep.mubr.bf16.mxu0 %v5610
    %9430 = vmatmul.mubr.bf16.gmra.mxu0 %v5609
    %v9431 = vpop.f32.mrf.mxu0
    %v9432 = vadd.f32 0.0, %v9431
    %v9433 = vpop.f32.mrf.mxu0
    %v9434 = vadd.f32 0.0, %v9433
    %v9435 = vpop.f32.mrf.mxu0
    %v9436 = vadd.f32 0.0, %v9435
    %v9437 = vpop.f32.mrf.mxu0
    %v9438 = vadd.f32 0.0, %v9437
    %9439 = vmatprep.mubr.bf16.mxu0 %v8818
    %9440 = vmatmul.mubr.bf16.gmra.mxu0 %v8817
    %v9441 = vpop.f32.mrf.mxu0
    %v9442 = vadd.f32 0.0, %v9441
    %v9443 = vpop.f32.mrf.mxu0
    %v9444 = vadd.f32 0.0, %v9443
    %v9445 = vpop.f32.mrf.mxu0
    %v9446 = vadd.f32 0.0, %v9445
    %v9447 = vpop.f32.mrf.mxu0
    %v9448 = vadd.f32 0.0, %v9447
    %9449 = vdwg.mxu0
    %9450 = vmatprep.subr.bf16.mxu0 %v9298
    %9451 = vmatpush1.bf16.msra.mxu0 %v9297
    %9452 = vmatprep.subr.bf16.mxu0 %v9294
    %9453 = vmatpush1.bf16.msra.mxu0 %v9293
    %9454 = vmatprep.subr.bf16.mxu0 %v9290
    %9455 = vmatpush1.bf16.msra.mxu0 %v9289
    %9456 = vmatprep.subr.bf16.mxu0 %v9286
    %9457 = vmatpush1.bf16.msra.mxu0 %v9285
    %9458 = vmatprep.subr.bf16.mxu0 %v9282
    %9459 = vmatpush1.bf16.msra.mxu0 %v9281
    %9460 = vmatprep.subr.bf16.mxu0 %v9278
    %9461 = vmatpush1.bf16.msra.mxu0 %v9277
    %9462 = vmatprep.subr.bf16.mxu0 %v9274
    %9463 = vmatpush1.bf16.msra.mxu0 %v9273
    %9464 = vmatprep.subr.bf16.mxu0 %v9270
    %9465 = vmatpush1.bf16.msra.mxu0 %v9269
    %9466 = vmatprep.subr.bf16.mxu0 0
    %9467 = vmatpush2.bf16.msra.mxu0 0
    %9468 = vmatprep.subr.bf16.mxu0 0
    %9469 = vmatpush2.bf16.msra.mxu0 0
    %9470 = vmatprep.subr.bf16.mxu0 0
    %9471 = vmatpush2.bf16.msra.mxu0 0
    %9472 = vmatprep.subr.bf16.mxu0 0
    %9473 = vmatpush2.bf16.msra.mxu0 0
    %9474 = vmatprep.subr.bf16.mxu0 0
    %9475 = vmatpush2.bf16.msra.mxu0 0
    %9476 = vmatprep.subr.bf16.mxu0 0
    %9477 = vmatpush2.bf16.msra.mxu0 0
    %9478 = vmatprep.subr.bf16.mxu0 0
    %9479 = vmatpush2.bf16.msra.mxu0 0
    %9480 = vmatprep.subr.bf16.mxu0 0
    %9481 = vmatpush2.bf16.msra.mxu0 0
    %9482 = vmatprep.mubr.bf16.mxu0 0
    %9483 = vmatmul.mubr.bf16.gmra.mxu0 %v5611
    %v9484 = vpop.f32.mrf.mxu0
    %v9485 = vadd.f32 %v9432, %v9484
    %v9486 = vpop.f32.mrf.mxu0
    %v9487 = vadd.f32 %v9434, %v9486
    %v9488 = vpop.f32.mrf.mxu0
    %v9489 = vadd.f32 %v9436, %v9488
    %v9490 = vpop.f32.mrf.mxu0
    %v9491 = vadd.f32 %v9438, %v9490
    %9492 = vmatprep.mubr.bf16.mxu0 0
    %9493 = vmatmul.mubr.bf16.gmra.mxu0 %v8819
    %v9494 = vpop.f32.mrf.mxu0
    %v9495 = vadd.f32 %v9442, %v9494
    %v9496 = vpop.f32.mrf.mxu0
    %v9497 = vadd.f32 %v9444, %v9496
    %v9498 = vpop.f32.mrf.mxu0
    %v9499 = vadd.f32 %v9446, %v9498
    %v9500 = vpop.f32.mrf.mxu0
    %v9501 = vadd.f32 %v9448, %v9500
    %9502 = vdwg.mxu0
    %9503 = vmatprep.subr.bf16.mxu0 %v9236
    %9504 = vmatpush1.bf16.msra.mxu0 %v9235
    %9505 = vmatprep.subr.bf16.mxu0 %v9232
    %9506 = vmatpush1.bf16.msra.mxu0 %v9231
    %9507 = vmatprep.subr.bf16.mxu0 %v9228
    %9508 = vmatpush1.bf16.msra.mxu0 %v9227
    %9509 = vmatprep.subr.bf16.mxu0 %v9224
    %9510 = vmatpush1.bf16.msra.mxu0 %v9223
    %9511 = vmatprep.subr.bf16.mxu0 %v9220
    %9512 = vmatpush1.bf16.msra.mxu0 %v9219
    %9513 = vmatprep.subr.bf16.mxu0 %v9216
    %9514 = vmatpush1.bf16.msra.mxu0 %v9215
    %9515 = vmatprep.subr.bf16.mxu0 %v9212
    %9516 = vmatpush1.bf16.msra.mxu0 %v9211
    %9517 = vmatprep.subr.bf16.mxu0 %v9208
    %9518 = vmatpush1.bf16.msra.mxu0 %v9207
    %9519 = vmatprep.subr.bf16.mxu0 %v9268
    %9520 = vmatpush2.bf16.msra.mxu0 %v9267
    %9521 = vmatprep.subr.bf16.mxu0 %v9264
    %9522 = vmatpush2.bf16.msra.mxu0 %v9263
    %9523 = vmatprep.subr.bf16.mxu0 %v9260
    %9524 = vmatpush2.bf16.msra.mxu0 %v9259
    %9525 = vmatprep.subr.bf16.mxu0 %v9256
    %9526 = vmatpush2.bf16.msra.mxu0 %v9255
    %9527 = vmatprep.subr.bf16.mxu0 %v9252
    %9528 = vmatpush2.bf16.msra.mxu0 %v9251
    %9529 = vmatprep.subr.bf16.mxu0 %v9248
    %9530 = vmatpush2.bf16.msra.mxu0 %v9247
    %9531 = vmatprep.subr.bf16.mxu0 %v9244
    %9532 = vmatpush2.bf16.msra.mxu0 %v9243
    %9533 = vmatprep.subr.bf16.mxu0 %v9240
    %9534 = vmatpush2.bf16.msra.mxu0 %v9239
    %9535 = vmatprep.mubr.bf16.mxu0 %v5610
    %9536 = vmatmul.mubr.bf16.gmra.mxu0 %v5609
    %v9537 = vpop.f32.mrf.mxu0
    %v9538 = vadd.f32 0.0, %v9537
    %v9539 = vpop.f32.mrf.mxu0
    %v9540 = vadd.f32 0.0, %v9539
    %v9541 = vpop.f32.mrf.mxu0
    %v9542 = vadd.f32 0.0, %v9541
    %v9543 = vpop.f32.mrf.mxu0
    %v9544 = vadd.f32 0.0, %v9543
    %9545 = vmatprep.mubr.bf16.mxu0 %v8818
    %9546 = vmatmul.mubr.bf16.gmra.mxu0 %v8817
    %v9547 = vpop.f32.mrf.mxu0
    %v9548 = vadd.f32 0.0, %v9547
    %v9549 = vpop.f32.mrf.mxu0
    %v9550 = vadd.f32 0.0, %v9549
    %v9551 = vpop.f32.mrf.mxu0
    %v9552 = vadd.f32 0.0, %v9551
    %v9553 = vpop.f32.mrf.mxu0
    %v9554 = vadd.f32 0.0, %v9553
    %9555 = vdwg.mxu0
    %9556 = vmatprep.subr.bf16.mxu0 %v9300
    %9557 = vmatpush1.bf16.msra.mxu0 %v9299
    %9558 = vmatprep.subr.bf16.mxu0 %v9296
    %9559 = vmatpush1.bf16.msra.mxu0 %v9295
    %9560 = vmatprep.subr.bf16.mxu0 %v9292
    %9561 = vmatpush1.bf16.msra.mxu0 %v9291
    %9562 = vmatprep.subr.bf16.mxu0 %v9288
    %9563 = vmatpush1.bf16.msra.mxu0 %v9287
    %9564 = vmatprep.subr.bf16.mxu0 %v9284
    %9565 = vmatpush1.bf16.msra.mxu0 %v9283
    %9566 = vmatprep.subr.bf16.mxu0 %v9280
    %9567 = vmatpush1.bf16.msra.mxu0 %v9279
    %9568 = vmatprep.subr.bf16.mxu0 %v9276
    %9569 = vmatpush1.bf16.msra.mxu0 %v9275
    %9570 = vmatprep.subr.bf16.mxu0 %v9272
    %9571 = vmatpush1.bf16.msra.mxu0 %v9271
    %9572 = vmatprep.subr.bf16.mxu0 0
    %9573 = vmatpush2.bf16.msra.mxu0 0
    %9574 = vmatprep.subr.bf16.mxu0 0
    %9575 = vmatpush2.bf16.msra.mxu0 0
    %9576 = vmatprep.subr.bf16.mxu0 0
    %9577 = vmatpush2.bf16.msra.mxu0 0
    %9578 = vmatprep.subr.bf16.mxu0 0
    %9579 = vmatpush2.bf16.msra.mxu0 0
    %9580 = vmatprep.subr.bf16.mxu0 0
    %9581 = vmatpush2.bf16.msra.mxu0 0
    %9582 = vmatprep.subr.bf16.mxu0 0
    %9583 = vmatpush2.bf16.msra.mxu0 0
    %9584 = vmatprep.subr.bf16.mxu0 0
    %9585 = vmatpush2.bf16.msra.mxu0 0
    %9586 = vmatprep.subr.bf16.mxu0 0
    %9587 = vmatpush2.bf16.msra.mxu0 0
    %9588 = vmatprep.mubr.bf16.mxu0 0
    %9589 = vmatmul.mubr.bf16.gmra.mxu0 %v5611
    %v9590 = vpop.f32.mrf.mxu0
    %v9591 = vadd.f32 %v9538, %v9590
    %v9592 = vpop.f32.mrf.mxu0
    %v9593 = vadd.f32 %v9540, %v9592
    %v9594 = vpop.f32.mrf.mxu0
    %v9595 = vadd.f32 %v9542, %v9594
    %v9596 = vpop.f32.mrf.mxu0
    %v9597 = vadd.f32 %v9544, %v9596
    %9598 = vmatprep.mubr.bf16.mxu0 0
    %9599 = vmatmul.mubr.bf16.gmra.mxu0 %v8819
    %v9600 = vpop.f32.mrf.mxu0
    %v9601 = vadd.f32 %v9548, %v9600
    %v9602 = vpop.f32.mrf.mxu0
    %v9603 = vadd.f32 %v9550, %v9602
    %v9604 = vpop.f32.mrf.mxu0
    %v9605 = vadd.f32 %v9552, %v9604
    %v9606 = vpop.f32.mrf.mxu0
    %v9607 = vadd.f32 %v9554, %v9606
    %9608 = vdwg.mxu0
    %v9609 = vadd.f32 %v8801, %v9485
    %v9610 = vadd.f32 %v8802, %v9487
    %v9611 = vadd.f32 %v8803, %v9591
    %v9612 = vadd.f32 %v8804, %v9593
    %v9613 = vadd.f32 %v8805, %v9489
    %v9614 = vadd.f32 %v8806, %v9491
    %v9615 = vadd.f32 %v8807, %v9595
    %v9616 = vadd.f32 %v8808, %v9597
    %v9617 = vadd.f32 %v8809, %v9495
    %v9618 = vadd.f32 %v8810, %v9497
    %v9619 = vadd.f32 %v8811, %v9601
    %v9620 = vadd.f32 %v8812, %v9603
    %v9621 = vadd.f32 %v8813, %v9499
    %v9622 = vadd.f32 %v8814, %v9501
    %v9623 = vadd.f32 %v8815, %v9605
    %v9624 = vadd.f32 %v8816, %v9607
    %v9626 = vlaneseq
    %v9627 = vshrl.u32 %v9626, 7
    %v9628 = vsub.s32 0, %v9627
    %v9629 = vrot.slane %v5604, %v9628
    %v9630 = vlaneseq
    %v9631 = vshrl.u32 %v9630, 7
    %v9632 = vsub.s32 1, %v9631
    %v9633 = vrot.slane %v5604, %v9632
    %v9634 = vlaneseq
    %v9635 = vshrl.u32 %v9634, 7
    %v9636 = vsub.s32 2, %v9635
    %v9637 = vrot.slane %v5604, %v9636
    %v9638 = vlaneseq
    %v9639 = vshrl.u32 %v9638, 7
    %v9640 = vsub.s32 3, %v9639
    %v9641 = vrot.slane %v5604, %v9640
    %v9646 = vmul.f32 %v9609, %v9629
    %v9647 = vmul.f32 %v9610, %v9633
    %v9648 = vmul.f32 %v9611, %v9637
    %v9649 = vmul.f32 %v9612, %v9641
    %v9650 = vmul.f32 %v9613, %v9629
    %v9651 = vmul.f32 %v9614, %v9633
    %v9652 = vmul.f32 %v9615, %v9637
    %v9653 = vmul.f32 %v9616, %v9641
    %v9654 = vmul.f32 %v9617, %v9629
    %v9655 = vmul.f32 %v9618, %v9633
    %v9656 = vmul.f32 %v9619, %v9637
    %v9657 = vmul.f32 %v9620, %v9641
    %v9658 = vmul.f32 %v9621, %v9629
    %v9659 = vmul.f32 %v9622, %v9633
    %v9660 = vmul.f32 %v9623, %v9637
    %v9661 = vmul.f32 %v9624, %v9641
    %v9663 = vlaneseq
    %v9664 = vshrl.u32 %v9663, 7
    %v9665 = vsub.s32 0, %v9664
    %v9666 = vrot.slane %v5605, %v9665
    %v9667 = vlaneseq
    %v9668 = vshrl.u32 %v9667, 7
    %v9669 = vsub.s32 1, %v9668
    %v9670 = vrot.slane %v5605, %v9669
    %v9671 = vlaneseq
    %v9672 = vshrl.u32 %v9671, 7
    %v9673 = vsub.s32 2, %v9672
    %v9674 = vrot.slane %v5605, %v9673
    %v9675 = vlaneseq
    %v9676 = vshrl.u32 %v9675, 7
    %v9677 = vsub.s32 3, %v9676
    %v9678 = vrot.slane %v5605, %v9677
    %v9683 = vadd.f32 %v9646, %v9666
    %v9684 = vadd.f32 %v9647, %v9670
    %v9685 = vadd.f32 %v9648, %v9674
    %v9686 = vadd.f32 %v9649, %v9678
    %v9687 = vadd.f32 %v9650, %v9666
    %v9688 = vadd.f32 %v9651, %v9670
    %v9689 = vadd.f32 %v9652, %v9674
    %v9690 = vadd.f32 %v9653, %v9678
    %v9691 = vadd.f32 %v9654, %v9666
    %v9692 = vadd.f32 %v9655, %v9670
    %v9693 = vadd.f32 %v9656, %v9674
    %v9694 = vadd.f32 %v9657, %v9678
    %v9695 = vadd.f32 %v9658, %v9666
    %v9696 = vadd.f32 %v9659, %v9670
    %v9697 = vadd.f32 %v9660, %v9674
    %v9698 = vadd.f32 %v9661, %v9678
    %9699 = vmatprep.subr.bf16.mxu0 %v6128
    %9700 = vmatpush1.bf16.msra.mxu0 %v6127
    %9701 = vmatprep.subr.bf16.mxu0 %v6124
    %9702 = vmatpush1.bf16.msra.mxu0 %v6123
    %9703 = vmatprep.subr.bf16.mxu0 %v6120
    %9704 = vmatpush1.bf16.msra.mxu0 %v6119
    %9705 = vmatprep.subr.bf16.mxu0 %v6116
    %9706 = vmatpush1.bf16.msra.mxu0 %v6115
    %9707 = vmatprep.subr.bf16.mxu0 %v6112
    %9708 = vmatpush1.bf16.msra.mxu0 %v6111
    %9709 = vmatprep.subr.bf16.mxu0 %v6108
    %9710 = vmatpush1.bf16.msra.mxu0 %v6107
    %9711 = vmatprep.subr.bf16.mxu0 %v6104
    %9712 = vmatpush1.bf16.msra.mxu0 %v6103
    %9713 = vmatprep.subr.bf16.mxu0 %v6100
    %9714 = vmatpush1.bf16.msra.mxu0 %v6099
    %9715 = vmatprep.subr.bf16.mxu0 %v6160
    %9716 = vmatpush2.bf16.msra.mxu0 %v6159
    %9717 = vmatprep.subr.bf16.mxu0 %v6156
    %9718 = vmatpush2.bf16.msra.mxu0 %v6155
    %9719 = vmatprep.subr.bf16.mxu0 %v6152
    %9720 = vmatpush2.bf16.msra.mxu0 %v6151
    %9721 = vmatprep.subr.bf16.mxu0 %v6148
    %9722 = vmatpush2.bf16.msra.mxu0 %v6147
    %9723 = vmatprep.subr.bf16.mxu0 %v6144
    %9724 = vmatpush2.bf16.msra.mxu0 %v6143
    %9725 = vmatprep.subr.bf16.mxu0 %v6140
    %9726 = vmatpush2.bf16.msra.mxu0 %v6139
    %9727 = vmatprep.subr.bf16.mxu0 %v6136
    %9728 = vmatpush2.bf16.msra.mxu0 %v6135
    %9729 = vmatprep.subr.bf16.mxu0 %v6132
    %9730 = vmatpush2.bf16.msra.mxu0 %v6131
    %9731 = vmatprep.mubr.bf16.mxu0 %v7196
    %9732 = vmatmul.mubr.bf16.gmra.mxu0 %v7195
    %v9733 = vpop.f32.mrf.mxu0
    %v9734 = vadd.f32 0.0, %v9733
    %v9735 = vpop.f32.mrf.mxu0
    %v9736 = vadd.f32 0.0, %v9735
    %v9737 = vpop.f32.mrf.mxu0
    %v9738 = vadd.f32 0.0, %v9737
    %v9739 = vpop.f32.mrf.mxu0
    %v9740 = vadd.f32 0.0, %v9739
    %9741 = vmatprep.mubr.bf16.mxu0 %v7199
    %9742 = vmatmul.mubr.bf16.gmra.mxu0 %v7198
    %v9743 = vpop.f32.mrf.mxu0
    %v9744 = vadd.f32 0.0, %v9743
    %v9745 = vpop.f32.mrf.mxu0
    %v9746 = vadd.f32 0.0, %v9745
    %v9747 = vpop.f32.mrf.mxu0
    %v9748 = vadd.f32 0.0, %v9747
    %v9749 = vpop.f32.mrf.mxu0
    %v9750 = vadd.f32 0.0, %v9749
    %9751 = vdwg.mxu0
    %9752 = vmatprep.subr.bf16.mxu0 %v6192
    %9753 = vmatpush1.bf16.msra.mxu0 %v6191
    %9754 = vmatprep.subr.bf16.mxu0 %v6188
    %9755 = vmatpush1.bf16.msra.mxu0 %v6187
    %9756 = vmatprep.subr.bf16.mxu0 %v6184
    %9757 = vmatpush1.bf16.msra.mxu0 %v6183
    %9758 = vmatprep.subr.bf16.mxu0 %v6180
    %9759 = vmatpush1.bf16.msra.mxu0 %v6179
    %9760 = vmatprep.subr.bf16.mxu0 %v6176
    %9761 = vmatpush1.bf16.msra.mxu0 %v6175
    %9762 = vmatprep.subr.bf16.mxu0 %v6172
    %9763 = vmatpush1.bf16.msra.mxu0 %v6171
    %9764 = vmatprep.subr.bf16.mxu0 %v6168
    %9765 = vmatpush1.bf16.msra.mxu0 %v6167
    %9766 = vmatprep.subr.bf16.mxu0 %v6164
    %9767 = vmatpush1.bf16.msra.mxu0 %v6163
    %9768 = vmatprep.subr.bf16.mxu0 0
    %9769 = vmatpush2.bf16.msra.mxu0 0
    %9770 = vmatprep.subr.bf16.mxu0 0
    %9771 = vmatpush2.bf16.msra.mxu0 0
    %9772 = vmatprep.subr.bf16.mxu0 0
    %9773 = vmatpush2.bf16.msra.mxu0 0
    %9774 = vmatprep.subr.bf16.mxu0 0
    %9775 = vmatpush2.bf16.msra.mxu0 0
    %9776 = vmatprep.subr.bf16.mxu0 0
    %9777 = vmatpush2.bf16.msra.mxu0 0
    %9778 = vmatprep.subr.bf16.mxu0 0
    %9779 = vmatpush2.bf16.msra.mxu0 0
    %9780 = vmatprep.subr.bf16.mxu0 0
    %9781 = vmatpush2.bf16.msra.mxu0 0
    %9782 = vmatprep.subr.bf16.mxu0 0
    %9783 = vmatpush2.bf16.msra.mxu0 0
    %9784 = vmatprep.mubr.bf16.mxu0 0
    %9785 = vmatmul.mubr.bf16.gmra.mxu0 %v7197
    %v9786 = vpop.f32.mrf.mxu0
    %v9787 = vadd.f32 %v9734, %v9786
    %v9788 = vpop.f32.mrf.mxu0
    %v9789 = vadd.f32 %v9736, %v9788
    %v9790 = vpop.f32.mrf.mxu0
    %v9791 = vadd.f32 %v9738, %v9790
    %v9792 = vpop.f32.mrf.mxu0
    %v9793 = vadd.f32 %v9740, %v9792
    %9794 = vmatprep.mubr.bf16.mxu0 0
    %9795 = vmatmul.mubr.bf16.gmra.mxu0 %v7200
    %v9796 = vpop.f32.mrf.mxu0
    %v9797 = vadd.f32 %v9744, %v9796
    %v9798 = vpop.f32.mrf.mxu0
    %v9799 = vadd.f32 %v9746, %v9798
    %v9800 = vpop.f32.mrf.mxu0
    %v9801 = vadd.f32 %v9748, %v9800
    %v9802 = vpop.f32.mrf.mxu0
    %v9803 = vadd.f32 %v9750, %v9802
    %9804 = vdwg.mxu0
    %9805 = vmatprep.subr.bf16.mxu0 %v6130
    %9806 = vmatpush1.bf16.msra.mxu0 %v6129
    %9807 = vmatprep.subr.bf16.mxu0 %v6126
    %9808 = vmatpush1.bf16.msra.mxu0 %v6125
    %9809 = vmatprep.subr.bf16.mxu0 %v6122
    %9810 = vmatpush1.bf16.msra.mxu0 %v6121
    %9811 = vmatprep.subr.bf16.mxu0 %v6118
    %9812 = vmatpush1.bf16.msra.mxu0 %v6117
    %9813 = vmatprep.subr.bf16.mxu0 %v6114
    %9814 = vmatpush1.bf16.msra.mxu0 %v6113
    %9815 = vmatprep.subr.bf16.mxu0 %v6110
    %9816 = vmatpush1.bf16.msra.mxu0 %v6109
    %9817 = vmatprep.subr.bf16.mxu0 %v6106
    %9818 = vmatpush1.bf16.msra.mxu0 %v6105
    %9819 = vmatprep.subr.bf16.mxu0 %v6102
    %9820 = vmatpush1.bf16.msra.mxu0 %v6101
    %9821 = vmatprep.subr.bf16.mxu0 %v6162
    %9822 = vmatpush2.bf16.msra.mxu0 %v6161
    %9823 = vmatprep.subr.bf16.mxu0 %v6158
    %9824 = vmatpush2.bf16.msra.mxu0 %v6157
    %9825 = vmatprep.subr.bf16.mxu0 %v6154
    %9826 = vmatpush2.bf16.msra.mxu0 %v6153
    %9827 = vmatprep.subr.bf16.mxu0 %v6150
    %9828 = vmatpush2.bf16.msra.mxu0 %v6149
    %9829 = vmatprep.subr.bf16.mxu0 %v6146
    %9830 = vmatpush2.bf16.msra.mxu0 %v6145
    %9831 = vmatprep.subr.bf16.mxu0 %v6142
    %9832 = vmatpush2.bf16.msra.mxu0 %v6141
    %9833 = vmatprep.subr.bf16.mxu0 %v6138
    %9834 = vmatpush2.bf16.msra.mxu0 %v6137
    %9835 = vmatprep.subr.bf16.mxu0 %v6134
    %9836 = vmatpush2.bf16.msra.mxu0 %v6133
    %9837 = vmatprep.mubr.bf16.mxu0 %v7196
    %9838 = vmatmul.mubr.bf16.gmra.mxu0 %v7195
    %v9839 = vpop.f32.mrf.mxu0
    %v9840 = vadd.f32 0.0, %v9839
    %v9841 = vpop.f32.mrf.mxu0
    %v9842 = vadd.f32 0.0, %v9841
    %v9843 = vpop.f32.mrf.mxu0
    %v9844 = vadd.f32 0.0, %v9843
    %v9845 = vpop.f32.mrf.mxu0
    %v9846 = vadd.f32 0.0, %v9845
    %9847 = vmatprep.mubr.bf16.mxu0 %v7199
    %9848 = vmatmul.mubr.bf16.gmra.mxu0 %v7198
    %v9849 = vpop.f32.mrf.mxu0
    %v9850 = vadd.f32 0.0, %v9849
    %v9851 = vpop.f32.mrf.mxu0
    %v9852 = vadd.f32 0.0, %v9851
    %v9853 = vpop.f32.mrf.mxu0
    %v9854 = vadd.f32 0.0, %v9853
    %v9855 = vpop.f32.mrf.mxu0
    %v9856 = vadd.f32 0.0, %v9855
    %9857 = vdwg.mxu0
    %9858 = vmatprep.subr.bf16.mxu0 %v6194
    %9859 = vmatpush1.bf16.msra.mxu0 %v6193
    %9860 = vmatprep.subr.bf16.mxu0 %v6190
    %9861 = vmatpush1.bf16.msra.mxu0 %v6189
    %9862 = vmatprep.subr.bf16.mxu0 %v6186
    %9863 = vmatpush1.bf16.msra.mxu0 %v6185
    %9864 = vmatprep.subr.bf16.mxu0 %v6182
    %9865 = vmatpush1.bf16.msra.mxu0 %v6181
    %9866 = vmatprep.subr.bf16.mxu0 %v6178
    %9867 = vmatpush1.bf16.msra.mxu0 %v6177
    %9868 = vmatprep.subr.bf16.mxu0 %v6174
    %9869 = vmatpush1.bf16.msra.mxu0 %v6173
    %9870 = vmatprep.subr.bf16.mxu0 %v6170
    %9871 = vmatpush1.bf16.msra.mxu0 %v6169
    %9872 = vmatprep.subr.bf16.mxu0 %v6166
    %9873 = vmatpush1.bf16.msra.mxu0 %v6165
    %9874 = vmatprep.subr.bf16.mxu0 0
    %9875 = vmatpush2.bf16.msra.mxu0 0
    %9876 = vmatprep.subr.bf16.mxu0 0
    %9877 = vmatpush2.bf16.msra.mxu0 0
    %9878 = vmatprep.subr.bf16.mxu0 0
    %9879 = vmatpush2.bf16.msra.mxu0 0
    %9880 = vmatprep.subr.bf16.mxu0 0
    %9881 = vmatpush2.bf16.msra.mxu0 0
    %9882 = vmatprep.subr.bf16.mxu0 0
    %9883 = vmatpush2.bf16.msra.mxu0 0
    %9884 = vmatprep.subr.bf16.mxu0 0
    %9885 = vmatpush2.bf16.msra.mxu0 0
    %9886 = vmatprep.subr.bf16.mxu0 0
    %9887 = vmatpush2.bf16.msra.mxu0 0
    %9888 = vmatprep.subr.bf16.mxu0 0
    %9889 = vmatpush2.bf16.msra.mxu0 0
    %9890 = vmatprep.mubr.bf16.mxu0 0
    %9891 = vmatmul.mubr.bf16.gmra.mxu0 %v7197
    %v9892 = vpop.f32.mrf.mxu0
    %v9893 = vadd.f32 %v9840, %v9892
    %v9894 = vpop.f32.mrf.mxu0
    %v9895 = vadd.f32 %v9842, %v9894
    %v9896 = vpop.f32.mrf.mxu0
    %v9897 = vadd.f32 %v9844, %v9896
    %v9898 = vpop.f32.mrf.mxu0
    %v9899 = vadd.f32 %v9846, %v9898
    %9900 = vmatprep.mubr.bf16.mxu0 0
    %9901 = vmatmul.mubr.bf16.gmra.mxu0 %v7200
    %v9902 = vpop.f32.mrf.mxu0
    %v9903 = vadd.f32 %v9850, %v9902
    %v9904 = vpop.f32.mrf.mxu0
    %v9905 = vadd.f32 %v9852, %v9904
    %v9906 = vpop.f32.mrf.mxu0
    %v9907 = vadd.f32 %v9854, %v9906
    %v9908 = vpop.f32.mrf.mxu0
    %v9909 = vadd.f32 %v9856, %v9908
    %9910 = vdwg.mxu0
    %9911 = vmatprep.subr.bf16.mxu0 %v6820
    %9912 = vmatpush1.bf16.msra.mxu0 %v6819
    %9913 = vmatprep.subr.bf16.mxu0 %v6816
    %9914 = vmatpush1.bf16.msra.mxu0 %v6815
    %9915 = vmatprep.subr.bf16.mxu0 %v6812
    %9916 = vmatpush1.bf16.msra.mxu0 %v6811
    %9917 = vmatprep.subr.bf16.mxu0 %v6808
    %9918 = vmatpush1.bf16.msra.mxu0 %v6807
    %9919 = vmatprep.subr.bf16.mxu0 %v6804
    %9920 = vmatpush1.bf16.msra.mxu0 %v6803
    %9921 = vmatprep.subr.bf16.mxu0 %v6800
    %9922 = vmatpush1.bf16.msra.mxu0 %v6799
    %9923 = vmatprep.subr.bf16.mxu0 %v6796
    %9924 = vmatpush1.bf16.msra.mxu0 %v6795
    %9925 = vmatprep.subr.bf16.mxu0 %v6792
    %9926 = vmatpush1.bf16.msra.mxu0 %v6791
    %9927 = vmatprep.subr.bf16.mxu0 %v6852
    %9928 = vmatpush2.bf16.msra.mxu0 %v6851
    %9929 = vmatprep.subr.bf16.mxu0 %v6848
    %9930 = vmatpush2.bf16.msra.mxu0 %v6847
    %9931 = vmatprep.subr.bf16.mxu0 %v6844
    %9932 = vmatpush2.bf16.msra.mxu0 %v6843
    %9933 = vmatprep.subr.bf16.mxu0 %v6840
    %9934 = vmatpush2.bf16.msra.mxu0 %v6839
    %9935 = vmatprep.subr.bf16.mxu0 %v6836
    %9936 = vmatpush2.bf16.msra.mxu0 %v6835
    %9937 = vmatprep.subr.bf16.mxu0 %v6832
    %9938 = vmatpush2.bf16.msra.mxu0 %v6831
    %9939 = vmatprep.subr.bf16.mxu0 %v6828
    %9940 = vmatpush2.bf16.msra.mxu0 %v6827
    %9941 = vmatprep.subr.bf16.mxu0 %v6824
    %9942 = vmatpush2.bf16.msra.mxu0 %v6823
    %9943 = vmatprep.mubr.bf16.mxu0 %v5709
    %9944 = vmatmul.mubr.bf16.gmra.mxu0 %v5708
    %v9945 = vpop.f32.mrf.mxu0
    %v9946 = vadd.f32 %v9787, %v9945
    %v9947 = vpop.f32.mrf.mxu0
    %v9948 = vadd.f32 %v9789, %v9947
    %v9949 = vpop.f32.mrf.mxu0
    %v9950 = vadd.f32 %v9791, %v9949
    %v9951 = vpop.f32.mrf.mxu0
    %v9952 = vadd.f32 %v9793, %v9951
    %9953 = vmatprep.mubr.bf16.mxu0 %v5712
    %9954 = vmatmul.mubr.bf16.gmra.mxu0 %v5711
    %v9955 = vpop.f32.mrf.mxu0
    %v9956 = vadd.f32 %v9797, %v9955
    %v9957 = vpop.f32.mrf.mxu0
    %v9958 = vadd.f32 %v9799, %v9957
    %v9959 = vpop.f32.mrf.mxu0
    %v9960 = vadd.f32 %v9801, %v9959
    %v9961 = vpop.f32.mrf.mxu0
    %v9962 = vadd.f32 %v9803, %v9961
    %9963 = vdwg.mxu0
    %9964 = vmatprep.subr.bf16.mxu0 %v6884
    %9965 = vmatpush1.bf16.msra.mxu0 %v6883
    %9966 = vmatprep.subr.bf16.mxu0 %v6880
    %9967 = vmatpush1.bf16.msra.mxu0 %v6879
    %9968 = vmatprep.subr.bf16.mxu0 %v6876
    %9969 = vmatpush1.bf16.msra.mxu0 %v6875
    %9970 = vmatprep.subr.bf16.mxu0 %v6872
    %9971 = vmatpush1.bf16.msra.mxu0 %v6871
    %9972 = vmatprep.subr.bf16.mxu0 %v6868
    %9973 = vmatpush1.bf16.msra.mxu0 %v6867
    %9974 = vmatprep.subr.bf16.mxu0 %v6864
    %9975 = vmatpush1.bf16.msra.mxu0 %v6863
    %9976 = vmatprep.subr.bf16.mxu0 %v6860
    %9977 = vmatpush1.bf16.msra.mxu0 %v6859
    %9978 = vmatprep.subr.bf16.mxu0 %v6856
    %9979 = vmatpush1.bf16.msra.mxu0 %v6855
    %9980 = vmatprep.subr.bf16.mxu0 0
    %9981 = vmatpush2.bf16.msra.mxu0 0
    %9982 = vmatprep.subr.bf16.mxu0 0
    %9983 = vmatpush2.bf16.msra.mxu0 0
    %9984 = vmatprep.subr.bf16.mxu0 0
    %9985 = vmatpush2.bf16.msra.mxu0 0
    %9986 = vmatprep.subr.bf16.mxu0 0
    %9987 = vmatpush2.bf16.msra.mxu0 0
    %9988 = vmatprep.subr.bf16.mxu0 0
    %9989 = vmatpush2.bf16.msra.mxu0 0
    %9990 = vmatprep.subr.bf16.mxu0 0
    %9991 = vmatpush2.bf16.msra.mxu0 0
    %9992 = vmatprep.subr.bf16.mxu0 0
    %9993 = vmatpush2.bf16.msra.mxu0 0
    %9994 = vmatprep.subr.bf16.mxu0 0
    %9995 = vmatpush2.bf16.msra.mxu0 0
    %9996 = vmatprep.mubr.bf16.mxu0 0
    %9997 = vmatmul.mubr.bf16.gmra.mxu0 %v5710
    %v9998 = vpop.f32.mrf.mxu0
    %v9999 = vadd.f32 %v9946, %v9998
    %v10000 = vpop.f32.mrf.mxu0
    %v10001 = vadd.f32 %v9948, %v10000
    %v10002 = vpop.f32.mrf.mxu0
    %v10003 = vadd.f32 %v9950, %v10002
    %v10004 = vpop.f32.mrf.mxu0
    %v10005 = vadd.f32 %v9952, %v10004
    %10006 = vmatprep.mubr.bf16.mxu0 0
    %10007 = vmatmul.mubr.bf16.gmra.mxu0 %v5713
    %v10008 = vpop.f32.mrf.mxu0
    %v10009 = vadd.f32 %v9956, %v10008
    %v10010 = vpop.f32.mrf.mxu0
    %v10011 = vadd.f32 %v9958, %v10010
    %v10012 = vpop.f32.mrf.mxu0
    %v10013 = vadd.f32 %v9960, %v10012
    %v10014 = vpop.f32.mrf.mxu0
    %v10015 = vadd.f32 %v9962, %v10014
    %10016 = vdwg.mxu0
    %10017 = vmatprep.subr.bf16.mxu0 %v6822
    %10018 = vmatpush1.bf16.msra.mxu0 %v6821
    %10019 = vmatprep.subr.bf16.mxu0 %v6818
    %10020 = vmatpush1.bf16.msra.mxu0 %v6817
    %10021 = vmatprep.subr.bf16.mxu0 %v6814
    %10022 = vmatpush1.bf16.msra.mxu0 %v6813
    %10023 = vmatprep.subr.bf16.mxu0 %v6810
    %10024 = vmatpush1.bf16.msra.mxu0 %v6809
    %10025 = vmatprep.subr.bf16.mxu0 %v6806
    %10026 = vmatpush1.bf16.msra.mxu0 %v6805
    %10027 = vmatprep.subr.bf16.mxu0 %v6802
    %10028 = vmatpush1.bf16.msra.mxu0 %v6801
    %10029 = vmatprep.subr.bf16.mxu0 %v6798
    %10030 = vmatpush1.bf16.msra.mxu0 %v6797
    %10031 = vmatprep.subr.bf16.mxu0 %v6794
    %10032 = vmatpush1.bf16.msra.mxu0 %v6793
    %10033 = vmatprep.subr.bf16.mxu0 %v6854
    %10034 = vmatpush2.bf16.msra.mxu0 %v6853
    %10035 = vmatprep.subr.bf16.mxu0 %v6850
    %10036 = vmatpush2.bf16.msra.mxu0 %v6849
    %10037 = vmatprep.subr.bf16.mxu0 %v6846
    %10038 = vmatpush2.bf16.msra.mxu0 %v6845
    %10039 = vmatprep.subr.bf16.mxu0 %v6842
    %10040 = vmatpush2.bf16.msra.mxu0 %v6841
    %10041 = vmatprep.subr.bf16.mxu0 %v6838
    %10042 = vmatpush2.bf16.msra.mxu0 %v6837
    %10043 = vmatprep.subr.bf16.mxu0 %v6834
    %10044 = vmatpush2.bf16.msra.mxu0 %v6833
    %10045 = vmatprep.subr.bf16.mxu0 %v6830
    %10046 = vmatpush2.bf16.msra.mxu0 %v6829
    %10047 = vmatprep.subr.bf16.mxu0 %v6826
    %10048 = vmatpush2.bf16.msra.mxu0 %v6825
    %10049 = vmatprep.mubr.bf16.mxu0 %v5709
    %10050 = vmatmul.mubr.bf16.gmra.mxu0 %v5708
    %v10051 = vpop.f32.mrf.mxu0
    %v10052 = vadd.f32 %v9893, %v10051
    %v10053 = vpop.f32.mrf.mxu0
    %v10054 = vadd.f32 %v9895, %v10053
    %v10055 = vpop.f32.mrf.mxu0
    %v10056 = vadd.f32 %v9897, %v10055
    %v10057 = vpop.f32.mrf.mxu0
    %v10058 = vadd.f32 %v9899, %v10057
    %10059 = vmatprep.mubr.bf16.mxu0 %v5712
    %10060 = vmatmul.mubr.bf16.gmra.mxu0 %v5711
    %v10061 = vpop.f32.mrf.mxu0
    %v10062 = vadd.f32 %v9903, %v10061
    %v10063 = vpop.f32.mrf.mxu0
    %v10064 = vadd.f32 %v9905, %v10063
    %v10065 = vpop.f32.mrf.mxu0
    %v10066 = vadd.f32 %v9907, %v10065
    %v10067 = vpop.f32.mrf.mxu0
    %v10068 = vadd.f32 %v9909, %v10067
    %10069 = vdwg.mxu0
    %10070 = vmatprep.subr.bf16.mxu0 %v6886
    %10071 = vmatpush1.bf16.msra.mxu0 %v6885
    %10072 = vmatprep.subr.bf16.mxu0 %v6882
    %10073 = vmatpush1.bf16.msra.mxu0 %v6881
    %10074 = vmatprep.subr.bf16.mxu0 %v6878
    %10075 = vmatpush1.bf16.msra.mxu0 %v6877
    %10076 = vmatprep.subr.bf16.mxu0 %v6874
    %10077 = vmatpush1.bf16.msra.mxu0 %v6873
    %10078 = vmatprep.subr.bf16.mxu0 %v6870
    %10079 = vmatpush1.bf16.msra.mxu0 %v6869
    %10080 = vmatprep.subr.bf16.mxu0 %v6866
    %10081 = vmatpush1.bf16.msra.mxu0 %v6865
    %10082 = vmatprep.subr.bf16.mxu0 %v6862
    %10083 = vmatpush1.bf16.msra.mxu0 %v6861
    %10084 = vmatprep.subr.bf16.mxu0 %v6858
    %10085 = vmatpush1.bf16.msra.mxu0 %v6857
    %10086 = vmatprep.subr.bf16.mxu0 0
    %10087 = vmatpush2.bf16.msra.mxu0 0
    %10088 = vmatprep.subr.bf16.mxu0 0
    %10089 = vmatpush2.bf16.msra.mxu0 0
    %10090 = vmatprep.subr.bf16.mxu0 0
    %10091 = vmatpush2.bf16.msra.mxu0 0
    %10092 = vmatprep.subr.bf16.mxu0 0
    %10093 = vmatpush2.bf16.msra.mxu0 0
    %10094 = vmatprep.subr.bf16.mxu0 0
    %10095 = vmatpush2.bf16.msra.mxu0 0
    %10096 = vmatprep.subr.bf16.mxu0 0
    %10097 = vmatpush2.bf16.msra.mxu0 0
    %10098 = vmatprep.subr.bf16.mxu0 0
    %10099 = vmatpush2.bf16.msra.mxu0 0
    %10100 = vmatprep.subr.bf16.mxu0 0
    %10101 = vmatpush2.bf16.msra.mxu0 0
    %10102 = vmatprep.mubr.bf16.mxu0 0
    %10103 = vmatmul.mubr.bf16.gmra.mxu0 %v5710
    %v10104 = vpop.f32.mrf.mxu0
    %v10105 = vadd.f32 %v10052, %v10104
    %v10106 = vpop.f32.mrf.mxu0
    %v10107 = vadd.f32 %v10054, %v10106
    %v10108 = vpop.f32.mrf.mxu0
    %v10109 = vadd.f32 %v10056, %v10108
    %v10110 = vpop.f32.mrf.mxu0
    %v10111 = vadd.f32 %v10058, %v10110
    %10112 = vmatprep.mubr.bf16.mxu0 0
    %10113 = vmatmul.mubr.bf16.gmra.mxu0 %v5713
    %v10114 = vpop.f32.mrf.mxu0
    %v10115 = vadd.f32 %v10062, %v10114
    %v10116 = vpop.f32.mrf.mxu0
    %v10117 = vadd.f32 %v10064, %v10116
    %v10118 = vpop.f32.mrf.mxu0
    %v10119 = vadd.f32 %v10066, %v10118
    %v10120 = vpop.f32.mrf.mxu0
    %v10121 = vadd.f32 %v10068, %v10120
    %10122 = vdwg.mxu0
    %10123 = vmatprep.subr.bf16.mxu0 %v7615
    %10124 = vmatpush1.bf16.msra.mxu0 %v7614
    %10125 = vmatprep.subr.bf16.mxu0 %v7611
    %10126 = vmatpush1.bf16.msra.mxu0 %v7610
    %10127 = vmatprep.subr.bf16.mxu0 %v7607
    %10128 = vmatpush1.bf16.msra.mxu0 %v7606
    %10129 = vmatprep.subr.bf16.mxu0 %v7603
    %10130 = vmatpush1.bf16.msra.mxu0 %v7602
    %10131 = vmatprep.subr.bf16.mxu0 %v7599
    %10132 = vmatpush1.bf16.msra.mxu0 %v7598
    %10133 = vmatprep.subr.bf16.mxu0 %v7595
    %10134 = vmatpush1.bf16.msra.mxu0 %v7594
    %10135 = vmatprep.subr.bf16.mxu0 %v7591
    %10136 = vmatpush1.bf16.msra.mxu0 %v7590
    %10137 = vmatprep.subr.bf16.mxu0 %v7587
    %10138 = vmatpush1.bf16.msra.mxu0 %v7586
    %10139 = vmatprep.subr.bf16.mxu0 %v7647
    %10140 = vmatpush2.bf16.msra.mxu0 %v7646
    %10141 = vmatprep.subr.bf16.mxu0 %v7643
    %10142 = vmatpush2.bf16.msra.mxu0 %v7642
    %10143 = vmatprep.subr.bf16.mxu0 %v7639
    %10144 = vmatpush2.bf16.msra.mxu0 %v7638
    %10145 = vmatprep.subr.bf16.mxu0 %v7635
    %10146 = vmatpush2.bf16.msra.mxu0 %v7634
    %10147 = vmatprep.subr.bf16.mxu0 %v7631
    %10148 = vmatpush2.bf16.msra.mxu0 %v7630
    %10149 = vmatprep.subr.bf16.mxu0 %v7627
    %10150 = vmatpush2.bf16.msra.mxu0 %v7626
    %10151 = vmatprep.subr.bf16.mxu0 %v7623
    %10152 = vmatpush2.bf16.msra.mxu0 %v7622
    %10153 = vmatprep.subr.bf16.mxu0 %v7619
    %10154 = vmatpush2.bf16.msra.mxu0 %v7618
    %10155 = vmatprep.mubr.bf16.mxu0 %v8007
    %10156 = vmatmul.mubr.bf16.gmra.mxu0 %v8006
    %v10157 = vpop.f32.mrf.mxu0
    %v10158 = vadd.f32 0.0, %v10157
    %v10159 = vpop.f32.mrf.mxu0
    %v10160 = vadd.f32 0.0, %v10159
    %v10161 = vpop.f32.mrf.mxu0
    %v10162 = vadd.f32 0.0, %v10161
    %v10163 = vpop.f32.mrf.mxu0
    %v10164 = vadd.f32 0.0, %v10163
    %10165 = vmatprep.mubr.bf16.mxu0 %v8010
    %10166 = vmatmul.mubr.bf16.gmra.mxu0 %v8009
    %v10167 = vpop.f32.mrf.mxu0
    %v10168 = vadd.f32 0.0, %v10167
    %v10169 = vpop.f32.mrf.mxu0
    %v10170 = vadd.f32 0.0, %v10169
    %v10171 = vpop.f32.mrf.mxu0
    %v10172 = vadd.f32 0.0, %v10171
    %v10173 = vpop.f32.mrf.mxu0
    %v10174 = vadd.f32 0.0, %v10173
    %10175 = vdwg.mxu0
    %10176 = vmatprep.subr.bf16.mxu0 %v7679
    %10177 = vmatpush1.bf16.msra.mxu0 %v7678
    %10178 = vmatprep.subr.bf16.mxu0 %v7675
    %10179 = vmatpush1.bf16.msra.mxu0 %v7674
    %10180 = vmatprep.subr.bf16.mxu0 %v7671
    %10181 = vmatpush1.bf16.msra.mxu0 %v7670
    %10182 = vmatprep.subr.bf16.mxu0 %v7667
    %10183 = vmatpush1.bf16.msra.mxu0 %v7666
    %10184 = vmatprep.subr.bf16.mxu0 %v7663
    %10185 = vmatpush1.bf16.msra.mxu0 %v7662
    %10186 = vmatprep.subr.bf16.mxu0 %v7659
    %10187 = vmatpush1.bf16.msra.mxu0 %v7658
    %10188 = vmatprep.subr.bf16.mxu0 %v7655
    %10189 = vmatpush1.bf16.msra.mxu0 %v7654
    %10190 = vmatprep.subr.bf16.mxu0 %v7651
    %10191 = vmatpush1.bf16.msra.mxu0 %v7650
    %10192 = vmatprep.subr.bf16.mxu0 0
    %10193 = vmatpush2.bf16.msra.mxu0 0
    %10194 = vmatprep.subr.bf16.mxu0 0
    %10195 = vmatpush2.bf16.msra.mxu0 0
    %10196 = vmatprep.subr.bf16.mxu0 0
    %10197 = vmatpush2.bf16.msra.mxu0 0
    %10198 = vmatprep.subr.bf16.mxu0 0
    %10199 = vmatpush2.bf16.msra.mxu0 0
    %10200 = vmatprep.subr.bf16.mxu0 0
    %10201 = vmatpush2.bf16.msra.mxu0 0
    %10202 = vmatprep.subr.bf16.mxu0 0
    %10203 = vmatpush2.bf16.msra.mxu0 0
    %10204 = vmatprep.subr.bf16.mxu0 0
    %10205 = vmatpush2.bf16.msra.mxu0 0
    %10206 = vmatprep.subr.bf16.mxu0 0
    %10207 = vmatpush2.bf16.msra.mxu0 0
    %10208 = vmatprep.mubr.bf16.mxu0 0
    %10209 = vmatmul.mubr.bf16.gmra.mxu0 %v8008
    %v10210 = vpop.f32.mrf.mxu0
    %v10211 = vadd.f32 %v10158, %v10210
    %v10212 = vpop.f32.mrf.mxu0
    %v10213 = vadd.f32 %v10160, %v10212
    %v10214 = vpop.f32.mrf.mxu0
    %v10215 = vadd.f32 %v10162, %v10214
    %v10216 = vpop.f32.mrf.mxu0
    %v10217 = vadd.f32 %v10164, %v10216
    %10218 = vmatprep.mubr.bf16.mxu0 0
    %10219 = vmatmul.mubr.bf16.gmra.mxu0 %v8011
    %v10220 = vpop.f32.mrf.mxu0
    %v10221 = vadd.f32 %v10168, %v10220
    %v10222 = vpop.f32.mrf.mxu0
    %v10223 = vadd.f32 %v10170, %v10222
    %v10224 = vpop.f32.mrf.mxu0
    %v10225 = vadd.f32 %v10172, %v10224
    %v10226 = vpop.f32.mrf.mxu0
    %v10227 = vadd.f32 %v10174, %v10226
    %10228 = vdwg.mxu0
    %10229 = vmatprep.subr.bf16.mxu0 %v7617
    %10230 = vmatpush1.bf16.msra.mxu0 %v7616
    %10231 = vmatprep.subr.bf16.mxu0 %v7613
    %10232 = vmatpush1.bf16.msra.mxu0 %v7612
    %10233 = vmatprep.subr.bf16.mxu0 %v7609
    %10234 = vmatpush1.bf16.msra.mxu0 %v7608
    %10235 = vmatprep.subr.bf16.mxu0 %v7605
    %10236 = vmatpush1.bf16.msra.mxu0 %v7604
    %10237 = vmatprep.subr.bf16.mxu0 %v7601
    %10238 = vmatpush1.bf16.msra.mxu0 %v7600
    %10239 = vmatprep.subr.bf16.mxu0 %v7597
    %10240 = vmatpush1.bf16.msra.mxu0 %v7596
    %10241 = vmatprep.subr.bf16.mxu0 %v7593
    %10242 = vmatpush1.bf16.msra.mxu0 %v7592
    %10243 = vmatprep.subr.bf16.mxu0 %v7589
    %10244 = vmatpush1.bf16.msra.mxu0 %v7588
    %10245 = vmatprep.subr.bf16.mxu0 %v7649
    %10246 = vmatpush2.bf16.msra.mxu0 %v7648
    %10247 = vmatprep.subr.bf16.mxu0 %v7645
    %10248 = vmatpush2.bf16.msra.mxu0 %v7644
    %10249 = vmatprep.subr.bf16.mxu0 %v7641
    %10250 = vmatpush2.bf16.msra.mxu0 %v7640
    %10251 = vmatprep.subr.bf16.mxu0 %v7637
    %10252 = vmatpush2.bf16.msra.mxu0 %v7636
    %10253 = vmatprep.subr.bf16.mxu0 %v7633
    %10254 = vmatpush2.bf16.msra.mxu0 %v7632
    %10255 = vmatprep.subr.bf16.mxu0 %v7629
    %10256 = vmatpush2.bf16.msra.mxu0 %v7628
    %10257 = vmatprep.subr.bf16.mxu0 %v7625
    %10258 = vmatpush2.bf16.msra.mxu0 %v7624
    %10259 = vmatprep.subr.bf16.mxu0 %v7621
    %10260 = vmatpush2.bf16.msra.mxu0 %v7620
    %10261 = vmatprep.mubr.bf16.mxu0 %v8007
    %10262 = vmatmul.mubr.bf16.gmra.mxu0 %v8006
    %v10263 = vpop.f32.mrf.mxu0
    %v10264 = vadd.f32 0.0, %v10263
    %v10265 = vpop.f32.mrf.mxu0
    %v10266 = vadd.f32 0.0, %v10265
    %v10267 = vpop.f32.mrf.mxu0
    %v10268 = vadd.f32 0.0, %v10267
    %v10269 = vpop.f32.mrf.mxu0
    %v10270 = vadd.f32 0.0, %v10269
    %10271 = vmatprep.mubr.bf16.mxu0 %v8010
    %10272 = vmatmul.mubr.bf16.gmra.mxu0 %v8009
    %v10273 = vpop.f32.mrf.mxu0
    %v10274 = vadd.f32 0.0, %v10273
    %v10275 = vpop.f32.mrf.mxu0
    %v10276 = vadd.f32 0.0, %v10275
    %v10277 = vpop.f32.mrf.mxu0
    %v10278 = vadd.f32 0.0, %v10277
    %v10279 = vpop.f32.mrf.mxu0
    %v10280 = vadd.f32 0.0, %v10279
    %10281 = vdwg.mxu0
    %10282 = vmatprep.subr.bf16.mxu0 %v7681
    %10283 = vmatpush1.bf16.msra.mxu0 %v7680
    %10284 = vmatprep.subr.bf16.mxu0 %v7677
    %10285 = vmatpush1.bf16.msra.mxu0 %v7676
    %10286 = vmatprep.subr.bf16.mxu0 %v7673
    %10287 = vmatpush1.bf16.msra.mxu0 %v7672
    %10288 = vmatprep.subr.bf16.mxu0 %v7669
    %10289 = vmatpush1.bf16.msra.mxu0 %v7668
    %10290 = vmatprep.subr.bf16.mxu0 %v7665
    %10291 = vmatpush1.bf16.msra.mxu0 %v7664
    %10292 = vmatprep.subr.bf16.mxu0 %v7661
    %10293 = vmatpush1.bf16.msra.mxu0 %v7660
    %10294 = vmatprep.subr.bf16.mxu0 %v7657
    %10295 = vmatpush1.bf16.msra.mxu0 %v7656
    %10296 = vmatprep.subr.bf16.mxu0 %v7653
    %10297 = vmatpush1.bf16.msra.mxu0 %v7652
    %10298 = vmatprep.subr.bf16.mxu0 0
    %10299 = vmatpush2.bf16.msra.mxu0 0
    %10300 = vmatprep.subr.bf16.mxu0 0
    %10301 = vmatpush2.bf16.msra.mxu0 0
    %10302 = vmatprep.subr.bf16.mxu0 0
    %10303 = vmatpush2.bf16.msra.mxu0 0
    %10304 = vmatprep.subr.bf16.mxu0 0
    %10305 = vmatpush2.bf16.msra.mxu0 0
    %10306 = vmatprep.subr.bf16.mxu0 0
    %10307 = vmatpush2.bf16.msra.mxu0 0
    %10308 = vmatprep.subr.bf16.mxu0 0
    %10309 = vmatpush2.bf16.msra.mxu0 0
    %10310 = vmatprep.subr.bf16.mxu0 0
    %10311 = vmatpush2.bf16.msra.mxu0 0
    %10312 = vmatprep.subr.bf16.mxu0 0
    %10313 = vmatpush2.bf16.msra.mxu0 0
    %10314 = vmatprep.mubr.bf16.mxu0 0
    %10315 = vmatmul.mubr.bf16.gmra.mxu0 %v8008
    %v10316 = vpop.f32.mrf.mxu0
    %v10317 = vadd.f32 %v10264, %v10316
    %v10318 = vpop.f32.mrf.mxu0
    %v10319 = vadd.f32 %v10266, %v10318
    %v10320 = vpop.f32.mrf.mxu0
    %v10321 = vadd.f32 %v10268, %v10320
    %v10322 = vpop.f32.mrf.mxu0
    %v10323 = vadd.f32 %v10270, %v10322
    %10324 = vmatprep.mubr.bf16.mxu0 0
    %10325 = vmatmul.mubr.bf16.gmra.mxu0 %v8011
    %v10326 = vpop.f32.mrf.mxu0
    %v10327 = vadd.f32 %v10274, %v10326
    %v10328 = vpop.f32.mrf.mxu0
    %v10329 = vadd.f32 %v10276, %v10328
    %v10330 = vpop.f32.mrf.mxu0
    %v10331 = vadd.f32 %v10278, %v10330
    %v10332 = vpop.f32.mrf.mxu0
    %v10333 = vadd.f32 %v10280, %v10332
    %10334 = vdwg.mxu0
    %v10335 = vadd.f32 %v9999, %v10211
    %v10336 = vadd.f32 %v10001, %v10213
    %v10337 = vadd.f32 %v10105, %v10317
    %v10338 = vadd.f32 %v10107, %v10319
    %v10339 = vadd.f32 %v10003, %v10215
    %v10340 = vadd.f32 %v10005, %v10217
    %v10341 = vadd.f32 %v10109, %v10321
    %v10342 = vadd.f32 %v10111, %v10323
    %v10343 = vadd.f32 %v10009, %v10221
    %v10344 = vadd.f32 %v10011, %v10223
    %v10345 = vadd.f32 %v10115, %v10327
    %v10346 = vadd.f32 %v10117, %v10329
    %v10347 = vadd.f32 %v10013, %v10225
    %v10348 = vadd.f32 %v10015, %v10227
    %v10349 = vadd.f32 %v10119, %v10331
    %v10350 = vadd.f32 %v10121, %v10333
    %10351 = vmatprep.subr.bf16.mxu0 %v8426
    %10352 = vmatpush1.bf16.msra.mxu0 %v8425
    %10353 = vmatprep.subr.bf16.mxu0 %v8422
    %10354 = vmatpush1.bf16.msra.mxu0 %v8421
    %10355 = vmatprep.subr.bf16.mxu0 %v8418
    %10356 = vmatpush1.bf16.msra.mxu0 %v8417
    %10357 = vmatprep.subr.bf16.mxu0 %v8414
    %10358 = vmatpush1.bf16.msra.mxu0 %v8413
    %10359 = vmatprep.subr.bf16.mxu0 %v8410
    %10360 = vmatpush1.bf16.msra.mxu0 %v8409
    %10361 = vmatprep.subr.bf16.mxu0 %v8406
    %10362 = vmatpush1.bf16.msra.mxu0 %v8405
    %10363 = vmatprep.subr.bf16.mxu0 %v8402
    %10364 = vmatpush1.bf16.msra.mxu0 %v8401
    %10365 = vmatprep.subr.bf16.mxu0 %v8398
    %10366 = vmatpush1.bf16.msra.mxu0 %v8397
    %10367 = vmatprep.subr.bf16.mxu0 %v8458
    %10368 = vmatpush2.bf16.msra.mxu0 %v8457
    %10369 = vmatprep.subr.bf16.mxu0 %v8454
    %10370 = vmatpush2.bf16.msra.mxu0 %v8453
    %10371 = vmatprep.subr.bf16.mxu0 %v8450
    %10372 = vmatpush2.bf16.msra.mxu0 %v8449
    %10373 = vmatprep.subr.bf16.mxu0 %v8446
    %10374 = vmatpush2.bf16.msra.mxu0 %v8445
    %10375 = vmatprep.subr.bf16.mxu0 %v8442
    %10376 = vmatpush2.bf16.msra.mxu0 %v8441
    %10377 = vmatprep.subr.bf16.mxu0 %v8438
    %10378 = vmatpush2.bf16.msra.mxu0 %v8437
    %10379 = vmatprep.subr.bf16.mxu0 %v8434
    %10380 = vmatpush2.bf16.msra.mxu0 %v8433
    %10381 = vmatprep.subr.bf16.mxu0 %v8430
    %10382 = vmatpush2.bf16.msra.mxu0 %v8429
    %10383 = vmatprep.mubr.bf16.mxu0 %v5610
    %10384 = vmatmul.mubr.bf16.gmra.mxu0 %v5609
    %v10385 = vpop.f32.mrf.mxu0
    %v10386 = vadd.f32 0.0, %v10385
    %v10387 = vpop.f32.mrf.mxu0
    %v10388 = vadd.f32 0.0, %v10387
    %v10389 = vpop.f32.mrf.mxu0
    %v10390 = vadd.f32 0.0, %v10389
    %v10391 = vpop.f32.mrf.mxu0
    %v10392 = vadd.f32 0.0, %v10391
    %10393 = vmatprep.mubr.bf16.mxu0 %v8818
    %10394 = vmatmul.mubr.bf16.gmra.mxu0 %v8817
    %v10395 = vpop.f32.mrf.mxu0
    %v10396 = vadd.f32 0.0, %v10395
    %v10397 = vpop.f32.mrf.mxu0
    %v10398 = vadd.f32 0.0, %v10397
    %v10399 = vpop.f32.mrf.mxu0
    %v10400 = vadd.f32 0.0, %v10399
    %v10401 = vpop.f32.mrf.mxu0
    %v10402 = vadd.f32 0.0, %v10401
    %10403 = vdwg.mxu0
    %10404 = vmatprep.subr.bf16.mxu0 %v8490
    %10405 = vmatpush1.bf16.msra.mxu0 %v8489
    %10406 = vmatprep.subr.bf16.mxu0 %v8486
    %10407 = vmatpush1.bf16.msra.mxu0 %v8485
    %10408 = vmatprep.subr.bf16.mxu0 %v8482
    %10409 = vmatpush1.bf16.msra.mxu0 %v8481
    %10410 = vmatprep.subr.bf16.mxu0 %v8478
    %10411 = vmatpush1.bf16.msra.mxu0 %v8477
    %10412 = vmatprep.subr.bf16.mxu0 %v8474
    %10413 = vmatpush1.bf16.msra.mxu0 %v8473
    %10414 = vmatprep.subr.bf16.mxu0 %v8470
    %10415 = vmatpush1.bf16.msra.mxu0 %v8469
    %10416 = vmatprep.subr.bf16.mxu0 %v8466
    %10417 = vmatpush1.bf16.msra.mxu0 %v8465
    %10418 = vmatprep.subr.bf16.mxu0 %v8462
    %10419 = vmatpush1.bf16.msra.mxu0 %v8461
    %10420 = vmatprep.subr.bf16.mxu0 0
    %10421 = vmatpush2.bf16.msra.mxu0 0
    %10422 = vmatprep.subr.bf16.mxu0 0
    %10423 = vmatpush2.bf16.msra.mxu0 0
    %10424 = vmatprep.subr.bf16.mxu0 0
    %10425 = vmatpush2.bf16.msra.mxu0 0
    %10426 = vmatprep.subr.bf16.mxu0 0
    %10427 = vmatpush2.bf16.msra.mxu0 0
    %10428 = vmatprep.subr.bf16.mxu0 0
    %10429 = vmatpush2.bf16.msra.mxu0 0
    %10430 = vmatprep.subr.bf16.mxu0 0
    %10431 = vmatpush2.bf16.msra.mxu0 0
    %10432 = vmatprep.subr.bf16.mxu0 0
    %10433 = vmatpush2.bf16.msra.mxu0 0
    %10434 = vmatprep.subr.bf16.mxu0 0
    %10435 = vmatpush2.bf16.msra.mxu0 0
    %10436 = vmatprep.mubr.bf16.mxu0 0
    %10437 = vmatmul.mubr.bf16.gmra.mxu0 %v5611
    %v10438 = vpop.f32.mrf.mxu0
    %v10439 = vadd.f32 %v10386, %v10438
    %v10440 = vpop.f32.mrf.mxu0
    %v10441 = vadd.f32 %v10388, %v10440
    %v10442 = vpop.f32.mrf.mxu0
    %v10443 = vadd.f32 %v10390, %v10442
    %v10444 = vpop.f32.mrf.mxu0
    %v10445 = vadd.f32 %v10392, %v10444
    %10446 = vmatprep.mubr.bf16.mxu0 0
    %10447 = vmatmul.mubr.bf16.gmra.mxu0 %v8819
    %v10448 = vpop.f32.mrf.mxu0
    %v10449 = vadd.f32 %v10396, %v10448
    %v10450 = vpop.f32.mrf.mxu0
    %v10451 = vadd.f32 %v10398, %v10450
    %v10452 = vpop.f32.mrf.mxu0
    %v10453 = vadd.f32 %v10400, %v10452
    %v10454 = vpop.f32.mrf.mxu0
    %v10455 = vadd.f32 %v10402, %v10454
    %10456 = vdwg.mxu0
    %10457 = vmatprep.subr.bf16.mxu0 %v8428
    %10458 = vmatpush1.bf16.msra.mxu0 %v8427
    %10459 = vmatprep.subr.bf16.mxu0 %v8424
    %10460 = vmatpush1.bf16.msra.mxu0 %v8423
    %10461 = vmatprep.subr.bf16.mxu0 %v8420
    %10462 = vmatpush1.bf16.msra.mxu0 %v8419
    %10463 = vmatprep.subr.bf16.mxu0 %v8416
    %10464 = vmatpush1.bf16.msra.mxu0 %v8415
    %10465 = vmatprep.subr.bf16.mxu0 %v8412
    %10466 = vmatpush1.bf16.msra.mxu0 %v8411
    %10467 = vmatprep.subr.bf16.mxu0 %v8408
    %10468 = vmatpush1.bf16.msra.mxu0 %v8407
    %10469 = vmatprep.subr.bf16.mxu0 %v8404
    %10470 = vmatpush1.bf16.msra.mxu0 %v8403
    %10471 = vmatprep.subr.bf16.mxu0 %v8400
    %10472 = vmatpush1.bf16.msra.mxu0 %v8399
    %10473 = vmatprep.subr.bf16.mxu0 %v8460
    %10474 = vmatpush2.bf16.msra.mxu0 %v8459
    %10475 = vmatprep.subr.bf16.mxu0 %v8456
    %10476 = vmatpush2.bf16.msra.mxu0 %v8455
    %10477 = vmatprep.subr.bf16.mxu0 %v8452
    %10478 = vmatpush2.bf16.msra.mxu0 %v8451
    %10479 = vmatprep.subr.bf16.mxu0 %v8448
    %10480 = vmatpush2.bf16.msra.mxu0 %v8447
    %10481 = vmatprep.subr.bf16.mxu0 %v8444
    %10482 = vmatpush2.bf16.msra.mxu0 %v8443
    %10483 = vmatprep.subr.bf16.mxu0 %v8440
    %10484 = vmatpush2.bf16.msra.mxu0 %v8439
    %10485 = vmatprep.subr.bf16.mxu0 %v8436
    %10486 = vmatpush2.bf16.msra.mxu0 %v8435
    %10487 = vmatprep.subr.bf16.mxu0 %v8432
    %10488 = vmatpush2.bf16.msra.mxu0 %v8431
    %10489 = vmatprep.mubr.bf16.mxu0 %v5610
    %10490 = vmatmul.mubr.bf16.gmra.mxu0 %v5609
    %v10491 = vpop.f32.mrf.mxu0
    %v10492 = vadd.f32 0.0, %v10491
    %v10493 = vpop.f32.mrf.mxu0
    %v10494 = vadd.f32 0.0, %v10493
    %v10495 = vpop.f32.mrf.mxu0
    %v10496 = vadd.f32 0.0, %v10495
    %v10497 = vpop.f32.mrf.mxu0
    %v10498 = vadd.f32 0.0, %v10497
    %10499 = vmatprep.mubr.bf16.mxu0 %v8818
    %10500 = vmatmul.mubr.bf16.gmra.mxu0 %v8817
    %v10501 = vpop.f32.mrf.mxu0
    %v10502 = vadd.f32 0.0, %v10501
    %v10503 = vpop.f32.mrf.mxu0
    %v10504 = vadd.f32 0.0, %v10503
    %v10505 = vpop.f32.mrf.mxu0
    %v10506 = vadd.f32 0.0, %v10505
    %v10507 = vpop.f32.mrf.mxu0
    %v10508 = vadd.f32 0.0, %v10507
    %10509 = vdwg.mxu0
    %10510 = vmatprep.subr.bf16.mxu0 %v8492
    %10511 = vmatpush1.bf16.msra.mxu0 %v8491
    %10512 = vmatprep.subr.bf16.mxu0 %v8488
    %10513 = vmatpush1.bf16.msra.mxu0 %v8487
    %10514 = vmatprep.subr.bf16.mxu0 %v8484
    %10515 = vmatpush1.bf16.msra.mxu0 %v8483
    %10516 = vmatprep.subr.bf16.mxu0 %v8480
    %10517 = vmatpush1.bf16.msra.mxu0 %v8479
    %10518 = vmatprep.subr.bf16.mxu0 %v8476
    %10519 = vmatpush1.bf16.msra.mxu0 %v8475
    %10520 = vmatprep.subr.bf16.mxu0 %v8472
    %10521 = vmatpush1.bf16.msra.mxu0 %v8471
    %10522 = vmatprep.subr.bf16.mxu0 %v8468
    %10523 = vmatpush1.bf16.msra.mxu0 %v8467
    %10524 = vmatprep.subr.bf16.mxu0 %v8464
    %10525 = vmatpush1.bf16.msra.mxu0 %v8463
    %10526 = vmatprep.subr.bf16.mxu0 0
    %10527 = vmatpush2.bf16.msra.mxu0 0
    %10528 = vmatprep.subr.bf16.mxu0 0
    %10529 = vmatpush2.bf16.msra.mxu0 0
    %10530 = vmatprep.subr.bf16.mxu0 0
    %10531 = vmatpush2.bf16.msra.mxu0 0
    %10532 = vmatprep.subr.bf16.mxu0 0
    %10533 = vmatpush2.bf16.msra.mxu0 0
    %10534 = vmatprep.subr.bf16.mxu0 0
    %10535 = vmatpush2.bf16.msra.mxu0 0
    %10536 = vmatprep.subr.bf16.mxu0 0
    %10537 = vmatpush2.bf16.msra.mxu0 0
    %10538 = vmatprep.subr.bf16.mxu0 0
    %10539 = vmatpush2.bf16.msra.mxu0 0
    %10540 = vmatprep.subr.bf16.mxu0 0
    %10541 = vmatpush2.bf16.msra.mxu0 0
    %10542 = vmatprep.mubr.bf16.mxu0 0
    %10543 = vmatmul.mubr.bf16.gmra.mxu0 %v5611
    %v10544 = vpop.f32.mrf.mxu0
    %v10545 = vadd.f32 %v10492, %v10544
    %v10546 = vpop.f32.mrf.mxu0
    %v10547 = vadd.f32 %v10494, %v10546
    %v10548 = vpop.f32.mrf.mxu0
    %v10549 = vadd.f32 %v10496, %v10548
    %v10550 = vpop.f32.mrf.mxu0
    %v10551 = vadd.f32 %v10498, %v10550
    %10552 = vmatprep.mubr.bf16.mxu0 0
    %10553 = vmatmul.mubr.bf16.gmra.mxu0 %v8819
    %v10554 = vpop.f32.mrf.mxu0
    %v10555 = vadd.f32 %v10502, %v10554
    %v10556 = vpop.f32.mrf.mxu0
    %v10557 = vadd.f32 %v10504, %v10556
    %v10558 = vpop.f32.mrf.mxu0
    %v10559 = vadd.f32 %v10506, %v10558
    %v10560 = vpop.f32.mrf.mxu0
    %v10561 = vadd.f32 %v10508, %v10560
    %10562 = vdwg.mxu0
    %v10563 = vadd.f32 %v10335, %v10439
    %v10564 = vadd.f32 %v10336, %v10441
    %v10565 = vadd.f32 %v10337, %v10545
    %v10566 = vadd.f32 %v10338, %v10547
    %v10567 = vadd.f32 %v10339, %v10443
    %v10568 = vadd.f32 %v10340, %v10445
    %v10569 = vadd.f32 %v10341, %v10549
    %v10570 = vadd.f32 %v10342, %v10551
    %v10571 = vadd.f32 %v10343, %v10449
    %v10572 = vadd.f32 %v10344, %v10451
    %v10573 = vadd.f32 %v10345, %v10555
    %v10574 = vadd.f32 %v10346, %v10557
    %v10575 = vadd.f32 %v10347, %v10453
    %v10576 = vadd.f32 %v10348, %v10455
    %v10577 = vadd.f32 %v10349, %v10559
    %v10578 = vadd.f32 %v10350, %v10561
    %v10579 = vpack.c.bf16 %v5601, %v5598
    %v10580 = vpack.c.bf16 %v5602, %v5599
    %v10581 = vpack.c.bf16 %v5603, %v5600
    %10582 = vmatprep.subr.bf16.mxu0 %v9234
    %10583 = vmatpush1.bf16.msra.mxu0 %v9233
    %10584 = vmatprep.subr.bf16.mxu0 %v9230
    %10585 = vmatpush1.bf16.msra.mxu0 %v9229
    %10586 = vmatprep.subr.bf16.mxu0 %v9226
    %10587 = vmatpush1.bf16.msra.mxu0 %v9225
    %10588 = vmatprep.subr.bf16.mxu0 %v9222
    %10589 = vmatpush1.bf16.msra.mxu0 %v9221
    %10590 = vmatprep.subr.bf16.mxu0 %v9218
    %10591 = vmatpush1.bf16.msra.mxu0 %v9217
    %10592 = vmatprep.subr.bf16.mxu0 %v9214
    %10593 = vmatpush1.bf16.msra.mxu0 %v9213
    %10594 = vmatprep.subr.bf16.mxu0 %v9210
    %10595 = vmatpush1.bf16.msra.mxu0 %v9209
    %10596 = vmatprep.subr.bf16.mxu0 %v9206
    %10597 = vmatpush1.bf16.msra.mxu0 %v9205
    %10598 = vmatprep.subr.bf16.mxu0 %v9266
    %10599 = vmatpush2.bf16.msra.mxu0 %v9265
    %10600 = vmatprep.subr.bf16.mxu0 %v9262
    %10601 = vmatpush2.bf16.msra.mxu0 %v9261
    %10602 = vmatprep.subr.bf16.mxu0 %v9258
    %10603 = vmatpush2.bf16.msra.mxu0 %v9257
    %10604 = vmatprep.subr.bf16.mxu0 %v9254
    %10605 = vmatpush2.bf16.msra.mxu0 %v9253
    %10606 = vmatprep.subr.bf16.mxu0 %v9250
    %10607 = vmatpush2.bf16.msra.mxu0 %v9249
    %10608 = vmatprep.subr.bf16.mxu0 %v9246
    %10609 = vmatpush2.bf16.msra.mxu0 %v9245
    %10610 = vmatprep.subr.bf16.mxu0 %v9242
    %10611 = vmatpush2.bf16.msra.mxu0 %v9241
    %10612 = vmatprep.subr.bf16.mxu0 %v9238
    %10613 = vmatpush2.bf16.msra.mxu0 %v9237
    %10614 = vmatprep.mubr.bf16.mxu0 %v5712
    %10615 = vmatmul.mubr.bf16.gmra.mxu0 %v5711
    %v10616 = vpop.f32.mrf.mxu0
    %v10617 = vadd.f32 0.0, %v10616
    %v10618 = vpop.f32.mrf.mxu0
    %v10619 = vadd.f32 0.0, %v10618
    %v10620 = vpop.f32.mrf.mxu0
    %v10621 = vadd.f32 0.0, %v10620
    %v10622 = vpop.f32.mrf.mxu0
    %v10623 = vadd.f32 0.0, %v10622
    %10624 = vmatprep.mubr.bf16.mxu0 %v10580
    %10625 = vmatmul.mubr.bf16.gmra.mxu0 %v10579
    %v10626 = vpop.f32.mrf.mxu0
    %v10627 = vadd.f32 0.0, %v10626
    %v10628 = vpop.f32.mrf.mxu0
    %v10629 = vadd.f32 0.0, %v10628
    %v10630 = vpop.f32.mrf.mxu0
    %v10631 = vadd.f32 0.0, %v10630
    %v10632 = vpop.f32.mrf.mxu0
    %v10633 = vadd.f32 0.0, %v10632
    %10634 = vdwg.mxu0
    %10635 = vmatprep.subr.bf16.mxu0 %v9298
    %10636 = vmatpush1.bf16.msra.mxu0 %v9297
    %10637 = vmatprep.subr.bf16.mxu0 %v9294
    %10638 = vmatpush1.bf16.msra.mxu0 %v9293
    %10639 = vmatprep.subr.bf16.mxu0 %v9290
    %10640 = vmatpush1.bf16.msra.mxu0 %v9289
    %10641 = vmatprep.subr.bf16.mxu0 %v9286
    %10642 = vmatpush1.bf16.msra.mxu0 %v9285
    %10643 = vmatprep.subr.bf16.mxu0 %v9282
    %10644 = vmatpush1.bf16.msra.mxu0 %v9281
    %10645 = vmatprep.subr.bf16.mxu0 %v9278
    %10646 = vmatpush1.bf16.msra.mxu0 %v9277
    %10647 = vmatprep.subr.bf16.mxu0 %v9274
    %10648 = vmatpush1.bf16.msra.mxu0 %v9273
    %10649 = vmatprep.subr.bf16.mxu0 %v9270
    %10650 = vmatpush1.bf16.msra.mxu0 %v9269
    %10651 = vmatprep.subr.bf16.mxu0 0
    %10652 = vmatpush2.bf16.msra.mxu0 0
    %10653 = vmatprep.subr.bf16.mxu0 0
    %10654 = vmatpush2.bf16.msra.mxu0 0
    %10655 = vmatprep.subr.bf16.mxu0 0
    %10656 = vmatpush2.bf16.msra.mxu0 0
    %10657 = vmatprep.subr.bf16.mxu0 0
    %10658 = vmatpush2.bf16.msra.mxu0 0
    %10659 = vmatprep.subr.bf16.mxu0 0
    %10660 = vmatpush2.bf16.msra.mxu0 0
    %10661 = vmatprep.subr.bf16.mxu0 0
    %10662 = vmatpush2.bf16.msra.mxu0 0
    %10663 = vmatprep.subr.bf16.mxu0 0
    %10664 = vmatpush2.bf16.msra.mxu0 0
    %10665 = vmatprep.subr.bf16.mxu0 0
    %10666 = vmatpush2.bf16.msra.mxu0 0
    %10667 = vmatprep.mubr.bf16.mxu0 0
    %10668 = vmatmul.mubr.bf16.gmra.mxu0 %v5713
    %v10669 = vpop.f32.mrf.mxu0
    %v10670 = vadd.f32 %v10617, %v10669
    %v10671 = vpop.f32.mrf.mxu0
    %v10672 = vadd.f32 %v10619, %v10671
    %v10673 = vpop.f32.mrf.mxu0
    %v10674 = vadd.f32 %v10621, %v10673
    %v10675 = vpop.f32.mrf.mxu0
    %v10676 = vadd.f32 %v10623, %v10675
    %10677 = vmatprep.mubr.bf16.mxu0 0
    %10678 = vmatmul.mubr.bf16.gmra.mxu0 %v10581
    %v10679 = vpop.f32.mrf.mxu0
    %v10680 = vadd.f32 %v10627, %v10679
    %v10681 = vpop.f32.mrf.mxu0
    %v10682 = vadd.f32 %v10629, %v10681
    %v10683 = vpop.f32.mrf.mxu0
    %v10684 = vadd.f32 %v10631, %v10683
    %v10685 = vpop.f32.mrf.mxu0
    %v10686 = vadd.f32 %v10633, %v10685
    %10687 = vdwg.mxu0
    %10688 = vmatprep.subr.bf16.mxu0 %v9236
    %10689 = vmatpush1.bf16.msra.mxu0 %v9235
    %10690 = vmatprep.subr.bf16.mxu0 %v9232
    %10691 = vmatpush1.bf16.msra.mxu0 %v9231
    %10692 = vmatprep.subr.bf16.mxu0 %v9228
    %10693 = vmatpush1.bf16.msra.mxu0 %v9227
    %10694 = vmatprep.subr.bf16.mxu0 %v9224
    %10695 = vmatpush1.bf16.msra.mxu0 %v9223
    %10696 = vmatprep.subr.bf16.mxu0 %v9220
    %10697 = vmatpush1.bf16.msra.mxu0 %v9219
    %10698 = vmatprep.subr.bf16.mxu0 %v9216
    %10699 = vmatpush1.bf16.msra.mxu0 %v9215
    %10700 = vmatprep.subr.bf16.mxu0 %v9212
    %10701 = vmatpush1.bf16.msra.mxu0 %v9211
    %10702 = vmatprep.subr.bf16.mxu0 %v9208
    %10703 = vmatpush1.bf16.msra.mxu0 %v9207
    %10704 = vmatprep.subr.bf16.mxu0 %v9268
    %10705 = vmatpush2.bf16.msra.mxu0 %v9267
    %10706 = vmatprep.subr.bf16.mxu0 %v9264
    %10707 = vmatpush2.bf16.msra.mxu0 %v9263
    %10708 = vmatprep.subr.bf16.mxu0 %v9260
    %10709 = vmatpush2.bf16.msra.mxu0 %v9259
    %10710 = vmatprep.subr.bf16.mxu0 %v9256
    %10711 = vmatpush2.bf16.msra.mxu0 %v9255
    %10712 = vmatprep.subr.bf16.mxu0 %v9252
    %10713 = vmatpush2.bf16.msra.mxu0 %v9251
    %10714 = vmatprep.subr.bf16.mxu0 %v9248
    %10715 = vmatpush2.bf16.msra.mxu0 %v9247
    %10716 = vmatprep.subr.bf16.mxu0 %v9244
    %10717 = vmatpush2.bf16.msra.mxu0 %v9243
    %10718 = vmatprep.subr.bf16.mxu0 %v9240
    %10719 = vmatpush2.bf16.msra.mxu0 %v9239
    %10720 = vmatprep.mubr.bf16.mxu0 %v5712
    %10721 = vmatmul.mubr.bf16.gmra.mxu0 %v5711
    %v10722 = vpop.f32.mrf.mxu0
    %v10723 = vadd.f32 0.0, %v10722
    %v10724 = vpop.f32.mrf.mxu0
    %v10725 = vadd.f32 0.0, %v10724
    %v10726 = vpop.f32.mrf.mxu0
    %v10727 = vadd.f32 0.0, %v10726
    %v10728 = vpop.f32.mrf.mxu0
    %v10729 = vadd.f32 0.0, %v10728
    %10730 = vmatprep.mubr.bf16.mxu0 %v10580
    %10731 = vmatmul.mubr.bf16.gmra.mxu0 %v10579
    %v10732 = vpop.f32.mrf.mxu0
    %v10733 = vadd.f32 0.0, %v10732
    %v10734 = vpop.f32.mrf.mxu0
    %v10735 = vadd.f32 0.0, %v10734
    %v10736 = vpop.f32.mrf.mxu0
    %v10737 = vadd.f32 0.0, %v10736
    %v10738 = vpop.f32.mrf.mxu0
    %v10739 = vadd.f32 0.0, %v10738
    %10740 = vdwg.mxu0
    %10741 = vmatprep.subr.bf16.mxu0 %v9300
    %10742 = vmatpush1.bf16.msra.mxu0 %v9299
    %10743 = vmatprep.subr.bf16.mxu0 %v9296
    %10744 = vmatpush1.bf16.msra.mxu0 %v9295
    %10745 = vmatprep.subr.bf16.mxu0 %v9292
    %10746 = vmatpush1.bf16.msra.mxu0 %v9291
    %10747 = vmatprep.subr.bf16.mxu0 %v9288
    %10748 = vmatpush1.bf16.msra.mxu0 %v9287
    %10749 = vmatprep.subr.bf16.mxu0 %v9284
    %10750 = vmatpush1.bf16.msra.mxu0 %v9283
    %10751 = vmatprep.subr.bf16.mxu0 %v9280
    %10752 = vmatpush1.bf16.msra.mxu0 %v9279
    %10753 = vmatprep.subr.bf16.mxu0 %v9276
    %10754 = vmatpush1.bf16.msra.mxu0 %v9275
    %10755 = vmatprep.subr.bf16.mxu0 %v9272
    %10756 = vmatpush1.bf16.msra.mxu0 %v9271
    %10757 = vmatprep.subr.bf16.mxu0 0
    %10758 = vmatpush2.bf16.msra.mxu0 0
    %10759 = vmatprep.subr.bf16.mxu0 0
    %10760 = vmatpush2.bf16.msra.mxu0 0
    %10761 = vmatprep.subr.bf16.mxu0 0
    %10762 = vmatpush2.bf16.msra.mxu0 0
    %10763 = vmatprep.subr.bf16.mxu0 0
    %10764 = vmatpush2.bf16.msra.mxu0 0
    %10765 = vmatprep.subr.bf16.mxu0 0
    %10766 = vmatpush2.bf16.msra.mxu0 0
    %10767 = vmatprep.subr.bf16.mxu0 0
    %10768 = vmatpush2.bf16.msra.mxu0 0
    %10769 = vmatprep.subr.bf16.mxu0 0
    %10770 = vmatpush2.bf16.msra.mxu0 0
    %10771 = vmatprep.subr.bf16.mxu0 0
    %10772 = vmatpush2.bf16.msra.mxu0 0
    %10773 = vmatprep.mubr.bf16.mxu0 0
    %10774 = vmatmul.mubr.bf16.gmra.mxu0 %v5713
    %v10775 = vpop.f32.mrf.mxu0
    %v10776 = vadd.f32 %v10723, %v10775
    %v10777 = vpop.f32.mrf.mxu0
    %v10778 = vadd.f32 %v10725, %v10777
    %v10779 = vpop.f32.mrf.mxu0
    %v10780 = vadd.f32 %v10727, %v10779
    %v10781 = vpop.f32.mrf.mxu0
    %v10782 = vadd.f32 %v10729, %v10781
    %10783 = vmatprep.mubr.bf16.mxu0 0
    %10784 = vmatmul.mubr.bf16.gmra.mxu0 %v10581
    %v10785 = vpop.f32.mrf.mxu0
    %v10786 = vadd.f32 %v10733, %v10785
    %v10787 = vpop.f32.mrf.mxu0
    %v10788 = vadd.f32 %v10735, %v10787
    %v10789 = vpop.f32.mrf.mxu0
    %v10790 = vadd.f32 %v10737, %v10789
    %v10791 = vpop.f32.mrf.mxu0
    %v10792 = vadd.f32 %v10739, %v10791
    %10793 = vdwg.mxu0
    %v10794 = vadd.f32 %v10563, %v10670
    %v10795 = vadd.f32 %v10564, %v10672
    %v10796 = vadd.f32 %v10565, %v10776
    %v10797 = vadd.f32 %v10566, %v10778
    %v10798 = vadd.f32 %v10567, %v10674
    %v10799 = vadd.f32 %v10568, %v10676
    %v10800 = vadd.f32 %v10569, %v10780
    %v10801 = vadd.f32 %v10570, %v10782
    %v10802 = vadd.f32 %v10571, %v10680
    %v10803 = vadd.f32 %v10572, %v10682
    %v10804 = vadd.f32 %v10573, %v10786
    %v10805 = vadd.f32 %v10574, %v10788
    %v10806 = vadd.f32 %v10575, %v10684
    %v10807 = vadd.f32 %v10576, %v10686
    %v10808 = vadd.f32 %v10577, %v10790
    %v10809 = vadd.f32 %v10578, %v10792
    %v10810 = vmul.f32 %v10794, %v9629
    %v10811 = vmul.f32 %v10795, %v9633
    %v10812 = vmul.f32 %v10796, %v9637
    %v10813 = vmul.f32 %v10797, %v9641
    %v10814 = vmul.f32 %v10798, %v9629
    %v10815 = vmul.f32 %v10799, %v9633
    %v10816 = vmul.f32 %v10800, %v9637
    %v10817 = vmul.f32 %v10801, %v9641
    %v10818 = vmul.f32 %v10802, %v9629
    %v10819 = vmul.f32 %v10803, %v9633
    %v10820 = vmul.f32 %v10804, %v9637
    %v10821 = vmul.f32 %v10805, %v9641
    %v10822 = vmul.f32 %v10806, %v9629
    %v10823 = vmul.f32 %v10807, %v9633
    %v10824 = vmul.f32 %v10808, %v9637
    %v10825 = vmul.f32 %v10809, %v9641
    %v10826 = vadd.f32 %v10810, %v9666
    %v10827 = vadd.f32 %v10811, %v9670
    %v10828 = vadd.f32 %v10812, %v9674
    %v10829 = vadd.f32 %v10813, %v9678
    %v10830 = vadd.f32 %v10814, %v9666
    %v10831 = vadd.f32 %v10815, %v9670
    %v10832 = vadd.f32 %v10816, %v9674
    %v10833 = vadd.f32 %v10817, %v9678
    %v10834 = vadd.f32 %v10818, %v9666
    %v10835 = vadd.f32 %v10819, %v9670
    %v10836 = vadd.f32 %v10820, %v9674
    %v10837 = vadd.f32 %v10821, %v9678
    %v10838 = vadd.f32 %v10822, %v9666
    %v10839 = vadd.f32 %v10823, %v9670
    %v10840 = vadd.f32 %v10824, %v9674
    %v10841 = vadd.f32 %v10825, %v9678
    %v10842 = vmax.f32 %v9683, %v10826
    %v10843 = vmax.f32 %v9684, %v10827
    %v10844 = vmax.f32 %v9685, %v10828
    %v10845 = vmax.f32 %v9686, %v10829
    %v10846 = vmax.f32 %v9687, %v10830
    %v10847 = vmax.f32 %v9688, %v10831
    %v10848 = vmax.f32 %v9689, %v10832
    %v10849 = vmax.f32 %v9690, %v10833
    %v10850 = vmax.f32 %v9691, %v10834
    %v10851 = vmax.f32 %v9692, %v10835
    %v10852 = vmax.f32 %v9693, %v10836
    %v10853 = vmax.f32 %v9694, %v10837
    %v10854 = vmax.f32 %v9695, %v10838
    %v10855 = vmax.f32 %v9696, %v10839
    %v10856 = vmax.f32 %v9697, %v10840
    %v10857 = vmax.f32 %v9698, %v10841
    %v10858 = vmax.f32 %v10842, %v10844
    %v10859 = vmax.f32 %v10843, %v10845
    %v10860 = vmax.f32 %v10846, %v10848
    %v10861 = vmax.f32 %v10847, %v10849
    %v10862 = vmax.f32 %v10850, %v10852
    %v10863 = vmax.f32 %v10851, %v10853
    %v10864 = vmax.f32 %v10854, %v10856
    %v10865 = vmax.f32 %v10855, %v10857
    %v10866 = vmax.f32 %v10858, 0.0
    %v10867 = vmax.f32 %v10859, 0.0
    %v10868 = vmax.f32 %v10860, 0.0
    %v10869 = vmax.f32 %v10861, 0.0
    %v10870 = vmax.f32 %v10862, 0.0
    %v10871 = vmax.f32 %v10863, 0.0
    %v10872 = vmax.f32 %v10864, 0.0
    %v10873 = vmax.f32 %v10865, 0.0
    %v10874 = vpack.c.bf16 %v10866, %v10866
    %v10875 = vpack.c.bf16 %v10867, %v10867
    %v10876 = vld [vmem:[#allocation12] sm:$0xf]
    %v10877 = vld [vmem:[#allocation12 + $0x4] sm:$0xf]
    %v10878 = vld [vmem:[#allocation12 + $0x8] sm:$0xf]
    %v10879 = vld [vmem:[#allocation12 + $0xc] sm:$0xf]
    %v10880 = vld [vmem:[#allocation12 + $0x10] sm:$0xf]
    %v10881 = vld [vmem:[#allocation12 + $0x14] sm:$0xf]
    %v10882 = vld [vmem:[#allocation12 + $0x18] sm:$0xf]
    %v10883 = vld [vmem:[#allocation12 + $0x1c] sm:$0xf]
    %v10884 = vld [vmem:[#allocation12 + $0x20] sm:$0xf]
    %v10885 = vld [vmem:[#allocation12 + $0x24] sm:$0xf]
    %v10886 = vld [vmem:[#allocation12 + $0x28] sm:$0xf]
    %v10887 = vld [vmem:[#allocation12 + $0x2c] sm:$0xf]
    %v10888 = vld [vmem:[#allocation12 + $0x30] sm:$0xf]
    %v10889 = vld [vmem:[#allocation12 + $0x34] sm:$0xf]
    %v10890 = vld [vmem:[#allocation12 + $0x38] sm:$0xf]
    %v10891 = vld [vmem:[#allocation12 + $0x3c] sm:$0xf]
    %v10892 = vld [vmem:[#allocation12 + $0x40] sm:$0xf]
    %v10893 = vld [vmem:[#allocation12 + $0x44] sm:$0xf]
    %v10894 = vld [vmem:[#allocation12 + $0x48] sm:$0xf]
    %v10895 = vld [vmem:[#allocation12 + $0x4c] sm:$0xf]
    %v10896 = vld [vmem:[#allocation12 + $0x50] sm:$0xf]
    %v10897 = vld [vmem:[#allocation12 + $0x54] sm:$0xf]
    %v10898 = vld [vmem:[#allocation12 + $0x58] sm:$0xf]
    %v10899 = vld [vmem:[#allocation12 + $0x5c] sm:$0xf]
    %v10900 = vld [vmem:[#allocation12 + $0x60] sm:$0xf]
    %v10901 = vld [vmem:[#allocation12 + $0x64] sm:$0xf]
    %v10902 = vld [vmem:[#allocation12 + $0x68] sm:$0xf]
    %v10903 = vld [vmem:[#allocation12 + $0x6c] sm:$0xf]
    %v10904 = vld [vmem:[#allocation12 + $0x70] sm:$0xf]
    %v10905 = vld [vmem:[#allocation12 + $0x74] sm:$0xf]
    %v10906 = vld [vmem:[#allocation12 + $0x78] sm:$0xf]
    %v10907 = vld [vmem:[#allocation12 + $0x7c] sm:$0xf]
    %v10908 = vpack.c.bf16 %v10868, %v10868
    %v10909 = vpack.c.bf16 %v10869, %v10869
    %s10910 = scalar_lea.vmem [#allocation12], 128
    %v10911 = vld [vmem:[%s10910] sm:$0xf]
    %v10912 = vld [vmem:[%s10910 + $0x4] sm:$0xf]
    %v10913 = vld [vmem:[%s10910 + $0x8] sm:$0xf]
    %v10914 = vld [vmem:[%s10910 + $0xc] sm:$0xf]
    %v10915 = vld [vmem:[%s10910 + $0x10] sm:$0xf]
    %v10916 = vld [vmem:[%s10910 + $0x14] sm:$0xf]
    %v10917 = vld [vmem:[%s10910 + $0x18] sm:$0xf]
    %v10918 = vld [vmem:[%s10910 + $0x1c] sm:$0xf]
    %v10919 = vld [vmem:[%s10910 + $0x20] sm:$0xf]
    %v10920 = vld [vmem:[%s10910 + $0x24] sm:$0xf]
    %v10921 = vld [vmem:[%s10910 + $0x28] sm:$0xf]
    %v10922 = vld [vmem:[%s10910 + $0x2c] sm:$0xf]
    %v10923 = vld [vmem:[%s10910 + $0x30] sm:$0xf]
    %v10924 = vld [vmem:[%s10910 + $0x34] sm:$0xf]
    %v10925 = vld [vmem:[%s10910 + $0x38] sm:$0xf]
    %v10926 = vld [vmem:[%s10910 + $0x3c] sm:$0xf]
    %v10927 = vld [vmem:[%s10910 + $0x40] sm:$0xf]
    %v10928 = vld [vmem:[%s10910 + $0x44] sm:$0xf]
    %v10929 = vld [vmem:[%s10910 + $0x48] sm:$0xf]
    %v10930 = vld [vmem:[%s10910 + $0x4c] sm:$0xf]
    %v10931 = vld [vmem:[%s10910 + $0x50] sm:$0xf]
    %v10932 = vld [vmem:[%s10910 + $0x54] sm:$0xf]
    %v10933 = vld [vmem:[%s10910 + $0x58] sm:$0xf]
    %v10934 = vld [vmem:[%s10910 + $0x5c] sm:$0xf]
    %v10935 = vld [vmem:[%s10910 + $0x60] sm:$0xf]
    %v10936 = vld [vmem:[%s10910 + $0x64] sm:$0xf]
    %v10937 = vld [vmem:[%s10910 + $0x68] sm:$0xf]
    %v10938 = vld [vmem:[%s10910 + $0x6c] sm:$0xf]
    %v10939 = vld [vmem:[%s10910 + $0x70] sm:$0xf]
    %v10940 = vld [vmem:[%s10910 + $0x74] sm:$0xf]
    %v10941 = vld [vmem:[%s10910 + $0x78] sm:$0xf]
    %v10942 = vld [vmem:[%s10910 + $0x7c] sm:$0xf]
    %v10975 = vunpack.c.l.b16 %v10911
    %v10976 = vunpack.c.l.b16 %v10912
    %v10977 = vunpack.c.l.b16 %v10913
    %v10978 = vunpack.c.l.b16 %v10914
    %v10979 = vunpack.c.l.b16 %v10915
    %v10980 = vunpack.c.l.b16 %v10916
    %v10981 = vunpack.c.l.b16 %v10917
    %v10982 = vunpack.c.l.b16 %v10918
    %v10983 = vunpack.c.l.b16 %v10919
    %v10984 = vunpack.c.l.b16 %v10920
    %v10985 = vunpack.c.l.b16 %v10921
    %v10986 = vunpack.c.l.b16 %v10922
    %v10987 = vunpack.c.l.b16 %v10923
    %v10988 = vunpack.c.l.b16 %v10924
    %v10989 = vunpack.c.l.b16 %v10925
    %v10990 = vunpack.c.l.b16 %v10926
    %v10991 = vunpack.c.l.b16 %v10927
    %v10992 = vunpack.c.l.b16 %v10928
    %v10993 = vunpack.c.l.b16 %v10929
    %v10994 = vunpack.c.l.b16 %v10930
    %v10995 = vunpack.c.l.b16 %v10931
    %v10996 = vunpack.c.l.b16 %v10932
    %v10997 = vunpack.c.l.b16 %v10933
    %v10998 = vunpack.c.l.b16 %v10934
    %v10999 = vunpack.c.l.b16 %v10935
    %v11000 = vunpack.c.l.b16 %v10936
    %v11001 = vunpack.c.l.b16 %v10937
    %v11002 = vunpack.c.l.b16 %v10938
    %v11003 = vunpack.c.l.b16 %v10939
    %v11004 = vunpack.c.l.b16 %v10940
    %v11005 = vunpack.c.l.b16 %v10941
    %v11006 = vunpack.c.l.b16 %v10942
    %v11007 = vpack.c.b16 %v10976, %v10975
    %v11008 = vpack.c.b16 %v10978, %v10977
    %v11009 = vpack.c.b16 %v10980, %v10979
    %v11010 = vpack.c.b16 %v10982, %v10981
    %v11011 = vpack.c.b16 %v10984, %v10983
    %v11012 = vpack.c.b16 %v10986, %v10985
    %v11013 = vpack.c.b16 %v10988, %v10987
    %v11014 = vpack.c.b16 %v10990, %v10989
    %v11015 = vpack.c.b16 %v10992, %v10991
    %v11016 = vpack.c.b16 %v10994, %v10993
    %v11017 = vpack.c.b16 %v10996, %v10995
    %v11018 = vpack.c.b16 %v10998, %v10997
    %v11019 = vpack.c.b16 %v11000, %v10999
    %v11020 = vpack.c.b16 %v11002, %v11001
    %v11021 = vpack.c.b16 %v11004, %v11003
    %v11022 = vpack.c.b16 %v11006, %v11005
    %11039 = vmatprep.subr.bf16.mxu0 0
    %11040 = vmatpush1.bf16.msra.mxu0 %v11014
    %11041 = vmatprep.subr.bf16.mxu0 0
    %11042 = vmatpush1.bf16.msra.mxu0 %v11013
    %11043 = vmatprep.subr.bf16.mxu0 0
    %11044 = vmatpush1.bf16.msra.mxu0 %v11012
    %11045 = vmatprep.subr.bf16.mxu0 0
    %11046 = vmatpush1.bf16.msra.mxu0 %v11011
    %11047 = vmatprep.subr.bf16.mxu0 0
    %11048 = vmatpush1.bf16.msra.mxu0 %v11010
    %11049 = vmatprep.subr.bf16.mxu0 0
    %11050 = vmatpush1.bf16.msra.mxu0 %v11009
    %11051 = vmatprep.subr.bf16.mxu0 0
    %11052 = vmatpush1.bf16.msra.mxu0 %v11008
    %11053 = vmatprep.subr.bf16.mxu0 0
    %11054 = vmatpush1.bf16.msra.mxu0 %v11007
    %11055 = vmatprep.subr.bf16.mxu0 0
    %11056 = vmatpush2.bf16.msra.mxu0 %v11022
    %11057 = vmatprep.subr.bf16.mxu0 0
    %11058 = vmatpush2.bf16.msra.mxu0 %v11021
    %11059 = vmatprep.subr.bf16.mxu0 0
    %11060 = vmatpush2.bf16.msra.mxu0 %v11020
    %11061 = vmatprep.subr.bf16.mxu0 0
    %11062 = vmatpush2.bf16.msra.mxu0 %v11019
    %11063 = vmatprep.subr.bf16.mxu0 0
    %11064 = vmatpush2.bf16.msra.mxu0 %v11018
    %11065 = vmatprep.subr.bf16.mxu0 0
    %11066 = vmatpush2.bf16.msra.mxu0 %v11017
    %11067 = vmatprep.subr.bf16.mxu0 0
    %11068 = vmatpush2.bf16.msra.mxu0 %v11016
    %11069 = vmatprep.subr.bf16.mxu0 0
    %11070 = vmatpush2.bf16.msra.mxu0 %v11015
    %11071 = vmatprep.mubr.bf16.mxu0 %v10909
    %11072 = vmatmul.mubr.bf16.gmra.mxu0 %v10908
    %v11073 = vpop.f32.mrf.mxu0
    %v11074 = vadd.f32 0.0, %v11073
    %v11075 = vpop.f32.mrf.mxu0
    %v11076 = vpop.f32.mrf.mxu0
    %v11077 = vpop.f32.mrf.mxu0
    %11078 = vdwg.mxu0
    %v11111 = vunpack.c.l.b16 %v10876
    %v11112 = vunpack.c.l.b16 %v10877
    %v11113 = vunpack.c.l.b16 %v10878
    %v11114 = vunpack.c.l.b16 %v10879
    %v11115 = vunpack.c.l.b16 %v10880
    %v11116 = vunpack.c.l.b16 %v10881
    %v11117 = vunpack.c.l.b16 %v10882
    %v11118 = vunpack.c.l.b16 %v10883
    %v11119 = vunpack.c.l.b16 %v10884
    %v11120 = vunpack.c.l.b16 %v10885
    %v11121 = vunpack.c.l.b16 %v10886
    %v11122 = vunpack.c.l.b16 %v10887
    %v11123 = vunpack.c.l.b16 %v10888
    %v11124 = vunpack.c.l.b16 %v10889
    %v11125 = vunpack.c.l.b16 %v10890
    %v11126 = vunpack.c.l.b16 %v10891
    %v11127 = vunpack.c.l.b16 %v10892
    %v11128 = vunpack.c.l.b16 %v10893
    %v11129 = vunpack.c.l.b16 %v10894
    %v11130 = vunpack.c.l.b16 %v10895
    %v11131 = vunpack.c.l.b16 %v10896
    %v11132 = vunpack.c.l.b16 %v10897
    %v11133 = vunpack.c.l.b16 %v10898
    %v11134 = vunpack.c.l.b16 %v10899
    %v11135 = vunpack.c.l.b16 %v10900
    %v11136 = vunpack.c.l.b16 %v10901
    %v11137 = vunpack.c.l.b16 %v10902
    %v11138 = vunpack.c.l.b16 %v10903
    %v11139 = vunpack.c.l.b16 %v10904
    %v11140 = vunpack.c.l.b16 %v10905
    %v11141 = vunpack.c.l.b16 %v10906
    %v11142 = vunpack.c.l.b16 %v10907
    %v11143 = vpack.c.b16 %v11112, %v11111
    %v11144 = vpack.c.b16 %v11114, %v11113
    %v11145 = vpack.c.b16 %v11116, %v11115
    %v11146 = vpack.c.b16 %v11118, %v11117
    %v11147 = vpack.c.b16 %v11120, %v11119
    %v11148 = vpack.c.b16 %v11122, %v11121
    %v11149 = vpack.c.b16 %v11124, %v11123
    %v11150 = vpack.c.b16 %v11126, %v11125
    %v11151 = vpack.c.b16 %v11128, %v11127
    %v11152 = vpack.c.b16 %v11130, %v11129
    %v11153 = vpack.c.b16 %v11132, %v11131
    %v11154 = vpack.c.b16 %v11134, %v11133
    %v11155 = vpack.c.b16 %v11136, %v11135
    %v11156 = vpack.c.b16 %v11138, %v11137
    %v11157 = vpack.c.b16 %v11140, %v11139
    %v11158 = vpack.c.b16 %v11142, %v11141
    %11175 = vmatprep.subr.bf16.mxu0 0
    %11176 = vmatpush1.bf16.msra.mxu0 %v11150
    %11177 = vmatprep.subr.bf16.mxu0 0
    %11178 = vmatpush1.bf16.msra.mxu0 %v11149
    %11179 = vmatprep.subr.bf16.mxu0 0
    %11180 = vmatpush1.bf16.msra.mxu0 %v11148
    %11181 = vmatprep.subr.bf16.mxu0 0
    %11182 = vmatpush1.bf16.msra.mxu0 %v11147
    %11183 = vmatprep.subr.bf16.mxu0 0
    %11184 = vmatpush1.bf16.msra.mxu0 %v11146
    %11185 = vmatprep.subr.bf16.mxu0 0
    %11186 = vmatpush1.bf16.msra.mxu0 %v11145
    %11187 = vmatprep.subr.bf16.mxu0 0
    %11188 = vmatpush1.bf16.msra.mxu0 %v11144
    %11189 = vmatprep.subr.bf16.mxu0 0
    %11190 = vmatpush1.bf16.msra.mxu0 %v11143
    %11191 = vmatprep.subr.bf16.mxu0 0
    %11192 = vmatpush2.bf16.msra.mxu0 %v11158
    %11193 = vmatprep.subr.bf16.mxu0 0
    %11194 = vmatpush2.bf16.msra.mxu0 %v11157
    %11195 = vmatprep.subr.bf16.mxu0 0
    %11196 = vmatpush2.bf16.msra.mxu0 %v11156
    %11197 = vmatprep.subr.bf16.mxu0 0
    %11198 = vmatpush2.bf16.msra.mxu0 %v11155
    %11199 = vmatprep.subr.bf16.mxu0 0
    %11200 = vmatpush2.bf16.msra.mxu0 %v11154
    %11201 = vmatprep.subr.bf16.mxu0 0
    %11202 = vmatpush2.bf16.msra.mxu0 %v11153
    %11203 = vmatprep.subr.bf16.mxu0 0
    %11204 = vmatpush2.bf16.msra.mxu0 %v11152
    %11205 = vmatprep.subr.bf16.mxu0 0
    %11206 = vmatpush2.bf16.msra.mxu0 %v11151
    %11207 = vmatprep.mubr.bf16.mxu0 %v10875
    %11208 = vmatmul.mubr.bf16.gmra.mxu0 %v10874
    %v11209 = vpop.f32.mrf.mxu0
    %v11210 = vadd.f32 %v11074, %v11209
    %v11211 = vpop.f32.mrf.mxu0
    %v11212 = vpop.f32.mrf.mxu0
    %v11213 = vpop.f32.mrf.mxu0
    %11214 = vdwg.mxu0
    %v11215 = vpack.c.bf16 %v10870, %v10870
    %v11216 = vpack.c.bf16 %v10871, %v10871
    %s11217 = scalar_lea.vmem [#allocation12], 256
    %v11218 = vld [vmem:[%s11217] sm:$0xf]
    %v11219 = vld [vmem:[%s11217 + $0x4] sm:$0xf]
    %v11220 = vld [vmem:[%s11217 + $0x8] sm:$0xf]
    %v11221 = vld [vmem:[%s11217 + $0xc] sm:$0xf]
    %v11222 = vld [vmem:[%s11217 + $0x10] sm:$0xf]
    %v11223 = vld [vmem:[%s11217 + $0x14] sm:$0xf]
    %v11224 = vld [vmem:[%s11217 + $0x18] sm:$0xf]
    %v11225 = vld [vmem:[%s11217 + $0x1c] sm:$0xf]
    %v11226 = vld [vmem:[%s11217 + $0x20] sm:$0xf]
    %v11227 = vld [vmem:[%s11217 + $0x24] sm:$0xf]
    %v11228 = vld [vmem:[%s11217 + $0x28] sm:$0xf]
    %v11229 = vld [vmem:[%s11217 + $0x2c] sm:$0xf]
    %v11230 = vld [vmem:[%s11217 + $0x30] sm:$0xf]
    %v11231 = vld [vmem:[%s11217 + $0x34] sm:$0xf]
    %v11232 = vld [vmem:[%s11217 + $0x38] sm:$0xf]
    %v11233 = vld [vmem:[%s11217 + $0x3c] sm:$0xf]
    %v11234 = vld [vmem:[%s11217 + $0x40] sm:$0xf]
    %v11235 = vld [vmem:[%s11217 + $0x44] sm:$0xf]
    %v11236 = vld [vmem:[%s11217 + $0x48] sm:$0xf]
    %v11237 = vld [vmem:[%s11217 + $0x4c] sm:$0xf]
    %v11238 = vld [vmem:[%s11217 + $0x50] sm:$0xf]
    %v11239 = vld [vmem:[%s11217 + $0x54] sm:$0xf]
    %v11240 = vld [vmem:[%s11217 + $0x58] sm:$0xf]
    %v11241 = vld [vmem:[%s11217 + $0x5c] sm:$0xf]
    %v11242 = vld [vmem:[%s11217 + $0x60] sm:$0xf]
    %v11243 = vld [vmem:[%s11217 + $0x64] sm:$0xf]
    %v11244 = vld [vmem:[%s11217 + $0x68] sm:$0xf]
    %v11245 = vld [vmem:[%s11217 + $0x6c] sm:$0xf]
    %v11246 = vld [vmem:[%s11217 + $0x70] sm:$0xf]
    %v11247 = vld [vmem:[%s11217 + $0x74] sm:$0xf]
    %v11248 = vld [vmem:[%s11217 + $0x78] sm:$0xf]
    %v11249 = vld [vmem:[%s11217 + $0x7c] sm:$0xf]
    %v11282 = vunpack.c.l.b16 %v11218
    %v11283 = vunpack.c.l.b16 %v11219
    %v11284 = vunpack.c.l.b16 %v11220
    %v11285 = vunpack.c.l.b16 %v11221
    %v11286 = vunpack.c.l.b16 %v11222
    %v11287 = vunpack.c.l.b16 %v11223
    %v11288 = vunpack.c.l.b16 %v11224
    %v11289 = vunpack.c.l.b16 %v11225
    %v11290 = vunpack.c.l.b16 %v11226
    %v11291 = vunpack.c.l.b16 %v11227
    %v11292 = vunpack.c.l.b16 %v11228
    %v11293 = vunpack.c.l.b16 %v11229
    %v11294 = vunpack.c.l.b16 %v11230
    %v11295 = vunpack.c.l.b16 %v11231
    %v11296 = vunpack.c.l.b16 %v11232
    %v11297 = vunpack.c.l.b16 %v11233
    %v11298 = vunpack.c.l.b16 %v11234
    %v11299 = vunpack.c.l.b16 %v11235
    %v11300 = vunpack.c.l.b16 %v11236
    %v11301 = vunpack.c.l.b16 %v11237
    %v11302 = vunpack.c.l.b16 %v11238
    %v11303 = vunpack.c.l.b16 %v11239
    %v11304 = vunpack.c.l.b16 %v11240
    %v11305 = vunpack.c.l.b16 %v11241
    %v11306 = vunpack.c.l.b16 %v11242
    %v11307 = vunpack.c.l.b16 %v11243
    %v11308 = vunpack.c.l.b16 %v11244
    %v11309 = vunpack.c.l.b16 %v11245
    %v11310 = vunpack.c.l.b16 %v11246
    %v11311 = vunpack.c.l.b16 %v11247
    %v11312 = vunpack.c.l.b16 %v11248
    %v11313 = vunpack.c.l.b16 %v11249
    %v11314 = vpack.c.b16 %v11283, %v11282
    %v11315 = vpack.c.b16 %v11285, %v11284
    %v11316 = vpack.c.b16 %v11287, %v11286
    %v11317 = vpack.c.b16 %v11289, %v11288
    %v11318 = vpack.c.b16 %v11291, %v11290
    %v11319 = vpack.c.b16 %v11293, %v11292
    %v11320 = vpack.c.b16 %v11295, %v11294
    %v11321 = vpack.c.b16 %v11297, %v11296
    %v11322 = vpack.c.b16 %v11299, %v11298
    %v11323 = vpack.c.b16 %v11301, %v11300
    %v11324 = vpack.c.b16 %v11303, %v11302
    %v11325 = vpack.c.b16 %v11305, %v11304
    %v11326 = vpack.c.b16 %v11307, %v11306
    %v11327 = vpack.c.b16 %v11309, %v11308
    %v11328 = vpack.c.b16 %v11311, %v11310
    %v11329 = vpack.c.b16 %v11313, %v11312
    %11346 = vmatprep.subr.bf16.mxu0 0
    %11347 = vmatpush1.bf16.msra.mxu0 %v11321
    %11348 = vmatprep.subr.bf16.mxu0 0
    %11349 = vmatpush1.bf16.msra.mxu0 %v11320
    %11350 = vmatprep.subr.bf16.mxu0 0
    %11351 = vmatpush1.bf16.msra.mxu0 %v11319
    %11352 = vmatprep.subr.bf16.mxu0 0
    %11353 = vmatpush1.bf16.msra.mxu0 %v11318
    %11354 = vmatprep.subr.bf16.mxu0 0
    %11355 = vmatpush1.bf16.msra.mxu0 %v11317
    %11356 = vmatprep.subr.bf16.mxu0 0
    %11357 = vmatpush1.bf16.msra.mxu0 %v11316
    %11358 = vmatprep.subr.bf16.mxu0 0
    %11359 = vmatpush1.bf16.msra.mxu0 %v11315
    %11360 = vmatprep.subr.bf16.mxu0 0
    %11361 = vmatpush1.bf16.msra.mxu0 %v11314
    %11362 = vmatprep.subr.bf16.mxu0 0
    %11363 = vmatpush2.bf16.msra.mxu0 %v11329
    %11364 = vmatprep.subr.bf16.mxu0 0
    %11365 = vmatpush2.bf16.msra.mxu0 %v11328
    %11366 = vmatprep.subr.bf16.mxu0 0
    %11367 = vmatpush2.bf16.msra.mxu0 %v11327
    %11368 = vmatprep.subr.bf16.mxu0 0
    %11369 = vmatpush2.bf16.msra.mxu0 %v11326
    %11370 = vmatprep.subr.bf16.mxu0 0
    %11371 = vmatpush2.bf16.msra.mxu0 %v11325
    %11372 = vmatprep.subr.bf16.mxu0 0
    %11373 = vmatpush2.bf16.msra.mxu0 %v11324
    %11374 = vmatprep.subr.bf16.mxu0 0
    %11375 = vmatpush2.bf16.msra.mxu0 %v11323
    %11376 = vmatprep.subr.bf16.mxu0 0
    %11377 = vmatpush2.bf16.msra.mxu0 %v11322
    %11378 = vmatprep.mubr.bf16.mxu0 %v11216
    %11379 = vmatmul.mubr.bf16.gmra.mxu0 %v11215
    %v11380 = vpop.f32.mrf.mxu0
    %v11381 = vadd.f32 0.0, %v11380
    %v11382 = vpop.f32.mrf.mxu0
    %v11383 = vpop.f32.mrf.mxu0
    %v11384 = vpop.f32.mrf.mxu0
    %11385 = vdwg.mxu0
    %v11386 = vadd.f32 %v11210, %v11381
    %v11387 = vpack.c.bf16 %v10872, %v10872
    %v11388 = vpack.c.bf16 %v10873, %v10873
    %s11389 = scalar_lea.vmem [#allocation12], 384
    %v11390 = vld [vmem:[%s11389] sm:$0xf]
    %v11391 = vld [vmem:[%s11389 + $0x4] sm:$0xf]
    %v11392 = vld [vmem:[%s11389 + $0x8] sm:$0xf]
    %v11393 = vld [vmem:[%s11389 + $0xc] sm:$0xf]
    %v11394 = vld [vmem:[%s11389 + $0x10] sm:$0xf]
    %v11395 = vld [vmem:[%s11389 + $0x14] sm:$0xf]
    %v11396 = vld [vmem:[%s11389 + $0x18] sm:$0xf]
    %v11397 = vld [vmem:[%s11389 + $0x1c] sm:$0xf]
    %v11398 = vld [vmem:[%s11389 + $0x20] sm:$0xf]
    %v11399 = vld [vmem:[%s11389 + $0x24] sm:$0xf]
    %v11400 = vld [vmem:[%s11389 + $0x28] sm:$0xf]
    %v11401 = vld [vmem:[%s11389 + $0x2c] sm:$0xf]
    %v11402 = vld [vmem:[%s11389 + $0x30] sm:$0xf]
    %v11403 = vld [vmem:[%s11389 + $0x34] sm:$0xf]
    %v11404 = vld [vmem:[%s11389 + $0x38] sm:$0xf]
    %v11405 = vld [vmem:[%s11389 + $0x3c] sm:$0xf]
    %v11406 = vld [vmem:[%s11389 + $0x40] sm:$0xf]
    %v11407 = vld [vmem:[%s11389 + $0x44] sm:$0xf]
    %v11408 = vld [vmem:[%s11389 + $0x48] sm:$0xf]
    %v11409 = vld [vmem:[%s11389 + $0x4c] sm:$0xf]
    %v11410 = vld [vmem:[%s11389 + $0x50] sm:$0xf]
    %v11411 = vld [vmem:[%s11389 + $0x54] sm:$0xf]
    %v11412 = vld [vmem:[%s11389 + $0x58] sm:$0xf]
    %v11413 = vld [vmem:[%s11389 + $0x5c] sm:$0xf]
    %v11414 = vld [vmem:[%s11389 + $0x60] sm:$0xf]
    %v11415 = vld [vmem:[%s11389 + $0x64] sm:$0xf]
    %v11416 = vld [vmem:[%s11389 + $0x68] sm:$0xf]
    %v11417 = vld [vmem:[%s11389 + $0x6c] sm:$0xf]
    %v11418 = vld [vmem:[%s11389 + $0x70] sm:$0xf]
    %v11419 = vld [vmem:[%s11389 + $0x74] sm:$0xf]
    %v11420 = vld [vmem:[%s11389 + $0x78] sm:$0xf]
    %v11421 = vld [vmem:[%s11389 + $0x7c] sm:$0xf]
    %v11454 = vunpack.c.l.b16 %v11390
    %v11455 = vunpack.c.l.b16 %v11391
    %v11456 = vunpack.c.l.b16 %v11392
    %v11457 = vunpack.c.l.b16 %v11393
    %v11458 = vunpack.c.l.b16 %v11394
    %v11459 = vunpack.c.l.b16 %v11395
    %v11460 = vunpack.c.l.b16 %v11396
    %v11461 = vunpack.c.l.b16 %v11397
    %v11462 = vunpack.c.l.b16 %v11398
    %v11463 = vunpack.c.l.b16 %v11399
    %v11464 = vunpack.c.l.b16 %v11400
    %v11465 = vunpack.c.l.b16 %v11401
    %v11466 = vunpack.c.l.b16 %v11402
    %v11467 = vunpack.c.l.b16 %v11403
    %v11468 = vunpack.c.l.b16 %v11404
    %v11469 = vunpack.c.l.b16 %v11405
    %v11470 = vunpack.c.l.b16 %v11406
    %v11471 = vunpack.c.l.b16 %v11407
    %v11472 = vunpack.c.l.b16 %v11408
    %v11473 = vunpack.c.l.b16 %v11409
    %v11474 = vunpack.c.l.b16 %v11410
    %v11475 = vunpack.c.l.b16 %v11411
    %v11476 = vunpack.c.l.b16 %v11412
    %v11477 = vunpack.c.l.b16 %v11413
    %v11478 = vunpack.c.l.b16 %v11414
    %v11479 = vunpack.c.l.b16 %v11415
    %v11480 = vunpack.c.l.b16 %v11416
    %v11481 = vunpack.c.l.b16 %v11417
    %v11482 = vunpack.c.l.b16 %v11418
    %v11483 = vunpack.c.l.b16 %v11419
    %v11484 = vunpack.c.l.b16 %v11420
    %v11485 = vunpack.c.l.b16 %v11421
    %v11486 = vpack.c.b16 %v11455, %v11454
    %v11487 = vpack.c.b16 %v11457, %v11456
    %v11488 = vpack.c.b16 %v11459, %v11458
    %v11489 = vpack.c.b16 %v11461, %v11460
    %v11490 = vpack.c.b16 %v11463, %v11462
    %v11491 = vpack.c.b16 %v11465, %v11464
    %v11492 = vpack.c.b16 %v11467, %v11466
    %v11493 = vpack.c.b16 %v11469, %v11468
    %v11494 = vpack.c.b16 %v11471, %v11470
    %v11495 = vpack.c.b16 %v11473, %v11472
    %v11496 = vpack.c.b16 %v11475, %v11474
    %v11497 = vpack.c.b16 %v11477, %v11476
    %v11498 = vpack.c.b16 %v11479, %v11478
    %v11499 = vpack.c.b16 %v11481, %v11480
    %v11500 = vpack.c.b16 %v11483, %v11482
    %v11501 = vpack.c.b16 %v11485, %v11484
    %11518 = vmatprep.subr.bf16.mxu0 0
    %11519 = vmatpush1.bf16.msra.mxu0 %v11493
    %11520 = vmatprep.subr.bf16.mxu0 0
    %11521 = vmatpush1.bf16.msra.mxu0 %v11492
    %11522 = vmatprep.subr.bf16.mxu0 0
    %11523 = vmatpush1.bf16.msra.mxu0 %v11491
    %11524 = vmatprep.subr.bf16.mxu0 0
    %11525 = vmatpush1.bf16.msra.mxu0 %v11490
    %11526 = vmatprep.subr.bf16.mxu0 0
    %11527 = vmatpush1.bf16.msra.mxu0 %v11489
    %11528 = vmatprep.subr.bf16.mxu0 0
    %11529 = vmatpush1.bf16.msra.mxu0 %v11488
    %11530 = vmatprep.subr.bf16.mxu0 0
    %11531 = vmatpush1.bf16.msra.mxu0 %v11487
    %11532 = vmatprep.subr.bf16.mxu0 0
    %11533 = vmatpush1.bf16.msra.mxu0 %v11486
    %11534 = vmatprep.subr.bf16.mxu0 0
    %11535 = vmatpush2.bf16.msra.mxu0 %v11501
    %11536 = vmatprep.subr.bf16.mxu0 0
    %11537 = vmatpush2.bf16.msra.mxu0 %v11500
    %11538 = vmatprep.subr.bf16.mxu0 0
    %11539 = vmatpush2.bf16.msra.mxu0 %v11499
    %11540 = vmatprep.subr.bf16.mxu0 0
    %11541 = vmatpush2.bf16.msra.mxu0 %v11498
    %11542 = vmatprep.subr.bf16.mxu0 0
    %11543 = vmatpush2.bf16.msra.mxu0 %v11497
    %11544 = vmatprep.subr.bf16.mxu0 0
    %11545 = vmatpush2.bf16.msra.mxu0 %v11496
    %11546 = vmatprep.subr.bf16.mxu0 0
    %11547 = vmatpush2.bf16.msra.mxu0 %v11495
    %11548 = vmatprep.subr.bf16.mxu0 0
    %11549 = vmatpush2.bf16.msra.mxu0 %v11494
    %11550 = vmatprep.mubr.bf16.mxu0 %v11388
    %11551 = vmatmul.mubr.bf16.gmra.mxu0 %v11387
    %v11552 = vpop.f32.mrf.mxu0
    %v11553 = vadd.f32 0.0, %v11552
    %v11554 = vpop.f32.mrf.mxu0
    %v11555 = vpop.f32.mrf.mxu0
    %v11556 = vpop.f32.mrf.mxu0
    %11557 = vdwg.mxu0
    %v11558 = vadd.f32 %v11386, %v11553
    %v11559 = vld [vmem:[#allocation13] sm:$0x1]
    %v11561 = vlaneseq
    %v11562 = vshrl.u32 %v11561, 7
    %v11563 = vsub.s32 0, %v11562
    %v11564 = vrot.slane %v11559, %v11563
    %v11566 = vmul.f32 %v11558, %v11564
    %v11567 = vld [vmem:[#allocation15] sm:$0x1]
    %v11569 = vlaneseq
    %v11570 = vshrl.u32 %v11569, 7
    %v11571 = vsub.s32 0, %v11570
    %v11572 = vrot.slane %v11567, %v11571
    %v11574 = vadd.f32 %v11566, %v11572
    %v11575 = vmax.f32 %v11574, 0.0
    %v11576 = vpack.c.bf16 %v11575, %v11575
    %v11577 = vld [vmem:[#allocation16] sm:$0xf]
    %v11578 = vld [vmem:[#allocation16 + $0x4] sm:$0xf]
    %v11579 = vld [vmem:[#allocation16 + $0x8] sm:$0xf]
    %v11580 = vld [vmem:[#allocation16 + $0xc] sm:$0xf]
    %v11581 = vld [vmem:[#allocation16 + $0x10] sm:$0xf]
    %v11582 = vld [vmem:[#allocation16 + $0x14] sm:$0xf]
    %v11583 = vld [vmem:[#allocation16 + $0x18] sm:$0xf]
    %v11584 = vld [vmem:[#allocation16 + $0x1c] sm:$0xf]
    %v11585 = vld [vmem:[#allocation16 + $0x20] sm:$0xf]
    %v11586 = vld [vmem:[#allocation16 + $0x24] sm:$0xf]
    %v11587 = vld [vmem:[#allocation16 + $0x28] sm:$0xf]
    %v11588 = vld [vmem:[#allocation16 + $0x2c] sm:$0xf]
    %v11589 = vld [vmem:[#allocation16 + $0x30] sm:$0xf]
    %v11590 = vld [vmem:[#allocation16 + $0x34] sm:$0xf]
    %v11591 = vld [vmem:[#allocation16 + $0x38] sm:$0xf]
    %v11592 = vld [vmem:[#allocation16 + $0x3c] sm:$0xf]
    %v11609 = vunpack.c.l.b16 %v11577
    %v11610 = vunpack.c.l.b16 %v11578
    %v11611 = vunpack.c.l.b16 %v11579
    %v11612 = vunpack.c.l.b16 %v11580
    %v11613 = vunpack.c.l.b16 %v11581
    %v11614 = vunpack.c.l.b16 %v11582
    %v11615 = vunpack.c.l.b16 %v11583
    %v11616 = vunpack.c.l.b16 %v11584
    %v11617 = vunpack.c.l.b16 %v11585
    %v11618 = vunpack.c.l.b16 %v11586
    %v11619 = vunpack.c.l.b16 %v11587
    %v11620 = vunpack.c.l.b16 %v11588
    %v11621 = vunpack.c.l.b16 %v11589
    %v11622 = vunpack.c.l.b16 %v11590
    %v11623 = vunpack.c.l.b16 %v11591
    %v11624 = vunpack.c.l.b16 %v11592
    %v11625 = vpack.c.b16 %v11610, %v11609
    %v11626 = vpack.c.b16 %v11612, %v11611
    %v11627 = vpack.c.b16 %v11614, %v11613
    %v11628 = vpack.c.b16 %v11616, %v11615
    %v11629 = vpack.c.b16 %v11618, %v11617
    %v11630 = vpack.c.b16 %v11620, %v11619
    %v11631 = vpack.c.b16 %v11622, %v11621
    %v11632 = vpack.c.b16 %v11624, %v11623
    %11641 = vmatprep.subr.bf16.mxu0 0
    %11642 = vmatpush1.bf16.msra.mxu0 %v11632
    %11643 = vmatprep.subr.bf16.mxu0 0
    %11644 = vmatpush1.bf16.msra.mxu0 %v11631
    %11645 = vmatprep.subr.bf16.mxu0 0
    %11646 = vmatpush1.bf16.msra.mxu0 %v11630
    %11647 = vmatprep.subr.bf16.mxu0 0
    %11648 = vmatpush1.bf16.msra.mxu0 %v11629
    %11649 = vmatprep.subr.bf16.mxu0 0
    %11650 = vmatpush1.bf16.msra.mxu0 %v11628
    %11651 = vmatprep.subr.bf16.mxu0 0
    %11652 = vmatpush1.bf16.msra.mxu0 %v11627
    %11653 = vmatprep.subr.bf16.mxu0 0
    %11654 = vmatpush1.bf16.msra.mxu0 %v11626
    %11655 = vmatprep.subr.bf16.mxu0 0
    %11656 = vmatpush1.bf16.msra.mxu0 %v11625
    %11657 = vmatprep.subr.bf16.mxu0 0
    %11658 = vmatpush2.bf16.msra.mxu0 0
    %11659 = vmatprep.subr.bf16.mxu0 0
    %11660 = vmatpush2.bf16.msra.mxu0 0
    %11661 = vmatprep.subr.bf16.mxu0 0
    %11662 = vmatpush2.bf16.msra.mxu0 0
    %11663 = vmatprep.subr.bf16.mxu0 0
    %11664 = vmatpush2.bf16.msra.mxu0 0
    %11665 = vmatprep.subr.bf16.mxu0 0
    %11666 = vmatpush2.bf16.msra.mxu0 0
    %11667 = vmatprep.subr.bf16.mxu0 0
    %11668 = vmatpush2.bf16.msra.mxu0 0
    %11669 = vmatprep.subr.bf16.mxu0 0
    %11670 = vmatpush2.bf16.msra.mxu0 0
    %11671 = vmatprep.subr.bf16.mxu0 0
    %11672 = vmatpush2.bf16.msra.mxu0 0
    %11673 = vmatprep.mubr.bf16.mxu0 0
    %11674 = vmatmul.mubr.bf16.gmra.mxu0 %v11576
    %v11675 = vpop.f32.mrf.mxu0
    %v11676 = vadd.f32 0.0, %v11675
    %v11677 = vpop.f32.mrf.mxu0
    %v11678 = vpop.f32.mrf.mxu0
    %v11679 = vpop.f32.mrf.mxu0
    %11680 = vdwg.mxu0
    %v11681 = vld [vmem:[#allocation18] sm:$0x1]
    %v11683 = vlaneseq
    %v11684 = vshrl.u32 %v11683, 7
    %v11685 = vsub.s32 0, %v11684
    %v11686 = vrot.slane %v11681, %v11685
    %v11688 = vmul.f32 %v11676, %v11686
    %v11689 = vld [vmem:[#allocation19] sm:$0x1]
    %v11691 = vlaneseq
    %v11692 = vshrl.u32 %v11691, 7
    %v11693 = vsub.s32 0, %v11692
    %v11694 = vrot.slane %v11689, %v11693
    %v11696 = vadd.f32 %v11688, %v11694
    %v11697 = vmax.f32 %v11696, 0.0
    %v11698 = vpack.c.bf16 %v11697, %v11697
    %v11699 = vld [vmem:[#allocation21] sm:$0xf]
    %v11700 = vld [vmem:[#allocation21 + $0x4] sm:$0xf]
    %v11701 = vld [vmem:[#allocation21 + $0x8] sm:$0xf]
    %v11702 = vld [vmem:[#allocation21 + $0xc] sm:$0xf]
    %v11703 = vld [vmem:[#allocation21 + $0x10] sm:$0xf]
    %v11704 = vld [vmem:[#allocation21 + $0x14] sm:$0xf]
    %v11705 = vld [vmem:[#allocation21 + $0x18] sm:$0xf]
    %v11706 = vld [vmem:[#allocation21 + $0x1c] sm:$0xf]
    %v11707 = vld [vmem:[#allocation21 + $0x20] sm:$0xf]
    %v11708 = vld [vmem:[#allocation21 + $0x24] sm:$0xf]
    %v11709 = vld [vmem:[#allocation21 + $0x28] sm:$0xf]
    %v11710 = vld [vmem:[#allocation21 + $0x2c] sm:$0xf]
    %v11711 = vld [vmem:[#allocation21 + $0x30] sm:$0xf]
    %v11712 = vld [vmem:[#allocation21 + $0x34] sm:$0xf]
    %v11713 = vld [vmem:[#allocation21 + $0x38] sm:$0xf]
    %v11714 = vld [vmem:[#allocation21 + $0x3c] sm:$0xf]
    %v11715 = vld [vmem:[#allocation22] sm:$0x1]
    %v11717 = vlaneseq
    %v11718 = vshrl.u32 %v11717, 7
    %v11719 = vsub.s32 0, %v11718
    %v11720 = vrot.slane %v11715, %v11719
    %v11738 = vunpack.c.l.b16 %v11699
    %v11739 = vunpack.c.l.b16 %v11700
    %v11740 = vunpack.c.l.b16 %v11701
    %v11741 = vunpack.c.l.b16 %v11702
    %v11742 = vunpack.c.l.b16 %v11703
    %v11743 = vunpack.c.l.b16 %v11704
    %v11744 = vunpack.c.l.b16 %v11705
    %v11745 = vunpack.c.l.b16 %v11706
    %v11746 = vunpack.c.l.b16 %v11707
    %v11747 = vunpack.c.l.b16 %v11708
    %v11748 = vunpack.c.l.b16 %v11709
    %v11749 = vunpack.c.l.b16 %v11710
    %v11750 = vunpack.c.l.b16 %v11711
    %v11751 = vunpack.c.l.b16 %v11712
    %v11752 = vunpack.c.l.b16 %v11713
    %v11753 = vunpack.c.l.b16 %v11714
    %v11754 = vpack.c.b16 %v11739, %v11738
    %v11755 = vpack.c.b16 %v11741, %v11740
    %v11756 = vpack.c.b16 %v11743, %v11742
    %v11757 = vpack.c.b16 %v11745, %v11744
    %v11758 = vpack.c.b16 %v11747, %v11746
    %v11759 = vpack.c.b16 %v11749, %v11748
    %v11760 = vpack.c.b16 %v11751, %v11750
    %v11761 = vpack.c.b16 %v11753, %v11752
    %11770 = vmatprep.subr.bf16.mxu0 0
    %11771 = vmatpush1.bf16.msra.mxu0 %v11761
    %11772 = vmatprep.subr.bf16.mxu0 0
    %11773 = vmatpush1.bf16.msra.mxu0 %v11760
    %11774 = vmatprep.subr.bf16.mxu0 0
    %11775 = vmatpush1.bf16.msra.mxu0 %v11759
    %11776 = vmatprep.subr.bf16.mxu0 0
    %11777 = vmatpush1.bf16.msra.mxu0 %v11758
    %11778 = vmatprep.subr.bf16.mxu0 0
    %11779 = vmatpush1.bf16.msra.mxu0 %v11757
    %11780 = vmatprep.subr.bf16.mxu0 0
    %11781 = vmatpush1.bf16.msra.mxu0 %v11756
    %11782 = vmatprep.subr.bf16.mxu0 0
    %11783 = vmatpush1.bf16.msra.mxu0 %v11755
    %11784 = vmatprep.subr.bf16.mxu0 0
    %11785 = vmatpush1.bf16.msra.mxu0 %v11754
    %11786 = vmatprep.subr.bf16.mxu0 0
    %11787 = vmatpush2.bf16.msra.mxu0 0
    %11788 = vmatprep.subr.bf16.mxu0 0
    %11789 = vmatpush2.bf16.msra.mxu0 0
    %11790 = vmatprep.subr.bf16.mxu0 0
    %11791 = vmatpush2.bf16.msra.mxu0 0
    %11792 = vmatprep.subr.bf16.mxu0 0
    %11793 = vmatpush2.bf16.msra.mxu0 0
    %11794 = vmatprep.subr.bf16.mxu0 0
    %11795 = vmatpush2.bf16.msra.mxu0 0
    %11796 = vmatprep.subr.bf16.mxu0 0
    %11797 = vmatpush2.bf16.msra.mxu0 0
    %11798 = vmatprep.subr.bf16.mxu0 0
    %11799 = vmatpush2.bf16.msra.mxu0 0
    %11800 = vmatprep.subr.bf16.mxu0 0
    %11801 = vmatpush2.bf16.msra.mxu0 0
    %11802 = vmatprep.mubr.bf16.mxu0 0
    %11803 = vmatmul.mubr.bf16.gmra.mxu0 %v11698
    %v11804 = vpop.f32.mrf.mxu0
    %v11805 = vadd.f32 %v11720, %v11804
    %v11806 = vpop.f32.mrf.mxu0
    %v11807 = vpop.f32.mrf.mxu0
    %v11808 = vpop.f32.mrf.mxu0
    %11809 = vdwg.mxu0
    %11810 = vst [vmem:[%s15] sm:$0xff] %v11805
    // Predicated region
    $region118: #{mnist_forward.1} parent=1 // pred_check
      _
    $region119: #{mnist_forward.1} parent=1 // pred_check_branch
      %11812 = sbr.rel (0) target = $region121
    $region120: #{mnist_forward.1} parent=1 // pred_region
      _
    $region121: #{mnist_forward.1} parent=1 // pred_fallthru
      _
    // Predicated region
    $region122: #{mnist_forward.1} parent=1 // pred_check
      _
    $region123: #{mnist_forward.1} parent=1 // pred_check_branch
      %11814 = sbr.rel (0) target = $region125
    $region124: #{mnist_forward.1} parent=1 // pred_region
      _
    $region125: #{mnist_forward.1} parent=1 // pred_fallthru
      _
    %11815 = vsyncpa [#allocation3], 1
    %11816 = vsyncpa [#allocation5], 1
    %11817 = vsyncpa [#allocation8], 1
    %11818 = vsyncpa [#allocation11], 1
    %11819 = vsyncpa [#allocation14], 1
    %11820 = vsyncpa [#allocation17], 1
    %11821 = vsyncpa [#allocation20], 1
    %11822 = vsyncpa [#allocation23], 1

</llo_original>
